<compile_context>
chip_gen: v5e
topology: v5e:2x2
jax: 0.10.0
libtpu: 0.0.40
codegen_flags: <defaults>
</compile_context>

<pallas_src>
import functools

import jax
import jax.numpy as jnp
from jax.experimental import pallas as pl
from jax.experimental.pallas import tpu as pltpu


_COMPUTE_DTYPE = jnp.bfloat16  # MXU-native matmul operand dtype (f32 accumulation)


def _default_vmem_limit():
    try:
        kind = jax.devices()[0].device_kind.lower()
    except Exception:  # pragma: no cover - conservative fallback
        return 64 * 1024 * 1024
    if "v7" in kind:
        return 48 * 1024 * 1024      # v7x: 64 MiB physical VMEM per TC
    return 100 * 1024 * 1024         # v5e / v6e: 128 MiB physical VMEM


_VMEM_LIMIT = _default_vmem_limit()


def _cparams(sem):
    return pltpu.CompilerParams(dimension_semantics=tuple(sem),
                                vmem_limit_bytes=_VMEM_LIMIT)


def _row_blocking(m, pref=512):
    """Pick a sublane-aligned row tile. Returns (tile, padded_rows)."""
    if m <= pref:
        return m, m
    base = pref - (pref % 8) if pref % 8 else pref
    for t in range(base, 7, -8):
        if m % t == 0:
            return t, m
    padded = ((m + base - 1) // base) * base   # pad rows; caller slices the result back
    return base, padded


def _pad_rows(x, padded_m):
    m = x.shape[0]
    if padded_m == m:
        return x
    return jnp.pad(x, ((0, padded_m - m), (0, 0)))


# ---------------------------------------------------------------------------
# In-kernel math helpers
# ---------------------------------------------------------------------------

def _ln_f32(x, g_ref, b_ref):
    """LayerNorm (eps=1e-5) of an f32 tile, scaled/shifted by (1, D) refs."""
    mean = jnp.mean(x, axis=-1, keepdims=True)
    var = jnp.mean(jnp.square(x - mean), axis=-1, keepdims=True)
    y = (x - mean) * jax.lax.rsqrt(var + 1e-5)
    return y * g_ref[...].astype(jnp.float32) + b_ref[...].astype(jnp.float32)


def _erf_approx(x):
    # TODO(synk): exact torch.erf GELU replaced with Abramowitz & Stegun 7.1.26
    # (max abs err ~1.5e-7) because lax.erf lowering inside a Pallas TPU kernel is not
    # guaranteed. Uses only exp/abs/where (EUP + VPU).
    ax = jnp.abs(x)
    t = 1.0 / (1.0 + 0.3275911 * ax)
    poly = ((((1.061405429 * t - 1.453152027) * t + 1.421413741) * t
             - 0.284496736) * t + 0.254829592) * t
    y = 1.0 - poly * jnp.exp(-ax * ax)
    return jnp.where(x >= 0, y, -y)


def _gelu_erf(x):
    return 0.5 * x * (1.0 + _erf_approx(x * 0.7071067811865476))


# ---------------------------------------------------------------------------
# Pallas kernels
# ---------------------------------------------------------------------------

def _ln_kernel(x_ref, g_ref, b_ref, o_ref):
    x = x_ref[...].astype(jnp.float32)
    o_ref[...] = _ln_f32(x, g_ref, b_ref).astype(o_ref.dtype)


def layernorm(x, gamma, beta, *, block_rows=512):
    """x: (M, D); LayerNorm over last dim, tiled & pipelined over rows."""
    M, D = x.shape
    tm, Mp = _row_blocking(M, block_rows)
    xp = _pad_rows(x, Mp)
    out = pl.pallas_call(
        _ln_kernel,
        out_shape=jax.ShapeDtypeStruct((Mp, D), x.dtype),
        grid=(Mp // tm,),
        in_specs=[pl.BlockSpec((tm, D), lambda i: (i, 0)),
                  pl.BlockSpec((1, D), lambda i: (0, 0)),
                  pl.BlockSpec((1, D), lambda i: (0, 0))],
        out_specs=pl.BlockSpec((tm, D), lambda i: (i, 0)),
        compiler_params=_cparams(("parallel",)),
    )(xp, gamma.reshape(1, D), beta.reshape(1, D))
    return out if Mp == M else out[:M]


def _embed_kernel(x_ref, g1_ref, b1_ref, w_ref, bias_ref, g2_ref, b2_ref, o_ref):
    """Tubelet projection: LN -> Linear (bf16 MXU, f32 acc) -> +bias -> LN, one row tile."""
    x = x_ref[...].astype(jnp.float32)
    y = _ln_f32(x, g1_ref, b1_ref)
    z = jnp.dot(y.astype(w_ref.dtype), w_ref[...], preferred_element_type=jnp.float32)
    z = z + bias_ref[...].astype(jnp.float32)
    o_ref[...] = _ln_f32(z, g2_ref, b2_ref).astype(o_ref.dtype)


def embed_project(x, p, *, block_rows=512):
    """Fused LN -> Linear -> LN for the tubelet embedding. x: (M, patch_dim) -> (M, dim)."""
    M, K = x.shape
    N = p["w"].shape[1]
    tm, Mp = _row_blocking(M, block_rows)
    xp = _pad_rows(x, Mp)
    out = pl.pallas_call(
        _embed_kernel,
        out_shape=jax.ShapeDtypeStruct((Mp, N), x.dtype),
        grid=(Mp // tm,),
        in_specs=[pl.BlockSpec((tm, K), lambda i: (i, 0)),
                  pl.BlockSpec((1, K), lambda i: (0, 0)),
                  pl.BlockSpec((1, K), lambda i: (0, 0)),
                  pl.BlockSpec((K, N), lambda i: (0, 0)),
                  pl.BlockSpec((1, N), lambda i: (0, 0)),
                  pl.BlockSpec((1, N), lambda i: (0, 0)),
                  pl.BlockSpec((1, N), lambda i: (0, 0))],
        out_specs=pl.BlockSpec((tm, N), lambda i: (i, 0)),
        compiler_params=_cparams(("parallel",)),
    )(xp, p["ln1_g"].reshape(1, K), p["ln1_b"].reshape(1, K), p["w"],
      p["b"].reshape(1, N), p["ln2_g"].reshape(1, N), p["ln2_b"].reshape(1, N))
    return out if Mp == M else out[:M]


def _ffn_kernel(x_ref, g_ref, b_ref, w1_ref, b1_ref, w2_ref, b2_ref, o_ref,
                y_scr, acc_scr):
    """out = x + W2(GELU(W1(LN(x)) + b1)) + b2, with the mlp dim chunked on grid axis 1."""
    j = pl.program_id(1)

    @pl.when(j == 0)
    def _():
        x = x_ref[...].astype(jnp.float32)
        y_scr[...] = _ln_f32(x, g_ref, b_ref).astype(y_scr.dtype)
        acc_scr[...] = jnp.zeros_like(acc_scr)

    h = jnp.dot(y_scr[...], w1_ref[...], preferred_element_type=jnp.float32)
    h = _gelu_erf(h + b1_ref[...].astype(jnp.float32))
    acc_scr[...] += jnp.dot(h.astype(w2_ref.dtype), w2_ref[...],
                            preferred_element_type=jnp.float32)

    @pl.when(j == pl.num_programs(1) - 1)
    def _():
        out = (x_ref[...].astype(jnp.float32) + acc_scr[...]
               + b2_ref[...].astype(jnp.float32))
        o_ref[...] = out.astype(o_ref.dtype)


def ffn(x, p, *, block_rows=512, h_chunk=1024):
    """Fused pre-LN MLP with residual. x: (M, D) -> (M, D)."""
    M, D = x.shape
    H = p["w1"].shape[1]
    tm, Mp = _row_blocking(M, block_rows)
    xp = _pad_rows(x, Mp)
    if H <= h_chunk or (H % h_chunk) != 0:
        hc = H  # TODO(synk): pick a 128-multiple divisor chunk for awkward mlp_dim values
    else:
        hc = h_chunk
    wdt = p["w1"].dtype
    out = pl.pallas_call(
        _ffn_kernel,
        out_shape=jax.ShapeDtypeStruct((Mp, D), x.dtype),
        grid=(Mp // tm, H // hc),
        in_specs=[pl.BlockSpec((tm, D), lambda i, j: (i, 0)),
                  pl.BlockSpec((1, D), lambda i, j: (0, 0)),
                  pl.BlockSpec((1, D), lambda i, j: (0, 0)),
                  pl.BlockSpec((D, hc), lambda i, j: (0, j)),
                  pl.BlockSpec((1, hc), lambda i, j: (0, j)),
                  pl.BlockSpec((hc, D), lambda i, j: (j, 0)),
                  pl.BlockSpec((1, D), lambda i, j: (0, 0))],
        out_specs=pl.BlockSpec((tm, D), lambda i, j: (i, 0)),
        scratch_shapes=[pltpu.VMEM((tm, D), wdt),
                        pltpu.VMEM((tm, D), jnp.float32)],
        compiler_params=_cparams(("parallel", "arbitrary")),
    )(xp, p["ln_g"].reshape(1, D), p["ln_b"].reshape(1, D),
      p["w1"], p["b1"].reshape(1, H), p["w2"], p["b2"].reshape(1, D))
    return out if Mp == M else out[:M]


def _attn_block_kernel(x_ref, g_ref, b_ref, wqkv_ref, wout_ref, bout_ref, o_ref,
                       attn_scr, *, heads, dim_head, scale, transpose_io):
    """One batch element per grid step: LN -> QKV -> per-head attention -> out proj + residual.

    x block: (1, F, N, D).  Spatial attention (transpose_io=False) treats the F frames as the
    batch of sequences of length N.  Temporal attention (transpose_io=True) relayouts to
    (N, F, D) in VMEM (pltpu.einshape) so the N tokens become the batch of length-F sequences,
    and relayouts the result back so the HBM layout stays (B, F, N, D) — no XLA transposes.
    """
    x = x_ref[0].astype(jnp.float32)                    # (F, N, D)
    if transpose_io:
        x = pltpu.einshape("fnd->nfd", x)               # (N, F, D)
    G, L, D = x.shape
    xr = x.reshape(G * L, D)

    y = _ln_f32(xr, g_ref, b_ref).astype(wqkv_ref.dtype)
    qkv = jnp.dot(y, wqkv_ref[...], preferred_element_type=jnp.float32)   # (G*L, 3*inner)
    inner = heads * dim_head
    qkv = qkv.reshape(G, L, 3 * inner)

    for h in range(heads):                              # static unroll over heads
        off = h * dim_head
        q = qkv[:, :, off:off + dim_head].astype(wqkv_ref.dtype)
        k = qkv[:, :, inner + off:inner + off + dim_head].astype(wqkv_ref.dtype)
        v = qkv[:, :, 2 * inner + off:2 * inner + off + dim_head].astype(wqkv_ref.dtype)
        s = jnp.einsum("gld,gmd->glm", q, k,
                       preferred_element_type=jnp.float32) * scale        # (G, L, L)
        s = s - jnp.max(s, axis=-1, keepdims=True)
        pattn = jnp.exp(s)
        pattn = pattn * pl.reciprocal(jnp.sum(pattn, axis=-1, keepdims=True), approx=True)
        ctx = jnp.einsum("glm,gmd->gld", pattn.astype(v.dtype), v,
                         preferred_element_type=jnp.float32)              # (G, L, dh)
        # per-head store into the scratch lane slice (no concatenate over heads)
        attn_scr[:, :, off:off + dim_head] = ctx.astype(attn_scr.dtype)

    out = jnp.dot(attn_scr[...].reshape(G * L, inner), wout_ref[...],
                  preferred_element_type=jnp.float32)
    out = out + bout_ref[...].astype(jnp.float32) + xr                    # bias + residual
    out = out.reshape(G, L, D)
    if transpose_io:
        out = pltpu.einshape("nfd->fnd", out)
    o_ref[0] = out.astype(o_ref.dtype)


def attention_block(x, p, heads, dim_head, *, transpose_io):
    """Fully fused pre-LN MHSA block with residual. x: (B, F, N, D) -> (B, F, N, D)."""
    B, F_, N, D = x.shape
    inner = heads * dim_head
    G, L = (N, F_) if transpose_io else (F_, N)
    kern = functools.partial(_attn_block_kernel, heads=heads, dim_head=dim_head,
                             scale=dim_head ** -0.5, transpose_io=transpose_io)
    return pl.pallas_call(
        kern,
        out_shape=jax.ShapeDtypeStruct((B, F_, N, D), x.dtype),
        grid=(B,),
        in_specs=[pl.BlockSpec((1, F_, N, D), lambda b: (b, 0, 0, 0)),
                  pl.BlockSpec((1, D), lambda b: (0, 0)),
                  pl.BlockSpec((1, D), lambda b: (0, 0)),
                  pl.BlockSpec((D, 3 * inner), lambda b: (0, 0)),
                  pl.BlockSpec((inner, D), lambda b: (0, 0)),
                  pl.BlockSpec((1, D), lambda b: (0, 0))],
        out_specs=pl.BlockSpec((1, F_, N, D), lambda b: (b, 0, 0, 0)),
        scratch_shapes=[pltpu.VMEM((G, L, inner), p["w_out"].dtype)],
        compiler_params=_cparams(("parallel",)),
    )(x, p["ln_g"].reshape(1, D), p["ln_b"].reshape(1, D),
      p["w_qkv"], p["w_out"], p["b_out"].reshape(1, D))


# ---------------------------------------------------------------------------
# Model glue (plain JAX reshapes around the Pallas kernels)
# ---------------------------------------------------------------------------

def tubelet_embedding(video, p, tubelet_size, patch_size):
    """'b c (f tf) (h ph) (w pw) -> b f (h w) (tf ph pw c)' -> LN -> Linear -> LN (fused)."""
    B, C, Fr, H, W = video.shape
    tf, ph, pw = tubelet_size, patch_size, patch_size
    f, h, w = Fr // tf, H // ph, W // pw
    x = video.reshape(B, C, f, tf, h, ph, w, pw)
    x = x.transpose(0, 2, 4, 6, 3, 5, 7, 1)                 # b f h w tf ph pw c
    patch_dim = tf * ph * pw * C
    flat = x.reshape(B * f * h * w, patch_dim)
    flat = embed_project(flat, p)                           # LN -> Linear -> +b -> LN fused
    dim = p["w"].shape[1]
    return flat.reshape(B, f, h * w, dim)


def video_vit_forward(params, video, *, heads, dim_head, tubelet_size, patch_size):
    x = tubelet_embedding(video, params["embed"], tubelet_size, patch_size)  # (B, f, n, d)
    B, f, n, d = x.shape
    x = x + params["pos_embedding"][:, :f, :n]

    # spatial cls token: repeat '1 1 d -> b f 1 d' and concat along the patch dim
    cls = jnp.broadcast_to(params["spatial_cls_token"].reshape(1, 1, 1, d), (B, f, 1, d))
    x = jnp.concatenate([cls, x], axis=2)                   # (B, f, N, d)
    # dropout(emb_dropout): identity in inference.

    for layer in params["layers"]:
        # Layout stays (B, f, N, d) for the whole loop: the spatial<->temporal relayout is
        # done inside the temporal kernel in VMEM (no per-layer HBM transposes).
        x = attention_block(x, layer["spatial"], heads, dim_head, transpose_io=False)
        x = attention_block(x, layer["temporal"], heads, dim_head, transpose_io=True)
        Bc, fc, Nc, dc = x.shape
        x = ffn(x.reshape(Bc * fc * Nc, dc), layer["ff"]).reshape(Bc, fc, Nc, dc)

    # pool='cls': final LN is per-row, so slice the cls token first and normalize only B rows.
    cls_tok = x[:, 0, 0]                                    # (B, d): frame 0, token 0 (cls)
    return layernorm(cls_tok, params["final_ln_g"], params["final_ln_b"])


# ---------------------------------------------------------------------------
# Deterministic parameter initialization (synthetic; shapes follow __init__)
# ---------------------------------------------------------------------------

def init_params(key, *, channels, tubelet_size, patch_size, dim, heads, dim_head,
                mlp_dim, depth, num_frame_patches, num_image_patches):
    patch_dim = channels * tubelet_size * patch_size * patch_size
    inner = heads * dim_head
    keys = iter(jax.random.split(key, 8 + 8 * depth))

    def nrm(shape, s=0.02):
        return s * jax.random.normal(next(keys), shape, jnp.float32)

    def attn_params():
        return {
            "ln_g": jnp.ones((dim,), jnp.float32),
            "ln_b": jnp.zeros((dim,), jnp.float32),
            "w_qkv": nrm((dim, 3 * inner)),
            "w_out": nrm((inner, dim)),
            "b_out": jnp.zeros((dim,), jnp.float32),
        }

    def ff_params():
        return {
            "ln_g": jnp.ones((dim,), jnp.float32),
            "ln_b": jnp.zeros((dim,), jnp.float32),
            "w1": nrm((dim, mlp_dim)),
            "b1": jnp.zeros((mlp_dim,), jnp.float32),
            "w2": nrm((mlp_dim, dim)),
            "b2": jnp.zeros((dim,), jnp.float32),
        }

    params = {
        "embed": {
            "ln1_g": jnp.ones((patch_dim,), jnp.float32),
            "ln1_b": jnp.zeros((patch_dim,), jnp.float32),
            "w": nrm((patch_dim, dim)),
            "b": jnp.zeros((dim,), jnp.float32),
            "ln2_g": jnp.ones((dim,), jnp.float32),
            "ln2_b": jnp.zeros((dim,), jnp.float32),
        },
        "pos_embedding": jax.random.normal(
            next(keys), (1, num_frame_patches, num_image_patches, dim), jnp.float32),
        "spatial_cls_token": jax.random.normal(next(keys), (1, 1, dim), jnp.float32),
        "layers": [
            {"spatial": attn_params(), "temporal": attn_params(), "ff": ff_params()}
            for _ in range(depth)
        ],
        "final_ln_g": jnp.ones((dim,), jnp.float32),
        "final_ln_b": jnp.zeros((dim,), jnp.float32),
    }
    return params


def cast_matmul_weights(params, dtype=_COMPUTE_DTYPE):
    """Cast only the matmul weights to the MXU compute dtype; LN params/biases stay f32."""
    out = {
        "embed": dict(params["embed"], w=params["embed"]["w"].astype(dtype)),
        "pos_embedding": params["pos_embedding"],
        "spatial_cls_token": params["spatial_cls_token"],
        "final_ln_g": params["final_ln_g"],
        "final_ln_b": params["final_ln_b"],
        "layers": [],
    }
    for layer in params["layers"]:
        out["layers"].append({
            "spatial": dict(layer["spatial"],
                            w_qkv=layer["spatial"]["w_qkv"].astype(dtype),
                            w_out=layer["spatial"]["w_out"].astype(dtype)),
            "temporal": dict(layer["temporal"],
                             w_qkv=layer["temporal"]["w_qkv"].astype(dtype),
                             w_out=layer["temporal"]["w_out"].astype(dtype)),
            "ff": dict(layer["ff"],
                       w1=layer["ff"]["w1"].astype(dtype),
                       w2=layer["ff"]["w2"].astype(dtype)),
        })
    return out


# ---------------------------------------------------------------------------
# Demo
# ---------------------------------------------------------------------------

if __name__ == "__main__":
    # Small, consistent configuration:
    #   image_size=16, image_patch_size=8  -> num_image_patches = 4
    #   frames=8, frame_patch_size=2       -> num_frame_patches = 4
    #   channels=3, dim=32, heads=4, dim_head=8, mlp_dim=64
    #   spatial_depth = temporal_depth = 1, variant='factorized_self_attention', pool='cls'
    B, C, FRAMES, H, W = 2, 3, 8, 16, 16
    PATCH, TUBELET = 8, 2
    DIM, HEADS, DIM_HEAD, MLP_DIM, DEPTH = 32, 4, 8, 64, 1
    NUM_IMAGE_PATCHES = (H // PATCH) * (W // PATCH)
    NUM_FRAME_PATCHES = FRAMES // TUBELET

    video = jax.random.normal(jax.random.PRNGKey(0), (B, C, FRAMES, H, W), jnp.float32)
    params = init_params(
        jax.random.PRNGKey(1),
        channels=C, tubelet_size=TUBELET, patch_size=PATCH, dim=DIM, heads=HEADS,
        dim_head=DIM_HEAD, mlp_dim=MLP_DIM, depth=DEPTH,
        num_frame_patches=NUM_FRAME_PATCHES, num_image_patches=NUM_IMAGE_PATCHES)
    params = cast_matmul_weights(params)   # bf16 matmul weights, f32 everything else

    fwd = jax.jit(functools.partial(
        video_vit_forward, heads=HEADS, dim_head=DIM_HEAD,
        tubelet_size=TUBELET, patch_size=PATCH))

    out = fwd(params, video)
    out = jax.block_until_ready(out)
    assert out.shape == (B, DIM), out.shape
    assert jnp.all(jnp.isfinite(out))
    print("KERNEL_OK")
</pallas_src>

<mosaic_0001>
module attributes {stable_mosaic.version = 11 : i64} {
  func.func @_embed_kernel(%arg0: i32, %arg1: memref<32x384xf32, #tpu.memory_space<vmem>>, %arg2: memref<1x384xf32, #tpu.memory_space<vmem>>, %arg3: memref<1x384xf32, #tpu.memory_space<vmem>>, %arg4: memref<384x32xbf16, #tpu.memory_space<vmem>>, %arg5: memref<1x32xf32, #tpu.memory_space<vmem>>, %arg6: memref<1x32xf32, #tpu.memory_space<vmem>>, %arg7: memref<1x32xf32, #tpu.memory_space<vmem>>, %arg8: memref<32x32xf32, #tpu.memory_space<vmem>>) attributes {dimension_semantics = [#tpu.dimension_semantics<parallel>], iteration_bounds = array<i64: 1>, scalar_prefetch = 0 : i64, scratch_operands = 0 : i64, tpu.core_type = #tpu.core_type<tc>, window_params = [{transform_indices = @transform_0, window_bounds = array<i64: 32, 384>}, {pipeline_mode = #tpu.pipeline_mode<synchronous>, transform_indices = @transform_1, window_bounds = array<i64: 1, 384>}, {pipeline_mode = #tpu.pipeline_mode<synchronous>, transform_indices = @transform_2, window_bounds = array<i64: 1, 384>}, {pipeline_mode = #tpu.pipeline_mode<synchronous>, transform_indices = @transform_3, window_bounds = array<i64: 384, 32>}, {pipeline_mode = #tpu.pipeline_mode<synchronous>, transform_indices = @transform_4, window_bounds = array<i64: 1, 32>}, {pipeline_mode = #tpu.pipeline_mode<synchronous>, transform_indices = @transform_5, window_bounds = array<i64: 1, 32>}, {pipeline_mode = #tpu.pipeline_mode<synchronous>, transform_indices = @transform_6, window_bounds = array<i64: 1, 32>}, {transform_indices = @transform_7, window_bounds = array<i64: 32, 32>}]} {
    %c0 = arith.constant 0 : index
    %c0_0 = arith.constant 0 : index
    %0 = vector.load %arg1[%c0, %c0_0] : memref<32x384xf32, #tpu.memory_space<vmem>>, vector<32x384xf32>
    %cst = arith.constant dense<0.000000e+00> : vector<32xf32>
    %1 = vector.multi_reduction <add>, %0, %cst [1] : vector<32x384xf32> to vector<32xf32>
    %2 = vector.shape_cast %1 : vector<32xf32> to vector<32x1xf32>
    %cst_1 = arith.constant 3.840000e+02 : f32
    %3 = vector.broadcast %cst_1 : f32 to vector<32x1xf32>
    %4 = arith.divf %2, %3 : vector<32x1xf32>
    %5 = vector.broadcast %4 : vector<32x1xf32> to vector<32x384xf32>
    %6 = arith.subf %0, %5 : vector<32x384xf32>
    %7 = arith.mulf %6, %6 : vector<32x384xf32>
    %cst_2 = arith.constant dense<0.000000e+00> : vector<32xf32>
    %8 = vector.multi_reduction <add>, %7, %cst_2 [1] : vector<32x384xf32> to vector<32xf32>
    %9 = vector.shape_cast %8 : vector<32xf32> to vector<32x1xf32>
    %cst_3 = arith.constant 3.840000e+02 : f32
    %10 = vector.broadcast %cst_3 : f32 to vector<32x1xf32>
    %11 = arith.divf %9, %10 : vector<32x1xf32>
    %12 = vector.broadcast %4 : vector<32x1xf32> to vector<32x384xf32>
    %13 = arith.subf %0, %12 : vector<32x384xf32>
    %cst_4 = arith.constant 9.99999974E-6 : f32
    %14 = vector.broadcast %cst_4 : f32 to vector<32x1xf32>
    %15 = arith.addf %11, %14 : vector<32x1xf32>
    %16 = math.rsqrt %15 : vector<32x1xf32>
    %17 = vector.broadcast %16 : vector<32x1xf32> to vector<32x384xf32>
    %18 = arith.mulf %13, %17 : vector<32x384xf32>
    %c0_5 = arith.constant 0 : index
    %c0_6 = arith.constant 0 : index
    %19 = vector.load %arg2[%c0_5, %c0_6] : memref<1x384xf32, #tpu.memory_space<vmem>>, vector<1x384xf32>
    %20 = vector.broadcast %19 : vector<1x384xf32> to vector<32x384xf32>
    %21 = arith.mulf %18, %20 : vector<32x384xf32>
    %c0_7 = arith.constant 0 : index
    %c0_8 = arith.constant 0 : index
    %22 = vector.load %arg3[%c0_7, %c0_8] : memref<1x384xf32, #tpu.memory_space<vmem>>, vector<1x384xf32>
    %23 = vector.broadcast %22 : vector<1x384xf32> to vector<32x384xf32>
    %24 = arith.addf %21, %23 : vector<32x384xf32>
    %25 = arith.truncf %24 : vector<32x384xf32> to vector<32x384xbf16>
    %c0_9 = arith.constant 0 : index
    %c0_10 = arith.constant 0 : index
    %26 = vector.load %arg4[%c0_9, %c0_10] : memref<384x32xbf16, #tpu.memory_space<vmem>>, vector<384x32xbf16>
    %cst_11 = arith.constant dense<0.000000e+00> : vector<32x32xf32>
    %27 = tpu.matmul %25, %26, %cst_11 {dimension_numbers = #tpu.dot_dimension_numbers<[1], [0], [0], [1], [0, 0, 1, 1], [], []>} : vector<32x384xbf16>, vector<384x32xbf16>, vector<32x32xf32> -> vector<32x32xf32>
    %c0_12 = arith.constant 0 : index
    %c0_13 = arith.constant 0 : index
    %28 = vector.load %arg5[%c0_12, %c0_13] : memref<1x32xf32, #tpu.memory_space<vmem>>, vector<1x32xf32>
    %29 = vector.broadcast %28 : vector<1x32xf32> to vector<32x32xf32>
    %30 = arith.addf %27, %29 : vector<32x32xf32>
    %cst_14 = arith.constant dense<0.000000e+00> : vector<32xf32>
    %31 = vector.multi_reduction <add>, %30, %cst_14 [1] : vector<32x32xf32> to vector<32xf32>
    %32 = vector.shape_cast %31 : vector<32xf32> to vector<32x1xf32>
    %cst_15 = arith.constant 3.200000e+01 : f32
    %33 = vector.broadcast %cst_15 : f32 to vector<32x1xf32>
    %34 = arith.divf %32, %33 : vector<32x1xf32>
    %35 = vector.broadcast %34 : vector<32x1xf32> to vector<32x32xf32>
    %36 = arith.subf %30, %35 : vector<32x32xf32>
    %37 = arith.mulf %36, %36 : vector<32x32xf32>
    %cst_16 = arith.constant dense<0.000000e+00> : vector<32xf32>
    %38 = vector.multi_reduction <add>, %37, %cst_16 [1] : vector<32x32xf32> to vector<32xf32>
    %39 = vector.shape_cast %38 : vector<32xf32> to vector<32x1xf32>
    %cst_17 = arith.constant 3.200000e+01 : f32
    %40 = vector.broadcast %cst_17 : f32 to vector<32x1xf32>
    %41 = arith.divf %39, %40 : vector<32x1xf32>
    %42 = vector.broadcast %34 : vector<32x1xf32> to vector<32x32xf32>
    %43 = arith.subf %30, %42 : vector<32x32xf32>
    %cst_18 = arith.constant 9.99999974E-6 : f32
    %44 = vector.broadcast %cst_18 : f32 to vector<32x1xf32>
    %45 = arith.addf %41, %44 : vector<32x1xf32>
    %46 = math.rsqrt %45 : vector<32x1xf32>
    %47 = vector.broadcast %46 : vector<32x1xf32> to vector<32x32xf32>
    %48 = arith.mulf %43, %47 : vector<32x32xf32>
    %c0_19 = arith.constant 0 : index
    %c0_20 = arith.constant 0 : index
    %49 = vector.load %arg6[%c0_19, %c0_20] : memref<1x32xf32, #tpu.memory_space<vmem>>, vector<1x32xf32>
    %50 = vector.broadcast %49 : vector<1x32xf32> to vector<32x32xf32>
    %51 = arith.mulf %48, %50 : vector<32x32xf32>
    %c0_21 = arith.constant 0 : index
    %c0_22 = arith.constant 0 : index
    %52 = vector.load %arg7[%c0_21, %c0_22] : memref<1x32xf32, #tpu.memory_space<vmem>>, vector<1x32xf32>
    %53 = vector.broadcast %52 : vector<1x32xf32> to vector<32x32xf32>
    %54 = arith.addf %51, %53 : vector<32x32xf32>
    %c0_23 = arith.constant 0 : index
    %c0_24 = arith.constant 0 : index
    %55 = vector.load %arg8[%c0_23, %c0_24] : memref<32x32xf32, #tpu.memory_space<vmem>>, vector<32x32xf32>
    tpu.vector_store %arg8[%c0_23, %c0_24], %54 {strides = array<i32>} : memref<32x32xf32, #tpu.memory_space<vmem>>, vector<32x32xf32>,
    return
  }
  func.func @transform_0(%arg0: i32) -> (i32, i32) {
    %c0_i32 = arith.constant 0 : i32
    %c0_i32_0 = arith.constant 0 : i32
    return %arg0, %c0_i32 : i32, i32
  }
  func.func @transform_1(%arg0: i32) -> (i32, i32) {
    %c0_i32 = arith.constant 0 : i32
    %c0_i32_0 = arith.constant 0 : i32
    %c0_i32_1 = arith.constant 0 : i32
    return %c0_i32, %c0_i32_0 : i32, i32
  }
  func.func @transform_2(%arg0: i32) -> (i32, i32) {
    %c0_i32 = arith.constant 0 : i32
    %c0_i32_0 = arith.constant 0 : i32
    %c0_i32_1 = arith.constant 0 : i32
    return %c0_i32, %c0_i32_0 : i32, i32
  }
  func.func @transform_3(%arg0: i32) -> (i32, i32) {
    %c0_i32 = arith.constant 0 : i32
    %c0_i32_0 = arith.constant 0 : i32
    %c0_i32_1 = arith.constant 0 : i32
    return %c0_i32, %c0_i32_0 : i32, i32
  }
  func.func @transform_4(%arg0: i32) -> (i32, i32) {
    %c0_i32 = arith.constant 0 : i32
    %c0_i32_0 = arith.constant 0 : i32
    %c0_i32_1 = arith.constant 0 : i32
    return %c0_i32, %c0_i32_0 : i32, i32
  }
  func.func @transform_5(%arg0: i32) -> (i32, i32) {
    %c0_i32 = arith.constant 0 : i32
    %c0_i32_0 = arith.constant 0 : i32
    %c0_i32_1 = arith.constant 0 : i32
    return %c0_i32, %c0_i32_0 : i32, i32
  }
  func.func @transform_6(%arg0: i32) -> (i32, i32) {
    %c0_i32 = arith.constant 0 : i32
    %c0_i32_0 = arith.constant 0 : i32
    %c0_i32_1 = arith.constant 0 : i32
    return %c0_i32, %c0_i32_0 : i32, i32
  }
  func.func @transform_7(%arg0: i32) -> (i32, i32) {
    %c0_i32 = arith.constant 0 : i32
    %c0_i32_0 = arith.constant 0 : i32
    return %arg0, %c0_i32 : i32, i32
  }
}

module attributes {stable_mosaic.version = 11 : i64} {
  func.func @_attn_block_kernel(%arg0: i32, %arg1: memref<1x4x5x32xf32, #tpu.memory_space<vmem>>, %arg2: memref<1x32xf32, #tpu.memory_space<vmem>>, %arg3: memref<1x32xf32, #tpu.memory_space<vmem>>, %arg4: memref<32x96xbf16, #tpu.memory_space<vmem>>, %arg5: memref<32x32xbf16, #tpu.memory_space<vmem>>, %arg6: memref<1x32xf32, #tpu.memory_space<vmem>>, %arg7: memref<1x4x5x32xf32, #tpu.memory_space<vmem>>, %arg8: memref<4x5x32xbf16, #tpu.memory_space<vmem>>) attributes {dimension_semantics = [#tpu.dimension_semantics<parallel>], iteration_bounds = array<i64: 2>, scalar_prefetch = 0 : i64, scratch_operands = 1 : i64, tpu.core_type = #tpu.core_type<tc>, window_params = [{transform_indices = @transform_0, window_bounds = array<i64: 1, 4, 5, 32>}, {pipeline_mode = #tpu.pipeline_mode<synchronous>, transform_indices = @transform_1, window_bounds = array<i64: 1, 32>}, {pipeline_mode = #tpu.pipeline_mode<synchronous>, transform_indices = @transform_2, window_bounds = array<i64: 1, 32>}, {pipeline_mode = #tpu.pipeline_mode<synchronous>, transform_indices = @transform_3, window_bounds = array<i64: 32, 96>}, {pipeline_mode = #tpu.pipeline_mode<synchronous>, transform_indices = @transform_4, window_bounds = array<i64: 32, 32>}, {pipeline_mode = #tpu.pipeline_mode<synchronous>, transform_indices = @transform_5, window_bounds = array<i64: 1, 32>}, {transform_indices = @transform_6, window_bounds = array<i64: 1, 4, 5, 32>}]} {
    %c0 = arith.constant 0 : index
    %c0_0 = arith.constant 0 : index
    %c0_1 = arith.constant 0 : index
    %c0_2 = arith.constant 0 : index
    %0 = vector.load %arg1[%c0, %c0_0, %c0_1, %c0_2] : memref<1x4x5x32xf32, #tpu.memory_space<vmem>>, vector<1x4x5x32xf32>
    %1 = vector.shape_cast %0 : vector<1x4x5x32xf32> to vector<4x5x32xf32>
    %2 = vector.shape_cast %1 : vector<4x5x32xf32> to vector<20x32xf32>
    %cst = arith.constant dense<0.000000e+00> : vector<20xf32>
    %3 = vector.multi_reduction <add>, %2, %cst [1] : vector<20x32xf32> to vector<20xf32>
    %4 = vector.shape_cast %3 : vector<20xf32> to vector<20x1xf32>
    %cst_3 = arith.constant 3.200000e+01 : f32
    %5 = vector.broadcast %cst_3 : f32 to vector<20x1xf32>
    %6 = arith.divf %4, %5 : vector<20x1xf32>
    %7 = vector.broadcast %6 : vector<20x1xf32> to vector<20x32xf32>
    %8 = arith.subf %2, %7 : vector<20x32xf32>
    %9 = arith.mulf %8, %8 : vector<20x32xf32>
    %cst_4 = arith.constant dense<0.000000e+00> : vector<20xf32>
    %10 = vector.multi_reduction <add>, %9, %cst_4 [1] : vector<20x32xf32> to vector<20xf32>
    %11 = vector.shape_cast %10 : vector<20xf32> to vector<20x1xf32>
    %cst_5 = arith.constant 3.200000e+01 : f32
    %12 = vector.broadcast %cst_5 : f32 to vector<20x1xf32>
    %13 = arith.divf %11, %12 : vector<20x1xf32>
    %14 = vector.broadcast %6 : vector<20x1xf32> to vector<20x32xf32>
    %15 = arith.subf %2, %14 : vector<20x32xf32>
    %cst_6 = arith.constant 9.99999974E-6 : f32
    %16 = vector.broadcast %cst_6 : f32 to vector<20x1xf32>
    %17 = arith.addf %13, %16 : vector<20x1xf32>
    %18 = math.rsqrt %17 : vector<20x1xf32>
    %19 = vector.broadcast %18 : vector<20x1xf32> to vector<20x32xf32>
    %20 = arith.mulf %15, %19 : vector<20x32xf32>
    %c0_7 = arith.constant 0 : index
    %c0_8 = arith.constant 0 : index
    %21 = vector.load %arg2[%c0_7, %c0_8] : memref<1x32xf32, #tpu.memory_space<vmem>>, vector<1x32xf32>
    %22 = vector.broadcast %21 : vector<1x32xf32> to vector<20x32xf32>
    %23 = arith.mulf %20, %22 : vector<20x32xf32>
    %c0_9 = arith.constant 0 : index
    %c0_10 = arith.constant 0 : index
    %24 = vector.load %arg3[%c0_9, %c0_10] : memref<1x32xf32, #tpu.memory_space<vmem>>, vector<1x32xf32>
    %25 = vector.broadcast %24 : vector<1x32xf32> to vector<20x32xf32>
    %26 = arith.addf %23, %25 : vector<20x32xf32>
    %27 = arith.truncf %26 : vector<20x32xf32> to vector<20x32xbf16>
    %c0_11 = arith.constant 0 : index
    %c0_12 = arith.constant 0 : index
    %28 = vector.load %arg4[%c0_11, %c0_12] : memref<32x96xbf16, #tpu.memory_space<vmem>>, vector<32x96xbf16>
    %cst_13 = arith.constant dense<0.000000e+00> : vector<20x96xf32>
    %29 = tpu.matmul %27, %28, %cst_13 {dimension_numbers = #tpu.dot_dimension_numbers<[1], [0], [0], [1], [0, 0, 1, 1], [], []>} : vector<20x32xbf16>, vector<32x96xbf16>, vector<20x96xf32> -> vector<20x96xf32>
    %30 = vector.shape_cast %29 : vector<20x96xf32> to vector<4x5x96xf32>
    %31 = vector.extract_strided_slice %30 {offsets = [0, 0, 0], sizes = [4, 5, 8], strides = [1, 1, 1]} : vector<4x5x96xf32> to vector<4x5x8xf32>
    %32 = arith.truncf %31 : vector<4x5x8xf32> to vector<4x5x8xbf16>
    %33 = vector.extract_strided_slice %30 {offsets = [0, 0, 32], sizes = [4, 5, 8], strides = [1, 1, 1]} : vector<4x5x96xf32> to vector<4x5x8xf32>
    %34 = arith.truncf %33 : vector<4x5x8xf32> to vector<4x5x8xbf16>
    %35 = vector.extract_strided_slice %30 {offsets = [0, 0, 64], sizes = [4, 5, 8], strides = [1, 1, 1]} : vector<4x5x96xf32> to vector<4x5x8xf32>
    %36 = arith.truncf %35 : vector<4x5x8xf32> to vector<4x5x8xbf16>
    "tpu.trace_start"() <{level = 10 : i32, message = "gld,gmd->glm"}> : () -> ()
    %cst_14 = arith.constant dense<0.000000e+00> : vector<4x5x5xf32>
    %37 = tpu.matmul %32, %34, %cst_14 {dimension_numbers = #tpu.dot_dimension_numbers<[2], [2], [1], [1], [0, 0, 0, 1, 1, 1], [0], [0]>} : vector<4x5x8xbf16>, vector<4x5x8xbf16>, vector<4x5x5xf32> -> vector<4x5x5xf32>
    "tpu.trace_stop"() : () -> ()
    %cst_15 = arith.constant 0.353553385 : f32
    %38 = vector.broadcast %cst_15 : f32 to vector<4x5x5xf32>
    %39 = arith.mulf %37, %38 : vector<4x5x5xf32>
    %cst_16 = arith.constant dense<0xFF800000> : vector<4x5xf32>
    %40 = vector.multi_reduction <maximumf>, %39, %cst_16 [2] : vector<4x5x5xf32> to vector<4x5xf32>
    %41 = vector.shape_cast %40 : vector<4x5xf32> to vector<4x5x1xf32>
    %42 = vector.broadcast %41 : vector<4x5x1xf32> to vector<4x5x5xf32>
    %43 = arith.subf %39, %42 : vector<4x5x5xf32>
    %44 = math.exp %43 : vector<4x5x5xf32>
    %cst_17 = arith.constant dense<0.000000e+00> : vector<4x5xf32>
    %45 = vector.multi_reduction <add>, %44, %cst_17 [2] : vector<4x5x5xf32> to vector<4x5xf32>
    %46 = vector.shape_cast %45 : vector<4x5xf32> to vector<4x5x1xf32>
    %47 = tpu.reciprocal %46 {approx = true} : vector<4x5x1xf32> -> vector<4x5x1xf32>
    %48 = vector.broadcast %47 : vector<4x5x1xf32> to vector<4x5x5xf32>
    %49 = arith.mulf %44, %48 : vector<4x5x5xf32>
    %50 = arith.truncf %49 : vector<4x5x5xf32> to vector<4x5x5xbf16>
    "tpu.trace_start"() <{level = 10 : i32, message = "glm,gmd->gld"}> : () -> ()
    %cst_18 = arith.constant dense<0.000000e+00> : vector<4x5x8xf32>
    %51 = tpu.matmul %50, %36, %cst_18 {dimension_numbers = #tpu.dot_dimension_numbers<[2], [1], [1], [2], [0, 0, 0, 1, 1, 2], [0], [0]>} : vector<4x5x5xbf16>, vector<4x5x8xbf16>, vector<4x5x8xf32> -> vector<4x5x8xf32>
    "tpu.trace_stop"() : () -> ()
    %52 = arith.truncf %51 : vector<4x5x8xf32> to vector<4x5x8xbf16>
    %c0_19 = arith.constant 0 : index
    %c0_20 = arith.constant 0 : index
    %c0_21 = arith.constant 0 : index
    %53 = vector.load %arg8[%c0_19, %c0_20, %c0_21] : memref<4x5x32xbf16, #tpu.memory_space<vmem>>, vector<4x5x8xbf16>
    tpu.vector_store %arg8[%c0_19, %c0_20, %c0_21], %52 {strides = array<i32>} : memref<4x5x32xbf16, #tpu.memory_space<vmem>>, vector<4x5x8xbf16>,
    %54 = vector.extract_strided_slice %30 {offsets = [0, 0, 8], sizes = [4, 5, 8], strides = [1, 1, 1]} : vector<4x5x96xf32> to vector<4x5x8xf32>
    %55 = arith.truncf %54 : vector<4x5x8xf32> to vector<4x5x8xbf16>
    %56 = vector.extract_strided_slice %30 {offsets = [0, 0, 40], sizes = [4, 5, 8], strides = [1, 1, 1]} : vector<4x5x96xf32> to vector<4x5x8xf32>
    %57 = arith.truncf %56 : vector<4x5x8xf32> to vector<4x5x8xbf16>
    %58 = vector.extract_strided_slice %30 {offsets = [0, 0, 72], sizes = [4, 5, 8], strides = [1, 1, 1]} : vector<4x5x96xf32> to vector<4x5x8xf32>
    %59 = arith.truncf %58 : vector<4x5x8xf32> to vector<4x5x8xbf16>
    "tpu.trace_start"() <{level = 10 : i32, message = "gld,gmd->glm"}> : () -> ()
    %cst_22 = arith.constant dense<0.000000e+00> : vector<4x5x5xf32>
    %60 = tpu.matmul %55, %57, %cst_22 {dimension_numbers = #tpu.dot_dimension_numbers<[2], [2], [1], [1], [0, 0, 0, 1, 1, 1], [0], [0]>} : vector<4x5x8xbf16>, vector<4x5x8xbf16>, vector<4x5x5xf32> -> vector<4x5x5xf32>
    "tpu.trace_stop"() : () -> ()
    %cst_23 = arith.constant 0.353553385 : f32
    %61 = vector.broadcast %cst_23 : f32 to vector<4x5x5xf32>
    %62 = arith.mulf %60, %61 : vector<4x5x5xf32>
    %cst_24 = arith.constant dense<0xFF800000> : vector<4x5xf32>
    %63 = vector.multi_reduction <maximumf>, %62, %cst_24 [2] : vector<4x5x5xf32> to vector<4x5xf32>
    %64 = vector.shape_cast %63 : vector<4x5xf32> to vector<4x5x1xf32>
    %65 = vector.broadcast %64 : vector<4x5x1xf32> to vector<4x5x5xf32>
    %66 = arith.subf %62, %65 : vector<4x5x5xf32>
    %67 = math.exp %66 : vector<4x5x5xf32>
    %cst_25 = arith.constant dense<0.000000e+00> : vector<4x5xf32>
    %68 = vector.multi_reduction <add>, %67, %cst_25 [2] : vector<4x5x5xf32> to vector<4x5xf32>
    %69 = vector.shape_cast %68 : vector<4x5xf32> to vector<4x5x1xf32>
    %70 = tpu.reciprocal %69 {approx = true} : vector<4x5x1xf32> -> vector<4x5x1xf32>
    %71 = vector.broadcast %70 : vector<4x5x1xf32> to vector<4x5x5xf32>
    %72 = arith.mulf %67, %71 : vector<4x5x5xf32>
    %73 = arith.truncf %72 : vector<4x5x5xf32> to vector<4x5x5xbf16>
    "tpu.trace_start"() <{level = 10 : i32, message = "glm,gmd->gld"}> : () -> ()
    %cst_26 = arith.constant dense<0.000000e+00> : vector<4x5x8xf32>
    %74 = tpu.matmul %73, %59, %cst_26 {dimension_numbers = #tpu.dot_dimension_numbers<[2], [1], [1], [2], [0, 0, 0, 1, 1, 2], [0], [0]>} : vector<4x5x5xbf16>, vector<4x5x8xbf16>, vector<4x5x8xf32> -> vector<4x5x8xf32>
    "tpu.trace_stop"() : () -> ()
    %75 = arith.truncf %74 : vector<4x5x8xf32> to vector<4x5x8xbf16>
    %c0_27 = arith.constant 0 : index
    %c0_28 = arith.constant 0 : index
    %c8 = arith.constant 8 : index
    %76 = vector.load %arg8[%c0_27, %c0_28, %c8] : memref<4x5x32xbf16, #tpu.memory_space<vmem>>, vector<4x5x8xbf16>
    tpu.vector_store %arg8[%c0_27, %c0_28, %c8], %75 {strides = array<i32>} : memref<4x5x32xbf16, #tpu.memory_space<vmem>>, vector<4x5x8xbf16>,
    %77 = vector.extract_strided_slice %30 {offsets = [0, 0, 16], sizes = [4, 5, 8], strides = [1, 1, 1]} : vector<4x5x96xf32> to vector<4x5x8xf32>
    %78 = arith.truncf %77 : vector<4x5x8xf32> to vector<4x5x8xbf16>
    %79 = vector.extract_strided_slice %30 {offsets = [0, 0, 48], sizes = [4, 5, 8], strides = [1, 1, 1]} : vector<4x5x96xf32> to vector<4x5x8xf32>
    %80 = arith.truncf %79 : vector<4x5x8xf32> to vector<4x5x8xbf16>
    %81 = vector.extract_strided_slice %30 {offsets = [0, 0, 80], sizes = [4, 5, 8], strides = [1, 1, 1]} : vector<4x5x96xf32> to vector<4x5x8xf32>
    %82 = arith.truncf %81 : vector<4x5x8xf32> to vector<4x5x8xbf16>
    "tpu.trace_start"() <{level = 10 : i32, message = "gld,gmd->glm"}> : () -> ()
    %cst_29 = arith.constant dense<0.000000e+00> : vector<4x5x5xf32>
    %83 = tpu.matmul %78, %80, %cst_29 {dimension_numbers = #tpu.dot_dimension_numbers<[2], [2], [1], [1], [0, 0, 0, 1, 1, 1], [0], [0]>} : vector<4x5x8xbf16>, vector<4x5x8xbf16>, vector<4x5x5xf32> -> vector<4x5x5xf32>
    "tpu.trace_stop"() : () -> ()
    %cst_30 = arith.constant 0.353553385 : f32
    %84 = vector.broadcast %cst_30 : f32 to vector<4x5x5xf32>
    %85 = arith.mulf %83, %84 : vector<4x5x5xf32>
    %cst_31 = arith.constant dense<0xFF800000> : vector<4x5xf32>
    %86 = vector.multi_reduction <maximumf>, %85, %cst_31 [2] : vector<4x5x5xf32> to vector<4x5xf32>
    %87 = vector.shape_cast %86 : vector<4x5xf32> to vector<4x5x1xf32>
    %88 = vector.broadcast %87 : vector<4x5x1xf32> to vector<4x5x5xf32>
    %89 = arith.subf %85, %88 : vector<4x5x5xf32>
    %90 = math.exp %89 : vector<4x5x5xf32>
    %cst_32 = arith.constant dense<0.000000e+00> : vector<4x5xf32>
    %91 = vector.multi_reduction <add>, %90, %cst_32 [2] : vector<4x5x5xf32> to vector<4x5xf32>
    %92 = vector.shape_cast %91 : vector<4x5xf32> to vector<4x5x1xf32>
    %93 = tpu.reciprocal %92 {approx = true} : vector<4x5x1xf32> -> vector<4x5x1xf32>
    %94 = vector.broadcast %93 : vector<4x5x1xf32> to vector<4x5x5xf32>
    %95 = arith.mulf %90, %94 : vector<4x5x5xf32>
    %96 = arith.truncf %95 : vector<4x5x5xf32> to vector<4x5x5xbf16>
    "tpu.trace_start"() <{level = 10 : i32, message = "glm,gmd->gld"}> : () -> ()
    %cst_33 = arith.constant dense<0.000000e+00> : vector<4x5x8xf32>
    %97 = tpu.matmul %96, %82, %cst_33 {dimension_numbers = #tpu.dot_dimension_numbers<[2], [1], [1], [2], [0, 0, 0, 1, 1, 2], [0], [0]>} : vector<4x5x5xbf16>, vector<4x5x8xbf16>, vector<4x5x8xf32> -> vector<4x5x8xf32>
    "tpu.trace_stop"() : () -> ()
    %98 = arith.truncf %97 : vector<4x5x8xf32> to vector<4x5x8xbf16>
    %c0_34 = arith.constant 0 : index
    %c0_35 = arith.constant 0 : index
    %c16 = arith.constant 16 : index
    %99 = vector.load %arg8[%c0_34, %c0_35, %c16] : memref<4x5x32xbf16, #tpu.memory_space<vmem>>, vector<4x5x8xbf16>
    tpu.vector_store %arg8[%c0_34, %c0_35, %c16], %98 {strides = array<i32>} : memref<4x5x32xbf16, #tpu.memory_space<vmem>>, vector<4x5x8xbf16>,
    %100 = vector.extract_strided_slice %30 {offsets = [0, 0, 24], sizes = [4, 5, 8], strides = [1, 1, 1]} : vector<4x5x96xf32> to vector<4x5x8xf32>
    %101 = arith.truncf %100 : vector<4x5x8xf32> to vector<4x5x8xbf16>
    %102 = vector.extract_strided_slice %30 {offsets = [0, 0, 56], sizes = [4, 5, 8], strides = [1, 1, 1]} : vector<4x5x96xf32> to vector<4x5x8xf32>
    %103 = arith.truncf %102 : vector<4x5x8xf32> to vector<4x5x8xbf16>
    %104 = vector.extract_strided_slice %30 {offsets = [0, 0, 88], sizes = [4, 5, 8], strides = [1, 1, 1]} : vector<4x5x96xf32> to vector<4x5x8xf32>
    %105 = arith.truncf %104 : vector<4x5x8xf32> to vector<4x5x8xbf16>
    "tpu.trace_start"() <{level = 10 : i32, message = "gld,gmd->glm"}> : () -> ()
    %cst_36 = arith.constant dense<0.000000e+00> : vector<4x5x5xf32>
    %106 = tpu.matmul %101, %103, %cst_36 {dimension_numbers = #tpu.dot_dimension_numbers<[2], [2], [1], [1], [0, 0, 0, 1, 1, 1], [0], [0]>} : vector<4x5x8xbf16>, vector<4x5x8xbf16>, vector<4x5x5xf32> -> vector<4x5x5xf32>
    "tpu.trace_stop"() : () -> ()
    %cst_37 = arith.constant 0.353553385 : f32
    %107 = vector.broadcast %cst_37 : f32 to vector<4x5x5xf32>
    %108 = arith.mulf %106, %107 : vector<4x5x5xf32>
    %cst_38 = arith.constant dense<0xFF800000> : vector<4x5xf32>
    %109 = vector.multi_reduction <maximumf>, %108, %cst_38 [2] : vector<4x5x5xf32> to vector<4x5xf32>
    %110 = vector.shape_cast %109 : vector<4x5xf32> to vector<4x5x1xf32>
    %111 = vector.broadcast %110 : vector<4x5x1xf32> to vector<4x5x5xf32>
    %112 = arith.subf %108, %111 : vector<4x5x5xf32>
    %113 = math.exp %112 : vector<4x5x5xf32>
    %cst_39 = arith.constant dense<0.000000e+00> : vector<4x5xf32>
    %114 = vector.multi_reduction <add>, %113, %cst_39 [2] : vector<4x5x5xf32> to vector<4x5xf32>
    %115 = vector.shape_cast %114 : vector<4x5xf32> to vector<4x5x1xf32>
    %116 = tpu.reciprocal %115 {approx = true} : vector<4x5x1xf32> -> vector<4x5x1xf32>
    %117 = vector.broadcast %116 : vector<4x5x1xf32> to vector<4x5x5xf32>
    %118 = arith.mulf %113, %117 : vector<4x5x5xf32>
    %119 = arith.truncf %118 : vector<4x5x5xf32> to vector<4x5x5xbf16>
    "tpu.trace_start"() <{level = 10 : i32, message = "glm,gmd->gld"}> : () -> ()
    %cst_40 = arith.constant dense<0.000000e+00> : vector<4x5x8xf32>
    %120 = tpu.matmul %119, %105, %cst_40 {dimension_numbers = #tpu.dot_dimension_numbers<[2], [1], [1], [2], [0, 0, 0, 1, 1, 2], [0], [0]>} : vector<4x5x5xbf16>, vector<4x5x8xbf16>, vector<4x5x8xf32> -> vector<4x5x8xf32>
    "tpu.trace_stop"() : () -> ()
    %121 = arith.truncf %120 : vector<4x5x8xf32> to vector<4x5x8xbf16>
    %c0_41 = arith.constant 0 : index
    %c0_42 = arith.constant 0 : index
    %c24 = arith.constant 24 : index
    %122 = vector.load %arg8[%c0_41, %c0_42, %c24] : memref<4x5x32xbf16, #tpu.memory_space<vmem>>, vector<4x5x8xbf16>
    tpu.vector_store %arg8[%c0_41, %c0_42, %c24], %121 {strides = array<i32>} : memref<4x5x32xbf16, #tpu.memory_space<vmem>>, vector<4x5x8xbf16>,
    %c0_43 = arith.constant 0 : index
    %c0_44 = arith.constant 0 : index
    %c0_45 = arith.constant 0 : index
    %123 = vector.load %arg8[%c0_43, %c0_44, %c0_45] : memref<4x5x32xbf16, #tpu.memory_space<vmem>>, vector<4x5x32xbf16>
    %124 = vector.shape_cast %123 : vector<4x5x32xbf16> to vector<20x32xbf16>
    %c0_46 = arith.constant 0 : index
    %c0_47 = arith.constant 0 : index
    %125 = vector.load %arg5[%c0_46, %c0_47] : memref<32x32xbf16, #tpu.memory_space<vmem>>, vector<32x32xbf16>
    %cst_48 = arith.constant dense<0.000000e+00> : vector<20x32xf32>
    %126 = tpu.matmul %124, %125, %cst_48 {dimension_numbers = #tpu.dot_dimension_numbers<[1], [0], [0], [1], [0, 0, 1, 1], [], []>} : vector<20x32xbf16>, vector<32x32xbf16>, vector<20x32xf32> -> vector<20x32xf32>
    %c0_49 = arith.constant 0 : index
    %c0_50 = arith.constant 0 : index
    %127 = vector.load %arg6[%c0_49, %c0_50] : memref<1x32xf32, #tpu.memory_space<vmem>>, vector<1x32xf32>
    %128 = vector.broadcast %127 : vector<1x32xf32> to vector<20x32xf32>
    %129 = arith.addf %126, %128 : vector<20x32xf32>
    %130 = arith.addf %129, %2 : vector<20x32xf32>
    %131 = vector.shape_cast %130 : vector<20x32xf32> to vector<4x5x32xf32>
    %c0_51 = arith.constant 0 : index
    %c0_52 = arith.constant 0 : index
    %c0_53 = arith.constant 0 : index
    %c0_54 = arith.constant 0 : index
    %132 = vector.load %arg7[%c0_51, %c0_52, %c0_53, %c0_54] : memref<1x4x5x32xf32, #tpu.memory_space<vmem>>, vector<1x4x5x32xf32>
    %133 = vector.shape_cast %132 : vector<1x4x5x32xf32> to vector<4x5x32xf32>
    %134 = vector.shape_cast %131 : vector<4x5x32xf32> to vector<1x4x5x32xf32>
    tpu.vector_store %arg7[%c0_51, %c0_52, %c0_53, %c0_54], %134 {strides = array<i32>} : memref<1x4x5x32xf32, #tpu.memory_space<vmem>>, vector<1x4x5x32xf32>,
    return
  }
  func.func @transform_0(%arg0: i32) -> (i32, i32, i32, i32) {
    %c0_i32 = arith.constant 0 : i32
    %c0_i32_0 = arith.constant 0 : i32
    %c0_i32_1 = arith.constant 0 : i32
    %c0_i32_2 = arith.constant 0 : i32
    return %arg0, %c0_i32, %c0_i32_0, %c0_i32_1 : i32, i32, i32, i32
  }
  func.func @transform_1(%arg0: i32) -> (i32, i32) {
    %c0_i32 = arith.constant 0 : i32
    %c0_i32_0 = arith.constant 0 : i32
    %c0_i32_1 = arith.constant 0 : i32
    return %c0_i32, %c0_i32_0 : i32, i32
  }
  func.func @transform_2(%arg0: i32) -> (i32, i32) {
    %c0_i32 = arith.constant 0 : i32
    %c0_i32_0 = arith.constant 0 : i32
    %c0_i32_1 = arith.constant 0 : i32
    return %c0_i32, %c0_i32_0 : i32, i32
  }
  func.func @transform_3(%arg0: i32) -> (i32, i32) {
    %c0_i32 = arith.constant 0 : i32
    %c0_i32_0 = arith.constant 0 : i32
    %c0_i32_1 = arith.constant 0 : i32
    return %c0_i32, %c0_i32_0 : i32, i32
  }
  func.func @transform_4(%arg0: i32) -> (i32, i32) {
    %c0_i32 = arith.constant 0 : i32
    %c0_i32_0 = arith.constant 0 : i32
    %c0_i32_1 = arith.constant 0 : i32
    return %c0_i32, %c0_i32_0 : i32, i32
  }
  func.func @transform_5(%arg0: i32) -> (i32, i32) {
    %c0_i32 = arith.constant 0 : i32
    %c0_i32_0 = arith.constant 0 : i32
    %c0_i32_1 = arith.constant 0 : i32
    return %c0_i32, %c0_i32_0 : i32, i32
  }
  func.func @transform_6(%arg0: i32) -> (i32, i32, i32, i32) {
    %c0_i32 = arith.constant 0 : i32
    %c0_i32_0 = arith.constant 0 : i32
    %c0_i32_1 = arith.constant 0 : i32
    %c0_i32_2 = arith.constant 0 : i32
    return %arg0, %c0_i32, %c0_i32_0, %c0_i32_1 : i32, i32, i32, i32
  }
}

module attributes {stable_mosaic.version = 11 : i64} {
  func.func @_attn_block_kernel(%arg0: i32, %arg1: memref<1x4x5x32xf32, #tpu.memory_space<vmem>>, %arg2: memref<1x32xf32, #tpu.memory_space<vmem>>, %arg3: memref<1x32xf32, #tpu.memory_space<vmem>>, %arg4: memref<32x96xbf16, #tpu.memory_space<vmem>>, %arg5: memref<32x32xbf16, #tpu.memory_space<vmem>>, %arg6: memref<1x32xf32, #tpu.memory_space<vmem>>, %arg7: memref<1x4x5x32xf32, #tpu.memory_space<vmem>>, %arg8: memref<5x4x32xbf16, #tpu.memory_space<vmem>>) attributes {dimension_semantics = [#tpu.dimension_semantics<parallel>], iteration_bounds = array<i64: 2>, scalar_prefetch = 0 : i64, scratch_operands = 1 : i64, tpu.core_type = #tpu.core_type<tc>, window_params = [{transform_indices = @transform_0, window_bounds = array<i64: 1, 4, 5, 32>}, {pipeline_mode = #tpu.pipeline_mode<synchronous>, transform_indices = @transform_1, window_bounds = array<i64: 1, 32>}, {pipeline_mode = #tpu.pipeline_mode<synchronous>, transform_indices = @transform_2, window_bounds = array<i64: 1, 32>}, {pipeline_mode = #tpu.pipeline_mode<synchronous>, transform_indices = @transform_3, window_bounds = array<i64: 32, 96>}, {pipeline_mode = #tpu.pipeline_mode<synchronous>, transform_indices = @transform_4, window_bounds = array<i64: 32, 32>}, {pipeline_mode = #tpu.pipeline_mode<synchronous>, transform_indices = @transform_5, window_bounds = array<i64: 1, 32>}, {transform_indices = @transform_6, window_bounds = array<i64: 1, 4, 5, 32>}]} {
    %c0 = arith.constant 0 : index
    %c0_0 = arith.constant 0 : index
    %c0_1 = arith.constant 0 : index
    %c0_2 = arith.constant 0 : index
    %0 = vector.load %arg1[%c0, %c0_0, %c0_1, %c0_2] : memref<1x4x5x32xf32, #tpu.memory_space<vmem>>, vector<1x4x5x32xf32>
    %1 = vector.shape_cast %0 : vector<1x4x5x32xf32> to vector<4x5x32xf32>
    %2 = tpu.transpose %1, [1, 0, 2] : vector<4x5x32xf32> -> vector<5x4x32xf32>
    %3 = vector.shape_cast %2 : vector<5x4x32xf32> to vector<20x32xf32>
    %cst = arith.constant dense<0.000000e+00> : vector<20xf32>
    %4 = vector.multi_reduction <add>, %3, %cst [1] : vector<20x32xf32> to vector<20xf32>
    %5 = vector.shape_cast %4 : vector<20xf32> to vector<20x1xf32>
    %cst_3 = arith.constant 3.200000e+01 : f32
    %6 = vector.broadcast %cst_3 : f32 to vector<20x1xf32>
    %7 = arith.divf %5, %6 : vector<20x1xf32>
    %8 = vector.broadcast %7 : vector<20x1xf32> to vector<20x32xf32>
    %9 = arith.subf %3, %8 : vector<20x32xf32>
    %10 = arith.mulf %9, %9 : vector<20x32xf32>
    %cst_4 = arith.constant dense<0.000000e+00> : vector<20xf32>
    %11 = vector.multi_reduction <add>, %10, %cst_4 [1] : vector<20x32xf32> to vector<20xf32>
    %12 = vector.shape_cast %11 : vector<20xf32> to vector<20x1xf32>
    %cst_5 = arith.constant 3.200000e+01 : f32
    %13 = vector.broadcast %cst_5 : f32 to vector<20x1xf32>
    %14 = arith.divf %12, %13 : vector<20x1xf32>
    %15 = vector.broadcast %7 : vector<20x1xf32> to vector<20x32xf32>
    %16 = arith.subf %3, %15 : vector<20x32xf32>
    %cst_6 = arith.constant 9.99999974E-6 : f32
    %17 = vector.broadcast %cst_6 : f32 to vector<20x1xf32>
    %18 = arith.addf %14, %17 : vector<20x1xf32>
    %19 = math.rsqrt %18 : vector<20x1xf32>
    %20 = vector.broadcast %19 : vector<20x1xf32> to vector<20x32xf32>
    %21 = arith.mulf %16, %20 : vector<20x32xf32>
    %c0_7 = arith.constant 0 : index
    %c0_8 = arith.constant 0 : index
    %22 = vector.load %arg2[%c0_7, %c0_8] : memref<1x32xf32, #tpu.memory_space<vmem>>, vector<1x32xf32>
    %23 = vector.broadcast %22 : vector<1x32xf32> to vector<20x32xf32>
    %24 = arith.mulf %21, %23 : vector<20x32xf32>
    %c0_9 = arith.constant 0 : index
    %c0_10 = arith.constant 0 : index
    %25 = vector.load %arg3[%c0_9, %c0_10] : memref<1x32xf32, #tpu.memory_space<vmem>>, vector<1x32xf32>
    %26 = vector.broadcast %25 : vector<1x32xf32> to vector<20x32xf32>
    %27 = arith.addf %24, %26 : vector<20x32xf32>
    %28 = arith.truncf %27 : vector<20x32xf32> to vector<20x32xbf16>
    %c0_11 = arith.constant 0 : index
    %c0_12 = arith.constant 0 : index
    %29 = vector.load %arg4[%c0_11, %c0_12] : memref<32x96xbf16, #tpu.memory_space<vmem>>, vector<32x96xbf16>
    %cst_13 = arith.constant dense<0.000000e+00> : vector<20x96xf32>
    %30 = tpu.matmul %28, %29, %cst_13 {dimension_numbers = #tpu.dot_dimension_numbers<[1], [0], [0], [1], [0, 0, 1, 1], [], []>} : vector<20x32xbf16>, vector<32x96xbf16>, vector<20x96xf32> -> vector<20x96xf32>
    %31 = vector.shape_cast %30 : vector<20x96xf32> to vector<5x4x96xf32>
    %32 = vector.extract_strided_slice %31 {offsets = [0, 0, 0], sizes = [5, 4, 8], strides = [1, 1, 1]} : vector<5x4x96xf32> to vector<5x4x8xf32>
    %33 = arith.truncf %32 : vector<5x4x8xf32> to vector<5x4x8xbf16>
    %34 = vector.extract_strided_slice %31 {offsets = [0, 0, 32], sizes = [5, 4, 8], strides = [1, 1, 1]} : vector<5x4x96xf32> to vector<5x4x8xf32>
    %35 = arith.truncf %34 : vector<5x4x8xf32> to vector<5x4x8xbf16>
    %36 = vector.extract_strided_slice %31 {offsets = [0, 0, 64], sizes = [5, 4, 8], strides = [1, 1, 1]} : vector<5x4x96xf32> to vector<5x4x8xf32>
    %37 = arith.truncf %36 : vector<5x4x8xf32> to vector<5x4x8xbf16>
    "tpu.trace_start"() <{level = 10 : i32, message = "gld,gmd->glm"}> : () -> ()
    %cst_14 = arith.constant dense<0.000000e+00> : vector<5x4x4xf32>
    %38 = tpu.matmul %33, %35, %cst_14 {dimension_numbers = #tpu.dot_dimension_numbers<[2], [2], [1], [1], [0, 0, 0, 1, 1, 1], [0], [0]>} : vector<5x4x8xbf16>, vector<5x4x8xbf16>, vector<5x4x4xf32> -> vector<5x4x4xf32>
    "tpu.trace_stop"() : () -> ()
    %cst_15 = arith.constant 0.353553385 : f32
    %39 = vector.broadcast %cst_15 : f32 to vector<5x4x4xf32>
    %40 = arith.mulf %38, %39 : vector<5x4x4xf32>
    %cst_16 = arith.constant dense<0xFF800000> : vector<5x4xf32>
    %41 = vector.multi_reduction <maximumf>, %40, %cst_16 [2] : vector<5x4x4xf32> to vector<5x4xf32>
    %42 = vector.shape_cast %41 : vector<5x4xf32> to vector<5x4x1xf32>
    %43 = vector.broadcast %42 : vector<5x4x1xf32> to vector<5x4x4xf32>
    %44 = arith.subf %40, %43 : vector<5x4x4xf32>
    %45 = math.exp %44 : vector<5x4x4xf32>
    %cst_17 = arith.constant dense<0.000000e+00> : vector<5x4xf32>
    %46 = vector.multi_reduction <add>, %45, %cst_17 [2] : vector<5x4x4xf32> to vector<5x4xf32>
    %47 = vector.shape_cast %46 : vector<5x4xf32> to vector<5x4x1xf32>
    %48 = tpu.reciprocal %47 {approx = true} : vector<5x4x1xf32> -> vector<5x4x1xf32>
    %49 = vector.broadcast %48 : vector<5x4x1xf32> to vector<5x4x4xf32>
    %50 = arith.mulf %45, %49 : vector<5x4x4xf32>
    %51 = arith.truncf %50 : vector<5x4x4xf32> to vector<5x4x4xbf16>
    "tpu.trace_start"() <{level = 10 : i32, message = "glm,gmd->gld"}> : () -> ()
    %cst_18 = arith.constant dense<0.000000e+00> : vector<5x4x8xf32>
    %52 = tpu.matmul %51, %37, %cst_18 {dimension_numbers = #tpu.dot_dimension_numbers<[2], [1], [1], [2], [0, 0, 0, 1, 1, 2], [0], [0]>} : vector<5x4x4xbf16>, vector<5x4x8xbf16>, vector<5x4x8xf32> -> vector<5x4x8xf32>
    "tpu.trace_stop"() : () -> ()
    %53 = arith.truncf %52 : vector<5x4x8xf32> to vector<5x4x8xbf16>
    %c0_19 = arith.constant 0 : index
    %c0_20 = arith.constant 0 : index
    %c0_21 = arith.constant 0 : index
    %54 = vector.load %arg8[%c0_19, %c0_20, %c0_21] : memref<5x4x32xbf16, #tpu.memory_space<vmem>>, vector<5x4x8xbf16>
    tpu.vector_store %arg8[%c0_19, %c0_20, %c0_21], %53 {strides = array<i32>} : memref<5x4x32xbf16, #tpu.memory_space<vmem>>, vector<5x4x8xbf16>,
    %55 = vector.extract_strided_slice %31 {offsets = [0, 0, 8], sizes = [5, 4, 8], strides = [1, 1, 1]} : vector<5x4x96xf32> to vector<5x4x8xf32>
    %56 = arith.truncf %55 : vector<5x4x8xf32> to vector<5x4x8xbf16>
    %57 = vector.extract_strided_slice %31 {offsets = [0, 0, 40], sizes = [5, 4, 8], strides = [1, 1, 1]} : vector<5x4x96xf32> to vector<5x4x8xf32>
    %58 = arith.truncf %57 : vector<5x4x8xf32> to vector<5x4x8xbf16>
    %59 = vector.extract_strided_slice %31 {offsets = [0, 0, 72], sizes = [5, 4, 8], strides = [1, 1, 1]} : vector<5x4x96xf32> to vector<5x4x8xf32>
    %60 = arith.truncf %59 : vector<5x4x8xf32> to vector<5x4x8xbf16>
    "tpu.trace_start"() <{level = 10 : i32, message = "gld,gmd->glm"}> : () -> ()
    %cst_22 = arith.constant dense<0.000000e+00> : vector<5x4x4xf32>
    %61 = tpu.matmul %56, %58, %cst_22 {dimension_numbers = #tpu.dot_dimension_numbers<[2], [2], [1], [1], [0, 0, 0, 1, 1, 1], [0], [0]>} : vector<5x4x8xbf16>, vector<5x4x8xbf16>, vector<5x4x4xf32> -> vector<5x4x4xf32>
    "tpu.trace_stop"() : () -> ()
    %cst_23 = arith.constant 0.353553385 : f32
    %62 = vector.broadcast %cst_23 : f32 to vector<5x4x4xf32>
    %63 = arith.mulf %61, %62 : vector<5x4x4xf32>
    %cst_24 = arith.constant dense<0xFF800000> : vector<5x4xf32>
    %64 = vector.multi_reduction <maximumf>, %63, %cst_24 [2] : vector<5x4x4xf32> to vector<5x4xf32>
    %65 = vector.shape_cast %64 : vector<5x4xf32> to vector<5x4x1xf32>
    %66 = vector.broadcast %65 : vector<5x4x1xf32> to vector<5x4x4xf32>
    %67 = arith.subf %63, %66 : vector<5x4x4xf32>
    %68 = math.exp %67 : vector<5x4x4xf32>
    %cst_25 = arith.constant dense<0.000000e+00> : vector<5x4xf32>
    %69 = vector.multi_reduction <add>, %68, %cst_25 [2] : vector<5x4x4xf32> to vector<5x4xf32>
    %70 = vector.shape_cast %69 : vector<5x4xf32> to vector<5x4x1xf32>
    %71 = tpu.reciprocal %70 {approx = true} : vector<5x4x1xf32> -> vector<5x4x1xf32>
    %72 = vector.broadcast %71 : vector<5x4x1xf32> to vector<5x4x4xf32>
    %73 = arith.mulf %68, %72 : vector<5x4x4xf32>
    %74 = arith.truncf %73 : vector<5x4x4xf32> to vector<5x4x4xbf16>
    "tpu.trace_start"() <{level = 10 : i32, message = "glm,gmd->gld"}> : () -> ()
    %cst_26 = arith.constant dense<0.000000e+00> : vector<5x4x8xf32>
    %75 = tpu.matmul %74, %60, %cst_26 {dimension_numbers = #tpu.dot_dimension_numbers<[2], [1], [1], [2], [0, 0, 0, 1, 1, 2], [0], [0]>} : vector<5x4x4xbf16>, vector<5x4x8xbf16>, vector<5x4x8xf32> -> vector<5x4x8xf32>
    "tpu.trace_stop"() : () -> ()
    %76 = arith.truncf %75 : vector<5x4x8xf32> to vector<5x4x8xbf16>
    %c0_27 = arith.constant 0 : index
    %c0_28 = arith.constant 0 : index
    %c8 = arith.constant 8 : index
    %77 = vector.load %arg8[%c0_27, %c0_28, %c8] : memref<5x4x32xbf16, #tpu.memory_space<vmem>>, vector<5x4x8xbf16>
    tpu.vector_store %arg8[%c0_27, %c0_28, %c8], %76 {strides = array<i32>} : memref<5x4x32xbf16, #tpu.memory_space<vmem>>, vector<5x4x8xbf16>,
    %78 = vector.extract_strided_slice %31 {offsets = [0, 0, 16], sizes = [5, 4, 8], strides = [1, 1, 1]} : vector<5x4x96xf32> to vector<5x4x8xf32>
    %79 = arith.truncf %78 : vector<5x4x8xf32> to vector<5x4x8xbf16>
    %80 = vector.extract_strided_slice %31 {offsets = [0, 0, 48], sizes = [5, 4, 8], strides = [1, 1, 1]} : vector<5x4x96xf32> to vector<5x4x8xf32>
    %81 = arith.truncf %80 : vector<5x4x8xf32> to vector<5x4x8xbf16>
    %82 = vector.extract_strided_slice %31 {offsets = [0, 0, 80], sizes = [5, 4, 8], strides = [1, 1, 1]} : vector<5x4x96xf32> to vector<5x4x8xf32>
    %83 = arith.truncf %82 : vector<5x4x8xf32> to vector<5x4x8xbf16>
    "tpu.trace_start"() <{level = 10 : i32, message = "gld,gmd->glm"}> : () -> ()
    %cst_29 = arith.constant dense<0.000000e+00> : vector<5x4x4xf32>
    %84 = tpu.matmul %79, %81, %cst_29 {dimension_numbers = #tpu.dot_dimension_numbers<[2], [2], [1], [1], [0, 0, 0, 1, 1, 1], [0], [0]>} : vector<5x4x8xbf16>, vector<5x4x8xbf16>, vector<5x4x4xf32> -> vector<5x4x4xf32>
    "tpu.trace_stop"() : () -> ()
    %cst_30 = arith.constant 0.353553385 : f32
    %85 = vector.broadcast %cst_30 : f32 to vector<5x4x4xf32>
    %86 = arith.mulf %84, %85 : vector<5x4x4xf32>
    %cst_31 = arith.constant dense<0xFF800000> : vector<5x4xf32>
    %87 = vector.multi_reduction <maximumf>, %86, %cst_31 [2] : vector<5x4x4xf32> to vector<5x4xf32>
    %88 = vector.shape_cast %87 : vector<5x4xf32> to vector<5x4x1xf32>
    %89 = vector.broadcast %88 : vector<5x4x1xf32> to vector<5x4x4xf32>
    %90 = arith.subf %86, %89 : vector<5x4x4xf32>
    %91 = math.exp %90 : vector<5x4x4xf32>
    %cst_32 = arith.constant dense<0.000000e+00> : vector<5x4xf32>
    %92 = vector.multi_reduction <add>, %91, %cst_32 [2] : vector<5x4x4xf32> to vector<5x4xf32>
    %93 = vector.shape_cast %92 : vector<5x4xf32> to vector<5x4x1xf32>
    %94 = tpu.reciprocal %93 {approx = true} : vector<5x4x1xf32> -> vector<5x4x1xf32>
    %95 = vector.broadcast %94 : vector<5x4x1xf32> to vector<5x4x4xf32>
    %96 = arith.mulf %91, %95 : vector<5x4x4xf32>
    %97 = arith.truncf %96 : vector<5x4x4xf32> to vector<5x4x4xbf16>
    "tpu.trace_start"() <{level = 10 : i32, message = "glm,gmd->gld"}> : () -> ()
    %cst_33 = arith.constant dense<0.000000e+00> : vector<5x4x8xf32>
    %98 = tpu.matmul %97, %83, %cst_33 {dimension_numbers = #tpu.dot_dimension_numbers<[2], [1], [1], [2], [0, 0, 0, 1, 1, 2], [0], [0]>} : vector<5x4x4xbf16>, vector<5x4x8xbf16>, vector<5x4x8xf32> -> vector<5x4x8xf32>
    "tpu.trace_stop"() : () -> ()
    %99 = arith.truncf %98 : vector<5x4x8xf32> to vector<5x4x8xbf16>
    %c0_34 = arith.constant 0 : index
    %c0_35 = arith.constant 0 : index
    %c16 = arith.constant 16 : index
    %100 = vector.load %arg8[%c0_34, %c0_35, %c16] : memref<5x4x32xbf16, #tpu.memory_space<vmem>>, vector<5x4x8xbf16>
    tpu.vector_store %arg8[%c0_34, %c0_35, %c16], %99 {strides = array<i32>} : memref<5x4x32xbf16, #tpu.memory_space<vmem>>, vector<5x4x8xbf16>,
    %101 = vector.extract_strided_slice %31 {offsets = [0, 0, 24], sizes = [5, 4, 8], strides = [1, 1, 1]} : vector<5x4x96xf32> to vector<5x4x8xf32>
    %102 = arith.truncf %101 : vector<5x4x8xf32> to vector<5x4x8xbf16>
    %103 = vector.extract_strided_slice %31 {offsets = [0, 0, 56], sizes = [5, 4, 8], strides = [1, 1, 1]} : vector<5x4x96xf32> to vector<5x4x8xf32>
    %104 = arith.truncf %103 : vector<5x4x8xf32> to vector<5x4x8xbf16>
    %105 = vector.extract_strided_slice %31 {offsets = [0, 0, 88], sizes = [5, 4, 8], strides = [1, 1, 1]} : vector<5x4x96xf32> to vector<5x4x8xf32>
    %106 = arith.truncf %105 : vector<5x4x8xf32> to vector<5x4x8xbf16>
    "tpu.trace_start"() <{level = 10 : i32, message = "gld,gmd->glm"}> : () -> ()
    %cst_36 = arith.constant dense<0.000000e+00> : vector<5x4x4xf32>
    %107 = tpu.matmul %102, %104, %cst_36 {dimension_numbers = #tpu.dot_dimension_numbers<[2], [2], [1], [1], [0, 0, 0, 1, 1, 1], [0], [0]>} : vector<5x4x8xbf16>, vector<5x4x8xbf16>, vector<5x4x4xf32> -> vector<5x4x4xf32>
    "tpu.trace_stop"() : () -> ()
    %cst_37 = arith.constant 0.353553385 : f32
    %108 = vector.broadcast %cst_37 : f32 to vector<5x4x4xf32>
    %109 = arith.mulf %107, %108 : vector<5x4x4xf32>
    %cst_38 = arith.constant dense<0xFF800000> : vector<5x4xf32>
    %110 = vector.multi_reduction <maximumf>, %109, %cst_38 [2] : vector<5x4x4xf32> to vector<5x4xf32>
    %111 = vector.shape_cast %110 : vector<5x4xf32> to vector<5x4x1xf32>
    %112 = vector.broadcast %111 : vector<5x4x1xf32> to vector<5x4x4xf32>
    %113 = arith.subf %109, %112 : vector<5x4x4xf32>
    %114 = math.exp %113 : vector<5x4x4xf32>
    %cst_39 = arith.constant dense<0.000000e+00> : vector<5x4xf32>
    %115 = vector.multi_reduction <add>, %114, %cst_39 [2] : vector<5x4x4xf32> to vector<5x4xf32>
    %116 = vector.shape_cast %115 : vector<5x4xf32> to vector<5x4x1xf32>
    %117 = tpu.reciprocal %116 {approx = true} : vector<5x4x1xf32> -> vector<5x4x1xf32>
    %118 = vector.broadcast %117 : vector<5x4x1xf32> to vector<5x4x4xf32>
    %119 = arith.mulf %114, %118 : vector<5x4x4xf32>
    %120 = arith.truncf %119 : vector<5x4x4xf32> to vector<5x4x4xbf16>
    "tpu.trace_start"() <{level = 10 : i32, message = "glm,gmd->gld"}> : () -> ()
    %cst_40 = arith.constant dense<0.000000e+00> : vector<5x4x8xf32>
    %121 = tpu.matmul %120, %106, %cst_40 {dimension_numbers = #tpu.dot_dimension_numbers<[2], [1], [1], [2], [0, 0, 0, 1, 1, 2], [0], [0]>} : vector<5x4x4xbf16>, vector<5x4x8xbf16>, vector<5x4x8xf32> -> vector<5x4x8xf32>
    "tpu.trace_stop"() : () -> ()
    %122 = arith.truncf %121 : vector<5x4x8xf32> to vector<5x4x8xbf16>
    %c0_41 = arith.constant 0 : index
    %c0_42 = arith.constant 0 : index
    %c24 = arith.constant 24 : index
    %123 = vector.load %arg8[%c0_41, %c0_42, %c24] : memref<5x4x32xbf16, #tpu.memory_space<vmem>>, vector<5x4x8xbf16>
    tpu.vector_store %arg8[%c0_41, %c0_42, %c24], %122 {strides = array<i32>} : memref<5x4x32xbf16, #tpu.memory_space<vmem>>, vector<5x4x8xbf16>,
    %c0_43 = arith.constant 0 : index
    %c0_44 = arith.constant 0 : index
    %c0_45 = arith.constant 0 : index
    %124 = vector.load %arg8[%c0_43, %c0_44, %c0_45] : memref<5x4x32xbf16, #tpu.memory_space<vmem>>, vector<5x4x32xbf16>
    %125 = vector.shape_cast %124 : vector<5x4x32xbf16> to vector<20x32xbf16>
    %c0_46 = arith.constant 0 : index
    %c0_47 = arith.constant 0 : index
    %126 = vector.load %arg5[%c0_46, %c0_47] : memref<32x32xbf16, #tpu.memory_space<vmem>>, vector<32x32xbf16>
    %cst_48 = arith.constant dense<0.000000e+00> : vector<20x32xf32>
    %127 = tpu.matmul %125, %126, %cst_48 {dimension_numbers = #tpu.dot_dimension_numbers<[1], [0], [0], [1], [0, 0, 1, 1], [], []>} : vector<20x32xbf16>, vector<32x32xbf16>, vector<20x32xf32> -> vector<20x32xf32>
    %c0_49 = arith.constant 0 : index
    %c0_50 = arith.constant 0 : index
    %128 = vector.load %arg6[%c0_49, %c0_50] : memref<1x32xf32, #tpu.memory_space<vmem>>, vector<1x32xf32>
    %129 = vector.broadcast %128 : vector<1x32xf32> to vector<20x32xf32>
    %130 = arith.addf %127, %129 : vector<20x32xf32>
    %131 = arith.addf %130, %3 : vector<20x32xf32>
    %132 = vector.shape_cast %131 : vector<20x32xf32> to vector<5x4x32xf32>
    %133 = tpu.transpose %132, [1, 0, 2] : vector<5x4x32xf32> -> vector<4x5x32xf32>
    %c0_51 = arith.constant 0 : index
    %c0_52 = arith.constant 0 : index
    %c0_53 = arith.constant 0 : index
    %c0_54 = arith.constant 0 : index
    %134 = vector.load %arg7[%c0_51, %c0_52, %c0_53, %c0_54] : memref<1x4x5x32xf32, #tpu.memory_space<vmem>>, vector<1x4x5x32xf32>
    %135 = vector.shape_cast %134 : vector<1x4x5x32xf32> to vector<4x5x32xf32>
    %136 = vector.shape_cast %133 : vector<4x5x32xf32> to vector<1x4x5x32xf32>
    tpu.vector_store %arg7[%c0_51, %c0_52, %c0_53, %c0_54], %136 {strides = array<i32>} : memref<1x4x5x32xf32, #tpu.memory_space<vmem>>, vector<1x4x5x32xf32>,
    return
  }
  func.func @transform_0(%arg0: i32) -> (i32, i32, i32, i32) {
    %c0_i32 = arith.constant 0 : i32
    %c0_i32_0 = arith.constant 0 : i32
    %c0_i32_1 = arith.constant 0 : i32
    %c0_i32_2 = arith.constant 0 : i32
    return %arg0, %c0_i32, %c0_i32_0, %c0_i32_1 : i32, i32, i32, i32
  }
  func.func @transform_1(%arg0: i32) -> (i32, i32) {
    %c0_i32 = arith.constant 0 : i32
    %c0_i32_0 = arith.constant 0 : i32
    %c0_i32_1 = arith.constant 0 : i32
    return %c0_i32, %c0_i32_0 : i32, i32
  }
  func.func @transform_2(%arg0: i32) -> (i32, i32) {
    %c0_i32 = arith.constant 0 : i32
    %c0_i32_0 = arith.constant 0 : i32
    %c0_i32_1 = arith.constant 0 : i32
    return %c0_i32, %c0_i32_0 : i32, i32
  }
  func.func @transform_3(%arg0: i32) -> (i32, i32) {
    %c0_i32 = arith.constant 0 : i32
    %c0_i32_0 = arith.constant 0 : i32
    %c0_i32_1 = arith.constant 0 : i32
    return %c0_i32, %c0_i32_0 : i32, i32
  }
  func.func @transform_4(%arg0: i32) -> (i32, i32) {
    %c0_i32 = arith.constant 0 : i32
    %c0_i32_0 = arith.constant 0 : i32
    %c0_i32_1 = arith.constant 0 : i32
    return %c0_i32, %c0_i32_0 : i32, i32
  }
  func.func @transform_5(%arg0: i32) -> (i32, i32) {
    %c0_i32 = arith.constant 0 : i32
    %c0_i32_0 = arith.constant 0 : i32
    %c0_i32_1 = arith.constant 0 : i32
    return %c0_i32, %c0_i32_0 : i32, i32
  }
  func.func @transform_6(%arg0: i32) -> (i32, i32, i32, i32) {
    %c0_i32 = arith.constant 0 : i32
    %c0_i32_0 = arith.constant 0 : i32
    %c0_i32_1 = arith.constant 0 : i32
    %c0_i32_2 = arith.constant 0 : i32
    return %arg0, %c0_i32, %c0_i32_0, %c0_i32_1 : i32, i32, i32, i32
  }
}

module attributes {stable_mosaic.version = 11 : i64} {
  func.func @_ffn_kernel(%arg0: i32, %arg1: i32, %arg2: memref<40x32xf32, #tpu.memory_space<vmem>>, %arg3: memref<1x32xf32, #tpu.memory_space<vmem>>, %arg4: memref<1x32xf32, #tpu.memory_space<vmem>>, %arg5: memref<32x64xbf16, #tpu.memory_space<vmem>>, %arg6: memref<1x64xf32, #tpu.memory_space<vmem>>, %arg7: memref<64x32xbf16, #tpu.memory_space<vmem>>, %arg8: memref<1x32xf32, #tpu.memory_space<vmem>>, %arg9: memref<40x32xf32, #tpu.memory_space<vmem>>, %arg10: memref<40x32xbf16, #tpu.memory_space<vmem>>, %arg11: memref<40x32xf32, #tpu.memory_space<vmem>>) attributes {dimension_semantics = [#tpu.dimension_semantics<parallel>, #tpu.dimension_semantics<arbitrary>], iteration_bounds = array<i64: 1, 1>, scalar_prefetch = 0 : i64, scratch_operands = 2 : i64, tpu.core_type = #tpu.core_type<tc>, window_params = [{transform_indices = @transform_0, window_bounds = array<i64: 40, 32>}, {pipeline_mode = #tpu.pipeline_mode<synchronous>, transform_indices = @transform_1, window_bounds = array<i64: 1, 32>}, {pipeline_mode = #tpu.pipeline_mode<synchronous>, transform_indices = @transform_2, window_bounds = array<i64: 1, 32>}, {transform_indices = @transform_3, window_bounds = array<i64: 32, 64>}, {transform_indices = @transform_4, window_bounds = array<i64: 1, 64>}, {transform_indices = @transform_5, window_bounds = array<i64: 64, 32>}, {pipeline_mode = #tpu.pipeline_mode<synchronous>, transform_indices = @transform_6, window_bounds = array<i64: 1, 32>}, {transform_indices = @transform_7, window_bounds = array<i64: 40, 32>}]} {
    %c0_i32 = arith.constant 0 : i32
    %0 = arith.cmpi eq, %arg1, %c0_i32 : i32
    %1 = arith.extui %0 : i1 to i32
    %c0_i32_0 = arith.constant 0 : i32
    %2 = arith.cmpi ne, %1, %c0_i32_0 : i32
    scf.if %2 {
      %c0_30 = arith.constant 0 : index
      %c0_31 = arith.constant 0 : index
      %58 = vector.load %arg2[%c0_30, %c0_31] : memref<40x32xf32, #tpu.memory_space<vmem>>, vector<40x32xf32>
      %cst_32 = arith.constant dense<0.000000e+00> : vector<40xf32>
      %59 = vector.multi_reduction <add>, %58, %cst_32 [1] : vector<40x32xf32> to vector<40xf32>
      %60 = vector.shape_cast %59 : vector<40xf32> to vector<40x1xf32>
      %cst_33 = arith.constant 3.200000e+01 : f32
      %61 = vector.broadcast %cst_33 : f32 to vector<40x1xf32>
      %62 = arith.divf %60, %61 : vector<40x1xf32>
      %63 = vector.broadcast %62 : vector<40x1xf32> to vector<40x32xf32>
      %64 = arith.subf %58, %63 : vector<40x32xf32>
      %65 = arith.mulf %64, %64 : vector<40x32xf32>
      %cst_34 = arith.constant dense<0.000000e+00> : vector<40xf32>
      %66 = vector.multi_reduction <add>, %65, %cst_34 [1] : vector<40x32xf32> to vector<40xf32>
      %67 = vector.shape_cast %66 : vector<40xf32> to vector<40x1xf32>
      %cst_35 = arith.constant 3.200000e+01 : f32
      %68 = vector.broadcast %cst_35 : f32 to vector<40x1xf32>
      %69 = arith.divf %67, %68 : vector<40x1xf32>
      %70 = vector.broadcast %62 : vector<40x1xf32> to vector<40x32xf32>
      %71 = arith.subf %58, %70 : vector<40x32xf32>
      %cst_36 = arith.constant 9.99999974E-6 : f32
      %72 = vector.broadcast %cst_36 : f32 to vector<40x1xf32>
      %73 = arith.addf %69, %72 : vector<40x1xf32>
      %74 = math.rsqrt %73 : vector<40x1xf32>
      %75 = vector.broadcast %74 : vector<40x1xf32> to vector<40x32xf32>
      %76 = arith.mulf %71, %75 : vector<40x32xf32>
      %c0_37 = arith.constant 0 : index
      %c0_38 = arith.constant 0 : index
      %77 = vector.load %arg3[%c0_37, %c0_38] : memref<1x32xf32, #tpu.memory_space<vmem>>, vector<1x32xf32>
      %78 = vector.broadcast %77 : vector<1x32xf32> to vector<40x32xf32>
      %79 = arith.mulf %76, %78 : vector<40x32xf32>
      %c0_39 = arith.constant 0 : index
      %c0_40 = arith.constant 0 : index
      %80 = vector.load %arg4[%c0_39, %c0_40] : memref<1x32xf32, #tpu.memory_space<vmem>>, vector<1x32xf32>
      %81 = vector.broadcast %80 : vector<1x32xf32> to vector<40x32xf32>
      %82 = arith.addf %79, %81 : vector<40x32xf32>
      %83 = arith.truncf %82 : vector<40x32xf32> to vector<40x32xbf16>
      %c0_41 = arith.constant 0 : index
      %c0_42 = arith.constant 0 : index
      %84 = vector.load %arg10[%c0_41, %c0_42] : memref<40x32xbf16, #tpu.memory_space<vmem>>, vector<40x32xbf16>
      tpu.vector_store %arg10[%c0_41, %c0_42], %83 {strides = array<i32>} : memref<40x32xbf16, #tpu.memory_space<vmem>>, vector<40x32xbf16>,
      %cst_43 = arith.constant 0.000000e+00 : f32
      %85 = vector.broadcast %cst_43 : f32 to vector<40x32xf32>
      %c0_44 = arith.constant 0 : index
      %c0_45 = arith.constant 0 : index
      %86 = vector.load %arg11[%c0_44, %c0_45] : memref<40x32xf32, #tpu.memory_space<vmem>>, vector<40x32xf32>
      tpu.vector_store %arg11[%c0_44, %c0_45], %85 {strides = array<i32>} : memref<40x32xf32, #tpu.memory_space<vmem>>, vector<40x32xf32>,
    } else {
    }
    %c0 = arith.constant 0 : index
    %c0_1 = arith.constant 0 : index
    %3 = vector.load %arg10[%c0, %c0_1] : memref<40x32xbf16, #tpu.memory_space<vmem>>, vector<40x32xbf16>
    %c0_2 = arith.constant 0 : index
    %c0_3 = arith.constant 0 : index
    %4 = vector.load %arg5[%c0_2, %c0_3] : memref<32x64xbf16, #tpu.memory_space<vmem>>, vector<32x64xbf16>
    %cst = arith.constant dense<0.000000e+00> : vector<40x64xf32>
    %5 = tpu.matmul %3, %4, %cst {dimension_numbers = #tpu.dot_dimension_numbers<[1], [0], [0], [1], [0, 0, 1, 1], [], []>} : vector<40x32xbf16>, vector<32x64xbf16>, vector<40x64xf32> -> vector<40x64xf32>
    %c0_4 = arith.constant 0 : index
    %c0_5 = arith.constant 0 : index
    %6 = vector.load %arg6[%c0_4, %c0_5] : memref<1x64xf32, #tpu.memory_space<vmem>>, vector<1x64xf32>
    %7 = vector.broadcast %6 : vector<1x64xf32> to vector<40x64xf32>
    %8 = arith.addf %5, %7 : vector<40x64xf32>
    %cst_6 = arith.constant 5.000000e-01 : f32
    %9 = vector.broadcast %cst_6 : f32 to vector<40x64xf32>
    %10 = arith.mulf %9, %8 : vector<40x64xf32>
    %cst_7 = arith.constant 0.707106769 : f32
    %11 = vector.broadcast %cst_7 : f32 to vector<40x64xf32>
    %12 = arith.mulf %8, %11 : vector<40x64xf32>
    %13 = math.absf %12 : vector<40x64xf32>
    %cst_8 = arith.constant 0.327591091 : f32
    %14 = vector.broadcast %cst_8 : f32 to vector<40x64xf32>
    %15 = arith.mulf %14, %13 : vector<40x64xf32>
    %cst_9 = arith.constant 1.000000e+00 : f32
    %16 = vector.broadcast %cst_9 : f32 to vector<40x64xf32>
    %17 = arith.addf %16, %15 : vector<40x64xf32>
    %cst_10 = arith.constant 1.000000e+00 : f32
    %18 = vector.broadcast %cst_10 : f32 to vector<40x64xf32>
    %19 = arith.divf %18, %17 : vector<40x64xf32>
    %cst_11 = arith.constant 1.06140542 : f32
    %20 = vector.broadcast %cst_11 : f32 to vector<40x64xf32>
    %21 = arith.mulf %20, %19 : vector<40x64xf32>
    %cst_12 = arith.constant 1.45315206 : f32
    %22 = vector.broadcast %cst_12 : f32 to vector<40x64xf32>
    %23 = arith.subf %21, %22 : vector<40x64xf32>
    %24 = arith.mulf %23, %19 : vector<40x64xf32>
    %cst_13 = arith.constant 1.42141378 : f32
    %25 = vector.broadcast %cst_13 : f32 to vector<40x64xf32>
    %26 = arith.addf %24, %25 : vector<40x64xf32>
    %27 = arith.mulf %26, %19 : vector<40x64xf32>
    %cst_14 = arith.constant 0.284496725 : f32
    %28 = vector.broadcast %cst_14 : f32 to vector<40x64xf32>
    %29 = arith.subf %27, %28 : vector<40x64xf32>
    %30 = arith.mulf %29, %19 : vector<40x64xf32>
    %cst_15 = arith.constant 0.254829586 : f32
    %31 = vector.broadcast %cst_15 : f32 to vector<40x64xf32>
    %32 = arith.addf %30, %31 : vector<40x64xf32>
    %33 = arith.mulf %32, %19 : vector<40x64xf32>
    %cst_16 = arith.constant 0.000000e+00 : f32
    %34 = vector.broadcast %cst_16 : f32 to vector<40x64xf32>
    %35 = arith.subf %34, %13 : vector<40x64xf32>
    %36 = arith.mulf %35, %13 : vector<40x64xf32>
    %37 = math.exp %36 : vector<40x64xf32>
    %38 = arith.mulf %33, %37 : vector<40x64xf32>
    %cst_17 = arith.constant 1.000000e+00 : f32
    %39 = vector.broadcast %cst_17 : f32 to vector<40x64xf32>
    %40 = arith.subf %39, %38 : vector<40x64xf32>
    %cst_18 = arith.constant 0.000000e+00 : f32
    %41 = vector.broadcast %cst_18 : f32 to vector<40x64xf32>
    %42 = arith.cmpf oge, %12, %41 : vector<40x64xf32>
    %cst_19 = arith.constant 0.000000e+00 : f32
    %43 = vector.broadcast %cst_19 : f32 to vector<40x64xf32>
    %44 = arith.subf %43, %40 : vector<40x64xf32>
    %45 = arith.select %42, %40, %44 : vector<40x64xi1>, vector<40x64xf32>
    %cst_20 = arith.constant 1.000000e+00 : f32
    %46 = vector.broadcast %cst_20 : f32 to vector<40x64xf32>
    %47 = arith.addf %46, %45 : vector<40x64xf32>
    %48 = arith.mulf %10, %47 : vector<40x64xf32>
    %c0_21 = arith.constant 0 : index
    %c0_22 = arith.constant 0 : index
    %49 = vector.load %arg11[%c0_21, %c0_22] : memref<40x32xf32, #tpu.memory_space<vmem>>, vector<40x32xf32>
    %50 = arith.truncf %48 : vector<40x64xf32> to vector<40x64xbf16>
    %c0_23 = arith.constant 0 : index
    %c0_24 = arith.constant 0 : index
    %51 = vector.load %arg7[%c0_23, %c0_24] : memref<64x32xbf16, #tpu.memory_space<vmem>>, vector<64x32xbf16>
    %cst_25 = arith.constant dense<0.000000e+00> : vector<40x32xf32>
    %52 = tpu.matmul %50, %51, %cst_25 {dimension_numbers = #tpu.dot_dimension_numbers<[1], [0], [0], [1], [0, 0, 1, 1], [], []>} : vector<40x64xbf16>, vector<64x32xbf16>, vector<40x32xf32> -> vector<40x32xf32>
    %53 = arith.addf %49, %52 : vector<40x32xf32>
    %c0_26 = arith.constant 0 : index
    %c0_27 = arith.constant 0 : index
    %54 = vector.load %arg11[%c0_26, %c0_27] : memref<40x32xf32, #tpu.memory_space<vmem>>, vector<40x32xf32>
    tpu.vector_store %arg11[%c0_26, %c0_27], %53 {strides = array<i32>} : memref<40x32xf32, #tpu.memory_space<vmem>>, vector<40x32xf32>,
    %c0_i32_28 = arith.constant 0 : i32
    %55 = arith.cmpi eq, %arg1, %c0_i32_28 : i32
    %56 = arith.extui %55 : i1 to i32
    %c0_i32_29 = arith.constant 0 : i32
    %57 = arith.cmpi ne, %56, %c0_i32_29 : i32
    scf.if %57 {
      %c0_30 = arith.constant 0 : index
      %c0_31 = arith.constant 0 : index
      %58 = vector.load %arg2[%c0_30, %c0_31] : memref<40x32xf32, #tpu.memory_space<vmem>>, vector<40x32xf32>
      %c0_32 = arith.constant 0 : index
      %c0_33 = arith.constant 0 : index
      %59 = vector.load %arg11[%c0_32, %c0_33] : memref<40x32xf32, #tpu.memory_space<vmem>>, vector<40x32xf32>
      %60 = arith.addf %58, %59 : vector<40x32xf32>
      %c0_34 = arith.constant 0 : index
      %c0_35 = arith.constant 0 : index
      %61 = vector.load %arg8[%c0_34, %c0_35] : memref<1x32xf32, #tpu.memory_space<vmem>>, vector<1x32xf32>
      %62 = vector.broadcast %61 : vector<1x32xf32> to vector<40x32xf32>
      %63 = arith.addf %60, %62 : vector<40x32xf32>
      %c0_36 = arith.constant 0 : index
      %c0_37 = arith.constant 0 : index
      %64 = vector.load %arg9[%c0_36, %c0_37] : memref<40x32xf32, #tpu.memory_space<vmem>>, vector<40x32xf32>
      tpu.vector_store %arg9[%c0_36, %c0_37], %63 {strides = array<i32>} : memref<40x32xf32, #tpu.memory_space<vmem>>, vector<40x32xf32>,
    } else {
    }
    return
  }
  func.func @transform_0(%arg0: i32, %arg1: i32) -> (i32, i32) {
    %c0_i32 = arith.constant 0 : i32
    %c0_i32_0 = arith.constant 0 : i32
    return %arg0, %c0_i32 : i32, i32
  }
  func.func @transform_1(%arg0: i32, %arg1: i32) -> (i32, i32) {
    %c0_i32 = arith.constant 0 : i32
    %c0_i32_0 = arith.constant 0 : i32
    %c0_i32_1 = arith.constant 0 : i32
    return %c0_i32, %c0_i32_0 : i32, i32
  }
  func.func @transform_2(%arg0: i32, %arg1: i32) -> (i32, i32) {
    %c0_i32 = arith.constant 0 : i32
    %c0_i32_0 = arith.constant 0 : i32
    %c0_i32_1 = arith.constant 0 : i32
    return %c0_i32, %c0_i32_0 : i32, i32
  }
  func.func @transform_3(%arg0: i32, %arg1: i32) -> (i32, i32) {
    %c0_i32 = arith.constant 0 : i32
    %c0_i32_0 = arith.constant 0 : i32
    return %c0_i32, %arg1 : i32, i32
  }
  func.func @transform_4(%arg0: i32, %arg1: i32) -> (i32, i32) {
    %c0_i32 = arith.constant 0 : i32
    %c0_i32_0 = arith.constant 0 : i32
    return %c0_i32, %arg1 : i32, i32
  }
  func.func @transform_5(%arg0: i32, %arg1: i32) -> (i32, i32) {
    %c0_i32 = arith.constant 0 : i32
    %c0_i32_0 = arith.constant 0 : i32
    return %arg1, %c0_i32 : i32, i32
  }
  func.func @transform_6(%arg0: i32, %arg1: i32) -> (i32, i32) {
    %c0_i32 = arith.constant 0 : i32
    %c0_i32_0 = arith.constant 0 : i32
    %c0_i32_1 = arith.constant 0 : i32
    return %c0_i32, %c0_i32_0 : i32, i32
  }
  func.func @transform_7(%arg0: i32, %arg1: i32) -> (i32, i32) {
    %c0_i32 = arith.constant 0 : i32
    %c0_i32_0 = arith.constant 0 : i32
    return %arg0, %c0_i32 : i32, i32
  }
}

module attributes {stable_mosaic.version = 11 : i64} {
  func.func @_ln_kernel(%arg0: i32, %arg1: memref<2x32xf32, #tpu.memory_space<vmem>>, %arg2: memref<1x32xf32, #tpu.memory_space<vmem>>, %arg3: memref<1x32xf32, #tpu.memory_space<vmem>>, %arg4: memref<2x32xf32, #tpu.memory_space<vmem>>) attributes {dimension_semantics = [#tpu.dimension_semantics<parallel>], iteration_bounds = array<i64: 1>, scalar_prefetch = 0 : i64, scratch_operands = 0 : i64, tpu.core_type = #tpu.core_type<tc>, window_params = [{transform_indices = @transform_0, window_bounds = array<i64: 2, 32>}, {pipeline_mode = #tpu.pipeline_mode<synchronous>, transform_indices = @transform_1, window_bounds = array<i64: 1, 32>}, {pipeline_mode = #tpu.pipeline_mode<synchronous>, transform_indices = @transform_2, window_bounds = array<i64: 1, 32>}, {transform_indices = @transform_3, window_bounds = array<i64: 2, 32>}]} {
    %c0 = arith.constant 0 : index
    %c0_0 = arith.constant 0 : index
    %0 = vector.load %arg1[%c0, %c0_0] : memref<2x32xf32, #tpu.memory_space<vmem>>, vector<2x32xf32>
    %cst = arith.constant dense<0.000000e+00> : vector<2xf32>
    %1 = vector.multi_reduction <add>, %0, %cst [1] : vector<2x32xf32> to vector<2xf32>
    %2 = vector.shape_cast %1 : vector<2xf32> to vector<2x1xf32>
    %cst_1 = arith.constant 3.200000e+01 : f32
    %3 = vector.broadcast %cst_1 : f32 to vector<2x1xf32>
    %4 = arith.divf %2, %3 : vector<2x1xf32>
    %5 = vector.broadcast %4 : vector<2x1xf32> to vector<2x32xf32>
    %6 = arith.subf %0, %5 : vector<2x32xf32>
    %7 = arith.mulf %6, %6 : vector<2x32xf32>
    %cst_2 = arith.constant dense<0.000000e+00> : vector<2xf32>
    %8 = vector.multi_reduction <add>, %7, %cst_2 [1] : vector<2x32xf32> to vector<2xf32>
    %9 = vector.shape_cast %8 : vector<2xf32> to vector<2x1xf32>
    %cst_3 = arith.constant 3.200000e+01 : f32
    %10 = vector.broadcast %cst_3 : f32 to vector<2x1xf32>
    %11 = arith.divf %9, %10 : vector<2x1xf32>
    %12 = vector.broadcast %4 : vector<2x1xf32> to vector<2x32xf32>
    %13 = arith.subf %0, %12 : vector<2x32xf32>
    %cst_4 = arith.constant 9.99999974E-6 : f32
    %14 = vector.broadcast %cst_4 : f32 to vector<2x1xf32>
    %15 = arith.addf %11, %14 : vector<2x1xf32>
    %16 = math.rsqrt %15 : vector<2x1xf32>
    %17 = vector.broadcast %16 : vector<2x1xf32> to vector<2x32xf32>
    %18 = arith.mulf %13, %17 : vector<2x32xf32>
    %c0_5 = arith.constant 0 : index
    %c0_6 = arith.constant 0 : index
    %19 = vector.load %arg2[%c0_5, %c0_6] : memref<1x32xf32, #tpu.memory_space<vmem>>, vector<1x32xf32>
    %20 = vector.broadcast %19 : vector<1x32xf32> to vector<2x32xf32>
    %21 = arith.mulf %18, %20 : vector<2x32xf32>
    %c0_7 = arith.constant 0 : index
    %c0_8 = arith.constant 0 : index
    %22 = vector.load %arg3[%c0_7, %c0_8] : memref<1x32xf32, #tpu.memory_space<vmem>>, vector<1x32xf32>
    %23 = vector.broadcast %22 : vector<1x32xf32> to vector<2x32xf32>
    %24 = arith.addf %21, %23 : vector<2x32xf32>
    %c0_9 = arith.constant 0 : index
    %c0_10 = arith.constant 0 : index
    %25 = vector.load %arg4[%c0_9, %c0_10] : memref<2x32xf32, #tpu.memory_space<vmem>>, vector<2x32xf32>
    tpu.vector_store %arg4[%c0_9, %c0_10], %24 {strides = array<i32>} : memref<2x32xf32, #tpu.memory_space<vmem>>, vector<2x32xf32>,
    return
  }
  func.func @transform_0(%arg0: i32) -> (i32, i32) {
    %c0_i32 = arith.constant 0 : i32
    %c0_i32_0 = arith.constant 0 : i32
    return %arg0, %c0_i32 : i32, i32
  }
  func.func @transform_1(%arg0: i32) -> (i32, i32) {
    %c0_i32 = arith.constant 0 : i32
    %c0_i32_0 = arith.constant 0 : i32
    %c0_i32_1 = arith.constant 0 : i32
    return %c0_i32, %c0_i32_0 : i32, i32
  }
  func.func @transform_2(%arg0: i32) -> (i32, i32) {
    %c0_i32 = arith.constant 0 : i32
    %c0_i32_0 = arith.constant 0 : i32
    %c0_i32_1 = arith.constant 0 : i32
    return %c0_i32, %c0_i32_0 : i32, i32
  }
  func.func @transform_3(%arg0: i32) -> (i32, i32) {
    %c0_i32 = arith.constant 0 : i32
    %c0_i32_0 = arith.constant 0 : i32
    return %arg0, %c0_i32 : i32, i32
  }
}

</mosaic_0001>

<llo_original>
// kernel: video_vit_forward.5
$region0: #{video_vit_forward.5}
  #allocation0 [shape = 'u32[]', space=smem, size = 0x4, offset = 0x4, fixed_abs, tag = 'smem constant byte address 0x4 - core index']
  #allocation1 [shape = 'u32[72,128]{1,0:T(1,128)}', space=vmem, size = 0x9000, scoped, tag = 'internal scratch']
  %s0 = inlined_call_operand.vmem [shape: f32[32,384], index: 0, kind: input, shape index: {}]
  %s1 = inlined_call_operand.vmem [shape: f32[1,384], index: 1, kind: input, shape index: {}]
  %s2 = inlined_call_operand.vmem [shape: f32[1,384], index: 2, kind: input, shape index: {}]
  %s3 = inlined_call_operand.vmem [shape: bf16[384,32], index: 3, kind: input, shape index: {}]
  %s4 = inlined_call_operand.vmem [shape: f32[1,32], index: 4, kind: input, shape index: {}]
  %s5 = inlined_call_operand.vmem [shape: f32[1,32], index: 5, kind: input, shape index: {}]
  %s6 = inlined_call_operand.vmem [shape: f32[1,32], index: 6, kind: input, shape index: {}]
  %s7 = inlined_call_operand.vmem [shape: f32[32,32], index: 7, kind: output, shape index: {}]
  %s8 = sld [smem:[#allocation0]]
  $region38: #{video_vit_forward.5} parent=0
    _
  %s10 = ssub.s32 1, %s8
  %s11 = scalar_select 0, %s10, %s8
  // Predicated region
  $region2: #{video_vit_forward.5} parent=0 // pred_check
    _
  $region3: #{video_vit_forward.5} parent=0 // pred_check_branch
    %13 = sbr.rel (0) target = $region5
  $region4: #{video_vit_forward.5} parent=0 // pred_region
    _
  $region5: #{video_vit_forward.5} parent=0 // pred_fallthru
    _
  // Predicated region
  $region6: #{video_vit_forward.5} parent=0 // pred_check
    _
  $region7: #{video_vit_forward.5} parent=0 // pred_check_branch
    %15 = sbr.rel (0) target = $region9
  $region8: #{video_vit_forward.5} parent=0 // pred_region
    _
  $region9: #{video_vit_forward.5} parent=0 // pred_fallthru
    _
  // Predicated region
  $region10: #{video_vit_forward.5} parent=0 // pred_check
    _
  $region11: #{video_vit_forward.5} parent=0 // pred_check_branch
    %17 = sbr.rel (0) target = $region13
  $region12: #{video_vit_forward.5} parent=0 // pred_region
    _
  $region13: #{video_vit_forward.5} parent=0 // pred_fallthru
    _
  // Predicated region
  $region14: #{video_vit_forward.5} parent=0 // pred_check
    _
  $region15: #{video_vit_forward.5} parent=0 // pred_check_branch
    %19 = sbr.rel (0) target = $region17
  $region16: #{video_vit_forward.5} parent=0 // pred_region
    _
  $region17: #{video_vit_forward.5} parent=0 // pred_fallthru
    _
  // Predicated region
  $region18: #{video_vit_forward.5} parent=0 // pred_check
    _
  $region19: #{video_vit_forward.5} parent=0 // pred_check_branch
    %21 = sbr.rel (0) target = $region21
  $region20: #{video_vit_forward.5} parent=0 // pred_region
    _
  $region21: #{video_vit_forward.5} parent=0 // pred_fallthru
    _
  // Predicated region
  $region22: #{video_vit_forward.5} parent=0 // pred_check
    _
  $region23: #{video_vit_forward.5} parent=0 // pred_check_branch
    %23 = sbr.rel (0) target = $region25
  $region24: #{video_vit_forward.5} parent=0 // pred_region
    _
  $region25: #{video_vit_forward.5} parent=0 // pred_fallthru
    _
  // Predicated region
  $region26: #{video_vit_forward.5} parent=0 // pred_check
    _
  $region27: #{video_vit_forward.5} parent=0 // pred_check_branch
    %25 = sbr.rel (0) target = $region29
  $region28: #{video_vit_forward.5} parent=0 // pred_region
    _
  $region29: #{video_vit_forward.5} parent=0 // pred_fallthru
    _
  %v26 = vld [vmem:[%s0] sm:$0xff]
  %v27 = vld [vmem:[%s0 + $0x8] sm:$0xff]
  %v28 = vld [vmem:[%s0 + $0x10] sm:$0xff]
  %v29 = vld [vmem:[%s0 + $0x18] sm:$0xff]
  %v30 = vld [vmem:[%s0 + $0x20] sm:$0xff]
  %v31 = vld [vmem:[%s0 + $0x28] sm:$0xff]
  %v32 = vld [vmem:[%s0 + $0x30] sm:$0xff]
  %v33 = vld [vmem:[%s0 + $0x38] sm:$0xff]
  %v34 = vld [vmem:[%s0 + $0x40] sm:$0xff]
  %v35 = vld [vmem:[%s0 + $0x48] sm:$0xff]
  %v36 = vld [vmem:[%s0 + $0x50] sm:$0xff]
  %v37 = vld [vmem:[%s0 + $0x58] sm:$0xff]
  %v38 = vadd.f32 %v26, %v27
  %v39 = vadd.f32 %v38, %v28
  %40 = vadd.xlane.f32.xlu0 %v39
  %v41 = vpop.xlane.xlu0 %40
  %v42 = vadd.f32 %v29, %v30
  %v43 = vadd.f32 %v42, %v31
  %44 = vadd.xlane.f32.xlu0 %v43
  %v45 = vpop.xlane.xlu0 %44
  %v46 = vadd.f32 %v32, %v33
  %v47 = vadd.f32 %v46, %v34
  %48 = vadd.xlane.f32.xlu0 %v47
  %v49 = vpop.xlane.xlu0 %48
  %v50 = vadd.f32 %v35, %v36
  %v51 = vadd.f32 %v50, %v37
  %52 = vadd.xlane.f32.xlu0 %v51
  %v53 = vpop.xlane.xlu0 %52
  %v54 = vrcp.pop 384.0
  %v55 = vmul.f32 384.0, %v54
  %v56 = vsub.f32 1.0, %v55
  %v57 = vmul.f32 %v54, %v56
  %v58 = vadd.f32 %v54, %v57
  %vm59 = vweird.f32 %v54
  %v60 = vsel %vm59, %v54, %v58
  %v61 = vmul.f32 %v41, %v60
  %v62 = vmul.f32 %v45, %v60
  %v63 = vmul.f32 %v49, %v60
  %v64 = vmul.f32 %v53, %v60
  %v65 = vsub.f32 %v26, %v61
  %v66 = vsub.f32 %v27, %v61
  %v67 = vsub.f32 %v28, %v61
  %v68 = vsub.f32 %v29, %v62
  %v69 = vsub.f32 %v30, %v62
  %v70 = vsub.f32 %v31, %v62
  %v71 = vsub.f32 %v32, %v63
  %v72 = vsub.f32 %v33, %v63
  %v73 = vsub.f32 %v34, %v63
  %v74 = vsub.f32 %v35, %v64
  %v75 = vsub.f32 %v36, %v64
  %v76 = vsub.f32 %v37, %v64
  %v77 = vmul.f32 %v65, %v65
  %v78 = vmul.f32 %v66, %v66
  %v79 = vmul.f32 %v67, %v67
  %v80 = vmul.f32 %v68, %v68
  %v81 = vmul.f32 %v69, %v69
  %v82 = vmul.f32 %v70, %v70
  %v83 = vmul.f32 %v71, %v71
  %v84 = vmul.f32 %v72, %v72
  %v85 = vmul.f32 %v73, %v73
  %v86 = vmul.f32 %v74, %v74
  %v87 = vmul.f32 %v75, %v75
  %v88 = vmul.f32 %v76, %v76
  %v89 = vadd.f32 %v77, %v78
  %v90 = vadd.f32 %v89, %v79
  %91 = vadd.xlane.f32.xlu0 %v90
  %v92 = vpop.xlane.xlu0 %91
  %v93 = vadd.f32 %v80, %v81
  %v94 = vadd.f32 %v93, %v82
  %95 = vadd.xlane.f32.xlu0 %v94
  %v96 = vpop.xlane.xlu0 %95
  %v97 = vadd.f32 %v83, %v84
  %v98 = vadd.f32 %v97, %v85
  %99 = vadd.xlane.f32.xlu0 %v98
  %v100 = vpop.xlane.xlu0 %99
  %v101 = vadd.f32 %v86, %v87
  %v102 = vadd.f32 %v101, %v88
  %103 = vadd.xlane.f32.xlu0 %v102
  %v104 = vpop.xlane.xlu0 %103
  %v105 = vmul.f32 %v92, %v60
  %v106 = vmul.f32 %v96, %v60
  %v107 = vmul.f32 %v100, %v60
  %v108 = vmul.f32 %v104, %v60
  %v109 = vadd.f32 %v105, 1e-05
  %v110 = vadd.f32 %v106, 1e-05
  %v111 = vadd.f32 %v107, 1e-05
  %v112 = vadd.f32 %v108, 1e-05
  %v113 = vrsqrt.pop %v109
  %v114 = vmul.f32 %v113, %v109
  %v115 = vmul.f32 %v114, %v113
  %v116 = vmul.f32 0.5, %v115
  %v117 = vsub.f32 1.5, %v116
  %v118 = vmul.f32 %v113, %v117
  %vm119 = vweird.f32 %v109
  %vm120 = vweird.f32 %v113
  %vm121 = vmor %vm119, %vm120
  %v122 = vsel %vm121, %v113, %v118
  %v123 = vrsqrt.pop %v110
  %v124 = vmul.f32 %v123, %v110
  %v125 = vmul.f32 %v124, %v123
  %v126 = vmul.f32 0.5, %v125
  %v127 = vsub.f32 1.5, %v126
  %v128 = vmul.f32 %v123, %v127
  %vm129 = vweird.f32 %v110
  %vm130 = vweird.f32 %v123
  %vm131 = vmor %vm129, %vm130
  %v132 = vsel %vm131, %v123, %v128
  %v133 = vrsqrt.pop %v111
  %v134 = vmul.f32 %v133, %v111
  %v135 = vmul.f32 %v134, %v133
  %v136 = vmul.f32 0.5, %v135
  %v137 = vsub.f32 1.5, %v136
  %v138 = vmul.f32 %v133, %v137
  %vm139 = vweird.f32 %v111
  %vm140 = vweird.f32 %v133
  %vm141 = vmor %vm139, %vm140
  %v142 = vsel %vm141, %v133, %v138
  %v143 = vrsqrt.pop %v112
  %v144 = vmul.f32 %v143, %v112
  %v145 = vmul.f32 %v144, %v143
  %v146 = vmul.f32 0.5, %v145
  %v147 = vsub.f32 1.5, %v146
  %v148 = vmul.f32 %v143, %v147
  %vm149 = vweird.f32 %v112
  %vm150 = vweird.f32 %v143
  %vm151 = vmor %vm149, %vm150
  %v152 = vsel %vm151, %v143, %v148
  %v153 = vmul.f32 %v65, %v122
  %v154 = vmul.f32 %v66, %v122
  %v155 = vmul.f32 %v67, %v122
  %v156 = vmul.f32 %v68, %v132
  %v157 = vmul.f32 %v69, %v132
  %v158 = vmul.f32 %v70, %v132
  %v159 = vmul.f32 %v71, %v142
  %v160 = vmul.f32 %v72, %v142
  %v161 = vmul.f32 %v73, %v142
  %v162 = vmul.f32 %v74, %v152
  %v163 = vmul.f32 %v75, %v152
  %v164 = vmul.f32 %v76, %v152
  %v165 = vld [vmem:[%s1] sm:$0x7]
  %v167 = vperm.slane %v165, 0
  %v168 = vperm.slane %v165, 1
  %v169 = vperm.slane %v165, 2
  %v173 = vmul.f32 %v153, %v167
  %v174 = vmul.f32 %v154, %v168
  %v175 = vmul.f32 %v155, %v169
  %v176 = vmul.f32 %v156, %v167
  %v177 = vmul.f32 %v157, %v168
  %v178 = vmul.f32 %v158, %v169
  %v179 = vmul.f32 %v159, %v167
  %v180 = vmul.f32 %v160, %v168
  %v181 = vmul.f32 %v161, %v169
  %v182 = vmul.f32 %v162, %v167
  %v183 = vmul.f32 %v163, %v168
  %v184 = vmul.f32 %v164, %v169
  %v185 = vld [vmem:[%s2] sm:$0x7]
  %v187 = vperm.slane %v185, 0
  %v188 = vperm.slane %v185, 1
  %v189 = vperm.slane %v185, 2
  %v193 = vadd.f32 %v173, %v187
  %v194 = vadd.f32 %v174, %v188
  %v195 = vadd.f32 %v175, %v189
  %v196 = vadd.f32 %v176, %v187
  %v197 = vadd.f32 %v177, %v188
  %v198 = vadd.f32 %v178, %v189
  %v199 = vadd.f32 %v179, %v187
  %v200 = vadd.f32 %v180, %v188
  %v201 = vadd.f32 %v181, %v189
  %v202 = vadd.f32 %v182, %v187
  %v203 = vadd.f32 %v183, %v188
  %v204 = vadd.f32 %v184, %v189
  %v205 = vpack.c.bf16 %v196, %v193
  %v206 = vpack.c.bf16 %v197, %v194
  %v207 = vpack.c.bf16 %v198, %v195
  %v208 = vpack.c.bf16 %v202, %v199
  %v209 = vpack.c.bf16 %v203, %v200
  %v210 = vpack.c.bf16 %v204, %v201
  %v211 = vld [vmem:[%s3] sm:$0xf]
  %v212 = vld [vmem:[%s3 + $0x4] sm:$0xf]
  %v213 = vld [vmem:[%s3 + $0x8] sm:$0xf]
  %v214 = vld [vmem:[%s3 + $0xc] sm:$0xf]
  %v215 = vld [vmem:[%s3 + $0x10] sm:$0xf]
  %v216 = vld [vmem:[%s3 + $0x14] sm:$0xf]
  %v217 = vld [vmem:[%s3 + $0x18] sm:$0xf]
  %v218 = vld [vmem:[%s3 + $0x1c] sm:$0xf]
  %v219 = vld [vmem:[%s3 + $0x20] sm:$0xf]
  %v220 = vld [vmem:[%s3 + $0x24] sm:$0xf]
  %v221 = vld [vmem:[%s3 + $0x28] sm:$0xf]
  %v222 = vld [vmem:[%s3 + $0x2c] sm:$0xf]
  %v223 = vld [vmem:[%s3 + $0x30] sm:$0xf]
  %v224 = vld [vmem:[%s3 + $0x34] sm:$0xf]
  %v225 = vld [vmem:[%s3 + $0x38] sm:$0xf]
  %v226 = vld [vmem:[%s3 + $0x3c] sm:$0xf]
  %v227 = vld [vmem:[%s3 + $0x40] sm:$0xf]
  %v228 = vld [vmem:[%s3 + $0x44] sm:$0xf]
  %v229 = vld [vmem:[%s3 + $0x48] sm:$0xf]
  %v230 = vld [vmem:[%s3 + $0x4c] sm:$0xf]
  %v231 = vld [vmem:[%s3 + $0x50] sm:$0xf]
  %v232 = vld [vmem:[%s3 + $0x54] sm:$0xf]
  %v233 = vld [vmem:[%s3 + $0x58] sm:$0xf]
  %v234 = vld [vmem:[%s3 + $0x5c] sm:$0xf]
  %v235 = vld [vmem:[%s3 + $0x60] sm:$0xf]
  %v236 = vld [vmem:[%s3 + $0x64] sm:$0xf]
  %v237 = vld [vmem:[%s3 + $0x68] sm:$0xf]
  %v238 = vld [vmem:[%s3 + $0x6c] sm:$0xf]
  %v239 = vld [vmem:[%s3 + $0x70] sm:$0xf]
  %v240 = vld [vmem:[%s3 + $0x74] sm:$0xf]
  %v241 = vld [vmem:[%s3 + $0x78] sm:$0xf]
  %v242 = vld [vmem:[%s3 + $0x7c] sm:$0xf]
  %v243 = vld [vmem:[%s3 + $0x80] sm:$0xf]
  %v244 = vld [vmem:[%s3 + $0x84] sm:$0xf]
  %v245 = vld [vmem:[%s3 + $0x88] sm:$0xf]
  %v246 = vld [vmem:[%s3 + $0x8c] sm:$0xf]
  %v247 = vld [vmem:[%s3 + $0x90] sm:$0xf]
  %v248 = vld [vmem:[%s3 + $0x94] sm:$0xf]
  %v249 = vld [vmem:[%s3 + $0x98] sm:$0xf]
  %v250 = vld [vmem:[%s3 + $0x9c] sm:$0xf]
  %v251 = vld [vmem:[%s3 + $0xa0] sm:$0xf]
  %v252 = vld [vmem:[%s3 + $0xa4] sm:$0xf]
  %v253 = vld [vmem:[%s3 + $0xa8] sm:$0xf]
  %v254 = vld [vmem:[%s3 + $0xac] sm:$0xf]
  %v255 = vld [vmem:[%s3 + $0xb0] sm:$0xf]
  %v256 = vld [vmem:[%s3 + $0xb4] sm:$0xf]
  %v257 = vld [vmem:[%s3 + $0xb8] sm:$0xf]
  %v258 = vld [vmem:[%s3 + $0xbc] sm:$0xf]
  %v259 = vld [vmem:[%s4] sm:$0x1]
  %v261 = vperm.slane %v259, 0
  %v311 = vunpack.c.l.b16 %v211
  %v312 = vunpack.c.l.b16 %v212
  %v313 = vunpack.c.l.b16 %v213
  %v314 = vunpack.c.l.b16 %v214
  %v315 = vunpack.c.l.b16 %v215
  %v316 = vunpack.c.l.b16 %v216
  %v317 = vunpack.c.l.b16 %v217
  %v318 = vunpack.c.l.b16 %v218
  %v319 = vunpack.c.l.b16 %v219
  %v320 = vunpack.c.l.b16 %v220
  %v321 = vunpack.c.l.b16 %v221
  %v322 = vunpack.c.l.b16 %v222
  %v323 = vunpack.c.l.b16 %v223
  %v324 = vunpack.c.l.b16 %v224
  %v325 = vunpack.c.l.b16 %v225
  %v326 = vunpack.c.l.b16 %v226
  %v327 = vunpack.c.l.b16 %v227
  %v328 = vunpack.c.l.b16 %v228
  %v329 = vunpack.c.l.b16 %v229
  %v330 = vunpack.c.l.b16 %v230
  %v331 = vunpack.c.l.b16 %v231
  %v332 = vunpack.c.l.b16 %v232
  %v333 = vunpack.c.l.b16 %v233
  %v334 = vunpack.c.l.b16 %v234
  %v335 = vunpack.c.l.b16 %v235
  %v336 = vunpack.c.l.b16 %v236
  %v337 = vunpack.c.l.b16 %v237
  %v338 = vunpack.c.l.b16 %v238
  %v339 = vunpack.c.l.b16 %v239
  %v340 = vunpack.c.l.b16 %v240
  %v341 = vunpack.c.l.b16 %v241
  %v342 = vunpack.c.l.b16 %v242
  %v343 = vunpack.c.l.b16 %v243
  %v344 = vunpack.c.l.b16 %v244
  %v345 = vunpack.c.l.b16 %v245
  %v346 = vunpack.c.l.b16 %v246
  %v347 = vunpack.c.l.b16 %v247
  %v348 = vunpack.c.l.b16 %v248
  %v349 = vunpack.c.l.b16 %v249
  %v350 = vunpack.c.l.b16 %v250
  %v351 = vunpack.c.l.b16 %v251
  %v352 = vunpack.c.l.b16 %v252
  %v353 = vunpack.c.l.b16 %v253
  %v354 = vunpack.c.l.b16 %v254
  %v355 = vunpack.c.l.b16 %v255
  %v356 = vunpack.c.l.b16 %v256
  %v357 = vunpack.c.l.b16 %v257
  %v358 = vunpack.c.l.b16 %v258
  %v359 = vpack.c.b16 %v312, %v311
  %v360 = vpack.c.b16 %v314, %v313
  %v361 = vpack.c.b16 %v316, %v315
  %v362 = vpack.c.b16 %v318, %v317
  %v363 = vpack.c.b16 %v320, %v319
  %v364 = vpack.c.b16 %v322, %v321
  %v365 = vpack.c.b16 %v324, %v323
  %v366 = vpack.c.b16 %v326, %v325
  %v367 = vpack.c.b16 %v328, %v327
  %v368 = vpack.c.b16 %v330, %v329
  %v369 = vpack.c.b16 %v332, %v331
  %v370 = vpack.c.b16 %v334, %v333
  %v371 = vpack.c.b16 %v336, %v335
  %v372 = vpack.c.b16 %v338, %v337
  %v373 = vpack.c.b16 %v340, %v339
  %v374 = vpack.c.b16 %v342, %v341
  %v375 = vpack.c.b16 %v344, %v343
  %v376 = vpack.c.b16 %v346, %v345
  %v377 = vpack.c.b16 %v348, %v347
  %v378 = vpack.c.b16 %v350, %v349
  %v379 = vpack.c.b16 %v352, %v351
  %v380 = vpack.c.b16 %v354, %v353
  %v381 = vpack.c.b16 %v356, %v355
  %v382 = vpack.c.b16 %v358, %v357
  %407 = vmatpush.bf16.msra.mxu0 %v366
  %408 = vmatpush.bf16.msra.mxu0 %v365
  %409 = vmatpush.bf16.msra.mxu0 %v364
  %410 = vmatpush.bf16.msra.mxu0 %v363
  %411 = vmatpush.bf16.msra.mxu0 %v362
  %412 = vmatpush.bf16.msra.mxu0 %v361
  %413 = vmatpush.bf16.msra.mxu0 %v360
  %414 = vmatpush.bf16.msra.mxu0 %v359
  %415 = vmatmul.bf16.gmra.mxu0 %v205
  %v416 = vpop.f32.mrf.mxu0
  %v417 = vadd.f32 %v261, %v416
  %v418 = vpop.f32.mrf.mxu0
  %v419 = vadd.f32 %v261, %v418
  %420 = vmatmul.bf16.gmra.mxu0 %v208
  %v421 = vpop.f32.mrf.mxu0
  %v422 = vadd.f32 %v261, %v421
  %v423 = vpop.f32.mrf.mxu0
  %v424 = vadd.f32 %v261, %v423
  %425 = vdwg.mxu0
  %426 = vmatpush.bf16.msra.mxu0 %v374
  %427 = vmatpush.bf16.msra.mxu0 %v373
  %428 = vmatpush.bf16.msra.mxu0 %v372
  %429 = vmatpush.bf16.msra.mxu0 %v371
  %430 = vmatpush.bf16.msra.mxu0 %v370
  %431 = vmatpush.bf16.msra.mxu0 %v369
  %432 = vmatpush.bf16.msra.mxu0 %v368
  %433 = vmatpush.bf16.msra.mxu0 %v367
  %434 = vmatmul.bf16.gmra.mxu0 %v206
  %v435 = vpop.f32.mrf.mxu0
  %v436 = vadd.f32 %v417, %v435
  %v437 = vpop.f32.mrf.mxu0
  %v438 = vadd.f32 %v419, %v437
  %439 = vmatmul.bf16.gmra.mxu0 %v209
  %v440 = vpop.f32.mrf.mxu0
  %v441 = vadd.f32 %v422, %v440
  %v442 = vpop.f32.mrf.mxu0
  %v443 = vadd.f32 %v424, %v442
  %444 = vdwg.mxu0
  %445 = vmatpush.bf16.msra.mxu0 %v382
  %446 = vmatpush.bf16.msra.mxu0 %v381
  %447 = vmatpush.bf16.msra.mxu0 %v380
  %448 = vmatpush.bf16.msra.mxu0 %v379
  %449 = vmatpush.bf16.msra.mxu0 %v378
  %450 = vmatpush.bf16.msra.mxu0 %v377
  %451 = vmatpush.bf16.msra.mxu0 %v376
  %452 = vmatpush.bf16.msra.mxu0 %v375
  %453 = vmatmul.bf16.gmra.mxu0 %v207
  %v454 = vpop.f32.mrf.mxu0
  %v455 = vadd.f32 %v436, %v454
  %v456 = vpop.f32.mrf.mxu0
  %v457 = vadd.f32 %v438, %v456
  %458 = vmatmul.bf16.gmra.mxu0 %v210
  %v459 = vpop.f32.mrf.mxu0
  %v460 = vadd.f32 %v441, %v459
  %v461 = vpop.f32.mrf.mxu0
  %v462 = vadd.f32 %v443, %v461
  %463 = vdwg.mxu0
  %vm464 = vcmask 261120
  %v465 = vsel %vm464, %v455, 0.0
  %466 = vadd.xlane.f32.xlu0 %v465
  %v467 = vpop.xlane.xlu0 %466
  %v468 = vsel %vm464, %v457, 0.0
  %469 = vadd.xlane.f32.xlu0 %v468
  %v470 = vpop.xlane.xlu0 %469
  %v471 = vsel %vm464, %v460, 0.0
  %472 = vadd.xlane.f32.xlu0 %v471
  %v473 = vpop.xlane.xlu0 %472
  %v474 = vsel %vm464, %v462, 0.0
  %475 = vadd.xlane.f32.xlu0 %v474
  %v476 = vpop.xlane.xlu0 %475
  %v477 = vrcp.pop 32.0
  %v478 = vmul.f32 32.0, %v477
  %v479 = vsub.f32 1.0, %v478
  %v480 = vmul.f32 %v477, %v479
  %v481 = vadd.f32 %v477, %v480
  %vm482 = vweird.f32 %v477
  %v483 = vsel %vm482, %v477, %v481
  %v484 = vmul.f32 %v467, %v483
  %v485 = vmul.f32 %v470, %v483
  %v486 = vmul.f32 %v473, %v483
  %v487 = vmul.f32 %v476, %v483
  %v488 = vsub.f32 %v455, %v484
  %v489 = vsub.f32 %v457, %v485
  %v490 = vsub.f32 %v460, %v486
  %v491 = vsub.f32 %v462, %v487
  %v492 = vmul.f32 %v488, %v488
  %v493 = vmul.f32 %v489, %v489
  %v494 = vmul.f32 %v490, %v490
  %v495 = vmul.f32 %v491, %v491
  %v496 = vsel %vm464, %v492, 0.0
  %497 = vadd.xlane.f32.xlu0 %v496
  %v498 = vpop.xlane.xlu0 %497
  %v499 = vsel %vm464, %v493, 0.0
  %500 = vadd.xlane.f32.xlu0 %v499
  %v501 = vpop.xlane.xlu0 %500
  %v502 = vsel %vm464, %v494, 0.0
  %503 = vadd.xlane.f32.xlu0 %v502
  %v504 = vpop.xlane.xlu0 %503
  %v505 = vsel %vm464, %v495, 0.0
  %506 = vadd.xlane.f32.xlu0 %v505
  %v507 = vpop.xlane.xlu0 %506
  %v508 = vmul.f32 %v498, %v483
  %v509 = vmul.f32 %v501, %v483
  %v510 = vmul.f32 %v504, %v483
  %v511 = vmul.f32 %v507, %v483
  %v512 = vadd.f32 %v508, 1e-05
  %v513 = vadd.f32 %v509, 1e-05
  %v514 = vadd.f32 %v510, 1e-05
  %v515 = vadd.f32 %v511, 1e-05
  %v516 = vrsqrt.pop %v512
  %v517 = vmul.f32 %v516, %v512
  %v518 = vmul.f32 %v517, %v516
  %v519 = vmul.f32 0.5, %v518
  %v520 = vsub.f32 1.5, %v519
  %v521 = vmul.f32 %v516, %v520
  %vm522 = vweird.f32 %v512
  %vm523 = vweird.f32 %v516
  %vm524 = vmor %vm522, %vm523
  %v525 = vsel %vm524, %v516, %v521
  %v526 = vrsqrt.pop %v513
  %v527 = vmul.f32 %v526, %v513
  %v528 = vmul.f32 %v527, %v526
  %v529 = vmul.f32 0.5, %v528
  %v530 = vsub.f32 1.5, %v529
  %v531 = vmul.f32 %v526, %v530
  %vm532 = vweird.f32 %v513
  %vm533 = vweird.f32 %v526
  %vm534 = vmor %vm532, %vm533
  %v535 = vsel %vm534, %v526, %v531
  %v536 = vrsqrt.pop %v514
  %v537 = vmul.f32 %v536, %v514
  %v538 = vmul.f32 %v537, %v536
  %v539 = vmul.f32 0.5, %v538
  %v540 = vsub.f32 1.5, %v539
  %v541 = vmul.f32 %v536, %v540
  %vm542 = vweird.f32 %v514
  %vm543 = vweird.f32 %v536
  %vm544 = vmor %vm542, %vm543
  %v545 = vsel %vm544, %v536, %v541
  %v546 = vrsqrt.pop %v515
  %v547 = vmul.f32 %v546, %v515
  %v548 = vmul.f32 %v547, %v546
  %v549 = vmul.f32 0.5, %v548
  %v550 = vsub.f32 1.5, %v549
  %v551 = vmul.f32 %v546, %v550
  %vm552 = vweird.f32 %v515
  %vm553 = vweird.f32 %v546
  %vm554 = vmor %vm552, %vm553
  %v555 = vsel %vm554, %v546, %v551
  %v556 = vmul.f32 %v488, %v525
  %v557 = vmul.f32 %v489, %v535
  %v558 = vmul.f32 %v490, %v545
  %v559 = vmul.f32 %v491, %v555
  %v560 = vld [vmem:[%s5] sm:$0x1]
  %v562 = vperm.slane %v560, 0
  %v564 = vmul.f32 %v556, %v562
  %v565 = vmul.f32 %v557, %v562
  %v566 = vmul.f32 %v558, %v562
  %v567 = vmul.f32 %v559, %v562
  %v568 = vld [vmem:[%s6] sm:$0x1]
  %v570 = vperm.slane %v568, 0
  %v572 = vadd.f32 %v564, %v570
  %v573 = vadd.f32 %v565, %v570
  %v574 = vadd.f32 %v566, %v570
  %v575 = vadd.f32 %v567, %v570
  %576 = vst.msk [vmem:[%s7] sm:$0xff] %vm464, %v572
  %577 = vst.msk [vmem:[%s7 + $0x8] sm:$0xff] %vm464, %v573
  %578 = vst.msk [vmem:[%s7 + $0x10] sm:$0xff] %vm464, %v574
  %579 = vst.msk [vmem:[%s7 + $0x18] sm:$0xff] %vm464, %v575
  // Predicated region
  $region30: #{video_vit_forward.5} parent=0 // pred_check
    _
  $region31: #{video_vit_forward.5} parent=0 // pred_check_branch
    %581 = sbr.rel (0) target = $region33
  $region32: #{video_vit_forward.5} parent=0 // pred_region
    _
  $region33: #{video_vit_forward.5} parent=0 // pred_fallthru
    _
  // Predicated region
  $region34: #{video_vit_forward.5} parent=0 // pred_check
    _
  $region35: #{video_vit_forward.5} parent=0 // pred_check_branch
    %583 = sbr.rel (0) target = $region37
  $region36: #{video_vit_forward.5} parent=0 // pred_region
    _
  $region37: #{video_vit_forward.5} parent=0 // pred_fallthru
    _

// kernel: video_vit_forward.8
$region0: #{video_vit_forward.8}
  #allocation0 [shape = 'u32[]', space=smem, size = 0x4, offset = 0x4, fixed_abs, tag = 'smem constant byte address 0x4 - core index']
  #allocation1 [shape = 'u32[72,128]{1,0:T(1,128)}', space=vmem, size = 0x9000, scoped, tag = 'internal scratch']
  #allocation2 [shape = 'bf16[40,32]{1,0:T(8,128)(2,1)}', space=vmem, size = 0x2800, scoped, tag = 'scratch operand']
  #allocation3 [shape = 'f32[40,32]{1,0:T(8,128)}', space=vmem, size = 0x5000, scoped, tag = 'scratch operand']
  %s0 = inlined_call_operand.vmem [shape: f32[40,32], index: 0, kind: input, shape index: {}]
  %s1 = inlined_call_operand.vmem [shape: f32[1,32], index: 1, kind: input, shape index: {}]
  %s2 = inlined_call_operand.vmem [shape: f32[1,32], index: 2, kind: input, shape index: {}]
  %s3 = inlined_call_operand.vmem [shape: bf16[32,64], index: 3, kind: input, shape index: {}]
  %s4 = inlined_call_operand.vmem [shape: f32[1,64], index: 4, kind: input, shape index: {}]
  %s5 = inlined_call_operand.vmem [shape: bf16[64,32], index: 5, kind: input, shape index: {}]
  %s6 = inlined_call_operand.vmem [shape: f32[1,32], index: 6, kind: input, shape index: {}]
  %s7 = inlined_call_operand.vmem [shape: f32[40,32], index: 7, kind: output, shape index: {}]
  %s8 = sld [smem:[#allocation0]]
  $region46: #{video_vit_forward.8} parent=0
    _
  %s10 = ssub.s32 1, %s8
  %s11 = scalar_select 0, %s10, %s8
  // Predicated region
  $region2: #{video_vit_forward.8} parent=0 // pred_check
    _
  $region3: #{video_vit_forward.8} parent=0 // pred_check_branch
    %13 = sbr.rel (0) target = $region5
  $region4: #{video_vit_forward.8} parent=0 // pred_region
    _
  $region5: #{video_vit_forward.8} parent=0 // pred_fallthru
    _
  // Predicated region
  $region6: #{video_vit_forward.8} parent=0 // pred_check
    _
  $region7: #{video_vit_forward.8} parent=0 // pred_check_branch
    %15 = sbr.rel (0) target = $region9
  $region8: #{video_vit_forward.8} parent=0 // pred_region
    _
  $region9: #{video_vit_forward.8} parent=0 // pred_fallthru
    _
  // Predicated region
  $region10: #{video_vit_forward.8} parent=0 // pred_check
    _
  $region11: #{video_vit_forward.8} parent=0 // pred_check_branch
    %17 = sbr.rel (0) target = $region13
  $region12: #{video_vit_forward.8} parent=0 // pred_region
    _
  $region13: #{video_vit_forward.8} parent=0 // pred_fallthru
    _
  // Predicated region
  $region14: #{video_vit_forward.8} parent=0 // pred_check
    _
  $region15: #{video_vit_forward.8} parent=0 // pred_check_branch
    %19 = sbr.rel (0) target = $region17
  $region16: #{video_vit_forward.8} parent=0 // pred_region
    _
  $region17: #{video_vit_forward.8} parent=0 // pred_fallthru
    _
  // Predicated region
  $region18: #{video_vit_forward.8} parent=0 // pred_check
    _
  $region19: #{video_vit_forward.8} parent=0 // pred_check_branch
    %21 = sbr.rel (0) target = $region21
  $region20: #{video_vit_forward.8} parent=0 // pred_region
    _
  $region21: #{video_vit_forward.8} parent=0 // pred_fallthru
    _
  // Predicated region
  $region22: #{video_vit_forward.8} parent=0 // pred_check
    _
  $region23: #{video_vit_forward.8} parent=0 // pred_check_branch
    %23 = sbr.rel (0) target = $region25
  $region24: #{video_vit_forward.8} parent=0 // pred_region
    _
  $region25: #{video_vit_forward.8} parent=0 // pred_fallthru
    _
  // Predicated region
  $region26: #{video_vit_forward.8} parent=0 // pred_check
    _
  $region27: #{video_vit_forward.8} parent=0 // pred_check_branch
    %25 = sbr.rel (0) target = $region29
  $region28: #{video_vit_forward.8} parent=0 // pred_region
    _
  $region29: #{video_vit_forward.8} parent=0 // pred_fallthru
    _
  %p27 = scmp.eq.s32.totalorder 0, 0
  // Predicated region
  $region30: #{video_vit_forward.8} parent=0 // pred_check
    %p28 = pneg %p27
  $region31: #{video_vit_forward.8} parent=0 // pred_check_branch
    %30 = sbr.rel (%p28) target = $region33
  $region32: #{video_vit_forward.8} parent=0 // pred_region
    %v31 = vld [vmem:[%s0] sm:$0xff]
    %v32 = vld [vmem:[%s0 + $0x8] sm:$0xff]
    %v33 = vld [vmem:[%s0 + $0x10] sm:$0xff]
    %v34 = vld [vmem:[%s0 + $0x18] sm:$0xff]
    %v35 = vld [vmem:[%s0 + $0x20] sm:$0xff]
    %vm36 = vcmask 261120
    %v37 = vsel %vm36, %v31, 0.0
    %38 = vadd.xlane.f32.xlu0 %v37
    %v39 = vpop.xlane.xlu0 %38
    %v40 = vsel %vm36, %v32, 0.0
    %41 = vadd.xlane.f32.xlu0 %v40
    %v42 = vpop.xlane.xlu0 %41
    %v43 = vsel %vm36, %v33, 0.0
    %44 = vadd.xlane.f32.xlu0 %v43
    %v45 = vpop.xlane.xlu0 %44
    %v46 = vsel %vm36, %v34, 0.0
    %47 = vadd.xlane.f32.xlu0 %v46
    %v48 = vpop.xlane.xlu0 %47
    %v49 = vsel %vm36, %v35, 0.0
    %50 = vadd.xlane.f32.xlu0 %v49
    %v51 = vpop.xlane.xlu0 %50
    %v52 = vrcp.pop 32.0
    %v53 = vmul.f32 32.0, %v52
    %v54 = vsub.f32 1.0, %v53
    %v55 = vmul.f32 %v52, %v54
    %v56 = vadd.f32 %v52, %v55
    %vm57 = vweird.f32 %v52
    %v58 = vsel %vm57, %v52, %v56
    %v59 = vmul.f32 %v39, %v58
    %v60 = vmul.f32 %v42, %v58
    %v61 = vmul.f32 %v45, %v58
    %v62 = vmul.f32 %v48, %v58
    %v63 = vmul.f32 %v51, %v58
    %v64 = vsub.f32 %v31, %v59
    %v65 = vsub.f32 %v32, %v60
    %v66 = vsub.f32 %v33, %v61
    %v67 = vsub.f32 %v34, %v62
    %v68 = vsub.f32 %v35, %v63
    %v69 = vmul.f32 %v64, %v64
    %v70 = vmul.f32 %v65, %v65
    %v71 = vmul.f32 %v66, %v66
    %v72 = vmul.f32 %v67, %v67
    %v73 = vmul.f32 %v68, %v68
    %v74 = vsel %vm36, %v69, 0.0
    %75 = vadd.xlane.f32.xlu0 %v74
    %v76 = vpop.xlane.xlu0 %75
    %v77 = vsel %vm36, %v70, 0.0
    %78 = vadd.xlane.f32.xlu0 %v77
    %v79 = vpop.xlane.xlu0 %78
    %v80 = vsel %vm36, %v71, 0.0
    %81 = vadd.xlane.f32.xlu0 %v80
    %v82 = vpop.xlane.xlu0 %81
    %v83 = vsel %vm36, %v72, 0.0
    %84 = vadd.xlane.f32.xlu0 %v83
    %v85 = vpop.xlane.xlu0 %84
    %v86 = vsel %vm36, %v73, 0.0
    %87 = vadd.xlane.f32.xlu0 %v86
    %v88 = vpop.xlane.xlu0 %87
    %v89 = vmul.f32 %v76, %v58
    %v90 = vmul.f32 %v79, %v58
    %v91 = vmul.f32 %v82, %v58
    %v92 = vmul.f32 %v85, %v58
    %v93 = vmul.f32 %v88, %v58
    %v94 = vadd.f32 %v89, 1e-05
    %v95 = vadd.f32 %v90, 1e-05
    %v96 = vadd.f32 %v91, 1e-05
    %v97 = vadd.f32 %v92, 1e-05
    %v98 = vadd.f32 %v93, 1e-05
    %v99 = vrsqrt.pop %v94
    %v100 = vmul.f32 %v99, %v94
    %v101 = vmul.f32 %v100, %v99
    %v102 = vmul.f32 0.5, %v101
    %v103 = vsub.f32 1.5, %v102
    %v104 = vmul.f32 %v99, %v103
    %vm105 = vweird.f32 %v94
    %vm106 = vweird.f32 %v99
    %vm107 = vmor %vm105, %vm106
    %v108 = vsel %vm107, %v99, %v104
    %v109 = vrsqrt.pop %v95
    %v110 = vmul.f32 %v109, %v95
    %v111 = vmul.f32 %v110, %v109
    %v112 = vmul.f32 0.5, %v111
    %v113 = vsub.f32 1.5, %v112
    %v114 = vmul.f32 %v109, %v113
    %vm115 = vweird.f32 %v95
    %vm116 = vweird.f32 %v109
    %vm117 = vmor %vm115, %vm116
    %v118 = vsel %vm117, %v109, %v114
    %v119 = vrsqrt.pop %v96
    %v120 = vmul.f32 %v119, %v96
    %v121 = vmul.f32 %v120, %v119
    %v122 = vmul.f32 0.5, %v121
    %v123 = vsub.f32 1.5, %v122
    %v124 = vmul.f32 %v119, %v123
    %vm125 = vweird.f32 %v96
    %vm126 = vweird.f32 %v119
    %vm127 = vmor %vm125, %vm126
    %v128 = vsel %vm127, %v119, %v124
    %v129 = vrsqrt.pop %v97
    %v130 = vmul.f32 %v129, %v97
    %v131 = vmul.f32 %v130, %v129
    %v132 = vmul.f32 0.5, %v131
    %v133 = vsub.f32 1.5, %v132
    %v134 = vmul.f32 %v129, %v133
    %vm135 = vweird.f32 %v97
    %vm136 = vweird.f32 %v129
    %vm137 = vmor %vm135, %vm136
    %v138 = vsel %vm137, %v129, %v134
    %v139 = vrsqrt.pop %v98
    %v140 = vmul.f32 %v139, %v98
    %v141 = vmul.f32 %v140, %v139
    %v142 = vmul.f32 0.5, %v141
    %v143 = vsub.f32 1.5, %v142
    %v144 = vmul.f32 %v139, %v143
    %vm145 = vweird.f32 %v98
    %vm146 = vweird.f32 %v139
    %vm147 = vmor %vm145, %vm146
    %v148 = vsel %vm147, %v139, %v144
    %v149 = vmul.f32 %v64, %v108
    %v150 = vmul.f32 %v65, %v118
    %v151 = vmul.f32 %v66, %v128
    %v152 = vmul.f32 %v67, %v138
    %v153 = vmul.f32 %v68, %v148
    %v154 = vld [vmem:[%s1] sm:$0x1]
    %v156 = vperm.slane %v154, 0
    %v158 = vmul.f32 %v149, %v156
    %v159 = vmul.f32 %v150, %v156
    %v160 = vmul.f32 %v151, %v156
    %v161 = vmul.f32 %v152, %v156
    %v162 = vmul.f32 %v153, %v156
    %v163 = vld [vmem:[%s2] sm:$0x1]
    %v165 = vperm.slane %v163, 0
    %v167 = vadd.f32 %v158, %v165
    %v168 = vadd.f32 %v159, %v165
    %v169 = vadd.f32 %v160, %v165
    %v170 = vadd.f32 %v161, %v165
    %v171 = vadd.f32 %v162, %v165
    %v172 = vpack.c.bf16 %v167, %v167
    %v173 = vpack.c.bf16 %v168, %v168
    %v174 = vpack.c.bf16 %v169, %v169
    %v175 = vpack.c.bf16 %v170, %v170
    %v176 = vpack.c.bf16 %v171, %v171
    %vm177 = vcmask 257024
    %178 = vst.msk [vmem:[#allocation2] sm:$0xf] %vm177, %v172
    %179 = vst.msk [vmem:[#allocation2 + $0x4] sm:$0xf] %vm177, %v173
    %180 = vst.msk [vmem:[#allocation2 + $0x8] sm:$0xf] %vm177, %v174
    %181 = vst.msk [vmem:[#allocation2 + $0xc] sm:$0xf] %vm177, %v175
    %182 = vst.msk [vmem:[#allocation2 + $0x10] sm:$0xf] %vm177, %v176
    %183 = vst.msk [vmem:[#allocation3] sm:$0xff] %vm36, 0.0
    %184 = vst.msk [vmem:[#allocation3 + $0x8] sm:$0xff] %vm36, 0.0
    %185 = vst.msk [vmem:[#allocation3 + $0x10] sm:$0xff] %vm36, 0.0
    %186 = vst.msk [vmem:[#allocation3 + $0x18] sm:$0xff] %vm36, 0.0
    %187 = vst.msk [vmem:[#allocation3 + $0x20] sm:$0xff] %vm36, 0.0
  $region33: #{video_vit_forward.8} parent=0 // pred_fallthru
    _
  %v188 = vld [vmem:[#allocation2] sm:$0xf]
  %v189 = vld [vmem:[#allocation2 + $0x4] sm:$0xf]
  %v190 = vld [vmem:[#allocation2 + $0x8] sm:$0xf]
  %v191 = vld [vmem:[#allocation2 + $0xc] sm:$0xf]
  %v192 = vld [vmem:[#allocation2 + $0x10] sm:$0xf]
  %v193 = vld [vmem:[%s3] sm:$0xf]
  %v194 = vld [vmem:[%s3 + $0x4] sm:$0xf]
  %v195 = vld [vmem:[%s3 + $0x8] sm:$0xf]
  %v196 = vld [vmem:[%s3 + $0xc] sm:$0xf]
  %v197 = vld [vmem:[%s4] sm:$0x1]
  %v199 = vperm.slane %v197, 0
  %v206 = vunpack.c.l.b16 %v188
  %v207 = vunpack.c.l.b16 %v189
  %v208 = vunpack.c.l.b16 %v190
  %v209 = vunpack.c.l.b16 %v191
  %v210 = vunpack.c.l.b16 %v192
  %v211 = vpack.c.b16 %v207, %v206
  %v212 = vpack.c.b16 %v209, %v208
  %v213 = vpack.c.b16 %v210, %v210
  %v218 = vunpack.c.l.b16 %v193
  %v219 = vunpack.c.l.b16 %v194
  %v220 = vunpack.c.l.b16 %v195
  %v221 = vunpack.c.l.b16 %v196
  %v222 = vpack.c.b16 %v219, %v218
  %v223 = vpack.c.b16 %v221, %v220
  %vm226 = vcmask 261120
  %v228 = vsel %vm226, %v211, 0
  %v231 = vsel %vm226, %v212, 0
  %v234 = vsel %vm226, %v213, 0
  %236 = vmatpush.bf16.msra.mxu0 0
  %237 = vmatpush.bf16.msra.mxu0 0
  %238 = vmatpush.bf16.msra.mxu0 0
  %239 = vmatpush.bf16.msra.mxu0 0
  %240 = vmatpush.bf16.msra.mxu0 0
  %241 = vmatpush.bf16.msra.mxu0 0
  %242 = vmatpush.bf16.msra.mxu0 %v223
  %243 = vmatpush.bf16.msra.mxu0 %v222
  %244 = vmatmul.bf16.gmra.mxu0 %v228
  %v245 = vpop.f32.mrf.mxu0
  %v246 = vadd.f32 %v199, %v245
  %v247 = vpop.f32.mrf.mxu0
  %v248 = vadd.f32 %v199, %v247
  %249 = vmatmul.bf16.gmra.mxu0 %v231
  %v250 = vpop.f32.mrf.mxu0
  %v251 = vadd.f32 %v199, %v250
  %v252 = vpop.f32.mrf.mxu0
  %v253 = vadd.f32 %v199, %v252
  %254 = vmatmul.bf16.gmra.mxu0 %v234
  %v255 = vpop.f32.mrf.mxu0
  %v256 = vadd.f32 %v199, %v255
  %v257 = vpop.f32.mrf.mxu0
  %258 = vdwg.mxu0
  %v259 = vmul.f32 %v246, 0.5
  %v260 = vmul.f32 %v248, 0.5
  %v261 = vmul.f32 %v251, 0.5
  %v262 = vmul.f32 %v253, 0.5
  %v263 = vmul.f32 %v256, 0.5
  %v264 = vmul.f32 %v246, 0.70710677
  %v265 = vmul.f32 %v248, 0.70710677
  %v266 = vmul.f32 %v251, 0.70710677
  %v267 = vmul.f32 %v253, 0.70710677
  %v268 = vmul.f32 %v256, 0.70710677
  %v269 = vand.u32 2147483647, %v264
  %v270 = vand.u32 2147483647, %v265
  %v271 = vand.u32 2147483647, %v266
  %v272 = vand.u32 2147483647, %v267
  %v273 = vand.u32 2147483647, %v268
  %v274 = vmul.f32 %v269, 0.3275911
  %v275 = vmul.f32 %v270, 0.3275911
  %v276 = vmul.f32 %v271, 0.3275911
  %v277 = vmul.f32 %v272, 0.3275911
  %v278 = vmul.f32 %v273, 0.3275911
  %v279 = vadd.f32 %v274, 1.0
  %v280 = vadd.f32 %v275, 1.0
  %v281 = vadd.f32 %v276, 1.0
  %v282 = vadd.f32 %v277, 1.0
  %v283 = vadd.f32 %v278, 1.0
  %v284 = vrcp.pop %v279
  %v285 = vmul.f32 %v279, %v284
  %v286 = vsub.f32 1.0, %v285
  %v287 = vmul.f32 %v284, %v286
  %v288 = vadd.f32 %v284, %v287
  %vm289 = vweird.f32 %v279
  %vm290 = vweird.f32 %v284
  %vm291 = vmor %vm289, %vm290
  %v292 = vsel %vm291, %v284, %v288
  %v293 = vand.u32 2147483647, %v279
  %vm294 = vcmp.eq.f32.partialorder %v293, 8.507059e+37
  %v295 = vand.u32 %v279, 2147483648
  %v296 = vor.u32 1.1754944e-38, %v295
  %v297 = vsel %vm294, %v296, %v292
  %v298 = vmul.f32 1.0, %v297
  %v299 = vrcp.pop %v280
  %v300 = vmul.f32 %v280, %v299
  %v301 = vsub.f32 1.0, %v300
  %v302 = vmul.f32 %v299, %v301
  %v303 = vadd.f32 %v299, %v302
  %vm304 = vweird.f32 %v280
  %vm305 = vweird.f32 %v299
  %vm306 = vmor %vm304, %vm305
  %v307 = vsel %vm306, %v299, %v303
  %v308 = vand.u32 2147483647, %v280
  %vm309 = vcmp.eq.f32.partialorder %v308, 8.507059e+37
  %v310 = vand.u32 %v280, 2147483648
  %v311 = vor.u32 1.1754944e-38, %v310
  %v312 = vsel %vm309, %v311, %v307
  %v313 = vmul.f32 1.0, %v312
  %v314 = vrcp.pop %v281
  %v315 = vmul.f32 %v281, %v314
  %v316 = vsub.f32 1.0, %v315
  %v317 = vmul.f32 %v314, %v316
  %v318 = vadd.f32 %v314, %v317
  %vm319 = vweird.f32 %v281
  %vm320 = vweird.f32 %v314
  %vm321 = vmor %vm319, %vm320
  %v322 = vsel %vm321, %v314, %v318
  %v323 = vand.u32 2147483647, %v281
  %vm324 = vcmp.eq.f32.partialorder %v323, 8.507059e+37
  %v325 = vand.u32 %v281, 2147483648
  %v326 = vor.u32 1.1754944e-38, %v325
  %v327 = vsel %vm324, %v326, %v322
  %v328 = vmul.f32 1.0, %v327
  %v329 = vrcp.pop %v282
  %v330 = vmul.f32 %v282, %v329
  %v331 = vsub.f32 1.0, %v330
  %v332 = vmul.f32 %v329, %v331
  %v333 = vadd.f32 %v329, %v332
  %vm334 = vweird.f32 %v282
  %vm335 = vweird.f32 %v329
  %vm336 = vmor %vm334, %vm335
  %v337 = vsel %vm336, %v329, %v333
  %v338 = vand.u32 2147483647, %v282
  %vm339 = vcmp.eq.f32.partialorder %v338, 8.507059e+37
  %v340 = vand.u32 %v282, 2147483648
  %v341 = vor.u32 1.1754944e-38, %v340
  %v342 = vsel %vm339, %v341, %v337
  %v343 = vmul.f32 1.0, %v342
  %v344 = vrcp.pop %v283
  %v345 = vmul.f32 %v283, %v344
  %v346 = vsub.f32 1.0, %v345
  %v347 = vmul.f32 %v344, %v346
  %v348 = vadd.f32 %v344, %v347
  %vm349 = vweird.f32 %v283
  %vm350 = vweird.f32 %v344
  %vm351 = vmor %vm349, %vm350
  %v352 = vsel %vm351, %v344, %v348
  %v353 = vand.u32 2147483647, %v283
  %vm354 = vcmp.eq.f32.partialorder %v353, 8.507059e+37
  %v355 = vand.u32 %v283, 2147483648
  %v356 = vor.u32 1.1754944e-38, %v355
  %v357 = vsel %vm354, %v356, %v352
  %v358 = vmul.f32 1.0, %v357
  %v359 = vmul.f32 %v298, 1.0614054
  %v360 = vmul.f32 %v313, 1.0614054
  %v361 = vmul.f32 %v328, 1.0614054
  %v362 = vmul.f32 %v343, 1.0614054
  %v363 = vmul.f32 %v358, 1.0614054
  %v364 = vsub.f32 %v359, 1.4531521
  %v365 = vsub.f32 %v360, 1.4531521
  %v366 = vsub.f32 %v361, 1.4531521
  %v367 = vsub.f32 %v362, 1.4531521
  %v368 = vsub.f32 %v363, 1.4531521
  %v369 = vmul.f32 %v364, %v298
  %v370 = vmul.f32 %v365, %v313
  %v371 = vmul.f32 %v366, %v328
  %v372 = vmul.f32 %v367, %v343
  %v373 = vmul.f32 %v368, %v358
  %v374 = vadd.f32 %v369, 1.4214138
  %v375 = vadd.f32 %v370, 1.4214138
  %v376 = vadd.f32 %v371, 1.4214138
  %v377 = vadd.f32 %v372, 1.4214138
  %v378 = vadd.f32 %v373, 1.4214138
  %v379 = vmul.f32 %v374, %v298
  %v380 = vmul.f32 %v375, %v313
  %v381 = vmul.f32 %v376, %v328
  %v382 = vmul.f32 %v377, %v343
  %v383 = vmul.f32 %v378, %v358
  %v384 = vsub.f32 %v379, 0.28449672
  %v385 = vsub.f32 %v380, 0.28449672
  %v386 = vsub.f32 %v381, 0.28449672
  %v387 = vsub.f32 %v382, 0.28449672
  %v388 = vsub.f32 %v383, 0.28449672
  %v389 = vmul.f32 %v384, %v298
  %v390 = vmul.f32 %v385, %v313
  %v391 = vmul.f32 %v386, %v328
  %v392 = vmul.f32 %v387, %v343
  %v393 = vmul.f32 %v388, %v358
  %v394 = vadd.f32 %v389, 0.2548296
  %v395 = vadd.f32 %v390, 0.2548296
  %v396 = vadd.f32 %v391, 0.2548296
  %v397 = vadd.f32 %v392, 0.2548296
  %v398 = vadd.f32 %v393, 0.2548296
  %v399 = vmul.f32 %v394, %v298
  %v400 = vmul.f32 %v395, %v313
  %v401 = vmul.f32 %v396, %v328
  %v402 = vmul.f32 %v397, %v343
  %v403 = vmul.f32 %v398, %v358
  %v404 = vsub.f32 0.0, %v269
  %v405 = vsub.f32 0.0, %v270
  %v406 = vsub.f32 0.0, %v271
  %v407 = vsub.f32 0.0, %v272
  %v408 = vsub.f32 0.0, %v273
  %v409 = vmul.f32 %v404, %v269
  %v410 = vmul.f32 %v405, %v270
  %v411 = vmul.f32 %v406, %v271
  %v412 = vmul.f32 %v407, %v272
  %v413 = vmul.f32 %v408, %v273
  %v414 = vmul.f32 %v409, 1.442695
  %v415 = vpow.pop %v414
  %v416 = vmul.f32 %v410, 1.442695
  %v417 = vpow.pop %v416
  %v418 = vmul.f32 %v411, 1.442695
  %v419 = vpow.pop %v418
  %v420 = vmul.f32 %v412, 1.442695
  %v421 = vpow.pop %v420
  %v422 = vmul.f32 %v413, 1.442695
  %v423 = vpow.pop %v422
  %v424 = vmul.f32 %v399, %v415
  %v425 = vmul.f32 %v400, %v417
  %v426 = vmul.f32 %v401, %v419
  %v427 = vmul.f32 %v402, %v421
  %v428 = vmul.f32 %v403, %v423
  %v429 = vsub.f32 1.0, %v424
  %v430 = vsub.f32 1.0, %v425
  %v431 = vsub.f32 1.0, %v426
  %v432 = vsub.f32 1.0, %v427
  %v433 = vsub.f32 1.0, %v428
  %vm434 = vcmp.ge.f32.partialorder %v264, 0.0
  %vm435 = vcmp.ge.f32.partialorder %v265, 0.0
  %vm436 = vcmp.ge.f32.partialorder %v266, 0.0
  %vm437 = vcmp.ge.f32.partialorder %v267, 0.0
  %vm438 = vcmp.ge.f32.partialorder %v268, 0.0
  %v439 = vsub.f32 0.0, %v429
  %v440 = vsub.f32 0.0, %v430
  %v441 = vsub.f32 0.0, %v431
  %v442 = vsub.f32 0.0, %v432
  %v443 = vsub.f32 0.0, %v433
  %v444 = vsel %vm434, %v429, %v439
  %v445 = vsel %vm435, %v430, %v440
  %v446 = vsel %vm436, %v431, %v441
  %v447 = vsel %vm437, %v432, %v442
  %v448 = vsel %vm438, %v433, %v443
  %v449 = vadd.f32 %v444, 1.0
  %v450 = vadd.f32 %v445, 1.0
  %v451 = vadd.f32 %v446, 1.0
  %v452 = vadd.f32 %v447, 1.0
  %v453 = vadd.f32 %v448, 1.0
  %v454 = vmul.f32 %v259, %v449
  %v455 = vmul.f32 %v260, %v450
  %v456 = vmul.f32 %v261, %v451
  %v457 = vmul.f32 %v262, %v452
  %v458 = vmul.f32 %v263, %v453
  %v459 = vld [vmem:[#allocation3] sm:$0xff]
  %v460 = vld [vmem:[#allocation3 + $0x8] sm:$0xff]
  %v461 = vld [vmem:[#allocation3 + $0x10] sm:$0xff]
  %v462 = vld [vmem:[#allocation3 + $0x18] sm:$0xff]
  %v463 = vld [vmem:[#allocation3 + $0x20] sm:$0xff]
  %v464 = vpack.c.bf16 %v455, %v454
  %v465 = vpack.c.bf16 %v457, %v456
  %v466 = vpack.c.bf16 %v458, %v458
  %v467 = vld [vmem:[%s5] sm:$0xf]
  %v468 = vld [vmem:[%s5 + $0x4] sm:$0xf]
  %v469 = vld [vmem:[%s5 + $0x8] sm:$0xf]
  %v470 = vld [vmem:[%s5 + $0xc] sm:$0xf]
  %v471 = vld [vmem:[%s5 + $0x10] sm:$0xf]
  %v472 = vld [vmem:[%s5 + $0x14] sm:$0xf]
  %v473 = vld [vmem:[%s5 + $0x18] sm:$0xf]
  %v474 = vld [vmem:[%s5 + $0x1c] sm:$0xf]
  %v483 = vunpack.c.l.b16 %v467
  %v484 = vunpack.c.l.b16 %v468
  %v485 = vunpack.c.l.b16 %v469
  %v486 = vunpack.c.l.b16 %v470
  %v487 = vunpack.c.l.b16 %v471
  %v488 = vunpack.c.l.b16 %v472
  %v489 = vunpack.c.l.b16 %v473
  %v490 = vunpack.c.l.b16 %v474
  %v491 = vpack.c.b16 %v484, %v483
  %v492 = vpack.c.b16 %v486, %v485
  %v493 = vpack.c.b16 %v488, %v487
  %v494 = vpack.c.b16 %v490, %v489
  %vm499 = vcmask 523264
  %v501 = vsel %vm499, %v464, 0
  %v504 = vsel %vm499, %v465, 0
  %v507 = vsel %vm499, %v466, 0
  %509 = vmatpush.bf16.msra.mxu0 0
  %510 = vmatpush.bf16.msra.mxu0 0
  %511 = vmatpush.bf16.msra.mxu0 0
  %512 = vmatpush.bf16.msra.mxu0 0
  %513 = vmatpush.bf16.msra.mxu0 %v494
  %514 = vmatpush.bf16.msra.mxu0 %v493
  %515 = vmatpush.bf16.msra.mxu0 %v492
  %516 = vmatpush.bf16.msra.mxu0 %v491
  %517 = vmatmul.bf16.gmra.mxu0 %v501
  %v518 = vpop.f32.mrf.mxu0
  %v519 = vadd.f32 0.0, %v518
  %v520 = vpop.f32.mrf.mxu0
  %v521 = vadd.f32 0.0, %v520
  %522 = vmatmul.bf16.gmra.mxu0 %v504
  %v523 = vpop.f32.mrf.mxu0
  %v524 = vadd.f32 0.0, %v523
  %v525 = vpop.f32.mrf.mxu0
  %v526 = vadd.f32 0.0, %v525
  %527 = vmatmul.bf16.gmra.mxu0 %v507
  %v528 = vpop.f32.mrf.mxu0
  %v529 = vadd.f32 0.0, %v528
  %v530 = vpop.f32.mrf.mxu0
  %531 = vdwg.mxu0
  %v532 = vadd.f32 %v459, %v519
  %v533 = vadd.f32 %v460, %v521
  %v534 = vadd.f32 %v461, %v524
  %v535 = vadd.f32 %v462, %v526
  %v536 = vadd.f32 %v463, %v529
  %537 = vst.msk [vmem:[#allocation3] sm:$0xff] %vm226, %v532
  %538 = vst.msk [vmem:[#allocation3 + $0x8] sm:$0xff] %vm226, %v533
  %539 = vst.msk [vmem:[#allocation3 + $0x10] sm:$0xff] %vm226, %v534
  %540 = vst.msk [vmem:[#allocation3 + $0x18] sm:$0xff] %vm226, %v535
  %541 = vst.msk [vmem:[#allocation3 + $0x20] sm:$0xff] %vm226, %v536
  // Predicated region
  $region34: #{video_vit_forward.8} parent=0 // pred_check
    %p542 = pneg %p27
  $region35: #{video_vit_forward.8} parent=0 // pred_check_branch
    %544 = sbr.rel (%p542) target = $region37
  $region36: #{video_vit_forward.8} parent=0 // pred_region
    %v545 = vld [vmem:[%s0] sm:$0xff]
    %v546 = vld [vmem:[%s0 + $0x8] sm:$0xff]
    %v547 = vld [vmem:[%s0 + $0x10] sm:$0xff]
    %v548 = vld [vmem:[%s0 + $0x18] sm:$0xff]
    %v549 = vld [vmem:[%s0 + $0x20] sm:$0xff]
    %v550 = vld [vmem:[#allocation3] sm:$0xff]
    %v551 = vld [vmem:[#allocation3 + $0x8] sm:$0xff]
    %v552 = vld [vmem:[#allocation3 + $0x10] sm:$0xff]
    %v553 = vld [vmem:[#allocation3 + $0x18] sm:$0xff]
    %v554 = vld [vmem:[#allocation3 + $0x20] sm:$0xff]
    %v555 = vadd.f32 %v545, %v550
    %v556 = vadd.f32 %v546, %v551
    %v557 = vadd.f32 %v547, %v552
    %v558 = vadd.f32 %v548, %v553
    %v559 = vadd.f32 %v549, %v554
    %v560 = vld [vmem:[%s6] sm:$0x1]
    %v562 = vperm.slane %v560, 0
    %v564 = vadd.f32 %v555, %v562
    %v565 = vadd.f32 %v556, %v562
    %v566 = vadd.f32 %v557, %v562
    %v567 = vadd.f32 %v558, %v562
    %v568 = vadd.f32 %v559, %v562
    %569 = vst.msk [vmem:[%s7] sm:$0xff] %vm226, %v564
    %570 = vst.msk [vmem:[%s7 + $0x8] sm:$0xff] %vm226, %v565
    %571 = vst.msk [vmem:[%s7 + $0x10] sm:$0xff] %vm226, %v566
    %572 = vst.msk [vmem:[%s7 + $0x18] sm:$0xff] %vm226, %v567
    %573 = vst.msk [vmem:[%s7 + $0x20] sm:$0xff] %vm226, %v568
  $region37: #{video_vit_forward.8} parent=0 // pred_fallthru
    _
  // Predicated region
  $region38: #{video_vit_forward.8} parent=0 // pred_check
    _
  $region39: #{video_vit_forward.8} parent=0 // pred_check_branch
    %575 = sbr.rel (0) target = $region41
  $region40: #{video_vit_forward.8} parent=0 // pred_region
    _
  $region41: #{video_vit_forward.8} parent=0 // pred_fallthru
    _
  // Predicated region
  $region42: #{video_vit_forward.8} parent=0 // pred_check
    _
  $region43: #{video_vit_forward.8} parent=0 // pred_check_branch
    %577 = sbr.rel (0) target = $region45
  $region44: #{video_vit_forward.8} parent=0 // pred_region
    _
  $region45: #{video_vit_forward.8} parent=0 // pred_fallthru
    _

// kernel: video_vit_forward.7
$region0: #{video_vit_forward.7}
  #allocation0 [shape = 'u32[]', space=smem, size = 0x4, offset = 0x4, fixed_abs, tag = 'smem constant byte address 0x4 - core index']
  #allocation1 [shape = 'u32[72,128]{1,0:T(1,128)}', space=vmem, size = 0x9000, scoped, tag = 'internal scratch']
  #allocation2 [shape = 'bf16[5,4,32]{2,1,0:T(4,128)(2,1)}', space=vmem, size = 0x1400, scoped, tag = 'scratch operand']
  %s0 = inlined_call_operand.vmem [shape: f32[2,4,5,32], index: 0, kind: input, shape index: {}]
  %s1 = inlined_call_operand.vmem [shape: f32[1,32], index: 1, kind: input, shape index: {}]
  %s2 = inlined_call_operand.vmem [shape: f32[1,32], index: 2, kind: input, shape index: {}]
  %s3 = inlined_call_operand.vmem [shape: bf16[32,96], index: 3, kind: input, shape index: {}]
  %s4 = inlined_call_operand.vmem [shape: bf16[32,32], index: 4, kind: input, shape index: {}]
  %s5 = inlined_call_operand.vmem [shape: f32[1,32], index: 5, kind: input, shape index: {}]
  %s6 = inlined_call_operand.vmem [shape: f32[2,4,5,32], index: 6, kind: output, shape index: {}]
  %s7 = sld [smem:[#allocation0]]
  $region57: #{video_vit_forward.7} parent=0
    _
  %s9 = ssub.s32 1, %s7
  %s10 = scalar_select 0, %s9, %s7
  loop: start=0, step=1, limit=4
  $region2: #{video_vit_forward.7} parent=0 // loop_pre_header
    _
  $region3: #{video_vit_forward.7} parent=0 // loop_header
    %s12 = sphi 0, %s16
    %p13 = scmp.ge.s32.totalorder %s12, 4
    %s22 = sphi 0, %s24
    %s25 = sphi 0, %s22
    %s26 = sphi 0, %s25
    %s42 = sphi 0, %s26
    %s46 = sphi 0, %s46
    %s48 = sphi 0, %s46
    %s49 = sphi 0, %s48
    %s63 = sphi 0, %s49
    %s67 = sphi 0, %s67
    %s69 = sphi 0, %s67
    %s70 = sphi 0, %s69
    %s84 = sphi 0, %s70
    %s88 = sphi 0, %s88
    %s90 = sphi 0, %s88
    %s91 = sphi 0, %s90
    %s105 = sphi 0, %s91
    %s109 = sphi 0, %s109
    %s111 = sphi 0, %s109
    %s112 = sphi 0, %s111
    %s126 = sphi 0, %s112
    %s130 = sphi 0, %s130
    %s132 = sphi 0, %s130
    %s133 = sphi 0, %s132
    %s147 = sphi 0, %s133
    %s153 = sphi 0, %s155
    %s156 = sphi 0, %s153
    %s157 = sphi 0, %s156
    %s173 = sphi 0, %s157
  $region4: #{video_vit_forward.7} parent=0 // loop_header_branch
    %15 = sbr.rel (%p13) target = $region8
  $region5: #{video_vit_forward.7} parent=0 // loop_body
    %s17 = ssub.s32 %s12, 1
    %s18 = ssub.s32 %s12, 2
    %s19 = sadd.s32 %s12, 1
    %s20 = ssub.s32 %s12, %s19
    %p21 = scmp.eq.s32.totalorder %s20, 0
    %s23 = sadd.s32 %s22, 1
    %s24 = scalar_select %p21, %s22, %s23
    %p27 = pneg %p21
    %p28 = scmp.eq.s32.totalorder %s12, 1
    %p29 = por %p27, %p28
    %p30 = scmp.ne.s32.totalorder %s22, %s25
    %p31 = scmp.eq.s32.totalorder %s12, 0
    %p32 = por %p30, %p31
    %p33 = scmp.ne.s32.totalorder %s22, %s25
    %p34 = scmp.eq.s32.totalorder %s17, 1
    %p35 = por %p33, %p34
    %p36 = scmp.ne.s32.totalorder %s25, %s26
    %p37 = scmp.eq.s32.totalorder %s17, 0
    %p38 = por %p36, %p37
    %p39 = scmp.ne.s32.totalorder %s25, %s26
    %p40 = scmp.eq.s32.totalorder %s18, 1
    %p41 = por %p39, %p40
    %p43 = scmp.ne.s32.totalorder %s26, %s42
    %p44 = scmp.eq.s32.totalorder %s18, 0
    %p45 = por %p43, %p44
    %s47 = sadd.s32 %s46, 1
    %p50 = scmp.eq.s32.totalorder %s12, 1
    %p51 = scmp.ne.s32.totalorder %s46, %s48
    %p52 = scmp.eq.s32.totalorder %s12, 0
    %p53 = por %p51, %p52
    %p54 = scmp.ne.s32.totalorder %s46, %s48
    %p55 = scmp.eq.s32.totalorder %s17, 1
    %p56 = por %p54, %p55
    %p57 = scmp.ne.s32.totalorder %s48, %s49
    %p58 = scmp.eq.s32.totalorder %s17, 0
    %p59 = por %p57, %p58
    %p60 = scmp.ne.s32.totalorder %s48, %s49
    %p61 = scmp.eq.s32.totalorder %s18, 1
    %p62 = por %p60, %p61
    %p64 = scmp.ne.s32.totalorder %s49, %s63
    %p65 = scmp.eq.s32.totalorder %s18, 0
    %p66 = por %p64, %p65
    %s68 = sadd.s32 %s67, 1
    %p71 = scmp.eq.s32.totalorder %s12, 1
    %p72 = scmp.ne.s32.totalorder %s67, %s69
    %p73 = scmp.eq.s32.totalorder %s12, 0
    %p74 = por %p72, %p73
    %p75 = scmp.ne.s32.totalorder %s67, %s69
    %p76 = scmp.eq.s32.totalorder %s17, 1
    %p77 = por %p75, %p76
    %p78 = scmp.ne.s32.totalorder %s69, %s70
    %p79 = scmp.eq.s32.totalorder %s17, 0
    %p80 = por %p78, %p79
    %p81 = scmp.ne.s32.totalorder %s69, %s70
    %p82 = scmp.eq.s32.totalorder %s18, 1
    %p83 = por %p81, %p82
    %p85 = scmp.ne.s32.totalorder %s70, %s84
    %p86 = scmp.eq.s32.totalorder %s18, 0
    %p87 = por %p85, %p86
    %s89 = sadd.s32 %s88, 1
    %p92 = scmp.eq.s32.totalorder %s12, 1
    %p93 = scmp.ne.s32.totalorder %s88, %s90
    %p94 = scmp.eq.s32.totalorder %s12, 0
    %p95 = por %p93, %p94
    %p96 = scmp.ne.s32.totalorder %s88, %s90
    %p97 = scmp.eq.s32.totalorder %s17, 1
    %p98 = por %p96, %p97
    %p99 = scmp.ne.s32.totalorder %s90, %s91
    %p100 = scmp.eq.s32.totalorder %s17, 0
    %p101 = por %p99, %p100
    %p102 = scmp.ne.s32.totalorder %s90, %s91
    %p103 = scmp.eq.s32.totalorder %s18, 1
    %p104 = por %p102, %p103
    %p106 = scmp.ne.s32.totalorder %s91, %s105
    %p107 = scmp.eq.s32.totalorder %s18, 0
    %p108 = por %p106, %p107
    %s110 = sadd.s32 %s109, 1
    %p113 = scmp.eq.s32.totalorder %s12, 1
    %p114 = scmp.ne.s32.totalorder %s109, %s111
    %p115 = scmp.eq.s32.totalorder %s12, 0
    %p116 = por %p114, %p115
    %p117 = scmp.ne.s32.totalorder %s109, %s111
    %p118 = scmp.eq.s32.totalorder %s17, 1
    %p119 = por %p117, %p118
    %p120 = scmp.ne.s32.totalorder %s111, %s112
    %p121 = scmp.eq.s32.totalorder %s17, 0
    %p122 = por %p120, %p121
    %p123 = scmp.ne.s32.totalorder %s111, %s112
    %p124 = scmp.eq.s32.totalorder %s18, 1
    %p125 = por %p123, %p124
    %p127 = scmp.ne.s32.totalorder %s112, %s126
    %p128 = scmp.eq.s32.totalorder %s18, 0
    %p129 = por %p127, %p128
    %s131 = sadd.s32 %s130, 1
    %p134 = scmp.eq.s32.totalorder %s12, 1
    %p135 = scmp.ne.s32.totalorder %s130, %s132
    %p136 = scmp.eq.s32.totalorder %s12, 0
    %p137 = por %p135, %p136
    %p138 = scmp.ne.s32.totalorder %s130, %s132
    %p139 = scmp.eq.s32.totalorder %s17, 1
    %p140 = por %p138, %p139
    %p141 = scmp.ne.s32.totalorder %s132, %s133
    %p142 = scmp.eq.s32.totalorder %s17, 0
    %p143 = por %p141, %p142
    %p144 = scmp.ne.s32.totalorder %s132, %s133
    %p145 = scmp.eq.s32.totalorder %s18, 1
    %p146 = por %p144, %p145
    %p148 = scmp.ne.s32.totalorder %s133, %s147
    %p149 = scmp.eq.s32.totalorder %s18, 0
    %p150 = por %p148, %p149
    %s151 = ssub.s32 %s12, %s19
    %p152 = scmp.eq.s32.totalorder %s151, 0
    %s154 = sadd.s32 %s153, 1
    %s155 = scalar_select %p152, %s153, %s154
    %p158 = pneg %p152
    %p159 = scmp.eq.s32.totalorder %s12, 1
    %p160 = por %p158, %p159
    %p161 = scmp.ne.s32.totalorder %s153, %s156
    %p162 = scmp.eq.s32.totalorder %s12, 0
    %p163 = por %p161, %p162
    %p164 = scmp.ne.s32.totalorder %s153, %s156
    %p165 = scmp.eq.s32.totalorder %s17, 1
    %p166 = por %p164, %p165
    %p167 = scmp.ne.s32.totalorder %s156, %s157
    %p168 = scmp.eq.s32.totalorder %s17, 0
    %p169 = por %p167, %p168
    %p170 = scmp.ne.s32.totalorder %s156, %s157
    %p171 = scmp.eq.s32.totalorder %s18, 1
    %p172 = por %p170, %p171
    %p174 = scmp.ne.s32.totalorder %s157, %s173
    %p175 = scmp.eq.s32.totalorder %s18, 0
    %p176 = por %p174, %p175
    %p177 = scmp.le.s32.totalorder 1, %s12
    %p178 = scmp.lt.s32.totalorder %s12, 3
    %p179 = pnand %p177, %p178
    %p180 = pneg %p179
    // Predicated region
    $region9: #{video_vit_forward.7} parent=5 // pred_check
      _
    $region10: #{video_vit_forward.7} parent=5 // pred_check_branch
      %182 = sbr.rel (%p179) target = $region12
    $region11: #{video_vit_forward.7} parent=5 // pred_region
      %s183 = ssub.s32 %s12, 1
      // Predicated region
      $region13: #{video_vit_forward.7} parent=11 // pred_check
        %p184 = pneg %p59
      $region14: #{video_vit_forward.7} parent=11 // pred_check_branch
        %186 = sbr.rel (%p184) target = $region16
      $region15: #{video_vit_forward.7} parent=11 // pred_region
        _
      $region16: #{video_vit_forward.7} parent=11 // pred_fallthru
        _
      // Predicated region
      $region17: #{video_vit_forward.7} parent=11 // pred_check
        %p187 = pneg %p80
      $region18: #{video_vit_forward.7} parent=11 // pred_check_branch
        %189 = sbr.rel (%p187) target = $region20
      $region19: #{video_vit_forward.7} parent=11 // pred_region
        _
      $region20: #{video_vit_forward.7} parent=11 // pred_fallthru
        _
      // Predicated region
      $region21: #{video_vit_forward.7} parent=11 // pred_check
        %p190 = pneg %p101
      $region22: #{video_vit_forward.7} parent=11 // pred_check_branch
        %192 = sbr.rel (%p190) target = $region24
      $region23: #{video_vit_forward.7} parent=11 // pred_region
        _
      $region24: #{video_vit_forward.7} parent=11 // pred_fallthru
        _
      // Predicated region
      $region25: #{video_vit_forward.7} parent=11 // pred_check
        %p193 = pneg %p122
      $region26: #{video_vit_forward.7} parent=11 // pred_check_branch
        %195 = sbr.rel (%p193) target = $region28
      $region27: #{video_vit_forward.7} parent=11 // pred_region
        _
      $region28: #{video_vit_forward.7} parent=11 // pred_fallthru
        _
      // Predicated region
      $region29: #{video_vit_forward.7} parent=11 // pred_check
        %p196 = pneg %p143
      $region30: #{video_vit_forward.7} parent=11 // pred_check_branch
        %198 = sbr.rel (%p196) target = $region32
      $region31: #{video_vit_forward.7} parent=11 // pred_region
        _
      $region32: #{video_vit_forward.7} parent=11 // pred_fallthru
        _
    $region12: #{video_vit_forward.7} parent=5 // pred_fallthru
      _
    %p199 = scmp.lt.s32.totalorder %s12, 2
    // Predicated region
    $region33: #{video_vit_forward.7} parent=5 // pred_check
      %p200 = pneg %p199
    $region34: #{video_vit_forward.7} parent=5 // pred_check_branch
      %202 = sbr.rel (%p200) target = $region36
    $region35: #{video_vit_forward.7} parent=5 // pred_region
      // Predicated region
      $region37: #{video_vit_forward.7} parent=35 // pred_check
        %p203 = pneg %p32
      $region38: #{video_vit_forward.7} parent=35 // pred_check_branch
        %205 = sbr.rel (%p203) target = $region40
      $region39: #{video_vit_forward.7} parent=35 // pred_region
        %p206 = scmp.lt.s32.totalorder %s12, 1
        %s207 = scalar_select %p206, %s12, 1
        %s208 = smul.addr %s207, 4
        %s209 = smul.addr %s208, 8
        %s210 = scalar_lea.vmem %s0, %s209
      $region40: #{video_vit_forward.7} parent=35 // pred_fallthru
        _
    $region36: #{video_vit_forward.7} parent=5 // pred_fallthru
      _
    %p211 = scmp.le.s32.totalorder 1, %s12
    %p212 = scmp.lt.s32.totalorder %s12, 3
    %p213 = pnand %p211, %p212
    %p214 = pneg %p213
    // Predicated region
    $region41: #{video_vit_forward.7} parent=5 // pred_check
      _
    $region42: #{video_vit_forward.7} parent=5 // pred_check_branch
      %216 = sbr.rel (%p213) target = $region44
    $region43: #{video_vit_forward.7} parent=5 // pred_region
      %s217 = ssub.s32 %s12, 1
      %p218 = scmp.lt.s32.totalorder %s17, 1
      %s219 = scalar_select %p218, %s17, 1
      %s220 = smul.addr %s219, 4
      %s221 = smul.addr %s220, 8
      %s222 = scalar_lea.vmem %s0, %s221
      %p223 = pneg %p38
      %p224 = pneg %p35
      %p225 = pneg %p59
      %p226 = pneg %p56
      %p227 = pneg %p80
      %p228 = pneg %p77
      %p229 = pneg %p101
      %p230 = pneg %p98
      %p231 = pneg %p122
      %p232 = pneg %p119
      %p233 = pneg %p143
      %p234 = pneg %p140
      %p235 = pneg %p169
      %p236 = pneg %p166
      %p237 = scmp.lt.s32.totalorder %s17, 1
      %s238 = scalar_select %p237, %s17, 1
      %s239 = smul.addr %s238, 4
      %s240 = smul.addr %s239, 8
      %s241 = scalar_lea.vmem %s6, %s240
      %p242 = scmp.lt.s32.totalorder %s17, 1
      %s243 = scalar_select %p242, %s17, 1
      %s244 = smul.addr %s243, 4
      %s245 = smul.addr %s244, 8
      %s246 = scalar_lea.vmem %s0, %s245
      %p247 = scmp.lt.s32.totalorder %s17, 1
      %s248 = scalar_select %p247, %s17, 1
      %s249 = smul.addr %s248, 4
      %s250 = smul.addr %s249, 8
      %s251 = scalar_lea.vmem %s6, %s250
      %v253 = vld [vmem:[%s246] sm:$0x1f]
      %v254 = vld [vmem:[%s246 + $0x8] sm:$0x1f]
      %v255 = vld [vmem:[%s246 + $0x10] sm:$0x1f]
      %v256 = vld [vmem:[%s246 + $0x18] sm:$0x1f]
      %v257 = vrot.slane %v255, 4
      %vm258 = vcmask 1047556
      %v259 = vsel %vm258, %v257, %v253
      %v260 = vrot.slane %v253, 4
      %v261 = vsel %vm258, %v255, %v260
      %v263 = vunpack.c.l.s4 1983009808
      %v264 = vunpack.c.0.s8 %v263
      %v265 = vperm.slane %v259, %v264
      %v267 = vunpack.c.l.s4 1983009808
      %v268 = vunpack.c.0.s8 %v267
      %v269 = vperm.slane %v261, %v268
      %v270 = vrot.slane %v256, 4
      %v271 = vsel %vm258, %v270, %v254
      %v272 = vrot.slane %v254, 4
      %v273 = vsel %vm258, %v256, %v272
      %v275 = vunpack.c.l.s4 1983009808
      %v276 = vunpack.c.0.s8 %v275
      %v277 = vperm.slane %v271, %v276
      %v279 = vunpack.c.l.s4 1983009808
      %v280 = vunpack.c.0.s8 %v279
      %v281 = vperm.slane %v273, %v280
      %v282 = vrot.slane %v277, 4
      %v283 = vsel %vm258, %v282, %v265
      %v284 = vrot.slane %v265, 4
      %v285 = vsel %vm258, %v277, %v284
      %v287 = vunpack.c.l.s4 1934713408
      %v288 = vunpack.c.0.s8 %v287
      %v289 = vperm.slane %v283, %v288
      %v291 = vunpack.c.l.s4 1934713408
      %v292 = vunpack.c.0.s8 %v291
      %v293 = vperm.slane %v285, %v292
      %v294 = vrot.slane %v281, 4
      %v295 = vsel %vm258, %v294, %v269
      %v296 = vrot.slane %v289, 4
      %v297 = vsel %vm258, 0.0, %v296
      %v298 = vrot.slane %v293, 4
      %v299 = vsel %vm258, 0.0, %v298
      %v301 = vunpack.c.l.s4 1934713408
      %v302 = vunpack.c.0.s8 %v301
      %v303 = vperm.slane %v295, %v302
      %309 = vst [vmem:[#allocation1] ss:$2 sm:$0xff] %v289
      %s310 = scalar_lea.vmem [#allocation1], 1
      %311 = vst [vmem:[%s310] ss:$2 sm:$0xff] %v297
      %s312 = scalar_lea.vmem [#allocation1], 16
      %313 = vst [vmem:[%s312] ss:$2 sm:$0xff] %v293
      %s314 = scalar_lea.vmem [#allocation1], 17
      %315 = vst [vmem:[%s314] ss:$2 sm:$0xff] %v299
      %s316 = scalar_lea.vmem [#allocation1], 32
      %317 = vst [vmem:[%s316] ss:$2 sm:$0xff] %v303
      %v318 = vld.sshfl [vmem:[#allocation1] sm:$0xff pattern:$0x75316420]
      %v319 = vld.sshfl [vmem:[#allocation1 + $0x10] sm:$0xff pattern:$0x75316420]
      %v320 = vld.sshfl [vmem:[#allocation1 + $0x20] sm:$0xff pattern:$0x75316420]
      %vm324 = vcmask 261120
      %v325 = vsel %vm324, %v318, 0.0
      %326 = vadd.xlane.f32.xlu0 %v325
      %v327 = vpop.xlane.xlu0 %326
      %v328 = vsel %vm324, %v319, 0.0
      %329 = vadd.xlane.f32.xlu0 %v328
      %v330 = vpop.xlane.xlu0 %329
      %vm331 = vcmask 257024
      %v332 = vsel %vm331, %v320, 0.0
      %333 = vadd.xlane.f32.xlu0 %v332
      %v334 = vpop.xlane.xlu0 %333
      %v335 = vrcp.pop 32.0
      %v336 = vmul.f32 32.0, %v335
      %v337 = vsub.f32 1.0, %v336
      %v338 = vmul.f32 %v335, %v337
      %v339 = vadd.f32 %v335, %v338
      %vm340 = vweird.f32 %v335
      %v341 = vsel %vm340, %v335, %v339
      %v342 = vmul.f32 %v327, %v341
      %v343 = vmul.f32 %v330, %v341
      %v344 = vmul.f32 %v334, %v341
      %v349 = vunpack.c.l.s4 839922192
      %v350 = vunpack.c.0.s8 %v349
      %v351 = vperm.slane %v342, %v350
      %v353 = vunpack.c.l.s4 1985246804
      %v354 = vunpack.c.0.s8 %v353
      %v355 = vperm.slane %v342, %v354
      %v357 = vunpack.c.l.s4 839922192
      %v358 = vunpack.c.0.s8 %v357
      %v359 = vperm.slane %v343, %v358
      %v361 = vunpack.c.l.s4 1985246804
      %v362 = vunpack.c.0.s8 %v361
      %v363 = vperm.slane %v343, %v362
      %v365 = vunpack.c.l.s4 839922192
      %v366 = vunpack.c.0.s8 %v365
      %v367 = vperm.slane %v344, %v366
      %v373 = vsub.f32 %v289, %v351
      %v374 = vsub.f32 %v297, %v355
      %v375 = vsub.f32 %v293, %v359
      %v376 = vsub.f32 %v299, %v363
      %v377 = vsub.f32 %v303, %v367
      %v378 = vmul.f32 %v373, %v373
      %v379 = vmul.f32 %v374, %v374
      %v380 = vmul.f32 %v375, %v375
      %v381 = vmul.f32 %v376, %v376
      %v382 = vmul.f32 %v377, %v377
      %388 = vst [vmem:[#allocation1] ss:$2 sm:$0xff] %v378
      %s389 = scalar_lea.vmem [#allocation1], 1
      %390 = vst [vmem:[%s389] ss:$2 sm:$0xff] %v379
      %s391 = scalar_lea.vmem [#allocation1], 16
      %392 = vst [vmem:[%s391] ss:$2 sm:$0xff] %v380
      %s393 = scalar_lea.vmem [#allocation1], 17
      %394 = vst [vmem:[%s393] ss:$2 sm:$0xff] %v381
      %s395 = scalar_lea.vmem [#allocation1], 32
      %396 = vst [vmem:[%s395] ss:$2 sm:$0xff] %v382
      %v397 = vld.sshfl [vmem:[#allocation1] sm:$0xff pattern:$0x75316420]
      %v398 = vld.sshfl [vmem:[#allocation1 + $0x10] sm:$0xff pattern:$0x75316420]
      %v399 = vld.sshfl [vmem:[#allocation1 + $0x20] sm:$0xff pattern:$0x75316420]
      %v403 = vsel %vm324, %v397, 0.0
      %404 = vadd.xlane.f32.xlu0 %v403
      %v405 = vpop.xlane.xlu0 %404
      %v406 = vsel %vm324, %v398, 0.0
      %407 = vadd.xlane.f32.xlu0 %v406
      %v408 = vpop.xlane.xlu0 %407
      %v409 = vsel %vm331, %v399, 0.0
      %410 = vadd.xlane.f32.xlu0 %v409
      %v411 = vpop.xlane.xlu0 %410
      %v412 = vmul.f32 %v405, %v341
      %v413 = vmul.f32 %v408, %v341
      %v414 = vmul.f32 %v411, %v341
      %v415 = vadd.f32 %v412, 1e-05
      %v416 = vadd.f32 %v413, 1e-05
      %v417 = vadd.f32 %v414, 1e-05
      %v418 = vrsqrt.pop %v415
      %v419 = vmul.f32 %v418, %v415
      %v420 = vmul.f32 %v419, %v418
      %v421 = vmul.f32 0.5, %v420
      %v422 = vsub.f32 1.5, %v421
      %v423 = vmul.f32 %v418, %v422
      %vm424 = vweird.f32 %v415
      %vm425 = vweird.f32 %v418
      %vm426 = vmor %vm424, %vm425
      %v427 = vsel %vm426, %v418, %v423
      %v428 = vrsqrt.pop %v416
      %v429 = vmul.f32 %v428, %v416
      %v430 = vmul.f32 %v429, %v428
      %v431 = vmul.f32 0.5, %v430
      %v432 = vsub.f32 1.5, %v431
      %v433 = vmul.f32 %v428, %v432
      %vm434 = vweird.f32 %v416
      %vm435 = vweird.f32 %v428
      %vm436 = vmor %vm434, %vm435
      %v437 = vsel %vm436, %v428, %v433
      %v438 = vrsqrt.pop %v417
      %v439 = vmul.f32 %v438, %v417
      %v440 = vmul.f32 %v439, %v438
      %v441 = vmul.f32 0.5, %v440
      %v442 = vsub.f32 1.5, %v441
      %v443 = vmul.f32 %v438, %v442
      %vm444 = vweird.f32 %v417
      %vm445 = vweird.f32 %v438
      %vm446 = vmor %vm444, %vm445
      %v447 = vsel %vm446, %v438, %v443
      %v452 = vunpack.c.l.s4 839922192
      %v453 = vunpack.c.0.s8 %v452
      %v454 = vperm.slane %v427, %v453
      %v456 = vunpack.c.l.s4 1985246804
      %v457 = vunpack.c.0.s8 %v456
      %v458 = vperm.slane %v427, %v457
      %v460 = vunpack.c.l.s4 839922192
      %v461 = vunpack.c.0.s8 %v460
      %v462 = vperm.slane %v437, %v461
      %v464 = vunpack.c.l.s4 1985246804
      %v465 = vunpack.c.0.s8 %v464
      %v466 = vperm.slane %v437, %v465
      %v468 = vunpack.c.l.s4 839922192
      %v469 = vunpack.c.0.s8 %v468
      %v470 = vperm.slane %v447, %v469
      %v476 = vmul.f32 %v373, %v454
      %v477 = vmul.f32 %v374, %v458
      %v478 = vmul.f32 %v375, %v462
      %v479 = vmul.f32 %v376, %v466
      %v480 = vmul.f32 %v377, %v470
      %v481 = vld [vmem:[%s1] sm:$0x1]
      %v483 = vperm.slane %v481, 0
      %v485 = vrot.slane %v483, 4
      %v487 = vmul.f32 %v476, %v483
      %v488 = vmul.f32 %v477, %v485
      %v489 = vmul.f32 %v478, %v483
      %v490 = vmul.f32 %v479, %v485
      %v491 = vmul.f32 %v480, %v483
      %v492 = vld [vmem:[%s2] sm:$0x1]
      %v494 = vperm.slane %v492, 0
      %v496 = vrot.slane %v494, 4
      %v498 = vadd.f32 %v487, %v494
      %v499 = vadd.f32 %v488, %v496
      %v500 = vadd.f32 %v489, %v494
      %v501 = vadd.f32 %v490, %v496
      %v502 = vadd.f32 %v491, %v494
      %508 = vst [vmem:[#allocation1] ss:$2 sm:$0xff] %v498
      %s509 = scalar_lea.vmem [#allocation1], 1
      %510 = vst [vmem:[%s509] ss:$2 sm:$0xff] %v499
      %s511 = scalar_lea.vmem [#allocation1], 16
      %512 = vst [vmem:[%s511] ss:$2 sm:$0xff] %v500
      %s513 = scalar_lea.vmem [#allocation1], 17
      %514 = vst [vmem:[%s513] ss:$2 sm:$0xff] %v501
      %s515 = scalar_lea.vmem [#allocation1], 32
      %516 = vst [vmem:[%s515] ss:$2 sm:$0xff] %v502
      %v517 = vld.sshfl [vmem:[#allocation1] sm:$0xff pattern:$0x75316420]
      %v518 = vld.sshfl [vmem:[#allocation1 + $0x10] sm:$0xff pattern:$0x75316420]
      %v519 = vld.sshfl [vmem:[#allocation1 + $0x20] sm:$0xff pattern:$0x75316420]
      %v523 = vpack.c.bf16 %v518, %v517
      %v524 = vpack.c.bf16 %v519, %v519
      %v525 = vld [vmem:[%s3] sm:$0xf]
      %v526 = vld [vmem:[%s3 + $0x4] sm:$0xf]
      %v527 = vld [vmem:[%s3 + $0x8] sm:$0xf]
      %v528 = vld [vmem:[%s3 + $0xc] sm:$0xf]
      %v533 = vunpack.c.l.b16 %v525
      %v534 = vunpack.c.l.b16 %v526
      %v535 = vunpack.c.l.b16 %v527
      %v536 = vunpack.c.l.b16 %v528
      %v537 = vpack.c.b16 %v534, %v533
      %v538 = vpack.c.b16 %v536, %v535
      %v542 = vsel %vm324, %v523, 0
      %v545 = vsel %vm324, %v524, 0
      %547 = vmatpush.bf16.msra.mxu0 0
      %548 = vmatpush.bf16.msra.mxu0 0
      %549 = vmatpush.bf16.msra.mxu0 0
      %550 = vmatpush.bf16.msra.mxu0 0
      %551 = vmatpush.bf16.msra.mxu0 0
      %552 = vmatpush.bf16.msra.mxu0 0
      %553 = vmatpush.bf16.msra.mxu0 %v538
      %554 = vmatpush.bf16.msra.mxu0 %v537
      %555 = vmatmul.bf16.gmra.mxu0 %v542
      %v556 = vpop.f32.mrf.mxu0
      %v557 = vadd.f32 0.0, %v556
      %v558 = vpop.f32.mrf.mxu0
      %v559 = vadd.f32 0.0, %v558
      %560 = vmatmul.bf16.gmra.mxu0 %v545
      %v561 = vpop.f32.mrf.mxu0
      %v562 = vadd.f32 0.0, %v561
      %v563 = vpop.f32.mrf.mxu0
      %564 = vdwg.mxu0
      %v567 = vrot.slane %v557, 4
      %v568 = vrot.slane %v559, 4
      %v571 = vpack.c.bf16 %v557, %v557
      %v572 = vpack.c.bf16 %v567, %v567
      %v573 = vpack.c.bf16 %v559, %v559
      %v574 = vpack.c.bf16 %v568, %v568
      %v575 = vpack.c.bf16 %v562, %v562
      %v577 = vunpack.c.l.b16 %v571
      %v578 = vpack.c.b16 %v577, %v577
      %579 = vrot.lane.b32.xlu0 %v578, 96
      %v580 = vpop.permute.xlu0 %579
      %vm581 = vcmask 64512
      %v583 = vsel %vm581, %v571, 0
      %v586 = vsel %vm581, %v580, 0
      %588 = vmatpush.bf16.xpose.msra.mxu0 0
      %589 = vmatpush.bf16.xpose.msra.mxu0 0
      %590 = vmatpush.bf16.xpose.msra.mxu0 0
      %591 = vmatpush.bf16.xpose.msra.mxu0 0
      %592 = vmatpush.bf16.xpose.msra.mxu0 0
      %593 = vmatpush.bf16.xpose.msra.mxu0 0
      %594 = vmatpush.bf16.xpose.msra.mxu0 0
      %595 = vmatpush.bf16.xpose.msra.mxu0 %v586
      %596 = vmatmul.bf16.gmra.mxu0 %v583
      %v597 = vpop.f32.mrf.mxu0
      %v598 = vadd.f32 0.0, %v597
      %v599 = vpop.f32.mrf.mxu0
      %600 = vdwg.mxu0
      %v602 = vunpack.c.l.b16 %v572
      %v603 = vpack.c.b16 %v602, %v602
      %604 = vrot.lane.b32.xlu0 %v603, 96
      %v605 = vpop.permute.xlu0 %604
      %v607 = vsel %vm581, %v572, 0
      %v610 = vsel %vm581, %v605, 0
      %612 = vmatpush.bf16.xpose.msra.mxu0 0
      %613 = vmatpush.bf16.xpose.msra.mxu0 0
      %614 = vmatpush.bf16.xpose.msra.mxu0 0
      %615 = vmatpush.bf16.xpose.msra.mxu0 0
      %616 = vmatpush.bf16.xpose.msra.mxu0 0
      %617 = vmatpush.bf16.xpose.msra.mxu0 0
      %618 = vmatpush.bf16.xpose.msra.mxu0 0
      %619 = vmatpush.bf16.xpose.msra.mxu0 %v610
      %620 = vmatmul.bf16.gmra.mxu0 %v607
      %v621 = vpop.f32.mrf.mxu0
      %v622 = vadd.f32 0.0, %v621
      %v623 = vpop.f32.mrf.mxu0
      %624 = vdwg.mxu0
      %v626 = vunpack.c.l.b16 %v573
      %v627 = vpack.c.b16 %v626, %v626
      %628 = vrot.lane.b32.xlu0 %v627, 96
      %v629 = vpop.permute.xlu0 %628
      %v631 = vsel %vm581, %v573, 0
      %v634 = vsel %vm581, %v629, 0
      %636 = vmatpush.bf16.xpose.msra.mxu0 0
      %637 = vmatpush.bf16.xpose.msra.mxu0 0
      %638 = vmatpush.bf16.xpose.msra.mxu0 0
      %639 = vmatpush.bf16.xpose.msra.mxu0 0
      %640 = vmatpush.bf16.xpose.msra.mxu0 0
      %641 = vmatpush.bf16.xpose.msra.mxu0 0
      %642 = vmatpush.bf16.xpose.msra.mxu0 0
      %643 = vmatpush.bf16.xpose.msra.mxu0 %v634
      %644 = vmatmul.bf16.gmra.mxu0 %v631
      %v645 = vpop.f32.mrf.mxu0
      %v646 = vadd.f32 0.0, %v645
      %v647 = vpop.f32.mrf.mxu0
      %648 = vdwg.mxu0
      %v650 = vunpack.c.l.b16 %v574
      %v651 = vpack.c.b16 %v650, %v650
      %652 = vrot.lane.b32.xlu0 %v651, 96
      %v653 = vpop.permute.xlu0 %652
      %v655 = vsel %vm581, %v574, 0
      %v658 = vsel %vm581, %v653, 0
      %660 = vmatpush.bf16.xpose.msra.mxu0 0
      %661 = vmatpush.bf16.xpose.msra.mxu0 0
      %662 = vmatpush.bf16.xpose.msra.mxu0 0
      %663 = vmatpush.bf16.xpose.msra.mxu0 0
      %664 = vmatpush.bf16.xpose.msra.mxu0 0
      %665 = vmatpush.bf16.xpose.msra.mxu0 0
      %666 = vmatpush.bf16.xpose.msra.mxu0 0
      %667 = vmatpush.bf16.xpose.msra.mxu0 %v658
      %668 = vmatmul.bf16.gmra.mxu0 %v655
      %v669 = vpop.f32.mrf.mxu0
      %v670 = vadd.f32 0.0, %v669
      %v671 = vpop.f32.mrf.mxu0
      %672 = vdwg.mxu0
      %v674 = vunpack.c.l.b16 %v575
      %v675 = vpack.c.b16 %v674, %v674
      %676 = vrot.lane.b32.xlu0 %v675, 96
      %v677 = vpop.permute.xlu0 %676
      %v679 = vsel %vm581, %v575, 0
      %v682 = vsel %vm581, %v677, 0
      %684 = vmatpush.bf16.xpose.msra.mxu0 0
      %685 = vmatpush.bf16.xpose.msra.mxu0 0
      %686 = vmatpush.bf16.xpose.msra.mxu0 0
      %687 = vmatpush.bf16.xpose.msra.mxu0 0
      %688 = vmatpush.bf16.xpose.msra.mxu0 0
      %689 = vmatpush.bf16.xpose.msra.mxu0 0
      %690 = vmatpush.bf16.xpose.msra.mxu0 0
      %691 = vmatpush.bf16.xpose.msra.mxu0 %v682
      %692 = vmatmul.bf16.gmra.mxu0 %v679
      %v693 = vpop.f32.mrf.mxu0
      %v694 = vadd.f32 0.0, %v693
      %v695 = vpop.f32.mrf.mxu0
      %696 = vdwg.mxu0
      %v697 = vmul.f32 %v598, 0.35355338
      %v698 = vmul.f32 %v622, 0.35355338
      %v699 = vmul.f32 %v646, 0.35355338
      %v700 = vmul.f32 %v670, 0.35355338
      %v701 = vmul.f32 %v694, 0.35355338
      %vm702 = vcmask 27648
      %v703 = vsel %vm702, %v697, -inf
      %704 = vmax.xlane.f32.xlu0 %v703
      %v705 = vpop.xlane.xlu0 %704
      %v706 = vsel %vm702, %v698, -inf
      %707 = vmax.xlane.f32.xlu0 %v706
      %v708 = vpop.xlane.xlu0 %707
      %v709 = vsel %vm702, %v699, -inf
      %710 = vmax.xlane.f32.xlu0 %v709
      %v711 = vpop.xlane.xlu0 %710
      %v712 = vsel %vm702, %v700, -inf
      %713 = vmax.xlane.f32.xlu0 %v712
      %v714 = vpop.xlane.xlu0 %713
      %v715 = vsel %vm702, %v701, -inf
      %716 = vmax.xlane.f32.xlu0 %v715
      %v717 = vpop.xlane.xlu0 %716
      %v718 = vsub.f32 %v697, %v705
      %v719 = vsub.f32 %v698, %v708
      %v720 = vsub.f32 %v699, %v711
      %v721 = vsub.f32 %v700, %v714
      %v722 = vsub.f32 %v701, %v717
      %v723 = vmul.f32 %v718, 1.442695
      %v724 = vpow.pop %v723
      %v725 = vmul.f32 %v719, 1.442695
      %v726 = vpow.pop %v725
      %v727 = vmul.f32 %v720, 1.442695
      %v728 = vpow.pop %v727
      %v729 = vmul.f32 %v721, 1.442695
      %v730 = vpow.pop %v729
      %v731 = vmul.f32 %v722, 1.442695
      %v732 = vpow.pop %v731
      %v733 = vsel %vm702, %v724, 0.0
      %734 = vadd.xlane.f32.xlu0 %v733
      %v735 = vpop.xlane.xlu0 %734
      %v736 = vsel %vm702, %v726, 0.0
      %737 = vadd.xlane.f32.xlu0 %v736
      %v738 = vpop.xlane.xlu0 %737
      %v739 = vsel %vm702, %v728, 0.0
      %740 = vadd.xlane.f32.xlu0 %v739
      %v741 = vpop.xlane.xlu0 %740
      %v742 = vsel %vm702, %v730, 0.0
      %743 = vadd.xlane.f32.xlu0 %v742
      %v744 = vpop.xlane.xlu0 %743
      %v745 = vsel %vm702, %v732, 0.0
      %746 = vadd.xlane.f32.xlu0 %v745
      %v747 = vpop.xlane.xlu0 %746
      %v748 = vrcp.pop %v735
      %v749 = vrcp.pop %v738
      %v750 = vrcp.pop %v741
      %v751 = vrcp.pop %v744
      %v752 = vrcp.pop %v747
      %v753 = vmul.f32 %v724, %v748
      %v754 = vmul.f32 %v726, %v749
      %v755 = vmul.f32 %v728, %v750
      %v756 = vmul.f32 %v730, %v751
      %v757 = vmul.f32 %v732, %v752
      %v758 = vpack.c.bf16 %v753, %v753
      %v759 = vpack.c.bf16 %v754, %v754
      %v760 = vpack.c.bf16 %v755, %v755
      %v761 = vpack.c.bf16 %v756, %v756
      %v762 = vpack.c.bf16 %v757, %v757
      %763 = vrot.lane.b32.xlu0 %v578, 64
      %v764 = vpop.permute.xlu0 %763
      %vm765 = vcmask 31744
      %v767 = vsel %vm765, %v758, 0
      %vm769 = vcmask 1041408
      %v771 = vsel %vm769, %v764, 0
      %773 = vmatpush.bf16.msra.mxu0 0
      %774 = vmatpush.bf16.msra.mxu0 0
      %775 = vmatpush.bf16.msra.mxu0 0
      %776 = vmatpush.bf16.msra.mxu0 0
      %777 = vmatpush.bf16.msra.mxu0 0
      %778 = vmatpush.bf16.msra.mxu0 0
      %779 = vmatpush.bf16.msra.mxu0 0
      %780 = vmatpush.bf16.msra.mxu0 %v771
      %781 = vmatmul.bf16.gmra.mxu0 %v767
      %v782 = vpop.f32.mrf.mxu0
      %v783 = vadd.f32 0.0, %v782
      %v784 = vpop.f32.mrf.mxu0
      %785 = vdwg.mxu0
      %786 = vrot.lane.b32.xlu0 %v603, 64
      %v787 = vpop.permute.xlu0 %786
      %v789 = vsel %vm765, %v759, 0
      %v792 = vsel %vm769, %v787, 0
      %794 = vmatpush.bf16.msra.mxu0 0
      %795 = vmatpush.bf16.msra.mxu0 0
      %796 = vmatpush.bf16.msra.mxu0 0
      %797 = vmatpush.bf16.msra.mxu0 0
      %798 = vmatpush.bf16.msra.mxu0 0
      %799 = vmatpush.bf16.msra.mxu0 0
      %800 = vmatpush.bf16.msra.mxu0 0
      %801 = vmatpush.bf16.msra.mxu0 %v792
      %802 = vmatmul.bf16.gmra.mxu0 %v789
      %v803 = vpop.f32.mrf.mxu0
      %v804 = vadd.f32 0.0, %v803
      %v805 = vpop.f32.mrf.mxu0
      %806 = vdwg.mxu0
      %807 = vrot.lane.b32.xlu0 %v627, 64
      %v808 = vpop.permute.xlu0 %807
      %v810 = vsel %vm765, %v760, 0
      %v813 = vsel %vm769, %v808, 0
      %815 = vmatpush.bf16.msra.mxu0 0
      %816 = vmatpush.bf16.msra.mxu0 0
      %817 = vmatpush.bf16.msra.mxu0 0
      %818 = vmatpush.bf16.msra.mxu0 0
      %819 = vmatpush.bf16.msra.mxu0 0
      %820 = vmatpush.bf16.msra.mxu0 0
      %821 = vmatpush.bf16.msra.mxu0 0
      %822 = vmatpush.bf16.msra.mxu0 %v813
      %823 = vmatmul.bf16.gmra.mxu0 %v810
      %v824 = vpop.f32.mrf.mxu0
      %v825 = vadd.f32 0.0, %v824
      %v826 = vpop.f32.mrf.mxu0
      %827 = vdwg.mxu0
      %828 = vrot.lane.b32.xlu0 %v651, 64
      %v829 = vpop.permute.xlu0 %828
      %v831 = vsel %vm765, %v761, 0
      %v834 = vsel %vm769, %v829, 0
      %836 = vmatpush.bf16.msra.mxu0 0
      %837 = vmatpush.bf16.msra.mxu0 0
      %838 = vmatpush.bf16.msra.mxu0 0
      %839 = vmatpush.bf16.msra.mxu0 0
      %840 = vmatpush.bf16.msra.mxu0 0
      %841 = vmatpush.bf16.msra.mxu0 0
      %842 = vmatpush.bf16.msra.mxu0 0
      %843 = vmatpush.bf16.msra.mxu0 %v834
      %844 = vmatmul.bf16.gmra.mxu0 %v831
      %v845 = vpop.f32.mrf.mxu0
      %v846 = vadd.f32 0.0, %v845
      %v847 = vpop.f32.mrf.mxu0
      %848 = vdwg.mxu0
      %849 = vrot.lane.b32.xlu0 %v675, 64
      %v850 = vpop.permute.xlu0 %849
      %v852 = vsel %vm765, %v762, 0
      %v855 = vsel %vm769, %v850, 0
      %857 = vmatpush.bf16.msra.mxu0 0
      %858 = vmatpush.bf16.msra.mxu0 0
      %859 = vmatpush.bf16.msra.mxu0 0
      %860 = vmatpush.bf16.msra.mxu0 0
      %861 = vmatpush.bf16.msra.mxu0 0
      %862 = vmatpush.bf16.msra.mxu0 0
      %863 = vmatpush.bf16.msra.mxu0 0
      %864 = vmatpush.bf16.msra.mxu0 %v855
      %865 = vmatmul.bf16.gmra.mxu0 %v852
      %v866 = vpop.f32.mrf.mxu0
      %v867 = vadd.f32 0.0, %v866
      %v868 = vpop.f32.mrf.mxu0
      %869 = vdwg.mxu0
      %v870 = vpack.c.bf16 %v783, %v783
      %v871 = vpack.c.bf16 %v804, %v804
      %v872 = vpack.c.bf16 %v825, %v825
      %v873 = vpack.c.bf16 %v846, %v846
      %v874 = vpack.c.bf16 %v867, %v867
      %vm875 = vcmask 58368
      %876 = vst.msk [vmem:[#allocation2] sm:$0x3] %vm875, %v870
      %877 = vst.msk [vmem:[#allocation2 + $0x2] sm:$0x3] %vm875, %v871
      %878 = vst.msk [vmem:[#allocation2 + $0x4] sm:$0x3] %vm875, %v872
      %879 = vst.msk [vmem:[#allocation2 + $0x6] sm:$0x3] %vm875, %v873
      %880 = vst.msk [vmem:[#allocation2 + $0x8] sm:$0x3] %vm875, %v874
      %881 = vrot.lane.b32.xlu0 %v578, 120
      %v882 = vpop.permute.xlu0 %881
      %883 = vrot.lane.b32.xlu0 %v578, 88
      %v884 = vpop.permute.xlu0 %883
      %v886 = vsel %vm581, %v882, 0
      %v889 = vsel %vm581, %v884, 0
      %891 = vmatpush.bf16.xpose.msra.mxu0 0
      %892 = vmatpush.bf16.xpose.msra.mxu0 0
      %893 = vmatpush.bf16.xpose.msra.mxu0 0
      %894 = vmatpush.bf16.xpose.msra.mxu0 0
      %895 = vmatpush.bf16.xpose.msra.mxu0 0
      %896 = vmatpush.bf16.xpose.msra.mxu0 0
      %897 = vmatpush.bf16.xpose.msra.mxu0 0
      %898 = vmatpush.bf16.xpose.msra.mxu0 %v889
      %899 = vmatmul.bf16.gmra.mxu0 %v886
      %v900 = vpop.f32.mrf.mxu0
      %v901 = vadd.f32 0.0, %v900
      %v902 = vpop.f32.mrf.mxu0
      %903 = vdwg.mxu0
      %904 = vrot.lane.b32.xlu0 %v603, 120
      %v905 = vpop.permute.xlu0 %904
      %906 = vrot.lane.b32.xlu0 %v603, 88
      %v907 = vpop.permute.xlu0 %906
      %v909 = vsel %vm581, %v905, 0
      %v912 = vsel %vm581, %v907, 0
      %914 = vmatpush.bf16.xpose.msra.mxu0 0
      %915 = vmatpush.bf16.xpose.msra.mxu0 0
      %916 = vmatpush.bf16.xpose.msra.mxu0 0
      %917 = vmatpush.bf16.xpose.msra.mxu0 0
      %918 = vmatpush.bf16.xpose.msra.mxu0 0
      %919 = vmatpush.bf16.xpose.msra.mxu0 0
      %920 = vmatpush.bf16.xpose.msra.mxu0 0
      %921 = vmatpush.bf16.xpose.msra.mxu0 %v912
      %922 = vmatmul.bf16.gmra.mxu0 %v909
      %v923 = vpop.f32.mrf.mxu0
      %v924 = vadd.f32 0.0, %v923
      %v925 = vpop.f32.mrf.mxu0
      %926 = vdwg.mxu0
      %927 = vrot.lane.b32.xlu0 %v627, 120
      %v928 = vpop.permute.xlu0 %927
      %929 = vrot.lane.b32.xlu0 %v627, 88
      %v930 = vpop.permute.xlu0 %929
      %v932 = vsel %vm581, %v928, 0
      %v935 = vsel %vm581, %v930, 0
      %937 = vmatpush.bf16.xpose.msra.mxu0 0
      %938 = vmatpush.bf16.xpose.msra.mxu0 0
      %939 = vmatpush.bf16.xpose.msra.mxu0 0
      %940 = vmatpush.bf16.xpose.msra.mxu0 0
      %941 = vmatpush.bf16.xpose.msra.mxu0 0
      %942 = vmatpush.bf16.xpose.msra.mxu0 0
      %943 = vmatpush.bf16.xpose.msra.mxu0 0
      %944 = vmatpush.bf16.xpose.msra.mxu0 %v935
      %945 = vmatmul.bf16.gmra.mxu0 %v932
      %v946 = vpop.f32.mrf.mxu0
      %v947 = vadd.f32 0.0, %v946
      %v948 = vpop.f32.mrf.mxu0
      %949 = vdwg.mxu0
      %950 = vrot.lane.b32.xlu0 %v651, 120
      %v951 = vpop.permute.xlu0 %950
      %952 = vrot.lane.b32.xlu0 %v651, 88
      %v953 = vpop.permute.xlu0 %952
      %v955 = vsel %vm581, %v951, 0
      %v958 = vsel %vm581, %v953, 0
      %960 = vmatpush.bf16.xpose.msra.mxu0 0
      %961 = vmatpush.bf16.xpose.msra.mxu0 0
      %962 = vmatpush.bf16.xpose.msra.mxu0 0
      %963 = vmatpush.bf16.xpose.msra.mxu0 0
      %964 = vmatpush.bf16.xpose.msra.mxu0 0
      %965 = vmatpush.bf16.xpose.msra.mxu0 0
      %966 = vmatpush.bf16.xpose.msra.mxu0 0
      %967 = vmatpush.bf16.xpose.msra.mxu0 %v958
      %968 = vmatmul.bf16.gmra.mxu0 %v955
      %v969 = vpop.f32.mrf.mxu0
      %v970 = vadd.f32 0.0, %v969
      %v971 = vpop.f32.mrf.mxu0
      %972 = vdwg.mxu0
      %973 = vrot.lane.b32.xlu0 %v675, 120
      %v974 = vpop.permute.xlu0 %973
      %975 = vrot.lane.b32.xlu0 %v675, 88
      %v976 = vpop.permute.xlu0 %975
      %v978 = vsel %vm581, %v974, 0
      %v981 = vsel %vm581, %v976, 0
      %983 = vmatpush.bf16.xpose.msra.mxu0 0
      %984 = vmatpush.bf16.xpose.msra.mxu0 0
      %985 = vmatpush.bf16.xpose.msra.mxu0 0
      %986 = vmatpush.bf16.xpose.msra.mxu0 0
      %987 = vmatpush.bf16.xpose.msra.mxu0 0
      %988 = vmatpush.bf16.xpose.msra.mxu0 0
      %989 = vmatpush.bf16.xpose.msra.mxu0 0
      %990 = vmatpush.bf16.xpose.msra.mxu0 %v981
      %991 = vmatmul.bf16.gmra.mxu0 %v978
      %v992 = vpop.f32.mrf.mxu0
      %v993 = vadd.f32 0.0, %v992
      %v994 = vpop.f32.mrf.mxu0
      %995 = vdwg.mxu0
      %v996 = vmul.f32 %v901, 0.35355338
      %v997 = vmul.f32 %v924, 0.35355338
      %v998 = vmul.f32 %v947, 0.35355338
      %v999 = vmul.f32 %v970, 0.35355338
      %v1000 = vmul.f32 %v993, 0.35355338
      %v1001 = vsel %vm702, %v996, -inf
      %1002 = vmax.xlane.f32.xlu0 %v1001
      %v1003 = vpop.xlane.xlu0 %1002
      %v1004 = vsel %vm702, %v997, -inf
      %1005 = vmax.xlane.f32.xlu0 %v1004
      %v1006 = vpop.xlane.xlu0 %1005
      %v1007 = vsel %vm702, %v998, -inf
      %1008 = vmax.xlane.f32.xlu0 %v1007
      %v1009 = vpop.xlane.xlu0 %1008
      %v1010 = vsel %vm702, %v999, -inf
      %1011 = vmax.xlane.f32.xlu0 %v1010
      %v1012 = vpop.xlane.xlu0 %1011
      %v1013 = vsel %vm702, %v1000, -inf
      %1014 = vmax.xlane.f32.xlu0 %v1013
      %v1015 = vpop.xlane.xlu0 %1014
      %v1016 = vsub.f32 %v996, %v1003
      %v1017 = vsub.f32 %v997, %v1006
      %v1018 = vsub.f32 %v998, %v1009
      %v1019 = vsub.f32 %v999, %v1012
      %v1020 = vsub.f32 %v1000, %v1015
      %v1021 = vmul.f32 %v1016, 1.442695
      %v1022 = vpow.pop %v1021
      %v1023 = vmul.f32 %v1017, 1.442695
      %v1024 = vpow.pop %v1023
      %v1025 = vmul.f32 %v1018, 1.442695
      %v1026 = vpow.pop %v1025
      %v1027 = vmul.f32 %v1019, 1.442695
      %v1028 = vpow.pop %v1027
      %v1029 = vmul.f32 %v1020, 1.442695
      %v1030 = vpow.pop %v1029
      %v1031 = vsel %vm702, %v1022, 0.0
      %1032 = vadd.xlane.f32.xlu0 %v1031
      %v1033 = vpop.xlane.xlu0 %1032
      %v1034 = vsel %vm702, %v1024, 0.0
      %1035 = vadd.xlane.f32.xlu0 %v1034
      %v1036 = vpop.xlane.xlu0 %1035
      %v1037 = vsel %vm702, %v1026, 0.0
      %1038 = vadd.xlane.f32.xlu0 %v1037
      %v1039 = vpop.xlane.xlu0 %1038
      %v1040 = vsel %vm702, %v1028, 0.0
      %1041 = vadd.xlane.f32.xlu0 %v1040
      %v1042 = vpop.xlane.xlu0 %1041
      %v1043 = vsel %vm702, %v1030, 0.0
      %1044 = vadd.xlane.f32.xlu0 %v1043
      %v1045 = vpop.xlane.xlu0 %1044
      %v1046 = vrcp.pop %v1033
      %v1047 = vrcp.pop %v1036
      %v1048 = vrcp.pop %v1039
      %v1049 = vrcp.pop %v1042
      %v1050 = vrcp.pop %v1045
      %v1051 = vmul.f32 %v1022, %v1046
      %v1052 = vmul.f32 %v1024, %v1047
      %v1053 = vmul.f32 %v1026, %v1048
      %v1054 = vmul.f32 %v1028, %v1049
      %v1055 = vmul.f32 %v1030, %v1050
      %v1056 = vpack.c.bf16 %v1051, %v1051
      %v1057 = vpack.c.bf16 %v1052, %v1052
      %v1058 = vpack.c.bf16 %v1053, %v1053
      %v1059 = vpack.c.bf16 %v1054, %v1054
      %v1060 = vpack.c.bf16 %v1055, %v1055
      %1061 = vrot.lane.b32.xlu0 %v578, 56
      %v1062 = vpop.permute.xlu0 %1061
      %v1064 = vsel %vm765, %v1056, 0
      %v1067 = vsel %vm769, %v1062, 0
      %1069 = vmatpush.bf16.msra.mxu0 0
      %1070 = vmatpush.bf16.msra.mxu0 0
      %1071 = vmatpush.bf16.msra.mxu0 0
      %1072 = vmatpush.bf16.msra.mxu0 0
      %1073 = vmatpush.bf16.msra.mxu0 0
      %1074 = vmatpush.bf16.msra.mxu0 0
      %1075 = vmatpush.bf16.msra.mxu0 0
      %1076 = vmatpush.bf16.msra.mxu0 %v1067
      %1077 = vmatmul.bf16.gmra.mxu0 %v1064
      %v1078 = vpop.f32.mrf.mxu0
      %v1079 = vadd.f32 0.0, %v1078
      %v1080 = vpop.f32.mrf.mxu0
      %1081 = vdwg.mxu0
      %1082 = vrot.lane.b32.xlu0 %v603, 56
      %v1083 = vpop.permute.xlu0 %1082
      %v1085 = vsel %vm765, %v1057, 0
      %v1088 = vsel %vm769, %v1083, 0
      %1090 = vmatpush.bf16.msra.mxu0 0
      %1091 = vmatpush.bf16.msra.mxu0 0
      %1092 = vmatpush.bf16.msra.mxu0 0
      %1093 = vmatpush.bf16.msra.mxu0 0
      %1094 = vmatpush.bf16.msra.mxu0 0
      %1095 = vmatpush.bf16.msra.mxu0 0
      %1096 = vmatpush.bf16.msra.mxu0 0
      %1097 = vmatpush.bf16.msra.mxu0 %v1088
      %1098 = vmatmul.bf16.gmra.mxu0 %v1085
      %v1099 = vpop.f32.mrf.mxu0
      %v1100 = vadd.f32 0.0, %v1099
      %v1101 = vpop.f32.mrf.mxu0
      %1102 = vdwg.mxu0
      %1103 = vrot.lane.b32.xlu0 %v627, 56
      %v1104 = vpop.permute.xlu0 %1103
      %v1106 = vsel %vm765, %v1058, 0
      %v1109 = vsel %vm769, %v1104, 0
      %1111 = vmatpush.bf16.msra.mxu0 0
      %1112 = vmatpush.bf16.msra.mxu0 0
      %1113 = vmatpush.bf16.msra.mxu0 0
      %1114 = vmatpush.bf16.msra.mxu0 0
      %1115 = vmatpush.bf16.msra.mxu0 0
      %1116 = vmatpush.bf16.msra.mxu0 0
      %1117 = vmatpush.bf16.msra.mxu0 0
      %1118 = vmatpush.bf16.msra.mxu0 %v1109
      %1119 = vmatmul.bf16.gmra.mxu0 %v1106
      %v1120 = vpop.f32.mrf.mxu0
      %v1121 = vadd.f32 0.0, %v1120
      %v1122 = vpop.f32.mrf.mxu0
      %1123 = vdwg.mxu0
      %1124 = vrot.lane.b32.xlu0 %v651, 56
      %v1125 = vpop.permute.xlu0 %1124
      %v1127 = vsel %vm765, %v1059, 0
      %v1130 = vsel %vm769, %v1125, 0
      %1132 = vmatpush.bf16.msra.mxu0 0
      %1133 = vmatpush.bf16.msra.mxu0 0
      %1134 = vmatpush.bf16.msra.mxu0 0
      %1135 = vmatpush.bf16.msra.mxu0 0
      %1136 = vmatpush.bf16.msra.mxu0 0
      %1137 = vmatpush.bf16.msra.mxu0 0
      %1138 = vmatpush.bf16.msra.mxu0 0
      %1139 = vmatpush.bf16.msra.mxu0 %v1130
      %1140 = vmatmul.bf16.gmra.mxu0 %v1127
      %v1141 = vpop.f32.mrf.mxu0
      %v1142 = vadd.f32 0.0, %v1141
      %v1143 = vpop.f32.mrf.mxu0
      %1144 = vdwg.mxu0
      %1145 = vrot.lane.b32.xlu0 %v675, 56
      %v1146 = vpop.permute.xlu0 %1145
      %v1148 = vsel %vm765, %v1060, 0
      %v1151 = vsel %vm769, %v1146, 0
      %1153 = vmatpush.bf16.msra.mxu0 0
      %1154 = vmatpush.bf16.msra.mxu0 0
      %1155 = vmatpush.bf16.msra.mxu0 0
      %1156 = vmatpush.bf16.msra.mxu0 0
      %1157 = vmatpush.bf16.msra.mxu0 0
      %1158 = vmatpush.bf16.msra.mxu0 0
      %1159 = vmatpush.bf16.msra.mxu0 0
      %1160 = vmatpush.bf16.msra.mxu0 %v1151
      %1161 = vmatmul.bf16.gmra.mxu0 %v1148
      %v1162 = vpop.f32.mrf.mxu0
      %v1163 = vadd.f32 0.0, %v1162
      %v1164 = vpop.f32.mrf.mxu0
      %1165 = vdwg.mxu0
      %v1166 = vpack.c.bf16 %v1079, %v1079
      %v1167 = vpack.c.bf16 %v1100, %v1100
      %v1168 = vpack.c.bf16 %v1121, %v1121
      %v1169 = vpack.c.bf16 %v1142, %v1142
      %v1170 = vpack.c.bf16 %v1163, %v1163
      %v1176 = vrot.slane %v1166, 2
      %v1177 = vrot.slane %v1167, 2
      %v1178 = vrot.slane %v1168, 2
      %v1179 = vrot.slane %v1169, 2
      %v1180 = vrot.slane %v1170, 2
      %v1183 = vsel %vm769, %v1166, %v1176
      %v1187 = vsel %vm769, %v1167, %v1177
      %v1191 = vsel %vm769, %v1168, %v1178
      %v1195 = vsel %vm769, %v1169, %v1179
      %v1199 = vsel %vm769, %v1170, %v1180
      %1201 = vrot.lane.b32.xlu0 %v1183, 8
      %v1202 = vpop.permute.xlu0 %1201
      %1203 = vrot.lane.b32.xlu0 %v1187, 8
      %v1204 = vpop.permute.xlu0 %1203
      %1205 = vrot.lane.b32.xlu0 %v1191, 8
      %v1206 = vpop.permute.xlu0 %1205
      %1207 = vrot.lane.b32.xlu0 %v1195, 8
      %v1208 = vpop.permute.xlu0 %1207
      %1209 = vrot.lane.b32.xlu0 %v1199, 8
      %v1210 = vpop.permute.xlu0 %1209
      %vm1216 = vcmask 123968
      %1217 = vst.msk [vmem:[#allocation2] sm:$0x3] %vm1216, %v1202
      %1218 = vst.msk [vmem:[#allocation2 + $0x2] sm:$0x3] %vm1216, %v1204
      %1219 = vst.msk [vmem:[#allocation2 + $0x4] sm:$0x3] %vm1216, %v1206
      %1220 = vst.msk [vmem:[#allocation2 + $0x6] sm:$0x3] %vm1216, %v1208
      %1221 = vst.msk [vmem:[#allocation2 + $0x8] sm:$0x3] %vm1216, %v1210
      %1222 = vrot.lane.b32.xlu0 %v578, 112
      %v1223 = vpop.permute.xlu0 %1222
      %1224 = vrot.lane.b32.xlu0 %v578, 80
      %v1225 = vpop.permute.xlu0 %1224
      %v1227 = vsel %vm581, %v1223, 0
      %v1230 = vsel %vm581, %v1225, 0
      %1232 = vmatpush.bf16.xpose.msra.mxu0 0
      %1233 = vmatpush.bf16.xpose.msra.mxu0 0
      %1234 = vmatpush.bf16.xpose.msra.mxu0 0
      %1235 = vmatpush.bf16.xpose.msra.mxu0 0
      %1236 = vmatpush.bf16.xpose.msra.mxu0 0
      %1237 = vmatpush.bf16.xpose.msra.mxu0 0
      %1238 = vmatpush.bf16.xpose.msra.mxu0 0
      %1239 = vmatpush.bf16.xpose.msra.mxu0 %v1230
      %1240 = vmatmul.bf16.gmra.mxu0 %v1227
      %v1241 = vpop.f32.mrf.mxu0
      %v1242 = vadd.f32 0.0, %v1241
      %v1243 = vpop.f32.mrf.mxu0
      %1244 = vdwg.mxu0
      %1245 = vrot.lane.b32.xlu0 %v603, 112
      %v1246 = vpop.permute.xlu0 %1245
      %1247 = vrot.lane.b32.xlu0 %v603, 80
      %v1248 = vpop.permute.xlu0 %1247
      %v1250 = vsel %vm581, %v1246, 0
      %v1253 = vsel %vm581, %v1248, 0
      %1255 = vmatpush.bf16.xpose.msra.mxu0 0
      %1256 = vmatpush.bf16.xpose.msra.mxu0 0
      %1257 = vmatpush.bf16.xpose.msra.mxu0 0
      %1258 = vmatpush.bf16.xpose.msra.mxu0 0
      %1259 = vmatpush.bf16.xpose.msra.mxu0 0
      %1260 = vmatpush.bf16.xpose.msra.mxu0 0
      %1261 = vmatpush.bf16.xpose.msra.mxu0 0
      %1262 = vmatpush.bf16.xpose.msra.mxu0 %v1253
      %1263 = vmatmul.bf16.gmra.mxu0 %v1250
      %v1264 = vpop.f32.mrf.mxu0
      %v1265 = vadd.f32 0.0, %v1264
      %v1266 = vpop.f32.mrf.mxu0
      %1267 = vdwg.mxu0
      %1268 = vrot.lane.b32.xlu0 %v627, 112
      %v1269 = vpop.permute.xlu0 %1268
      %1270 = vrot.lane.b32.xlu0 %v627, 80
      %v1271 = vpop.permute.xlu0 %1270
      %v1273 = vsel %vm581, %v1269, 0
      %v1276 = vsel %vm581, %v1271, 0
      %1278 = vmatpush.bf16.xpose.msra.mxu0 0
      %1279 = vmatpush.bf16.xpose.msra.mxu0 0
      %1280 = vmatpush.bf16.xpose.msra.mxu0 0
      %1281 = vmatpush.bf16.xpose.msra.mxu0 0
      %1282 = vmatpush.bf16.xpose.msra.mxu0 0
      %1283 = vmatpush.bf16.xpose.msra.mxu0 0
      %1284 = vmatpush.bf16.xpose.msra.mxu0 0
      %1285 = vmatpush.bf16.xpose.msra.mxu0 %v1276
      %1286 = vmatmul.bf16.gmra.mxu0 %v1273
      %v1287 = vpop.f32.mrf.mxu0
      %v1288 = vadd.f32 0.0, %v1287
      %v1289 = vpop.f32.mrf.mxu0
      %1290 = vdwg.mxu0
      %1291 = vrot.lane.b32.xlu0 %v651, 112
      %v1292 = vpop.permute.xlu0 %1291
      %1293 = vrot.lane.b32.xlu0 %v651, 80
      %v1294 = vpop.permute.xlu0 %1293
      %v1296 = vsel %vm581, %v1292, 0
      %v1299 = vsel %vm581, %v1294, 0
      %1301 = vmatpush.bf16.xpose.msra.mxu0 0
      %1302 = vmatpush.bf16.xpose.msra.mxu0 0
      %1303 = vmatpush.bf16.xpose.msra.mxu0 0
      %1304 = vmatpush.bf16.xpose.msra.mxu0 0
      %1305 = vmatpush.bf16.xpose.msra.mxu0 0
      %1306 = vmatpush.bf16.xpose.msra.mxu0 0
      %1307 = vmatpush.bf16.xpose.msra.mxu0 0
      %1308 = vmatpush.bf16.xpose.msra.mxu0 %v1299
      %1309 = vmatmul.bf16.gmra.mxu0 %v1296
      %v1310 = vpop.f32.mrf.mxu0
      %v1311 = vadd.f32 0.0, %v1310
      %v1312 = vpop.f32.mrf.mxu0
      %1313 = vdwg.mxu0
      %1314 = vrot.lane.b32.xlu0 %v675, 112
      %v1315 = vpop.permute.xlu0 %1314
      %1316 = vrot.lane.b32.xlu0 %v675, 80
      %v1317 = vpop.permute.xlu0 %1316
      %v1319 = vsel %vm581, %v1315, 0
      %v1322 = vsel %vm581, %v1317, 0
      %1324 = vmatpush.bf16.xpose.msra.mxu0 0
      %1325 = vmatpush.bf16.xpose.msra.mxu0 0
      %1326 = vmatpush.bf16.xpose.msra.mxu0 0
      %1327 = vmatpush.bf16.xpose.msra.mxu0 0
      %1328 = vmatpush.bf16.xpose.msra.mxu0 0
      %1329 = vmatpush.bf16.xpose.msra.mxu0 0
      %1330 = vmatpush.bf16.xpose.msra.mxu0 0
      %1331 = vmatpush.bf16.xpose.msra.mxu0 %v1322
      %1332 = vmatmul.bf16.gmra.mxu0 %v1319
      %v1333 = vpop.f32.mrf.mxu0
      %v1334 = vadd.f32 0.0, %v1333
      %v1335 = vpop.f32.mrf.mxu0
      %1336 = vdwg.mxu0
      %v1337 = vmul.f32 %v1242, 0.35355338
      %v1338 = vmul.f32 %v1265, 0.35355338
      %v1339 = vmul.f32 %v1288, 0.35355338
      %v1340 = vmul.f32 %v1311, 0.35355338
      %v1341 = vmul.f32 %v1334, 0.35355338
      %v1342 = vsel %vm702, %v1337, -inf
      %1343 = vmax.xlane.f32.xlu0 %v1342
      %v1344 = vpop.xlane.xlu0 %1343
      %v1345 = vsel %vm702, %v1338, -inf
      %1346 = vmax.xlane.f32.xlu0 %v1345
      %v1347 = vpop.xlane.xlu0 %1346
      %v1348 = vsel %vm702, %v1339, -inf
      %1349 = vmax.xlane.f32.xlu0 %v1348
      %v1350 = vpop.xlane.xlu0 %1349
      %v1351 = vsel %vm702, %v1340, -inf
      %1352 = vmax.xlane.f32.xlu0 %v1351
      %v1353 = vpop.xlane.xlu0 %1352
      %v1354 = vsel %vm702, %v1341, -inf
      %1355 = vmax.xlane.f32.xlu0 %v1354
      %v1356 = vpop.xlane.xlu0 %1355
      %v1357 = vsub.f32 %v1337, %v1344
      %v1358 = vsub.f32 %v1338, %v1347
      %v1359 = vsub.f32 %v1339, %v1350
      %v1360 = vsub.f32 %v1340, %v1353
      %v1361 = vsub.f32 %v1341, %v1356
      %v1362 = vmul.f32 %v1357, 1.442695
      %v1363 = vpow.pop %v1362
      %v1364 = vmul.f32 %v1358, 1.442695
      %v1365 = vpow.pop %v1364
      %v1366 = vmul.f32 %v1359, 1.442695
      %v1367 = vpow.pop %v1366
      %v1368 = vmul.f32 %v1360, 1.442695
      %v1369 = vpow.pop %v1368
      %v1370 = vmul.f32 %v1361, 1.442695
      %v1371 = vpow.pop %v1370
      %v1372 = vsel %vm702, %v1363, 0.0
      %1373 = vadd.xlane.f32.xlu0 %v1372
      %v1374 = vpop.xlane.xlu0 %1373
      %v1375 = vsel %vm702, %v1365, 0.0
      %1376 = vadd.xlane.f32.xlu0 %v1375
      %v1377 = vpop.xlane.xlu0 %1376
      %v1378 = vsel %vm702, %v1367, 0.0
      %1379 = vadd.xlane.f32.xlu0 %v1378
      %v1380 = vpop.xlane.xlu0 %1379
      %v1381 = vsel %vm702, %v1369, 0.0
      %1382 = vadd.xlane.f32.xlu0 %v1381
      %v1383 = vpop.xlane.xlu0 %1382
      %v1384 = vsel %vm702, %v1371, 0.0
      %1385 = vadd.xlane.f32.xlu0 %v1384
      %v1386 = vpop.xlane.xlu0 %1385
      %v1387 = vrcp.pop %v1374
      %v1388 = vrcp.pop %v1377
      %v1389 = vrcp.pop %v1380
      %v1390 = vrcp.pop %v1383
      %v1391 = vrcp.pop %v1386
      %v1392 = vmul.f32 %v1363, %v1387
      %v1393 = vmul.f32 %v1365, %v1388
      %v1394 = vmul.f32 %v1367, %v1389
      %v1395 = vmul.f32 %v1369, %v1390
      %v1396 = vmul.f32 %v1371, %v1391
      %v1397 = vpack.c.bf16 %v1392, %v1392
      %v1398 = vpack.c.bf16 %v1393, %v1393
      %v1399 = vpack.c.bf16 %v1394, %v1394
      %v1400 = vpack.c.bf16 %v1395, %v1395
      %v1401 = vpack.c.bf16 %v1396, %v1396
      %1402 = vrot.lane.b32.xlu0 %v578, 48
      %v1403 = vpop.permute.xlu0 %1402
      %v1405 = vsel %vm765, %v1397, 0
      %v1408 = vsel %vm769, %v1403, 0
      %1410 = vmatpush.bf16.msra.mxu0 0
      %1411 = vmatpush.bf16.msra.mxu0 0
      %1412 = vmatpush.bf16.msra.mxu0 0
      %1413 = vmatpush.bf16.msra.mxu0 0
      %1414 = vmatpush.bf16.msra.mxu0 0
      %1415 = vmatpush.bf16.msra.mxu0 0
      %1416 = vmatpush.bf16.msra.mxu0 0
      %1417 = vmatpush.bf16.msra.mxu0 %v1408
      %1418 = vmatmul.bf16.gmra.mxu0 %v1405
      %v1419 = vpop.f32.mrf.mxu0
      %v1420 = vadd.f32 0.0, %v1419
      %v1421 = vpop.f32.mrf.mxu0
      %1422 = vdwg.mxu0
      %1423 = vrot.lane.b32.xlu0 %v603, 48
      %v1424 = vpop.permute.xlu0 %1423
      %v1426 = vsel %vm765, %v1398, 0
      %v1429 = vsel %vm769, %v1424, 0
      %1431 = vmatpush.bf16.msra.mxu0 0
      %1432 = vmatpush.bf16.msra.mxu0 0
      %1433 = vmatpush.bf16.msra.mxu0 0
      %1434 = vmatpush.bf16.msra.mxu0 0
      %1435 = vmatpush.bf16.msra.mxu0 0
      %1436 = vmatpush.bf16.msra.mxu0 0
      %1437 = vmatpush.bf16.msra.mxu0 0
      %1438 = vmatpush.bf16.msra.mxu0 %v1429
      %1439 = vmatmul.bf16.gmra.mxu0 %v1426
      %v1440 = vpop.f32.mrf.mxu0
      %v1441 = vadd.f32 0.0, %v1440
      %v1442 = vpop.f32.mrf.mxu0
      %1443 = vdwg.mxu0
      %1444 = vrot.lane.b32.xlu0 %v627, 48
      %v1445 = vpop.permute.xlu0 %1444
      %v1447 = vsel %vm765, %v1399, 0
      %v1450 = vsel %vm769, %v1445, 0
      %1452 = vmatpush.bf16.msra.mxu0 0
      %1453 = vmatpush.bf16.msra.mxu0 0
      %1454 = vmatpush.bf16.msra.mxu0 0
      %1455 = vmatpush.bf16.msra.mxu0 0
      %1456 = vmatpush.bf16.msra.mxu0 0
      %1457 = vmatpush.bf16.msra.mxu0 0
      %1458 = vmatpush.bf16.msra.mxu0 0
      %1459 = vmatpush.bf16.msra.mxu0 %v1450
      %1460 = vmatmul.bf16.gmra.mxu0 %v1447
      %v1461 = vpop.f32.mrf.mxu0
      %v1462 = vadd.f32 0.0, %v1461
      %v1463 = vpop.f32.mrf.mxu0
      %1464 = vdwg.mxu0
      %1465 = vrot.lane.b32.xlu0 %v651, 48
      %v1466 = vpop.permute.xlu0 %1465
      %v1468 = vsel %vm765, %v1400, 0
      %v1471 = vsel %vm769, %v1466, 0
      %1473 = vmatpush.bf16.msra.mxu0 0
      %1474 = vmatpush.bf16.msra.mxu0 0
      %1475 = vmatpush.bf16.msra.mxu0 0
      %1476 = vmatpush.bf16.msra.mxu0 0
      %1477 = vmatpush.bf16.msra.mxu0 0
      %1478 = vmatpush.bf16.msra.mxu0 0
      %1479 = vmatpush.bf16.msra.mxu0 0
      %1480 = vmatpush.bf16.msra.mxu0 %v1471
      %1481 = vmatmul.bf16.gmra.mxu0 %v1468
      %v1482 = vpop.f32.mrf.mxu0
      %v1483 = vadd.f32 0.0, %v1482
      %v1484 = vpop.f32.mrf.mxu0
      %1485 = vdwg.mxu0
      %1486 = vrot.lane.b32.xlu0 %v675, 48
      %v1487 = vpop.permute.xlu0 %1486
      %v1489 = vsel %vm765, %v1401, 0
      %v1492 = vsel %vm769, %v1487, 0
      %1494 = vmatpush.bf16.msra.mxu0 0
      %1495 = vmatpush.bf16.msra.mxu0 0
      %1496 = vmatpush.bf16.msra.mxu0 0
      %1497 = vmatpush.bf16.msra.mxu0 0
      %1498 = vmatpush.bf16.msra.mxu0 0
      %1499 = vmatpush.bf16.msra.mxu0 0
      %1500 = vmatpush.bf16.msra.mxu0 0
      %1501 = vmatpush.bf16.msra.mxu0 %v1492
      %1502 = vmatmul.bf16.gmra.mxu0 %v1489
      %v1503 = vpop.f32.mrf.mxu0
      %v1504 = vadd.f32 0.0, %v1503
      %v1505 = vpop.f32.mrf.mxu0
      %1506 = vdwg.mxu0
      %v1507 = vpack.c.bf16 %v1420, %v1420
      %v1508 = vpack.c.bf16 %v1441, %v1441
      %v1509 = vpack.c.bf16 %v1462, %v1462
      %v1510 = vpack.c.bf16 %v1483, %v1483
      %v1511 = vpack.c.bf16 %v1504, %v1504
      %v1517 = vrot.slane %v1507, 2
      %v1518 = vrot.slane %v1508, 2
      %v1519 = vrot.slane %v1509, 2
      %v1520 = vrot.slane %v1510, 2
      %v1521 = vrot.slane %v1511, 2
      %v1524 = vsel %vm769, %v1507, %v1517
      %v1528 = vsel %vm769, %v1508, %v1518
      %v1532 = vsel %vm769, %v1509, %v1519
      %v1536 = vsel %vm769, %v1510, %v1520
      %v1540 = vsel %vm769, %v1511, %v1521
      %1542 = vrot.lane.b32.xlu0 %v1524, 16
      %v1543 = vpop.permute.xlu0 %1542
      %1544 = vrot.lane.b32.xlu0 %v1528, 16
      %v1545 = vpop.permute.xlu0 %1544
      %1546 = vrot.lane.b32.xlu0 %v1532, 16
      %v1547 = vpop.permute.xlu0 %1546
      %1548 = vrot.lane.b32.xlu0 %v1536, 16
      %v1549 = vpop.permute.xlu0 %1548
      %1550 = vrot.lane.b32.xlu0 %v1540, 16
      %v1551 = vpop.permute.xlu0 %1550
      %vm1557 = vcmask 189568
      %1558 = vst.msk [vmem:[#allocation2] sm:$0x3] %vm1557, %v1543
      %1559 = vst.msk [vmem:[#allocation2 + $0x2] sm:$0x3] %vm1557, %v1545
      %1560 = vst.msk [vmem:[#allocation2 + $0x4] sm:$0x3] %vm1557, %v1547
      %1561 = vst.msk [vmem:[#allocation2 + $0x6] sm:$0x3] %vm1557, %v1549
      %1562 = vst.msk [vmem:[#allocation2 + $0x8] sm:$0x3] %vm1557, %v1551
      %1563 = vrot.lane.b32.xlu0 %v578, 104
      %v1564 = vpop.permute.xlu0 %1563
      %1565 = vrot.lane.b32.xlu0 %v578, 72
      %v1566 = vpop.permute.xlu0 %1565
      %v1568 = vsel %vm581, %v1564, 0
      %v1571 = vsel %vm581, %v1566, 0
      %1573 = vmatpush.bf16.xpose.msra.mxu0 0
      %1574 = vmatpush.bf16.xpose.msra.mxu0 0
      %1575 = vmatpush.bf16.xpose.msra.mxu0 0
      %1576 = vmatpush.bf16.xpose.msra.mxu0 0
      %1577 = vmatpush.bf16.xpose.msra.mxu0 0
      %1578 = vmatpush.bf16.xpose.msra.mxu0 0
      %1579 = vmatpush.bf16.xpose.msra.mxu0 0
      %1580 = vmatpush.bf16.xpose.msra.mxu0 %v1571
      %1581 = vmatmul.bf16.gmra.mxu0 %v1568
      %v1582 = vpop.f32.mrf.mxu0
      %v1583 = vadd.f32 0.0, %v1582
      %v1584 = vpop.f32.mrf.mxu0
      %1585 = vdwg.mxu0
      %1586 = vrot.lane.b32.xlu0 %v603, 104
      %v1587 = vpop.permute.xlu0 %1586
      %1588 = vrot.lane.b32.xlu0 %v603, 72
      %v1589 = vpop.permute.xlu0 %1588
      %v1591 = vsel %vm581, %v1587, 0
      %v1594 = vsel %vm581, %v1589, 0
      %1596 = vmatpush.bf16.xpose.msra.mxu0 0
      %1597 = vmatpush.bf16.xpose.msra.mxu0 0
      %1598 = vmatpush.bf16.xpose.msra.mxu0 0
      %1599 = vmatpush.bf16.xpose.msra.mxu0 0
      %1600 = vmatpush.bf16.xpose.msra.mxu0 0
      %1601 = vmatpush.bf16.xpose.msra.mxu0 0
      %1602 = vmatpush.bf16.xpose.msra.mxu0 0
      %1603 = vmatpush.bf16.xpose.msra.mxu0 %v1594
      %1604 = vmatmul.bf16.gmra.mxu0 %v1591
      %v1605 = vpop.f32.mrf.mxu0
      %v1606 = vadd.f32 0.0, %v1605
      %v1607 = vpop.f32.mrf.mxu0
      %1608 = vdwg.mxu0
      %1609 = vrot.lane.b32.xlu0 %v627, 104
      %v1610 = vpop.permute.xlu0 %1609
      %1611 = vrot.lane.b32.xlu0 %v627, 72
      %v1612 = vpop.permute.xlu0 %1611
      %v1614 = vsel %vm581, %v1610, 0
      %v1617 = vsel %vm581, %v1612, 0
      %1619 = vmatpush.bf16.xpose.msra.mxu0 0
      %1620 = vmatpush.bf16.xpose.msra.mxu0 0
      %1621 = vmatpush.bf16.xpose.msra.mxu0 0
      %1622 = vmatpush.bf16.xpose.msra.mxu0 0
      %1623 = vmatpush.bf16.xpose.msra.mxu0 0
      %1624 = vmatpush.bf16.xpose.msra.mxu0 0
      %1625 = vmatpush.bf16.xpose.msra.mxu0 0
      %1626 = vmatpush.bf16.xpose.msra.mxu0 %v1617
      %1627 = vmatmul.bf16.gmra.mxu0 %v1614
      %v1628 = vpop.f32.mrf.mxu0
      %v1629 = vadd.f32 0.0, %v1628
      %v1630 = vpop.f32.mrf.mxu0
      %1631 = vdwg.mxu0
      %1632 = vrot.lane.b32.xlu0 %v651, 104
      %v1633 = vpop.permute.xlu0 %1632
      %1634 = vrot.lane.b32.xlu0 %v651, 72
      %v1635 = vpop.permute.xlu0 %1634
      %v1637 = vsel %vm581, %v1633, 0
      %v1640 = vsel %vm581, %v1635, 0
      %1642 = vmatpush.bf16.xpose.msra.mxu0 0
      %1643 = vmatpush.bf16.xpose.msra.mxu0 0
      %1644 = vmatpush.bf16.xpose.msra.mxu0 0
      %1645 = vmatpush.bf16.xpose.msra.mxu0 0
      %1646 = vmatpush.bf16.xpose.msra.mxu0 0
      %1647 = vmatpush.bf16.xpose.msra.mxu0 0
      %1648 = vmatpush.bf16.xpose.msra.mxu0 0
      %1649 = vmatpush.bf16.xpose.msra.mxu0 %v1640
      %1650 = vmatmul.bf16.gmra.mxu0 %v1637
      %v1651 = vpop.f32.mrf.mxu0
      %v1652 = vadd.f32 0.0, %v1651
      %v1653 = vpop.f32.mrf.mxu0
      %1654 = vdwg.mxu0
      %1655 = vrot.lane.b32.xlu0 %v675, 104
      %v1656 = vpop.permute.xlu0 %1655
      %1657 = vrot.lane.b32.xlu0 %v675, 72
      %v1658 = vpop.permute.xlu0 %1657
      %v1660 = vsel %vm581, %v1656, 0
      %v1663 = vsel %vm581, %v1658, 0
      %1665 = vmatpush.bf16.xpose.msra.mxu0 0
      %1666 = vmatpush.bf16.xpose.msra.mxu0 0
      %1667 = vmatpush.bf16.xpose.msra.mxu0 0
      %1668 = vmatpush.bf16.xpose.msra.mxu0 0
      %1669 = vmatpush.bf16.xpose.msra.mxu0 0
      %1670 = vmatpush.bf16.xpose.msra.mxu0 0
      %1671 = vmatpush.bf16.xpose.msra.mxu0 0
      %1672 = vmatpush.bf16.xpose.msra.mxu0 %v1663
      %1673 = vmatmul.bf16.gmra.mxu0 %v1660
      %v1674 = vpop.f32.mrf.mxu0
      %v1675 = vadd.f32 0.0, %v1674
      %v1676 = vpop.f32.mrf.mxu0
      %1677 = vdwg.mxu0
      %v1678 = vmul.f32 %v1583, 0.35355338
      %v1679 = vmul.f32 %v1606, 0.35355338
      %v1680 = vmul.f32 %v1629, 0.35355338
      %v1681 = vmul.f32 %v1652, 0.35355338
      %v1682 = vmul.f32 %v1675, 0.35355338
      %v1683 = vsel %vm702, %v1678, -inf
      %1684 = vmax.xlane.f32.xlu0 %v1683
      %v1685 = vpop.xlane.xlu0 %1684
      %v1686 = vsel %vm702, %v1679, -inf
      %1687 = vmax.xlane.f32.xlu0 %v1686
      %v1688 = vpop.xlane.xlu0 %1687
      %v1689 = vsel %vm702, %v1680, -inf
      %1690 = vmax.xlane.f32.xlu0 %v1689
      %v1691 = vpop.xlane.xlu0 %1690
      %v1692 = vsel %vm702, %v1681, -inf
      %1693 = vmax.xlane.f32.xlu0 %v1692
      %v1694 = vpop.xlane.xlu0 %1693
      %v1695 = vsel %vm702, %v1682, -inf
      %1696 = vmax.xlane.f32.xlu0 %v1695
      %v1697 = vpop.xlane.xlu0 %1696
      %v1698 = vsub.f32 %v1678, %v1685
      %v1699 = vsub.f32 %v1679, %v1688
      %v1700 = vsub.f32 %v1680, %v1691
      %v1701 = vsub.f32 %v1681, %v1694
      %v1702 = vsub.f32 %v1682, %v1697
      %v1703 = vmul.f32 %v1698, 1.442695
      %v1704 = vpow.pop %v1703
      %v1705 = vmul.f32 %v1699, 1.442695
      %v1706 = vpow.pop %v1705
      %v1707 = vmul.f32 %v1700, 1.442695
      %v1708 = vpow.pop %v1707
      %v1709 = vmul.f32 %v1701, 1.442695
      %v1710 = vpow.pop %v1709
      %v1711 = vmul.f32 %v1702, 1.442695
      %v1712 = vpow.pop %v1711
      %v1713 = vsel %vm702, %v1704, 0.0
      %1714 = vadd.xlane.f32.xlu0 %v1713
      %v1715 = vpop.xlane.xlu0 %1714
      %v1716 = vsel %vm702, %v1706, 0.0
      %1717 = vadd.xlane.f32.xlu0 %v1716
      %v1718 = vpop.xlane.xlu0 %1717
      %v1719 = vsel %vm702, %v1708, 0.0
      %1720 = vadd.xlane.f32.xlu0 %v1719
      %v1721 = vpop.xlane.xlu0 %1720
      %v1722 = vsel %vm702, %v1710, 0.0
      %1723 = vadd.xlane.f32.xlu0 %v1722
      %v1724 = vpop.xlane.xlu0 %1723
      %v1725 = vsel %vm702, %v1712, 0.0
      %1726 = vadd.xlane.f32.xlu0 %v1725
      %v1727 = vpop.xlane.xlu0 %1726
      %v1728 = vrcp.pop %v1715
      %v1729 = vrcp.pop %v1718
      %v1730 = vrcp.pop %v1721
      %v1731 = vrcp.pop %v1724
      %v1732 = vrcp.pop %v1727
      %v1733 = vmul.f32 %v1704, %v1728
      %v1734 = vmul.f32 %v1706, %v1729
      %v1735 = vmul.f32 %v1708, %v1730
      %v1736 = vmul.f32 %v1710, %v1731
      %v1737 = vmul.f32 %v1712, %v1732
      %v1738 = vpack.c.bf16 %v1733, %v1733
      %v1739 = vpack.c.bf16 %v1734, %v1734
      %v1740 = vpack.c.bf16 %v1735, %v1735
      %v1741 = vpack.c.bf16 %v1736, %v1736
      %v1742 = vpack.c.bf16 %v1737, %v1737
      %1743 = vrot.lane.b32.xlu0 %v578, 40
      %v1744 = vpop.permute.xlu0 %1743
      %v1746 = vsel %vm765, %v1738, 0
      %v1749 = vsel %vm769, %v1744, 0
      %1751 = vmatpush.bf16.msra.mxu0 0
      %1752 = vmatpush.bf16.msra.mxu0 0
      %1753 = vmatpush.bf16.msra.mxu0 0
      %1754 = vmatpush.bf16.msra.mxu0 0
      %1755 = vmatpush.bf16.msra.mxu0 0
      %1756 = vmatpush.bf16.msra.mxu0 0
      %1757 = vmatpush.bf16.msra.mxu0 0
      %1758 = vmatpush.bf16.msra.mxu0 %v1749
      %1759 = vmatmul.bf16.gmra.mxu0 %v1746
      %v1760 = vpop.f32.mrf.mxu0
      %v1761 = vadd.f32 0.0, %v1760
      %v1762 = vpop.f32.mrf.mxu0
      %1763 = vdwg.mxu0
      %1764 = vrot.lane.b32.xlu0 %v603, 40
      %v1765 = vpop.permute.xlu0 %1764
      %v1767 = vsel %vm765, %v1739, 0
      %v1770 = vsel %vm769, %v1765, 0
      %1772 = vmatpush.bf16.msra.mxu0 0
      %1773 = vmatpush.bf16.msra.mxu0 0
      %1774 = vmatpush.bf16.msra.mxu0 0
      %1775 = vmatpush.bf16.msra.mxu0 0
      %1776 = vmatpush.bf16.msra.mxu0 0
      %1777 = vmatpush.bf16.msra.mxu0 0
      %1778 = vmatpush.bf16.msra.mxu0 0
      %1779 = vmatpush.bf16.msra.mxu0 %v1770
      %1780 = vmatmul.bf16.gmra.mxu0 %v1767
      %v1781 = vpop.f32.mrf.mxu0
      %v1782 = vadd.f32 0.0, %v1781
      %v1783 = vpop.f32.mrf.mxu0
      %1784 = vdwg.mxu0
      %1785 = vrot.lane.b32.xlu0 %v627, 40
      %v1786 = vpop.permute.xlu0 %1785
      %v1788 = vsel %vm765, %v1740, 0
      %v1791 = vsel %vm769, %v1786, 0
      %1793 = vmatpush.bf16.msra.mxu0 0
      %1794 = vmatpush.bf16.msra.mxu0 0
      %1795 = vmatpush.bf16.msra.mxu0 0
      %1796 = vmatpush.bf16.msra.mxu0 0
      %1797 = vmatpush.bf16.msra.mxu0 0
      %1798 = vmatpush.bf16.msra.mxu0 0
      %1799 = vmatpush.bf16.msra.mxu0 0
      %1800 = vmatpush.bf16.msra.mxu0 %v1791
      %1801 = vmatmul.bf16.gmra.mxu0 %v1788
      %v1802 = vpop.f32.mrf.mxu0
      %v1803 = vadd.f32 0.0, %v1802
      %v1804 = vpop.f32.mrf.mxu0
      %1805 = vdwg.mxu0
      %1806 = vrot.lane.b32.xlu0 %v651, 40
      %v1807 = vpop.permute.xlu0 %1806
      %v1809 = vsel %vm765, %v1741, 0
      %v1812 = vsel %vm769, %v1807, 0
      %1814 = vmatpush.bf16.msra.mxu0 0
      %1815 = vmatpush.bf16.msra.mxu0 0
      %1816 = vmatpush.bf16.msra.mxu0 0
      %1817 = vmatpush.bf16.msra.mxu0 0
      %1818 = vmatpush.bf16.msra.mxu0 0
      %1819 = vmatpush.bf16.msra.mxu0 0
      %1820 = vmatpush.bf16.msra.mxu0 0
      %1821 = vmatpush.bf16.msra.mxu0 %v1812
      %1822 = vmatmul.bf16.gmra.mxu0 %v1809
      %v1823 = vpop.f32.mrf.mxu0
      %v1824 = vadd.f32 0.0, %v1823
      %v1825 = vpop.f32.mrf.mxu0
      %1826 = vdwg.mxu0
      %1827 = vrot.lane.b32.xlu0 %v675, 40
      %v1828 = vpop.permute.xlu0 %1827
      %v1830 = vsel %vm765, %v1742, 0
      %v1833 = vsel %vm769, %v1828, 0
      %1835 = vmatpush.bf16.msra.mxu0 0
      %1836 = vmatpush.bf16.msra.mxu0 0
      %1837 = vmatpush.bf16.msra.mxu0 0
      %1838 = vmatpush.bf16.msra.mxu0 0
      %1839 = vmatpush.bf16.msra.mxu0 0
      %1840 = vmatpush.bf16.msra.mxu0 0
      %1841 = vmatpush.bf16.msra.mxu0 0
      %1842 = vmatpush.bf16.msra.mxu0 %v1833
      %1843 = vmatmul.bf16.gmra.mxu0 %v1830
      %v1844 = vpop.f32.mrf.mxu0
      %v1845 = vadd.f32 0.0, %v1844
      %v1846 = vpop.f32.mrf.mxu0
      %1847 = vdwg.mxu0
      %v1848 = vpack.c.bf16 %v1761, %v1761
      %v1849 = vpack.c.bf16 %v1782, %v1782
      %v1850 = vpack.c.bf16 %v1803, %v1803
      %v1851 = vpack.c.bf16 %v1824, %v1824
      %v1852 = vpack.c.bf16 %v1845, %v1845
      %v1858 = vrot.slane %v1848, 2
      %v1859 = vrot.slane %v1849, 2
      %v1860 = vrot.slane %v1850, 2
      %v1861 = vrot.slane %v1851, 2
      %v1862 = vrot.slane %v1852, 2
      %v1865 = vsel %vm769, %v1848, %v1858
      %v1869 = vsel %vm769, %v1849, %v1859
      %v1873 = vsel %vm769, %v1850, %v1860
      %v1877 = vsel %vm769, %v1851, %v1861
      %v1881 = vsel %vm769, %v1852, %v1862
      %1883 = vrot.lane.b32.xlu0 %v1865, 24
      %v1884 = vpop.permute.xlu0 %1883
      %1885 = vrot.lane.b32.xlu0 %v1869, 24
      %v1886 = vpop.permute.xlu0 %1885
      %1887 = vrot.lane.b32.xlu0 %v1873, 24
      %v1888 = vpop.permute.xlu0 %1887
      %1889 = vrot.lane.b32.xlu0 %v1877, 24
      %v1890 = vpop.permute.xlu0 %1889
      %1891 = vrot.lane.b32.xlu0 %v1881, 24
      %v1892 = vpop.permute.xlu0 %1891
      %vm1898 = vcmask 255168
      %1899 = vst.msk [vmem:[#allocation2] sm:$0x3] %vm1898, %v1884
      %1900 = vst.msk [vmem:[#allocation2 + $0x2] sm:$0x3] %vm1898, %v1886
      %1901 = vst.msk [vmem:[#allocation2 + $0x4] sm:$0x3] %vm1898, %v1888
      %1902 = vst.msk [vmem:[#allocation2 + $0x6] sm:$0x3] %vm1898, %v1890
      %1903 = vst.msk [vmem:[#allocation2 + $0x8] sm:$0x3] %vm1898, %v1892
      %v1904 = vld [vmem:[#allocation2] sm:$0x3]
      %v1905 = vld [vmem:[#allocation2 + $0x2] sm:$0x3]
      %v1906 = vld [vmem:[#allocation2 + $0x4] sm:$0x3]
      %v1907 = vld [vmem:[#allocation2 + $0x6] sm:$0x3]
      %v1908 = vld [vmem:[#allocation2 + $0x8] sm:$0x3]
      %v1909 = vld [vmem:[%s4] sm:$0xf]
      %v1910 = vld [vmem:[%s4 + $0x4] sm:$0xf]
      %v1911 = vld [vmem:[%s4 + $0x8] sm:$0xf]
      %v1912 = vld [vmem:[%s4 + $0xc] sm:$0xf]
      %v1913 = vld [vmem:[%s5] sm:$0x1]
      %v1915 = vperm.slane %v1913, 0
      %1918 = vst [vmem:[#allocation1] ss:$4 sm:$0xff] %v1904
      %s1920 = scalar_lea.vmem [#allocation1], 1
      %1921 = vst [vmem:[%s1920] ss:$4 sm:$0xff] %v1905
      %s1923 = scalar_lea.vmem [#allocation1], 2
      %1924 = vst [vmem:[%s1923] ss:$4 sm:$0xff] %v1906
      %s1926 = scalar_lea.vmem [#allocation1], 3
      %1927 = vst [vmem:[%s1926] ss:$4 sm:$0xff] %v1907
      %s1929 = scalar_lea.vmem [#allocation1], 32
      %1930 = vst [vmem:[%s1929] ss:$4 sm:$0xff] %v1908
      %v1931 = vld.sshfl [vmem:[#allocation1] sm:$0xff pattern:$0x73625140]
      %v1932 = vld.sshfl [vmem:[#allocation1 + $0x20] sm:$0xff pattern:$0x73625140]
      %v1937 = vunpack.c.l.b16 %v1909
      %v1938 = vunpack.c.l.b16 %v1910
      %v1939 = vunpack.c.l.b16 %v1911
      %v1940 = vunpack.c.l.b16 %v1912
      %v1941 = vpack.c.b16 %v1938, %v1937
      %v1942 = vpack.c.b16 %v1940, %v1939
      %v1945 = vsel %vm324, %v1931, 0
      %v1947 = vsel %vm324, %v1932, 0
      %1949 = vmatpush.bf16.msra.mxu0 0
      %1950 = vmatpush.bf16.msra.mxu0 0
      %1951 = vmatpush.bf16.msra.mxu0 0
      %1952 = vmatpush.bf16.msra.mxu0 0
      %1953 = vmatpush.bf16.msra.mxu0 0
      %1954 = vmatpush.bf16.msra.mxu0 0
      %1955 = vmatpush.bf16.msra.mxu0 %v1942
      %1956 = vmatpush.bf16.msra.mxu0 %v1941
      %1957 = vmatmul.bf16.gmra.mxu0 %v1945
      %v1958 = vpop.f32.mrf.mxu0
      %v1959 = vadd.f32 %v1915, %v1958
      %v1960 = vpop.f32.mrf.mxu0
      %v1961 = vadd.f32 %v1915, %v1960
      %1962 = vmatmul.bf16.gmra.mxu0 %v1947
      %v1963 = vpop.f32.mrf.mxu0
      %v1964 = vadd.f32 %v1915, %v1963
      %v1965 = vpop.f32.mrf.mxu0
      %1966 = vdwg.mxu0
      %1967 = vst [vmem:[#allocation1] ss:$2 sm:$0xff] %v289
      %s1968 = scalar_lea.vmem [#allocation1], 1
      %1969 = vst [vmem:[%s1968] ss:$2 sm:$0xff] %v297
      %s1970 = scalar_lea.vmem [#allocation1], 16
      %1971 = vst [vmem:[%s1970] ss:$2 sm:$0xff] %v293
      %s1972 = scalar_lea.vmem [#allocation1], 17
      %1973 = vst [vmem:[%s1972] ss:$2 sm:$0xff] %v299
      %s1974 = scalar_lea.vmem [#allocation1], 32
      %1975 = vst [vmem:[%s1974] ss:$2 sm:$0xff] %v303
      %v1976 = vld.sshfl [vmem:[#allocation1] sm:$0xff pattern:$0x75316420]
      %v1977 = vld.sshfl [vmem:[#allocation1 + $0x10] sm:$0xff pattern:$0x75316420]
      %v1978 = vld.sshfl [vmem:[#allocation1 + $0x20] sm:$0xff pattern:$0x75316420]
      %v1982 = vadd.f32 %v1959, %v1976
      %v1983 = vadd.f32 %v1961, %v1977
      %v1984 = vadd.f32 %v1964, %v1978
      %v1987 = vrot.slane %v1982, 4
      %v1988 = vrot.slane %v1983, 4
      %v1991 = vrot.slane %v1983, 4
      %v1992 = vsel %vm258, %v1991, %v1982
      %v1994 = vunpack.c.l.s4 1983009808
      %v1995 = vunpack.c.0.s8 %v1994
      %v1996 = vperm.slane %v1992, %v1995
      %v1997 = vrot.slane %v1988, 4
      %v1998 = vsel %vm258, %v1997, %v1987
      %v2000 = vunpack.c.l.s4 1983009808
      %v2001 = vunpack.c.0.s8 %v2000
      %v2002 = vperm.slane %v1998, %v2001
      %v2003 = vrot.slane %v2002, 4
      %v2004 = vsel %vm258, %v2003, %v1996
      %v2005 = vrot.slane %v1996, 4
      %v2006 = vsel %vm258, %v2002, %v2005
      %v2008 = vunpack.c.l.s4 1934713408
      %v2009 = vunpack.c.0.s8 %v2008
      %v2010 = vperm.slane %v2004, %v2009
      %v2012 = vunpack.c.l.s4 1934713408
      %v2013 = vunpack.c.0.s8 %v2012
      %v2014 = vperm.slane %v2006, %v2013
      %v2015 = vrot.slane %v2010, 4
      %v2016 = vsel %vm258, 0.0, %v2015
      %v2017 = vrot.slane %v2014, 4
      %v2018 = vsel %vm258, 0.0, %v2017
      %v2020 = vunpack.c.l.s4 1983009808
      %v2021 = vunpack.c.0.s8 %v2020
      %v2022 = vperm.slane %v1984, %v2021
      %v2023 = vrot.slane %v2022, 4
      %v2024 = vsel %vm258, 0.0, %v2023
      %v2026 = vunpack.c.l.s4 1934713408
      %v2027 = vunpack.c.0.s8 %v2026
      %v2028 = vperm.slane %v2022, %v2027
      %v2030 = vunpack.c.l.s4 1934713408
      %v2031 = vunpack.c.0.s8 %v2030
      %v2032 = vperm.slane %v2024, %v2031
      %v2033 = vrot.slane %v2028, 4
      %v2034 = vsel %vm258, 0.0, %v2033
      %v2035 = vrot.slane %v2032, 4
      %v2036 = vsel %vm258, 0.0, %v2035
      %2045 = vst [vmem:[#allocation1] ss:$2 sm:$0xff] %v2010
      %s2046 = scalar_lea.vmem [#allocation1], 1
      %2047 = vst [vmem:[%s2046] ss:$2 sm:$0xff] %v2028
      %v2048 = vld.sshfl [vmem:[#allocation1] sm:$0xff pattern:$0x75316420]
      %s2049 = scalar_lea.vmem [#allocation1], 16
      %2050 = vst [vmem:[%s2049] ss:$2 sm:$0xff] %v2016
      %s2051 = scalar_lea.vmem [#allocation1], 17
      %2052 = vst [vmem:[%s2051] ss:$2 sm:$0xff] %v2034
      %v2053 = vld.sshfl [vmem:[#allocation1 + $0x10] sm:$0xff pattern:$0x75316420]
      %s2054 = scalar_lea.vmem [#allocation1], 32
      %2055 = vst [vmem:[%s2054] ss:$2 sm:$0xff] %v2014
      %s2056 = scalar_lea.vmem [#allocation1], 33
      %2057 = vst [vmem:[%s2056] ss:$2 sm:$0xff] %v2032
      %v2058 = vld.sshfl [vmem:[#allocation1 + $0x20] sm:$0xff pattern:$0x75316420]
      %s2059 = scalar_lea.vmem [#allocation1], 48
      %2060 = vst [vmem:[%s2059] ss:$2 sm:$0xff] %v2018
      %s2061 = scalar_lea.vmem [#allocation1], 49
      %2062 = vst [vmem:[%s2061] ss:$2 sm:$0xff] %v2036
      %v2063 = vld.sshfl [vmem:[#allocation1 + $0x30] sm:$0xff pattern:$0x75316420]
      %vm2068 = vcmask 258048
      %2069 = vst.msk [vmem:[%s251] sm:$0x1f] %vm2068, %v2048
      %2070 = vst.msk [vmem:[%s251 + $0x8] sm:$0x1f] %vm2068, %v2053
      %2071 = vst.msk [vmem:[%s251 + $0x10] sm:$0x1f] %vm2068, %v2058
      %2072 = vst.msk [vmem:[%s251 + $0x18] sm:$0x1f] %vm2068, %v2063
      %p2073 = scmp.lt.s32.totalorder %s17, 1
      %s2074 = scalar_select %p2073, %s17, 1
      %s2075 = smul.addr %s2074, 4
      %s2076 = smul.addr %s2075, 8
      %s2077 = scalar_lea.vmem %s6, %s2076
      // Predicated region
      $region45: #{video_vit_forward.7} parent=43 // pred_check
        %p2078 = pneg %p166
      $region46: #{video_vit_forward.7} parent=43 // pred_check_branch
        %2080 = sbr.rel (%p2078) target = $region48
      $region47: #{video_vit_forward.7} parent=43 // pred_region
        _
      $region48: #{video_vit_forward.7} parent=43 // pred_fallthru
        _
    $region44: #{video_vit_forward.7} parent=5 // pred_fallthru
      _
    %p2081 = scmp.le.s32.totalorder 2, %s12
    // Predicated region
    $region49: #{video_vit_forward.7} parent=5 // pred_check
      %p2082 = pneg %p2081
    $region50: #{video_vit_forward.7} parent=5 // pred_check_branch
      %2084 = sbr.rel (%p2082) target = $region52
    $region51: #{video_vit_forward.7} parent=5 // pred_region
      %s2085 = ssub.s32 %s12, 2
      // Predicated region
      $region53: #{video_vit_forward.7} parent=51 // pred_check
        %p2086 = pneg %p172
      $region54: #{video_vit_forward.7} parent=51 // pred_check_branch
        %2088 = sbr.rel (%p2086) target = $region56
      $region55: #{video_vit_forward.7} parent=51 // pred_region
        %p2089 = scmp.lt.s32.totalorder %s18, 1
        %s2090 = scalar_select %p2089, %s18, 1
        %s2091 = smul.addr %s2090, 4
        %s2092 = smul.addr %s2091, 8
        %s2093 = scalar_lea.vmem %s6, %s2092
      $region56: #{video_vit_forward.7} parent=51 // pred_fallthru
        _
    $region52: #{video_vit_forward.7} parent=5 // pred_fallthru
      _
  $region6: #{video_vit_forward.7} parent=0 // loop_footer
    %s16 = sadd.s32 1, %s12
  $region7: #{video_vit_forward.7} parent=0 // loop_footer_branch
    %11 = sbr.rel target = $region3
  $region8: #{video_vit_forward.7} parent=0 // loop_exit
    _

// kernel: video_vit_forward.9
$region0: #{video_vit_forward.9}
  #allocation0 [shape = 'u32[]', space=smem, size = 0x4, offset = 0x4, fixed_abs, tag = 'smem constant byte address 0x4 - core index']
  #allocation1 [shape = 'u32[72,128]{1,0:T(1,128)}', space=vmem, size = 0x9000, scoped, tag = 'internal scratch']
  %s0 = inlined_call_operand.vmem [shape: f32[2,32], index: 0, kind: input, shape index: {}]
  %s1 = inlined_call_operand.vmem [shape: f32[1,32], index: 1, kind: input, shape index: {}]
  %s2 = inlined_call_operand.vmem [shape: f32[1,32], index: 2, kind: input, shape index: {}]
  %s3 = inlined_call_operand.hbm [shape: f32[2,32], index: 3, kind: output, shape index: {}]
  %s4 = sld [smem:[#allocation0]]
  $region22: #{video_vit_forward.9} parent=0
    _
  %s6 = ssub.s32 1, %s4
  %s7 = scalar_select 0, %s6, %s4
  $region1: #{video_vit_forward.9} parent=0
    #allocation2 [shape = 'u8[1024]{0}', space=vmem, size = 0x400, scoped, tag = 'output window, operand 0, single buffered']
    #allocation3 [shape = 's32[1]{0}', space=sflag, size = 0x4, scoped, tag = 'scoped memory for video_vit_forward.9']
    %8 = vsyncpa [#allocation3], 0
    // Predicated region
    $region2: #{video_vit_forward.9} parent=1 // pred_check
      _
    $region3: #{video_vit_forward.9} parent=1 // pred_check_branch
      %10 = sbr.rel (0) target = $region5
    $region4: #{video_vit_forward.9} parent=1 // pred_region
      _
    $region5: #{video_vit_forward.9} parent=1 // pred_fallthru
      _
    // Predicated region
    $region6: #{video_vit_forward.9} parent=1 // pred_check
      _
    $region7: #{video_vit_forward.9} parent=1 // pred_check_branch
      %12 = sbr.rel (0) target = $region9
    $region8: #{video_vit_forward.9} parent=1 // pred_region
      _
    $region9: #{video_vit_forward.9} parent=1 // pred_fallthru
      _
    // Predicated region
    $region10: #{video_vit_forward.9} parent=1 // pred_check
      _
    $region11: #{video_vit_forward.9} parent=1 // pred_check_branch
      %14 = sbr.rel (0) target = $region13
    $region12: #{video_vit_forward.9} parent=1 // pred_region
      _
    $region13: #{video_vit_forward.9} parent=1 // pred_fallthru
      _
    %v15 = vld [vmem:[%s0] sm:$0x3]
    %vm16 = vcmask 254976
    %v17 = vsel %vm16, %v15, 0.0
    %18 = vadd.xlane.f32.xlu0 %v17
    %v19 = vpop.xlane.xlu0 %18
    %v20 = vrcp.pop 32.0
    %v21 = vmul.f32 32.0, %v20
    %v22 = vsub.f32 1.0, %v21
    %v23 = vmul.f32 %v20, %v22
    %v24 = vadd.f32 %v20, %v23
    %vm25 = vweird.f32 %v20
    %v26 = vsel %vm25, %v20, %v24
    %v27 = vmul.f32 %v19, %v26
    %v28 = vsub.f32 %v15, %v27
    %v29 = vmul.f32 %v28, %v28
    %v30 = vsel %vm16, %v29, 0.0
    %31 = vadd.xlane.f32.xlu0 %v30
    %v32 = vpop.xlane.xlu0 %31
    %v33 = vmul.f32 %v32, %v26
    %v34 = vadd.f32 %v33, 1e-05
    %v35 = vrsqrt.pop %v34
    %v36 = vmul.f32 %v35, %v34
    %v37 = vmul.f32 %v36, %v35
    %v38 = vmul.f32 0.5, %v37
    %v39 = vsub.f32 1.5, %v38
    %v40 = vmul.f32 %v35, %v39
    %vm41 = vweird.f32 %v34
    %vm42 = vweird.f32 %v35
    %vm43 = vmor %vm41, %vm42
    %v44 = vsel %vm43, %v35, %v40
    %v45 = vmul.f32 %v28, %v44
    %v46 = vld [vmem:[%s1] sm:$0x1]
    %v48 = vperm.slane %v46, 0
    %v50 = vmul.f32 %v45, %v48
    %v51 = vld [vmem:[%s2] sm:$0x1]
    %v53 = vperm.slane %v51, 0
    %v55 = vadd.f32 %v50, %v53
    %56 = vst.msk [vmem:[#allocation2] sm:$0x3] %vm16, %v55
    // Predicated region
    $region14: #{video_vit_forward.9} parent=1 // pred_check
      _
    $region15: #{video_vit_forward.9} parent=1 // pred_check_branch
      %58 = sbr.rel (0) target = $region17
    $region16: #{video_vit_forward.9} parent=1 // pred_region
      %60 = vsyncadd [#allocation3], 0
      %s62 = sshll.u32 [#allocation2], 4
      %s63 = int_to_ptr.vmem [resolvable:$true] %s62
      %s64 = sshll.u32 %s3, 4
      %s65 = int_to_ptr.hbm [resolvable:$true] %s64
      %67 = dma.vmem_to_hbm [thread:$0]  %s63, 32, %s65, [#allocation3]
    $region17: #{video_vit_forward.9} parent=1 // pred_fallthru
      _
    // Predicated region
    $region18: #{video_vit_forward.9} parent=1 // pred_check
      _
    $region19: #{video_vit_forward.9} parent=1 // pred_check_branch
      %69 = sbr.rel (0) target = $region21
    $region20: #{video_vit_forward.9} parent=1 // pred_region
      %71 = dma.done [#allocation3], 32
    $region21: #{video_vit_forward.9} parent=1 // pred_fallthru
      _
    %72 = vsyncpa [#allocation3], 1

// kernel: video_vit_forward.6
$region0: #{video_vit_forward.6}
  #allocation0 [shape = 'u32[]', space=smem, size = 0x4, offset = 0x4, fixed_abs, tag = 'smem constant byte address 0x4 - core index']
  #allocation1 [shape = 'u32[72,128]{1,0:T(1,128)}', space=vmem, size = 0x9000, scoped, tag = 'internal scratch']
  #allocation2 [shape = 'bf16[4,5,32]{2,1,0:T(8,128)(2,1)}', space=vmem, size = 0x2000, scoped, tag = 'scratch operand']
  %s0 = inlined_call_operand.vmem [shape: f32[2,4,5,32], index: 0, kind: input, shape index: {}]
  %s1 = inlined_call_operand.vmem [shape: f32[1,32], index: 1, kind: input, shape index: {}]
  %s2 = inlined_call_operand.vmem [shape: f32[1,32], index: 2, kind: input, shape index: {}]
  %s3 = inlined_call_operand.vmem [shape: bf16[32,96], index: 3, kind: input, shape index: {}]
  %s4 = inlined_call_operand.vmem [shape: bf16[32,32], index: 4, kind: input, shape index: {}]
  %s5 = inlined_call_operand.vmem [shape: f32[1,32], index: 5, kind: input, shape index: {}]
  %s6 = inlined_call_operand.vmem [shape: f32[2,4,5,32], index: 6, kind: output, shape index: {}]
  %s7 = sld [smem:[#allocation0]]
  $region57: #{video_vit_forward.6} parent=0
    _
  %s9 = ssub.s32 1, %s7
  %s10 = scalar_select 0, %s9, %s7
  loop: start=0, step=1, limit=4
  $region2: #{video_vit_forward.6} parent=0 // loop_pre_header
    _
  $region3: #{video_vit_forward.6} parent=0 // loop_header
    %s12 = sphi 0, %s16
    %p13 = scmp.ge.s32.totalorder %s12, 4
    %s22 = sphi 0, %s24
    %s25 = sphi 0, %s22
    %s26 = sphi 0, %s25
    %s42 = sphi 0, %s26
    %s46 = sphi 0, %s46
    %s48 = sphi 0, %s46
    %s49 = sphi 0, %s48
    %s63 = sphi 0, %s49
    %s67 = sphi 0, %s67
    %s69 = sphi 0, %s67
    %s70 = sphi 0, %s69
    %s84 = sphi 0, %s70
    %s88 = sphi 0, %s88
    %s90 = sphi 0, %s88
    %s91 = sphi 0, %s90
    %s105 = sphi 0, %s91
    %s109 = sphi 0, %s109
    %s111 = sphi 0, %s109
    %s112 = sphi 0, %s111
    %s126 = sphi 0, %s112
    %s130 = sphi 0, %s130
    %s132 = sphi 0, %s130
    %s133 = sphi 0, %s132
    %s147 = sphi 0, %s133
    %s153 = sphi 0, %s155
    %s156 = sphi 0, %s153
    %s157 = sphi 0, %s156
    %s173 = sphi 0, %s157
  $region4: #{video_vit_forward.6} parent=0 // loop_header_branch
    %15 = sbr.rel (%p13) target = $region8
  $region5: #{video_vit_forward.6} parent=0 // loop_body
    %s17 = ssub.s32 %s12, 1
    %s18 = ssub.s32 %s12, 2
    %s19 = sadd.s32 %s12, 1
    %s20 = ssub.s32 %s12, %s19
    %p21 = scmp.eq.s32.totalorder %s20, 0
    %s23 = sadd.s32 %s22, 1
    %s24 = scalar_select %p21, %s22, %s23
    %p27 = pneg %p21
    %p28 = scmp.eq.s32.totalorder %s12, 1
    %p29 = por %p27, %p28
    %p30 = scmp.ne.s32.totalorder %s22, %s25
    %p31 = scmp.eq.s32.totalorder %s12, 0
    %p32 = por %p30, %p31
    %p33 = scmp.ne.s32.totalorder %s22, %s25
    %p34 = scmp.eq.s32.totalorder %s17, 1
    %p35 = por %p33, %p34
    %p36 = scmp.ne.s32.totalorder %s25, %s26
    %p37 = scmp.eq.s32.totalorder %s17, 0
    %p38 = por %p36, %p37
    %p39 = scmp.ne.s32.totalorder %s25, %s26
    %p40 = scmp.eq.s32.totalorder %s18, 1
    %p41 = por %p39, %p40
    %p43 = scmp.ne.s32.totalorder %s26, %s42
    %p44 = scmp.eq.s32.totalorder %s18, 0
    %p45 = por %p43, %p44
    %s47 = sadd.s32 %s46, 1
    %p50 = scmp.eq.s32.totalorder %s12, 1
    %p51 = scmp.ne.s32.totalorder %s46, %s48
    %p52 = scmp.eq.s32.totalorder %s12, 0
    %p53 = por %p51, %p52
    %p54 = scmp.ne.s32.totalorder %s46, %s48
    %p55 = scmp.eq.s32.totalorder %s17, 1
    %p56 = por %p54, %p55
    %p57 = scmp.ne.s32.totalorder %s48, %s49
    %p58 = scmp.eq.s32.totalorder %s17, 0
    %p59 = por %p57, %p58
    %p60 = scmp.ne.s32.totalorder %s48, %s49
    %p61 = scmp.eq.s32.totalorder %s18, 1
    %p62 = por %p60, %p61
    %p64 = scmp.ne.s32.totalorder %s49, %s63
    %p65 = scmp.eq.s32.totalorder %s18, 0
    %p66 = por %p64, %p65
    %s68 = sadd.s32 %s67, 1
    %p71 = scmp.eq.s32.totalorder %s12, 1
    %p72 = scmp.ne.s32.totalorder %s67, %s69
    %p73 = scmp.eq.s32.totalorder %s12, 0
    %p74 = por %p72, %p73
    %p75 = scmp.ne.s32.totalorder %s67, %s69
    %p76 = scmp.eq.s32.totalorder %s17, 1
    %p77 = por %p75, %p76
    %p78 = scmp.ne.s32.totalorder %s69, %s70
    %p79 = scmp.eq.s32.totalorder %s17, 0
    %p80 = por %p78, %p79
    %p81 = scmp.ne.s32.totalorder %s69, %s70
    %p82 = scmp.eq.s32.totalorder %s18, 1
    %p83 = por %p81, %p82
    %p85 = scmp.ne.s32.totalorder %s70, %s84
    %p86 = scmp.eq.s32.totalorder %s18, 0
    %p87 = por %p85, %p86
    %s89 = sadd.s32 %s88, 1
    %p92 = scmp.eq.s32.totalorder %s12, 1
    %p93 = scmp.ne.s32.totalorder %s88, %s90
    %p94 = scmp.eq.s32.totalorder %s12, 0
    %p95 = por %p93, %p94
    %p96 = scmp.ne.s32.totalorder %s88, %s90
    %p97 = scmp.eq.s32.totalorder %s17, 1
    %p98 = por %p96, %p97
    %p99 = scmp.ne.s32.totalorder %s90, %s91
    %p100 = scmp.eq.s32.totalorder %s17, 0
    %p101 = por %p99, %p100
    %p102 = scmp.ne.s32.totalorder %s90, %s91
    %p103 = scmp.eq.s32.totalorder %s18, 1
    %p104 = por %p102, %p103
    %p106 = scmp.ne.s32.totalorder %s91, %s105
    %p107 = scmp.eq.s32.totalorder %s18, 0
    %p108 = por %p106, %p107
    %s110 = sadd.s32 %s109, 1
    %p113 = scmp.eq.s32.totalorder %s12, 1
    %p114 = scmp.ne.s32.totalorder %s109, %s111
    %p115 = scmp.eq.s32.totalorder %s12, 0
    %p116 = por %p114, %p115
    %p117 = scmp.ne.s32.totalorder %s109, %s111
    %p118 = scmp.eq.s32.totalorder %s17, 1
    %p119 = por %p117, %p118
    %p120 = scmp.ne.s32.totalorder %s111, %s112
    %p121 = scmp.eq.s32.totalorder %s17, 0
    %p122 = por %p120, %p121
    %p123 = scmp.ne.s32.totalorder %s111, %s112
    %p124 = scmp.eq.s32.totalorder %s18, 1
    %p125 = por %p123, %p124
    %p127 = scmp.ne.s32.totalorder %s112, %s126
    %p128 = scmp.eq.s32.totalorder %s18, 0
    %p129 = por %p127, %p128
    %s131 = sadd.s32 %s130, 1
    %p134 = scmp.eq.s32.totalorder %s12, 1
    %p135 = scmp.ne.s32.totalorder %s130, %s132
    %p136 = scmp.eq.s32.totalorder %s12, 0
    %p137 = por %p135, %p136
    %p138 = scmp.ne.s32.totalorder %s130, %s132
    %p139 = scmp.eq.s32.totalorder %s17, 1
    %p140 = por %p138, %p139
    %p141 = scmp.ne.s32.totalorder %s132, %s133
    %p142 = scmp.eq.s32.totalorder %s17, 0
    %p143 = por %p141, %p142
    %p144 = scmp.ne.s32.totalorder %s132, %s133
    %p145 = scmp.eq.s32.totalorder %s18, 1
    %p146 = por %p144, %p145
    %p148 = scmp.ne.s32.totalorder %s133, %s147
    %p149 = scmp.eq.s32.totalorder %s18, 0
    %p150 = por %p148, %p149
    %s151 = ssub.s32 %s12, %s19
    %p152 = scmp.eq.s32.totalorder %s151, 0
    %s154 = sadd.s32 %s153, 1
    %s155 = scalar_select %p152, %s153, %s154
    %p158 = pneg %p152
    %p159 = scmp.eq.s32.totalorder %s12, 1
    %p160 = por %p158, %p159
    %p161 = scmp.ne.s32.totalorder %s153, %s156
    %p162 = scmp.eq.s32.totalorder %s12, 0
    %p163 = por %p161, %p162
    %p164 = scmp.ne.s32.totalorder %s153, %s156
    %p165 = scmp.eq.s32.totalorder %s17, 1
    %p166 = por %p164, %p165
    %p167 = scmp.ne.s32.totalorder %s156, %s157
    %p168 = scmp.eq.s32.totalorder %s17, 0
    %p169 = por %p167, %p168
    %p170 = scmp.ne.s32.totalorder %s156, %s157
    %p171 = scmp.eq.s32.totalorder %s18, 1
    %p172 = por %p170, %p171
    %p174 = scmp.ne.s32.totalorder %s157, %s173
    %p175 = scmp.eq.s32.totalorder %s18, 0
    %p176 = por %p174, %p175
    %p177 = scmp.le.s32.totalorder 1, %s12
    %p178 = scmp.lt.s32.totalorder %s12, 3
    %p179 = pnand %p177, %p178
    %p180 = pneg %p179
    // Predicated region
    $region9: #{video_vit_forward.6} parent=5 // pred_check
      _
    $region10: #{video_vit_forward.6} parent=5 // pred_check_branch
      %182 = sbr.rel (%p179) target = $region12
    $region11: #{video_vit_forward.6} parent=5 // pred_region
      %s183 = ssub.s32 %s12, 1
      // Predicated region
      $region13: #{video_vit_forward.6} parent=11 // pred_check
        %p184 = pneg %p59
      $region14: #{video_vit_forward.6} parent=11 // pred_check_branch
        %186 = sbr.rel (%p184) target = $region16
      $region15: #{video_vit_forward.6} parent=11 // pred_region
        _
      $region16: #{video_vit_forward.6} parent=11 // pred_fallthru
        _
      // Predicated region
      $region17: #{video_vit_forward.6} parent=11 // pred_check
        %p187 = pneg %p80
      $region18: #{video_vit_forward.6} parent=11 // pred_check_branch
        %189 = sbr.rel (%p187) target = $region20
      $region19: #{video_vit_forward.6} parent=11 // pred_region
        _
      $region20: #{video_vit_forward.6} parent=11 // pred_fallthru
        _
      // Predicated region
      $region21: #{video_vit_forward.6} parent=11 // pred_check
        %p190 = pneg %p101
      $region22: #{video_vit_forward.6} parent=11 // pred_check_branch
        %192 = sbr.rel (%p190) target = $region24
      $region23: #{video_vit_forward.6} parent=11 // pred_region
        _
      $region24: #{video_vit_forward.6} parent=11 // pred_fallthru
        _
      // Predicated region
      $region25: #{video_vit_forward.6} parent=11 // pred_check
        %p193 = pneg %p122
      $region26: #{video_vit_forward.6} parent=11 // pred_check_branch
        %195 = sbr.rel (%p193) target = $region28
      $region27: #{video_vit_forward.6} parent=11 // pred_region
        _
      $region28: #{video_vit_forward.6} parent=11 // pred_fallthru
        _
      // Predicated region
      $region29: #{video_vit_forward.6} parent=11 // pred_check
        %p196 = pneg %p143
      $region30: #{video_vit_forward.6} parent=11 // pred_check_branch
        %198 = sbr.rel (%p196) target = $region32
      $region31: #{video_vit_forward.6} parent=11 // pred_region
        _
      $region32: #{video_vit_forward.6} parent=11 // pred_fallthru
        _
    $region12: #{video_vit_forward.6} parent=5 // pred_fallthru
      _
    %p199 = scmp.lt.s32.totalorder %s12, 2
    // Predicated region
    $region33: #{video_vit_forward.6} parent=5 // pred_check
      %p200 = pneg %p199
    $region34: #{video_vit_forward.6} parent=5 // pred_check_branch
      %202 = sbr.rel (%p200) target = $region36
    $region35: #{video_vit_forward.6} parent=5 // pred_region
      // Predicated region
      $region37: #{video_vit_forward.6} parent=35 // pred_check
        %p203 = pneg %p32
      $region38: #{video_vit_forward.6} parent=35 // pred_check_branch
        %205 = sbr.rel (%p203) target = $region40
      $region39: #{video_vit_forward.6} parent=35 // pred_region
        %p206 = scmp.lt.s32.totalorder %s12, 1
        %s207 = scalar_select %p206, %s12, 1
        %s208 = smul.addr %s207, 4
        %s209 = smul.addr %s208, 8
        %s210 = scalar_lea.vmem %s0, %s209
      $region40: #{video_vit_forward.6} parent=35 // pred_fallthru
        _
    $region36: #{video_vit_forward.6} parent=5 // pred_fallthru
      _
    %p211 = scmp.le.s32.totalorder 1, %s12
    %p212 = scmp.lt.s32.totalorder %s12, 3
    %p213 = pnand %p211, %p212
    %p214 = pneg %p213
    // Predicated region
    $region41: #{video_vit_forward.6} parent=5 // pred_check
      _
    $region42: #{video_vit_forward.6} parent=5 // pred_check_branch
      %216 = sbr.rel (%p213) target = $region44
    $region43: #{video_vit_forward.6} parent=5 // pred_region
      %s217 = ssub.s32 %s12, 1
      %p218 = scmp.lt.s32.totalorder %s17, 1
      %s219 = scalar_select %p218, %s17, 1
      %s220 = smul.addr %s219, 4
      %s221 = smul.addr %s220, 8
      %s222 = scalar_lea.vmem %s0, %s221
      %p223 = pneg %p38
      %p224 = pneg %p35
      %p225 = pneg %p59
      %p226 = pneg %p56
      %p227 = pneg %p80
      %p228 = pneg %p77
      %p229 = pneg %p101
      %p230 = pneg %p98
      %p231 = pneg %p122
      %p232 = pneg %p119
      %p233 = pneg %p143
      %p234 = pneg %p140
      %p235 = pneg %p169
      %p236 = pneg %p166
      %p237 = scmp.lt.s32.totalorder %s17, 1
      %s238 = scalar_select %p237, %s17, 1
      %s239 = smul.addr %s238, 4
      %s240 = smul.addr %s239, 8
      %s241 = scalar_lea.vmem %s6, %s240
      %p242 = scmp.lt.s32.totalorder %s17, 1
      %s243 = scalar_select %p242, %s17, 1
      %s244 = smul.addr %s243, 4
      %s245 = smul.addr %s244, 8
      %s246 = scalar_lea.vmem %s0, %s245
      %p247 = scmp.lt.s32.totalorder %s17, 1
      %s248 = scalar_select %p247, %s17, 1
      %s249 = smul.addr %s248, 4
      %s250 = smul.addr %s249, 8
      %s251 = scalar_lea.vmem %s6, %s250
      %v253 = vld [vmem:[%s246] sm:$0x1f]
      %v254 = vld [vmem:[%s246 + $0x8] sm:$0x1f]
      %v255 = vld [vmem:[%s246 + $0x10] sm:$0x1f]
      %v256 = vld [vmem:[%s246 + $0x18] sm:$0x1f]
      %v261 = vrot.slane %v253, 1
      %v262 = vrot.slane %v253, 2
      %v263 = vrot.slane %v253, 3
      %v264 = vrot.slane %v253, 4
      %v265 = vrot.slane %v254, 1
      %v266 = vrot.slane %v254, 2
      %v267 = vrot.slane %v254, 3
      %v268 = vrot.slane %v254, 4
      %v269 = vrot.slane %v255, 1
      %v270 = vrot.slane %v255, 2
      %v271 = vrot.slane %v255, 3
      %v272 = vrot.slane %v255, 4
      %v273 = vrot.slane %v256, 1
      %v274 = vrot.slane %v256, 2
      %v275 = vrot.slane %v256, 3
      %v276 = vrot.slane %v256, 4
      %293 = vst [vmem:[#allocation1] ss:$9 sm:$0xff] %v253
      %s294 = scalar_lea.vmem [#allocation1], 1
      %295 = vst [vmem:[%s294] ss:$9 sm:$0xff] %v261
      %s296 = scalar_lea.vmem [#allocation1], 2
      %297 = vst [vmem:[%s296] ss:$9 sm:$0xff] %v262
      %s298 = scalar_lea.vmem [#allocation1], 3
      %299 = vst [vmem:[%s298] ss:$9 sm:$0xff] %v263
      %s300 = scalar_lea.vmem [#allocation1], 4
      %301 = vst [vmem:[%s300] ss:$9 sm:$0xff] %v264
      %s302 = scalar_lea.vmem [#allocation1], 5
      %303 = vst [vmem:[%s302] ss:$9 sm:$0xff] %v254
      %s304 = scalar_lea.vmem [#allocation1], 6
      %305 = vst [vmem:[%s304] ss:$9 sm:$0xff] %v265
      %s306 = scalar_lea.vmem [#allocation1], 7
      %307 = vst [vmem:[%s306] ss:$9 sm:$0xff] %v266
      %v308 = vld [vmem:[#allocation1] sm:$0xff]
      %309 = vst [vmem:[#allocation1] ss:$9 sm:$0xff] %v267
      %310 = vst [vmem:[%s294] ss:$9 sm:$0xff] %v268
      %311 = vst [vmem:[%s296] ss:$9 sm:$0xff] %v255
      %312 = vst [vmem:[%s298] ss:$9 sm:$0xff] %v269
      %313 = vst [vmem:[%s300] ss:$9 sm:$0xff] %v270
      %314 = vst [vmem:[%s302] ss:$9 sm:$0xff] %v271
      %315 = vst [vmem:[%s304] ss:$9 sm:$0xff] %v272
      %316 = vst [vmem:[%s306] ss:$9 sm:$0xff] %v256
      %v317 = vld [vmem:[#allocation1] sm:$0xff]
      %318 = vst [vmem:[#allocation1] ss:$9 sm:$0xff] %v273
      %319 = vst [vmem:[%s294] ss:$9 sm:$0xff] %v274
      %320 = vst [vmem:[%s296] ss:$9 sm:$0xff] %v275
      %321 = vst [vmem:[%s298] ss:$9 sm:$0xff] %v276
      %v322 = vld [vmem:[#allocation1] sm:$0xff]
      %vm326 = vcmask 261120
      %v327 = vsel %vm326, %v308, 0.0
      %328 = vadd.xlane.f32.xlu0 %v327
      %v329 = vpop.xlane.xlu0 %328
      %v330 = vsel %vm326, %v317, 0.0
      %331 = vadd.xlane.f32.xlu0 %v330
      %v332 = vpop.xlane.xlu0 %331
      %vm333 = vcmask 257024
      %v334 = vsel %vm333, %v322, 0.0
      %335 = vadd.xlane.f32.xlu0 %v334
      %v336 = vpop.xlane.xlu0 %335
      %v337 = vrcp.pop 32.0
      %v338 = vmul.f32 32.0, %v337
      %v339 = vsub.f32 1.0, %v338
      %v340 = vmul.f32 %v337, %v339
      %v341 = vadd.f32 %v337, %v340
      %vm342 = vweird.f32 %v337
      %v343 = vsel %vm342, %v337, %v341
      %v344 = vmul.f32 %v329, %v343
      %v345 = vmul.f32 %v332, %v343
      %v346 = vmul.f32 %v336, %v343
      %v350 = vperm.slane %v344, 0
      %v351 = vperm.slane %v344, 1
      %v352 = vperm.slane %v344, 2
      %v353 = vperm.slane %v344, 3
      %v354 = vperm.slane %v344, 4
      %v355 = vperm.slane %v344, 5
      %v356 = vperm.slane %v344, 6
      %v357 = vperm.slane %v344, 7
      %v358 = vperm.slane %v345, 0
      %v359 = vperm.slane %v345, 1
      %v360 = vperm.slane %v345, 2
      %v361 = vperm.slane %v345, 3
      %v362 = vperm.slane %v345, 4
      %v363 = vperm.slane %v345, 5
      %v364 = vperm.slane %v345, 6
      %v365 = vperm.slane %v345, 7
      %v366 = vperm.slane %v346, 0
      %v367 = vperm.slane %v346, 1
      %v368 = vperm.slane %v346, 2
      %v369 = vperm.slane %v346, 3
      %v390 = vsub.f32 %v253, %v350
      %v391 = vsub.f32 %v261, %v351
      %v392 = vsub.f32 %v262, %v352
      %v393 = vsub.f32 %v263, %v353
      %v394 = vsub.f32 %v264, %v354
      %v395 = vsub.f32 %v254, %v355
      %v396 = vsub.f32 %v265, %v356
      %v397 = vsub.f32 %v266, %v357
      %v398 = vsub.f32 %v267, %v358
      %v399 = vsub.f32 %v268, %v359
      %v400 = vsub.f32 %v255, %v360
      %v401 = vsub.f32 %v269, %v361
      %v402 = vsub.f32 %v270, %v362
      %v403 = vsub.f32 %v271, %v363
      %v404 = vsub.f32 %v272, %v364
      %v405 = vsub.f32 %v256, %v365
      %v406 = vsub.f32 %v273, %v366
      %v407 = vsub.f32 %v274, %v367
      %v408 = vsub.f32 %v275, %v368
      %v409 = vsub.f32 %v276, %v369
      %v410 = vmul.f32 %v390, %v390
      %v411 = vmul.f32 %v391, %v391
      %v412 = vmul.f32 %v392, %v392
      %v413 = vmul.f32 %v393, %v393
      %v414 = vmul.f32 %v394, %v394
      %v415 = vmul.f32 %v395, %v395
      %v416 = vmul.f32 %v396, %v396
      %v417 = vmul.f32 %v397, %v397
      %v418 = vmul.f32 %v398, %v398
      %v419 = vmul.f32 %v399, %v399
      %v420 = vmul.f32 %v400, %v400
      %v421 = vmul.f32 %v401, %v401
      %v422 = vmul.f32 %v402, %v402
      %v423 = vmul.f32 %v403, %v403
      %v424 = vmul.f32 %v404, %v404
      %v425 = vmul.f32 %v405, %v405
      %v426 = vmul.f32 %v406, %v406
      %v427 = vmul.f32 %v407, %v407
      %v428 = vmul.f32 %v408, %v408
      %v429 = vmul.f32 %v409, %v409
      %450 = vst [vmem:[#allocation1] ss:$9 sm:$0xff] %v410
      %s451 = scalar_lea.vmem [#allocation1], 1
      %452 = vst [vmem:[%s451] ss:$9 sm:$0xff] %v411
      %s453 = scalar_lea.vmem [#allocation1], 2
      %454 = vst [vmem:[%s453] ss:$9 sm:$0xff] %v412
      %s455 = scalar_lea.vmem [#allocation1], 3
      %456 = vst [vmem:[%s455] ss:$9 sm:$0xff] %v413
      %s457 = scalar_lea.vmem [#allocation1], 4
      %458 = vst [vmem:[%s457] ss:$9 sm:$0xff] %v414
      %s459 = scalar_lea.vmem [#allocation1], 5
      %460 = vst [vmem:[%s459] ss:$9 sm:$0xff] %v415
      %s461 = scalar_lea.vmem [#allocation1], 6
      %462 = vst [vmem:[%s461] ss:$9 sm:$0xff] %v416
      %s463 = scalar_lea.vmem [#allocation1], 7
      %464 = vst [vmem:[%s463] ss:$9 sm:$0xff] %v417
      %v465 = vld [vmem:[#allocation1] sm:$0xff]
      %466 = vst [vmem:[#allocation1] ss:$9 sm:$0xff] %v418
      %467 = vst [vmem:[%s451] ss:$9 sm:$0xff] %v419
      %468 = vst [vmem:[%s453] ss:$9 sm:$0xff] %v420
      %469 = vst [vmem:[%s455] ss:$9 sm:$0xff] %v421
      %470 = vst [vmem:[%s457] ss:$9 sm:$0xff] %v422
      %471 = vst [vmem:[%s459] ss:$9 sm:$0xff] %v423
      %472 = vst [vmem:[%s461] ss:$9 sm:$0xff] %v424
      %473 = vst [vmem:[%s463] ss:$9 sm:$0xff] %v425
      %v474 = vld [vmem:[#allocation1] sm:$0xff]
      %475 = vst [vmem:[#allocation1] ss:$9 sm:$0xff] %v426
      %476 = vst [vmem:[%s451] ss:$9 sm:$0xff] %v427
      %477 = vst [vmem:[%s453] ss:$9 sm:$0xff] %v428
      %478 = vst [vmem:[%s455] ss:$9 sm:$0xff] %v429
      %v479 = vld [vmem:[#allocation1] sm:$0xff]
      %v483 = vsel %vm326, %v465, 0.0
      %484 = vadd.xlane.f32.xlu0 %v483
      %v485 = vpop.xlane.xlu0 %484
      %v486 = vsel %vm326, %v474, 0.0
      %487 = vadd.xlane.f32.xlu0 %v486
      %v488 = vpop.xlane.xlu0 %487
      %v489 = vsel %vm333, %v479, 0.0
      %490 = vadd.xlane.f32.xlu0 %v489
      %v491 = vpop.xlane.xlu0 %490
      %v492 = vmul.f32 %v485, %v343
      %v493 = vmul.f32 %v488, %v343
      %v494 = vmul.f32 %v491, %v343
      %v495 = vadd.f32 %v492, 1e-05
      %v496 = vadd.f32 %v493, 1e-05
      %v497 = vadd.f32 %v494, 1e-05
      %v498 = vrsqrt.pop %v495
      %v499 = vmul.f32 %v498, %v495
      %v500 = vmul.f32 %v499, %v498
      %v501 = vmul.f32 0.5, %v500
      %v502 = vsub.f32 1.5, %v501
      %v503 = vmul.f32 %v498, %v502
      %vm504 = vweird.f32 %v495
      %vm505 = vweird.f32 %v498
      %vm506 = vmor %vm504, %vm505
      %v507 = vsel %vm506, %v498, %v503
      %v508 = vrsqrt.pop %v496
      %v509 = vmul.f32 %v508, %v496
      %v510 = vmul.f32 %v509, %v508
      %v511 = vmul.f32 0.5, %v510
      %v512 = vsub.f32 1.5, %v511
      %v513 = vmul.f32 %v508, %v512
      %vm514 = vweird.f32 %v496
      %vm515 = vweird.f32 %v508
      %vm516 = vmor %vm514, %vm515
      %v517 = vsel %vm516, %v508, %v513
      %v518 = vrsqrt.pop %v497
      %v519 = vmul.f32 %v518, %v497
      %v520 = vmul.f32 %v519, %v518
      %v521 = vmul.f32 0.5, %v520
      %v522 = vsub.f32 1.5, %v521
      %v523 = vmul.f32 %v518, %v522
      %vm524 = vweird.f32 %v497
      %vm525 = vweird.f32 %v518
      %vm526 = vmor %vm524, %vm525
      %v527 = vsel %vm526, %v518, %v523
      %v531 = vperm.slane %v507, 0
      %v532 = vperm.slane %v507, 1
      %v533 = vperm.slane %v507, 2
      %v534 = vperm.slane %v507, 3
      %v535 = vperm.slane %v507, 4
      %v536 = vperm.slane %v507, 5
      %v537 = vperm.slane %v507, 6
      %v538 = vperm.slane %v507, 7
      %v539 = vperm.slane %v517, 0
      %v540 = vperm.slane %v517, 1
      %v541 = vperm.slane %v517, 2
      %v542 = vperm.slane %v517, 3
      %v543 = vperm.slane %v517, 4
      %v544 = vperm.slane %v517, 5
      %v545 = vperm.slane %v517, 6
      %v546 = vperm.slane %v517, 7
      %v547 = vperm.slane %v527, 0
      %v548 = vperm.slane %v527, 1
      %v549 = vperm.slane %v527, 2
      %v550 = vperm.slane %v527, 3
      %v571 = vmul.f32 %v390, %v531
      %v572 = vmul.f32 %v391, %v532
      %v573 = vmul.f32 %v392, %v533
      %v574 = vmul.f32 %v393, %v534
      %v575 = vmul.f32 %v394, %v535
      %v576 = vmul.f32 %v395, %v536
      %v577 = vmul.f32 %v396, %v537
      %v578 = vmul.f32 %v397, %v538
      %v579 = vmul.f32 %v398, %v539
      %v580 = vmul.f32 %v399, %v540
      %v581 = vmul.f32 %v400, %v541
      %v582 = vmul.f32 %v401, %v542
      %v583 = vmul.f32 %v402, %v543
      %v584 = vmul.f32 %v403, %v544
      %v585 = vmul.f32 %v404, %v545
      %v586 = vmul.f32 %v405, %v546
      %v587 = vmul.f32 %v406, %v547
      %v588 = vmul.f32 %v407, %v548
      %v589 = vmul.f32 %v408, %v549
      %v590 = vmul.f32 %v409, %v550
      %v591 = vld [vmem:[%s1] sm:$0x1]
      %v593 = vperm.slane %v591, 0
      %v595 = vrot.slane %v593, 1
      %v596 = vrot.slane %v593, 2
      %v597 = vrot.slane %v593, 3
      %v598 = vrot.slane %v593, 4
      %v599 = vrot.slane %v593, 5
      %v600 = vrot.slane %v593, 6
      %v601 = vrot.slane %v593, 7
      %v609 = vmul.f32 %v571, %v593
      %v610 = vmul.f32 %v572, %v595
      %v611 = vmul.f32 %v573, %v596
      %v612 = vmul.f32 %v574, %v597
      %v613 = vmul.f32 %v575, %v598
      %v614 = vmul.f32 %v576, %v599
      %v615 = vmul.f32 %v577, %v600
      %v616 = vmul.f32 %v578, %v601
      %v617 = vmul.f32 %v579, %v593
      %v618 = vmul.f32 %v580, %v595
      %v619 = vmul.f32 %v581, %v596
      %v620 = vmul.f32 %v582, %v597
      %v621 = vmul.f32 %v583, %v598
      %v622 = vmul.f32 %v584, %v599
      %v623 = vmul.f32 %v585, %v600
      %v624 = vmul.f32 %v586, %v601
      %v625 = vmul.f32 %v587, %v593
      %v626 = vmul.f32 %v588, %v595
      %v627 = vmul.f32 %v589, %v596
      %v628 = vmul.f32 %v590, %v597
      %v629 = vld [vmem:[%s2] sm:$0x1]
      %v631 = vperm.slane %v629, 0
      %v633 = vrot.slane %v631, 1
      %v634 = vrot.slane %v631, 2
      %v635 = vrot.slane %v631, 3
      %v636 = vrot.slane %v631, 4
      %v637 = vrot.slane %v631, 5
      %v638 = vrot.slane %v631, 6
      %v639 = vrot.slane %v631, 7
      %v647 = vadd.f32 %v609, %v631
      %v648 = vadd.f32 %v610, %v633
      %v649 = vadd.f32 %v611, %v634
      %v650 = vadd.f32 %v612, %v635
      %v651 = vadd.f32 %v613, %v636
      %v652 = vadd.f32 %v614, %v637
      %v653 = vadd.f32 %v615, %v638
      %v654 = vadd.f32 %v616, %v639
      %v655 = vadd.f32 %v617, %v631
      %v656 = vadd.f32 %v618, %v633
      %v657 = vadd.f32 %v619, %v634
      %v658 = vadd.f32 %v620, %v635
      %v659 = vadd.f32 %v621, %v636
      %v660 = vadd.f32 %v622, %v637
      %v661 = vadd.f32 %v623, %v638
      %v662 = vadd.f32 %v624, %v639
      %v663 = vadd.f32 %v625, %v631
      %v664 = vadd.f32 %v626, %v633
      %v665 = vadd.f32 %v627, %v634
      %v666 = vadd.f32 %v628, %v635
      %687 = vst [vmem:[#allocation1] ss:$9 sm:$0xff] %v647
      %s688 = scalar_lea.vmem [#allocation1], 1
      %689 = vst [vmem:[%s688] ss:$9 sm:$0xff] %v648
      %s690 = scalar_lea.vmem [#allocation1], 2
      %691 = vst [vmem:[%s690] ss:$9 sm:$0xff] %v649
      %s692 = scalar_lea.vmem [#allocation1], 3
      %693 = vst [vmem:[%s692] ss:$9 sm:$0xff] %v650
      %s694 = scalar_lea.vmem [#allocation1], 4
      %695 = vst [vmem:[%s694] ss:$9 sm:$0xff] %v651
      %s696 = scalar_lea.vmem [#allocation1], 5
      %697 = vst [vmem:[%s696] ss:$9 sm:$0xff] %v652
      %s698 = scalar_lea.vmem [#allocation1], 6
      %699 = vst [vmem:[%s698] ss:$9 sm:$0xff] %v653
      %s700 = scalar_lea.vmem [#allocation1], 7
      %701 = vst [vmem:[%s700] ss:$9 sm:$0xff] %v654
      %v702 = vld [vmem:[#allocation1] sm:$0xff]
      %703 = vst [vmem:[#allocation1] ss:$9 sm:$0xff] %v655
      %704 = vst [vmem:[%s688] ss:$9 sm:$0xff] %v656
      %705 = vst [vmem:[%s690] ss:$9 sm:$0xff] %v657
      %706 = vst [vmem:[%s692] ss:$9 sm:$0xff] %v658
      %707 = vst [vmem:[%s694] ss:$9 sm:$0xff] %v659
      %708 = vst [vmem:[%s696] ss:$9 sm:$0xff] %v660
      %709 = vst [vmem:[%s698] ss:$9 sm:$0xff] %v661
      %710 = vst [vmem:[%s700] ss:$9 sm:$0xff] %v662
      %v711 = vld [vmem:[#allocation1] sm:$0xff]
      %712 = vst [vmem:[#allocation1] ss:$9 sm:$0xff] %v663
      %713 = vst [vmem:[%s688] ss:$9 sm:$0xff] %v664
      %714 = vst [vmem:[%s690] ss:$9 sm:$0xff] %v665
      %715 = vst [vmem:[%s692] ss:$9 sm:$0xff] %v666
      %v716 = vld [vmem:[#allocation1] sm:$0xff]
      %v720 = vpack.c.bf16 %v711, %v702
      %v721 = vpack.c.bf16 %v716, %v716
      %v722 = vld [vmem:[%s3] sm:$0xf]
      %v723 = vld [vmem:[%s3 + $0x4] sm:$0xf]
      %v724 = vld [vmem:[%s3 + $0x8] sm:$0xf]
      %v725 = vld [vmem:[%s3 + $0xc] sm:$0xf]
      %v730 = vunpack.c.l.b16 %v722
      %v731 = vunpack.c.l.b16 %v723
      %v732 = vunpack.c.l.b16 %v724
      %v733 = vunpack.c.l.b16 %v725
      %v734 = vpack.c.b16 %v731, %v730
      %v735 = vpack.c.b16 %v733, %v732
      %v739 = vsel %vm326, %v720, 0
      %v742 = vsel %vm326, %v721, 0
      %744 = vmatpush.bf16.msra.mxu0 0
      %745 = vmatpush.bf16.msra.mxu0 0
      %746 = vmatpush.bf16.msra.mxu0 0
      %747 = vmatpush.bf16.msra.mxu0 0
      %748 = vmatpush.bf16.msra.mxu0 0
      %749 = vmatpush.bf16.msra.mxu0 0
      %750 = vmatpush.bf16.msra.mxu0 %v735
      %751 = vmatpush.bf16.msra.mxu0 %v734
      %752 = vmatmul.bf16.gmra.mxu0 %v739
      %v753 = vpop.f32.mrf.mxu0
      %v754 = vadd.f32 0.0, %v753
      %v755 = vpop.f32.mrf.mxu0
      %v756 = vadd.f32 0.0, %v755
      %757 = vmatmul.bf16.gmra.mxu0 %v742
      %v758 = vpop.f32.mrf.mxu0
      %v759 = vadd.f32 0.0, %v758
      %v760 = vpop.f32.mrf.mxu0
      %761 = vdwg.mxu0
      %v765 = vrot.slane %v754, 1
      %v766 = vrot.slane %v754, 2
      %v767 = vrot.slane %v754, 3
      %v768 = vrot.slane %v754, 4
      %v769 = vrot.slane %v754, 5
      %v770 = vrot.slane %v754, 6
      %v771 = vrot.slane %v754, 7
      %v772 = vrot.slane %v756, 1
      %v773 = vrot.slane %v756, 2
      %v774 = vrot.slane %v756, 3
      %v775 = vrot.slane %v756, 4
      %v776 = vrot.slane %v756, 5
      %v777 = vrot.slane %v756, 6
      %v778 = vrot.slane %v756, 7
      %v779 = vrot.slane %v759, 1
      %v780 = vrot.slane %v759, 2
      %v781 = vrot.slane %v759, 3
      %782 = vst [vmem:[#allocation1] ss:$9 sm:$0xff] %v754
      %s783 = scalar_lea.vmem [#allocation1], 1
      %784 = vst [vmem:[%s783] ss:$9 sm:$0xff] %v765
      %s785 = scalar_lea.vmem [#allocation1], 2
      %786 = vst [vmem:[%s785] ss:$9 sm:$0xff] %v766
      %s787 = scalar_lea.vmem [#allocation1], 3
      %788 = vst [vmem:[%s787] ss:$9 sm:$0xff] %v767
      %s789 = scalar_lea.vmem [#allocation1], 4
      %790 = vst [vmem:[%s789] ss:$9 sm:$0xff] %v768
      %v791 = vld [vmem:[#allocation1] sm:$0xff]
      %792 = vst [vmem:[#allocation1] ss:$9 sm:$0xff] %v769
      %793 = vst [vmem:[%s783] ss:$9 sm:$0xff] %v770
      %794 = vst [vmem:[%s785] ss:$9 sm:$0xff] %v771
      %795 = vst [vmem:[%s787] ss:$9 sm:$0xff] %v756
      %796 = vst [vmem:[%s789] ss:$9 sm:$0xff] %v772
      %v797 = vld [vmem:[#allocation1] sm:$0xff]
      %798 = vst [vmem:[#allocation1] ss:$9 sm:$0xff] %v773
      %799 = vst [vmem:[%s783] ss:$9 sm:$0xff] %v774
      %800 = vst [vmem:[%s785] ss:$9 sm:$0xff] %v775
      %801 = vst [vmem:[%s787] ss:$9 sm:$0xff] %v776
      %802 = vst [vmem:[%s789] ss:$9 sm:$0xff] %v777
      %v803 = vld [vmem:[#allocation1] sm:$0xff]
      %804 = vst [vmem:[#allocation1] ss:$9 sm:$0xff] %v778
      %805 = vst [vmem:[%s783] ss:$9 sm:$0xff] %v759
      %806 = vst [vmem:[%s785] ss:$9 sm:$0xff] %v779
      %807 = vst [vmem:[%s787] ss:$9 sm:$0xff] %v780
      %808 = vst [vmem:[%s789] ss:$9 sm:$0xff] %v781
      %v809 = vld [vmem:[#allocation1] sm:$0xff]
      %v814 = vpack.c.bf16 %v791, %v791
      %v815 = vpack.c.bf16 %v797, %v797
      %v816 = vpack.c.bf16 %v803, %v803
      %v817 = vpack.c.bf16 %v809, %v809
      %818 = vst [vmem:[#allocation1] ss:$9 sm:$0xff] %v754
      %s819 = scalar_lea.vmem [#allocation1], 1
      %820 = vst [vmem:[%s819] ss:$9 sm:$0xff] %v765
      %s821 = scalar_lea.vmem [#allocation1], 2
      %822 = vst [vmem:[%s821] ss:$9 sm:$0xff] %v766
      %s823 = scalar_lea.vmem [#allocation1], 3
      %824 = vst [vmem:[%s823] ss:$9 sm:$0xff] %v767
      %s825 = scalar_lea.vmem [#allocation1], 4
      %826 = vst [vmem:[%s825] ss:$9 sm:$0xff] %v768
      %v827 = vld [vmem:[#allocation1] sm:$0xff]
      %828 = vst [vmem:[#allocation1] ss:$9 sm:$0xff] %v769
      %829 = vst [vmem:[%s819] ss:$9 sm:$0xff] %v770
      %830 = vst [vmem:[%s821] ss:$9 sm:$0xff] %v771
      %831 = vst [vmem:[%s823] ss:$9 sm:$0xff] %v756
      %832 = vst [vmem:[%s825] ss:$9 sm:$0xff] %v772
      %v833 = vld [vmem:[#allocation1] sm:$0xff]
      %834 = vst [vmem:[#allocation1] ss:$9 sm:$0xff] %v773
      %835 = vst [vmem:[%s819] ss:$9 sm:$0xff] %v774
      %836 = vst [vmem:[%s821] ss:$9 sm:$0xff] %v775
      %837 = vst [vmem:[%s823] ss:$9 sm:$0xff] %v776
      %838 = vst [vmem:[%s825] ss:$9 sm:$0xff] %v777
      %v839 = vld [vmem:[#allocation1] sm:$0xff]
      %840 = vst [vmem:[#allocation1] ss:$9 sm:$0xff] %v778
      %841 = vst [vmem:[%s819] ss:$9 sm:$0xff] %v759
      %842 = vst [vmem:[%s821] ss:$9 sm:$0xff] %v779
      %843 = vst [vmem:[%s823] ss:$9 sm:$0xff] %v780
      %844 = vst [vmem:[%s825] ss:$9 sm:$0xff] %v781
      %v845 = vld [vmem:[#allocation1] sm:$0xff]
      %v850 = vpack.c.bf16 %v827, %v827
      %v851 = vpack.c.bf16 %v833, %v833
      %v852 = vpack.c.bf16 %v839, %v839
      %v853 = vpack.c.bf16 %v845, %v845
      %854 = vst [vmem:[#allocation1] ss:$9 sm:$0xff] %v754
      %s855 = scalar_lea.vmem [#allocation1], 1
      %856 = vst [vmem:[%s855] ss:$9 sm:$0xff] %v765
      %s857 = scalar_lea.vmem [#allocation1], 2
      %858 = vst [vmem:[%s857] ss:$9 sm:$0xff] %v766
      %s859 = scalar_lea.vmem [#allocation1], 3
      %860 = vst [vmem:[%s859] ss:$9 sm:$0xff] %v767
      %s861 = scalar_lea.vmem [#allocation1], 4
      %862 = vst [vmem:[%s861] ss:$9 sm:$0xff] %v768
      %v863 = vld [vmem:[#allocation1] sm:$0xff]
      %864 = vst [vmem:[#allocation1] ss:$9 sm:$0xff] %v769
      %865 = vst [vmem:[%s855] ss:$9 sm:$0xff] %v770
      %866 = vst [vmem:[%s857] ss:$9 sm:$0xff] %v771
      %867 = vst [vmem:[%s859] ss:$9 sm:$0xff] %v756
      %868 = vst [vmem:[%s861] ss:$9 sm:$0xff] %v772
      %v869 = vld [vmem:[#allocation1] sm:$0xff]
      %870 = vst [vmem:[#allocation1] ss:$9 sm:$0xff] %v773
      %871 = vst [vmem:[%s855] ss:$9 sm:$0xff] %v774
      %872 = vst [vmem:[%s857] ss:$9 sm:$0xff] %v775
      %873 = vst [vmem:[%s859] ss:$9 sm:$0xff] %v776
      %874 = vst [vmem:[%s861] ss:$9 sm:$0xff] %v777
      %v875 = vld [vmem:[#allocation1] sm:$0xff]
      %876 = vst [vmem:[#allocation1] ss:$9 sm:$0xff] %v778
      %877 = vst [vmem:[%s855] ss:$9 sm:$0xff] %v759
      %878 = vst [vmem:[%s857] ss:$9 sm:$0xff] %v779
      %879 = vst [vmem:[%s859] ss:$9 sm:$0xff] %v780
      %880 = vst [vmem:[%s861] ss:$9 sm:$0xff] %v781
      %v881 = vld [vmem:[#allocation1] sm:$0xff]
      %v886 = vpack.c.bf16 %v863, %v863
      %v887 = vpack.c.bf16 %v869, %v869
      %v888 = vpack.c.bf16 %v875, %v875
      %v889 = vpack.c.bf16 %v881, %v881
      %v891 = vunpack.c.l.b16 %v850
      %v892 = vpack.c.b16 %v891, %v891
      %893 = vrot.lane.b32.xlu0 %v892, 96
      %v894 = vpop.permute.xlu0 %893
      %vm895 = vcmask 64512
      %v897 = vsel %vm895, %v814, 0
      %v900 = vsel %vm895, %v894, 0
      %902 = vmatpush.bf16.xpose.msra.mxu0 0
      %903 = vmatpush.bf16.xpose.msra.mxu0 0
      %904 = vmatpush.bf16.xpose.msra.mxu0 0
      %905 = vmatpush.bf16.xpose.msra.mxu0 0
      %906 = vmatpush.bf16.xpose.msra.mxu0 0
      %907 = vmatpush.bf16.xpose.msra.mxu0 0
      %908 = vmatpush.bf16.xpose.msra.mxu0 0
      %909 = vmatpush.bf16.xpose.msra.mxu0 %v900
      %910 = vmatmul.bf16.gmra.mxu0 %v897
      %v911 = vpop.f32.mrf.mxu0
      %v912 = vadd.f32 0.0, %v911
      %v913 = vpop.f32.mrf.mxu0
      %914 = vdwg.mxu0
      %v916 = vunpack.c.l.b16 %v851
      %v917 = vpack.c.b16 %v916, %v916
      %918 = vrot.lane.b32.xlu0 %v917, 96
      %v919 = vpop.permute.xlu0 %918
      %v921 = vsel %vm895, %v815, 0
      %v924 = vsel %vm895, %v919, 0
      %926 = vmatpush.bf16.xpose.msra.mxu0 0
      %927 = vmatpush.bf16.xpose.msra.mxu0 0
      %928 = vmatpush.bf16.xpose.msra.mxu0 0
      %929 = vmatpush.bf16.xpose.msra.mxu0 0
      %930 = vmatpush.bf16.xpose.msra.mxu0 0
      %931 = vmatpush.bf16.xpose.msra.mxu0 0
      %932 = vmatpush.bf16.xpose.msra.mxu0 0
      %933 = vmatpush.bf16.xpose.msra.mxu0 %v924
      %934 = vmatmul.bf16.gmra.mxu0 %v921
      %v935 = vpop.f32.mrf.mxu0
      %v936 = vadd.f32 0.0, %v935
      %v937 = vpop.f32.mrf.mxu0
      %938 = vdwg.mxu0
      %v940 = vunpack.c.l.b16 %v852
      %v941 = vpack.c.b16 %v940, %v940
      %942 = vrot.lane.b32.xlu0 %v941, 96
      %v943 = vpop.permute.xlu0 %942
      %v945 = vsel %vm895, %v816, 0
      %v948 = vsel %vm895, %v943, 0
      %950 = vmatpush.bf16.xpose.msra.mxu0 0
      %951 = vmatpush.bf16.xpose.msra.mxu0 0
      %952 = vmatpush.bf16.xpose.msra.mxu0 0
      %953 = vmatpush.bf16.xpose.msra.mxu0 0
      %954 = vmatpush.bf16.xpose.msra.mxu0 0
      %955 = vmatpush.bf16.xpose.msra.mxu0 0
      %956 = vmatpush.bf16.xpose.msra.mxu0 0
      %957 = vmatpush.bf16.xpose.msra.mxu0 %v948
      %958 = vmatmul.bf16.gmra.mxu0 %v945
      %v959 = vpop.f32.mrf.mxu0
      %v960 = vadd.f32 0.0, %v959
      %v961 = vpop.f32.mrf.mxu0
      %962 = vdwg.mxu0
      %v964 = vunpack.c.l.b16 %v853
      %v965 = vpack.c.b16 %v964, %v964
      %966 = vrot.lane.b32.xlu0 %v965, 96
      %v967 = vpop.permute.xlu0 %966
      %v969 = vsel %vm895, %v817, 0
      %v972 = vsel %vm895, %v967, 0
      %974 = vmatpush.bf16.xpose.msra.mxu0 0
      %975 = vmatpush.bf16.xpose.msra.mxu0 0
      %976 = vmatpush.bf16.xpose.msra.mxu0 0
      %977 = vmatpush.bf16.xpose.msra.mxu0 0
      %978 = vmatpush.bf16.xpose.msra.mxu0 0
      %979 = vmatpush.bf16.xpose.msra.mxu0 0
      %980 = vmatpush.bf16.xpose.msra.mxu0 0
      %981 = vmatpush.bf16.xpose.msra.mxu0 %v972
      %982 = vmatmul.bf16.gmra.mxu0 %v969
      %v983 = vpop.f32.mrf.mxu0
      %v984 = vadd.f32 0.0, %v983
      %v985 = vpop.f32.mrf.mxu0
      %986 = vdwg.mxu0
      %v987 = vmul.f32 %v912, 0.35355338
      %v988 = vmul.f32 %v936, 0.35355338
      %v989 = vmul.f32 %v960, 0.35355338
      %v990 = vmul.f32 %v984, 0.35355338
      %vm991 = vcmask 36864
      %v992 = vsel %vm991, %v987, -inf
      %993 = vmax.xlane.f32.xlu0 %v992
      %v994 = vpop.xlane.xlu0 %993
      %v995 = vsel %vm991, %v988, -inf
      %996 = vmax.xlane.f32.xlu0 %v995
      %v997 = vpop.xlane.xlu0 %996
      %v998 = vsel %vm991, %v989, -inf
      %999 = vmax.xlane.f32.xlu0 %v998
      %v1000 = vpop.xlane.xlu0 %999
      %v1001 = vsel %vm991, %v990, -inf
      %1002 = vmax.xlane.f32.xlu0 %v1001
      %v1003 = vpop.xlane.xlu0 %1002
      %v1004 = vsub.f32 %v987, %v994
      %v1005 = vsub.f32 %v988, %v997
      %v1006 = vsub.f32 %v989, %v1000
      %v1007 = vsub.f32 %v990, %v1003
      %v1008 = vmul.f32 %v1004, 1.442695
      %v1009 = vpow.pop %v1008
      %v1010 = vmul.f32 %v1005, 1.442695
      %v1011 = vpow.pop %v1010
      %v1012 = vmul.f32 %v1006, 1.442695
      %v1013 = vpow.pop %v1012
      %v1014 = vmul.f32 %v1007, 1.442695
      %v1015 = vpow.pop %v1014
      %v1016 = vsel %vm991, %v1009, 0.0
      %1017 = vadd.xlane.f32.xlu0 %v1016
      %v1018 = vpop.xlane.xlu0 %1017
      %v1019 = vsel %vm991, %v1011, 0.0
      %1020 = vadd.xlane.f32.xlu0 %v1019
      %v1021 = vpop.xlane.xlu0 %1020
      %v1022 = vsel %vm991, %v1013, 0.0
      %1023 = vadd.xlane.f32.xlu0 %v1022
      %v1024 = vpop.xlane.xlu0 %1023
      %v1025 = vsel %vm991, %v1015, 0.0
      %1026 = vadd.xlane.f32.xlu0 %v1025
      %v1027 = vpop.xlane.xlu0 %1026
      %v1028 = vrcp.pop %v1018
      %v1029 = vrcp.pop %v1021
      %v1030 = vrcp.pop %v1024
      %v1031 = vrcp.pop %v1027
      %v1032 = vmul.f32 %v1009, %v1028
      %v1033 = vmul.f32 %v1011, %v1029
      %v1034 = vmul.f32 %v1013, %v1030
      %v1035 = vmul.f32 %v1015, %v1031
      %v1036 = vpack.c.bf16 %v1032, %v1032
      %v1037 = vpack.c.bf16 %v1033, %v1033
      %v1038 = vpack.c.bf16 %v1034, %v1034
      %v1039 = vpack.c.bf16 %v1035, %v1035
      %v1041 = vunpack.c.l.b16 %v886
      %v1042 = vpack.c.b16 %v1041, %v1041
      %1043 = vrot.lane.b32.xlu0 %v1042, 64
      %v1044 = vpop.permute.xlu0 %1043
      %vm1045 = vcmask 39936
      %v1047 = vsel %vm1045, %v1036, 0
      %vm1049 = vcmask 1041408
      %vm1050 = vcmask 1042432
      %v1051 = vsel %vm1049, 4294967295, 65535
      %v1052 = vsel %vm1050, %v1051, 0
      %v1054 = vand.u32 %v1044, %v1052
      %1056 = vmatpush.bf16.msra.mxu0 0
      %1057 = vmatpush.bf16.msra.mxu0 0
      %1058 = vmatpush.bf16.msra.mxu0 0
      %1059 = vmatpush.bf16.msra.mxu0 0
      %1060 = vmatpush.bf16.msra.mxu0 0
      %1061 = vmatpush.bf16.msra.mxu0 0
      %1062 = vmatpush.bf16.msra.mxu0 0
      %1063 = vmatpush.bf16.msra.mxu0 %v1054
      %1064 = vmatmul.bf16.gmra.mxu0 %v1047
      %v1065 = vpop.f32.mrf.mxu0
      %v1066 = vadd.f32 0.0, %v1065
      %v1067 = vpop.f32.mrf.mxu0
      %1068 = vdwg.mxu0
      %v1070 = vunpack.c.l.b16 %v887
      %v1071 = vpack.c.b16 %v1070, %v1070
      %1072 = vrot.lane.b32.xlu0 %v1071, 64
      %v1073 = vpop.permute.xlu0 %1072
      %v1075 = vsel %vm1045, %v1037, 0
      %v1078 = vand.u32 %v1073, %v1052
      %1080 = vmatpush.bf16.msra.mxu0 0
      %1081 = vmatpush.bf16.msra.mxu0 0
      %1082 = vmatpush.bf16.msra.mxu0 0
      %1083 = vmatpush.bf16.msra.mxu0 0
      %1084 = vmatpush.bf16.msra.mxu0 0
      %1085 = vmatpush.bf16.msra.mxu0 0
      %1086 = vmatpush.bf16.msra.mxu0 0
      %1087 = vmatpush.bf16.msra.mxu0 %v1078
      %1088 = vmatmul.bf16.gmra.mxu0 %v1075
      %v1089 = vpop.f32.mrf.mxu0
      %v1090 = vadd.f32 0.0, %v1089
      %v1091 = vpop.f32.mrf.mxu0
      %1092 = vdwg.mxu0
      %v1094 = vunpack.c.l.b16 %v888
      %v1095 = vpack.c.b16 %v1094, %v1094
      %1096 = vrot.lane.b32.xlu0 %v1095, 64
      %v1097 = vpop.permute.xlu0 %1096
      %v1099 = vsel %vm1045, %v1038, 0
      %v1102 = vand.u32 %v1097, %v1052
      %1104 = vmatpush.bf16.msra.mxu0 0
      %1105 = vmatpush.bf16.msra.mxu0 0
      %1106 = vmatpush.bf16.msra.mxu0 0
      %1107 = vmatpush.bf16.msra.mxu0 0
      %1108 = vmatpush.bf16.msra.mxu0 0
      %1109 = vmatpush.bf16.msra.mxu0 0
      %1110 = vmatpush.bf16.msra.mxu0 0
      %1111 = vmatpush.bf16.msra.mxu0 %v1102
      %1112 = vmatmul.bf16.gmra.mxu0 %v1099
      %v1113 = vpop.f32.mrf.mxu0
      %v1114 = vadd.f32 0.0, %v1113
      %v1115 = vpop.f32.mrf.mxu0
      %1116 = vdwg.mxu0
      %v1118 = vunpack.c.l.b16 %v889
      %v1119 = vpack.c.b16 %v1118, %v1118
      %1120 = vrot.lane.b32.xlu0 %v1119, 64
      %v1121 = vpop.permute.xlu0 %1120
      %v1123 = vsel %vm1045, %v1039, 0
      %v1126 = vand.u32 %v1121, %v1052
      %1128 = vmatpush.bf16.msra.mxu0 0
      %1129 = vmatpush.bf16.msra.mxu0 0
      %1130 = vmatpush.bf16.msra.mxu0 0
      %1131 = vmatpush.bf16.msra.mxu0 0
      %1132 = vmatpush.bf16.msra.mxu0 0
      %1133 = vmatpush.bf16.msra.mxu0 0
      %1134 = vmatpush.bf16.msra.mxu0 0
      %1135 = vmatpush.bf16.msra.mxu0 %v1126
      %1136 = vmatmul.bf16.gmra.mxu0 %v1123
      %v1137 = vpop.f32.mrf.mxu0
      %v1138 = vadd.f32 0.0, %v1137
      %v1139 = vpop.f32.mrf.mxu0
      %1140 = vdwg.mxu0
      %v1141 = vpack.c.bf16 %v1066, %v1066
      %v1142 = vpack.c.bf16 %v1090, %v1090
      %v1143 = vpack.c.bf16 %v1114, %v1114
      %v1144 = vpack.c.bf16 %v1138, %v1138
      %vm1145 = vcmask 59392
      %vm1146 = vsmask.f32 2304
      %vm1147 = vmand %vm1145, %vm1146
      %v1148 = vld [vmem:[#allocation2] sm:$0x7]
      %v1149 = vsel %vm1147, %v1141, %v1148
      %1150 = vst [vmem:[#allocation2] sm:$0x7] %v1149
      %v1151 = vld [vmem:[#allocation2 + $0x4] sm:$0x7]
      %v1152 = vsel %vm1147, %v1142, %v1151
      %1153 = vst [vmem:[#allocation2 + $0x4] sm:$0x7] %v1152
      %v1154 = vld [vmem:[#allocation2 + $0x8] sm:$0x7]
      %v1155 = vsel %vm1147, %v1143, %v1154
      %1156 = vst [vmem:[#allocation2 + $0x8] sm:$0x7] %v1155
      %v1157 = vld [vmem:[#allocation2 + $0xc] sm:$0x7]
      %v1158 = vsel %vm1147, %v1144, %v1157
      %1159 = vst [vmem:[#allocation2 + $0xc] sm:$0x7] %v1158
      %1160 = vst [vmem:[#allocation1] ss:$9 sm:$0xff] %v754
      %s1161 = scalar_lea.vmem [#allocation1], 1
      %1162 = vst [vmem:[%s1161] ss:$9 sm:$0xff] %v765
      %s1163 = scalar_lea.vmem [#allocation1], 2
      %1164 = vst [vmem:[%s1163] ss:$9 sm:$0xff] %v766
      %s1165 = scalar_lea.vmem [#allocation1], 3
      %1166 = vst [vmem:[%s1165] ss:$9 sm:$0xff] %v767
      %s1167 = scalar_lea.vmem [#allocation1], 4
      %1168 = vst [vmem:[%s1167] ss:$9 sm:$0xff] %v768
      %v1169 = vld [vmem:[#allocation1] sm:$0xff]
      %1170 = vst [vmem:[#allocation1] ss:$9 sm:$0xff] %v769
      %1171 = vst [vmem:[%s1161] ss:$9 sm:$0xff] %v770
      %1172 = vst [vmem:[%s1163] ss:$9 sm:$0xff] %v771
      %1173 = vst [vmem:[%s1165] ss:$9 sm:$0xff] %v756
      %1174 = vst [vmem:[%s1167] ss:$9 sm:$0xff] %v772
      %v1175 = vld [vmem:[#allocation1] sm:$0xff]
      %1176 = vst [vmem:[#allocation1] ss:$9 sm:$0xff] %v773
      %1177 = vst [vmem:[%s1161] ss:$9 sm:$0xff] %v774
      %1178 = vst [vmem:[%s1163] ss:$9 sm:$0xff] %v775
      %1179 = vst [vmem:[%s1165] ss:$9 sm:$0xff] %v776
      %1180 = vst [vmem:[%s1167] ss:$9 sm:$0xff] %v777
      %v1181 = vld [vmem:[#allocation1] sm:$0xff]
      %1182 = vst [vmem:[#allocation1] ss:$9 sm:$0xff] %v778
      %1183 = vst [vmem:[%s1161] ss:$9 sm:$0xff] %v759
      %1184 = vst [vmem:[%s1163] ss:$9 sm:$0xff] %v779
      %1185 = vst [vmem:[%s1165] ss:$9 sm:$0xff] %v780
      %1186 = vst [vmem:[%s1167] ss:$9 sm:$0xff] %v781
      %v1187 = vld [vmem:[#allocation1] sm:$0xff]
      %v1192 = vpack.c.bf16 %v1169, %v1169
      %v1193 = vpack.c.bf16 %v1175, %v1175
      %v1194 = vpack.c.bf16 %v1181, %v1181
      %v1195 = vpack.c.bf16 %v1187, %v1187
      %1196 = vst [vmem:[#allocation1] ss:$9 sm:$0xff] %v754
      %s1197 = scalar_lea.vmem [#allocation1], 1
      %1198 = vst [vmem:[%s1197] ss:$9 sm:$0xff] %v765
      %s1199 = scalar_lea.vmem [#allocation1], 2
      %1200 = vst [vmem:[%s1199] ss:$9 sm:$0xff] %v766
      %s1201 = scalar_lea.vmem [#allocation1], 3
      %1202 = vst [vmem:[%s1201] ss:$9 sm:$0xff] %v767
      %s1203 = scalar_lea.vmem [#allocation1], 4
      %1204 = vst [vmem:[%s1203] ss:$9 sm:$0xff] %v768
      %v1205 = vld [vmem:[#allocation1] sm:$0xff]
      %1206 = vst [vmem:[#allocation1] ss:$9 sm:$0xff] %v769
      %1207 = vst [vmem:[%s1197] ss:$9 sm:$0xff] %v770
      %1208 = vst [vmem:[%s1199] ss:$9 sm:$0xff] %v771
      %1209 = vst [vmem:[%s1201] ss:$9 sm:$0xff] %v756
      %1210 = vst [vmem:[%s1203] ss:$9 sm:$0xff] %v772
      %v1211 = vld [vmem:[#allocation1] sm:$0xff]
      %1212 = vst [vmem:[#allocation1] ss:$9 sm:$0xff] %v773
      %1213 = vst [vmem:[%s1197] ss:$9 sm:$0xff] %v774
      %1214 = vst [vmem:[%s1199] ss:$9 sm:$0xff] %v775
      %1215 = vst [vmem:[%s1201] ss:$9 sm:$0xff] %v776
      %1216 = vst [vmem:[%s1203] ss:$9 sm:$0xff] %v777
      %v1217 = vld [vmem:[#allocation1] sm:$0xff]
      %1218 = vst [vmem:[#allocation1] ss:$9 sm:$0xff] %v778
      %1219 = vst [vmem:[%s1197] ss:$9 sm:$0xff] %v759
      %1220 = vst [vmem:[%s1199] ss:$9 sm:$0xff] %v779
      %1221 = vst [vmem:[%s1201] ss:$9 sm:$0xff] %v780
      %1222 = vst [vmem:[%s1203] ss:$9 sm:$0xff] %v781
      %v1223 = vld [vmem:[#allocation1] sm:$0xff]
      %v1228 = vpack.c.bf16 %v1205, %v1205
      %v1229 = vpack.c.bf16 %v1211, %v1211
      %v1230 = vpack.c.bf16 %v1217, %v1217
      %v1231 = vpack.c.bf16 %v1223, %v1223
      %1232 = vst [vmem:[#allocation1] ss:$9 sm:$0xff] %v754
      %s1233 = scalar_lea.vmem [#allocation1], 1
      %1234 = vst [vmem:[%s1233] ss:$9 sm:$0xff] %v765
      %s1235 = scalar_lea.vmem [#allocation1], 2
      %1236 = vst [vmem:[%s1235] ss:$9 sm:$0xff] %v766
      %s1237 = scalar_lea.vmem [#allocation1], 3
      %1238 = vst [vmem:[%s1237] ss:$9 sm:$0xff] %v767
      %s1239 = scalar_lea.vmem [#allocation1], 4
      %1240 = vst [vmem:[%s1239] ss:$9 sm:$0xff] %v768
      %v1241 = vld [vmem:[#allocation1] sm:$0xff]
      %1242 = vst [vmem:[#allocation1] ss:$9 sm:$0xff] %v769
      %1243 = vst [vmem:[%s1233] ss:$9 sm:$0xff] %v770
      %1244 = vst [vmem:[%s1235] ss:$9 sm:$0xff] %v771
      %1245 = vst [vmem:[%s1237] ss:$9 sm:$0xff] %v756
      %1246 = vst [vmem:[%s1239] ss:$9 sm:$0xff] %v772
      %v1247 = vld [vmem:[#allocation1] sm:$0xff]
      %1248 = vst [vmem:[#allocation1] ss:$9 sm:$0xff] %v773
      %1249 = vst [vmem:[%s1233] ss:$9 sm:$0xff] %v774
      %1250 = vst [vmem:[%s1235] ss:$9 sm:$0xff] %v775
      %1251 = vst [vmem:[%s1237] ss:$9 sm:$0xff] %v776
      %1252 = vst [vmem:[%s1239] ss:$9 sm:$0xff] %v777
      %v1253 = vld [vmem:[#allocation1] sm:$0xff]
      %1254 = vst [vmem:[#allocation1] ss:$9 sm:$0xff] %v778
      %1255 = vst [vmem:[%s1233] ss:$9 sm:$0xff] %v759
      %1256 = vst [vmem:[%s1235] ss:$9 sm:$0xff] %v779
      %1257 = vst [vmem:[%s1237] ss:$9 sm:$0xff] %v780
      %1258 = vst [vmem:[%s1239] ss:$9 sm:$0xff] %v781
      %v1259 = vld [vmem:[#allocation1] sm:$0xff]
      %v1264 = vpack.c.bf16 %v1241, %v1241
      %v1265 = vpack.c.bf16 %v1247, %v1247
      %v1266 = vpack.c.bf16 %v1253, %v1253
      %v1267 = vpack.c.bf16 %v1259, %v1259
      %v1269 = vunpack.c.l.b16 %v1192
      %v1270 = vpack.c.b16 %v1269, %v1269
      %1271 = vrot.lane.b32.xlu0 %v1270, 120
      %v1272 = vpop.permute.xlu0 %1271
      %v1274 = vunpack.c.l.b16 %v1228
      %v1275 = vpack.c.b16 %v1274, %v1274
      %1276 = vrot.lane.b32.xlu0 %v1275, 88
      %v1277 = vpop.permute.xlu0 %1276
      %v1279 = vsel %vm895, %v1272, 0
      %v1282 = vsel %vm895, %v1277, 0
      %1284 = vmatpush.bf16.xpose.msra.mxu0 0
      %1285 = vmatpush.bf16.xpose.msra.mxu0 0
      %1286 = vmatpush.bf16.xpose.msra.mxu0 0
      %1287 = vmatpush.bf16.xpose.msra.mxu0 0
      %1288 = vmatpush.bf16.xpose.msra.mxu0 0
      %1289 = vmatpush.bf16.xpose.msra.mxu0 0
      %1290 = vmatpush.bf16.xpose.msra.mxu0 0
      %1291 = vmatpush.bf16.xpose.msra.mxu0 %v1282
      %1292 = vmatmul.bf16.gmra.mxu0 %v1279
      %v1293 = vpop.f32.mrf.mxu0
      %v1294 = vadd.f32 0.0, %v1293
      %v1295 = vpop.f32.mrf.mxu0
      %1296 = vdwg.mxu0
      %v1298 = vunpack.c.l.b16 %v1193
      %v1299 = vpack.c.b16 %v1298, %v1298
      %1300 = vrot.lane.b32.xlu0 %v1299, 120
      %v1301 = vpop.permute.xlu0 %1300
      %v1303 = vunpack.c.l.b16 %v1229
      %v1304 = vpack.c.b16 %v1303, %v1303
      %1305 = vrot.lane.b32.xlu0 %v1304, 88
      %v1306 = vpop.permute.xlu0 %1305
      %v1308 = vsel %vm895, %v1301, 0
      %v1311 = vsel %vm895, %v1306, 0
      %1313 = vmatpush.bf16.xpose.msra.mxu0 0
      %1314 = vmatpush.bf16.xpose.msra.mxu0 0
      %1315 = vmatpush.bf16.xpose.msra.mxu0 0
      %1316 = vmatpush.bf16.xpose.msra.mxu0 0
      %1317 = vmatpush.bf16.xpose.msra.mxu0 0
      %1318 = vmatpush.bf16.xpose.msra.mxu0 0
      %1319 = vmatpush.bf16.xpose.msra.mxu0 0
      %1320 = vmatpush.bf16.xpose.msra.mxu0 %v1311
      %1321 = vmatmul.bf16.gmra.mxu0 %v1308
      %v1322 = vpop.f32.mrf.mxu0
      %v1323 = vadd.f32 0.0, %v1322
      %v1324 = vpop.f32.mrf.mxu0
      %1325 = vdwg.mxu0
      %v1327 = vunpack.c.l.b16 %v1194
      %v1328 = vpack.c.b16 %v1327, %v1327
      %1329 = vrot.lane.b32.xlu0 %v1328, 120
      %v1330 = vpop.permute.xlu0 %1329
      %v1332 = vunpack.c.l.b16 %v1230
      %v1333 = vpack.c.b16 %v1332, %v1332
      %1334 = vrot.lane.b32.xlu0 %v1333, 88
      %v1335 = vpop.permute.xlu0 %1334
      %v1337 = vsel %vm895, %v1330, 0
      %v1340 = vsel %vm895, %v1335, 0
      %1342 = vmatpush.bf16.xpose.msra.mxu0 0
      %1343 = vmatpush.bf16.xpose.msra.mxu0 0
      %1344 = vmatpush.bf16.xpose.msra.mxu0 0
      %1345 = vmatpush.bf16.xpose.msra.mxu0 0
      %1346 = vmatpush.bf16.xpose.msra.mxu0 0
      %1347 = vmatpush.bf16.xpose.msra.mxu0 0
      %1348 = vmatpush.bf16.xpose.msra.mxu0 0
      %1349 = vmatpush.bf16.xpose.msra.mxu0 %v1340
      %1350 = vmatmul.bf16.gmra.mxu0 %v1337
      %v1351 = vpop.f32.mrf.mxu0
      %v1352 = vadd.f32 0.0, %v1351
      %v1353 = vpop.f32.mrf.mxu0
      %1354 = vdwg.mxu0
      %v1356 = vunpack.c.l.b16 %v1195
      %v1357 = vpack.c.b16 %v1356, %v1356
      %1358 = vrot.lane.b32.xlu0 %v1357, 120
      %v1359 = vpop.permute.xlu0 %1358
      %v1361 = vunpack.c.l.b16 %v1231
      %v1362 = vpack.c.b16 %v1361, %v1361
      %1363 = vrot.lane.b32.xlu0 %v1362, 88
      %v1364 = vpop.permute.xlu0 %1363
      %v1366 = vsel %vm895, %v1359, 0
      %v1369 = vsel %vm895, %v1364, 0
      %1371 = vmatpush.bf16.xpose.msra.mxu0 0
      %1372 = vmatpush.bf16.xpose.msra.mxu0 0
      %1373 = vmatpush.bf16.xpose.msra.mxu0 0
      %1374 = vmatpush.bf16.xpose.msra.mxu0 0
      %1375 = vmatpush.bf16.xpose.msra.mxu0 0
      %1376 = vmatpush.bf16.xpose.msra.mxu0 0
      %1377 = vmatpush.bf16.xpose.msra.mxu0 0
      %1378 = vmatpush.bf16.xpose.msra.mxu0 %v1369
      %1379 = vmatmul.bf16.gmra.mxu0 %v1366
      %v1380 = vpop.f32.mrf.mxu0
      %v1381 = vadd.f32 0.0, %v1380
      %v1382 = vpop.f32.mrf.mxu0
      %1383 = vdwg.mxu0
      %v1384 = vmul.f32 %v1294, 0.35355338
      %v1385 = vmul.f32 %v1323, 0.35355338
      %v1386 = vmul.f32 %v1352, 0.35355338
      %v1387 = vmul.f32 %v1381, 0.35355338
      %v1388 = vsel %vm991, %v1384, -inf
      %1389 = vmax.xlane.f32.xlu0 %v1388
      %v1390 = vpop.xlane.xlu0 %1389
      %v1391 = vsel %vm991, %v1385, -inf
      %1392 = vmax.xlane.f32.xlu0 %v1391
      %v1393 = vpop.xlane.xlu0 %1392
      %v1394 = vsel %vm991, %v1386, -inf
      %1395 = vmax.xlane.f32.xlu0 %v1394
      %v1396 = vpop.xlane.xlu0 %1395
      %v1397 = vsel %vm991, %v1387, -inf
      %1398 = vmax.xlane.f32.xlu0 %v1397
      %v1399 = vpop.xlane.xlu0 %1398
      %v1400 = vsub.f32 %v1384, %v1390
      %v1401 = vsub.f32 %v1385, %v1393
      %v1402 = vsub.f32 %v1386, %v1396
      %v1403 = vsub.f32 %v1387, %v1399
      %v1404 = vmul.f32 %v1400, 1.442695
      %v1405 = vpow.pop %v1404
      %v1406 = vmul.f32 %v1401, 1.442695
      %v1407 = vpow.pop %v1406
      %v1408 = vmul.f32 %v1402, 1.442695
      %v1409 = vpow.pop %v1408
      %v1410 = vmul.f32 %v1403, 1.442695
      %v1411 = vpow.pop %v1410
      %v1412 = vsel %vm991, %v1405, 0.0
      %1413 = vadd.xlane.f32.xlu0 %v1412
      %v1414 = vpop.xlane.xlu0 %1413
      %v1415 = vsel %vm991, %v1407, 0.0
      %1416 = vadd.xlane.f32.xlu0 %v1415
      %v1417 = vpop.xlane.xlu0 %1416
      %v1418 = vsel %vm991, %v1409, 0.0
      %1419 = vadd.xlane.f32.xlu0 %v1418
      %v1420 = vpop.xlane.xlu0 %1419
      %v1421 = vsel %vm991, %v1411, 0.0
      %1422 = vadd.xlane.f32.xlu0 %v1421
      %v1423 = vpop.xlane.xlu0 %1422
      %v1424 = vrcp.pop %v1414
      %v1425 = vrcp.pop %v1417
      %v1426 = vrcp.pop %v1420
      %v1427 = vrcp.pop %v1423
      %v1428 = vmul.f32 %v1405, %v1424
      %v1429 = vmul.f32 %v1407, %v1425
      %v1430 = vmul.f32 %v1409, %v1426
      %v1431 = vmul.f32 %v1411, %v1427
      %v1432 = vpack.c.bf16 %v1428, %v1428
      %v1433 = vpack.c.bf16 %v1429, %v1429
      %v1434 = vpack.c.bf16 %v1430, %v1430
      %v1435 = vpack.c.bf16 %v1431, %v1431
      %v1437 = vunpack.c.l.b16 %v1264
      %v1438 = vpack.c.b16 %v1437, %v1437
      %1439 = vrot.lane.b32.xlu0 %v1438, 56
      %v1440 = vpop.permute.xlu0 %1439
      %v1442 = vsel %vm1045, %v1432, 0
      %v1445 = vand.u32 %v1440, %v1052
      %1447 = vmatpush.bf16.msra.mxu0 0
      %1448 = vmatpush.bf16.msra.mxu0 0
      %1449 = vmatpush.bf16.msra.mxu0 0
      %1450 = vmatpush.bf16.msra.mxu0 0
      %1451 = vmatpush.bf16.msra.mxu0 0
      %1452 = vmatpush.bf16.msra.mxu0 0
      %1453 = vmatpush.bf16.msra.mxu0 0
      %1454 = vmatpush.bf16.msra.mxu0 %v1445
      %1455 = vmatmul.bf16.gmra.mxu0 %v1442
      %v1456 = vpop.f32.mrf.mxu0
      %v1457 = vadd.f32 0.0, %v1456
      %v1458 = vpop.f32.mrf.mxu0
      %1459 = vdwg.mxu0
      %v1461 = vunpack.c.l.b16 %v1265
      %v1462 = vpack.c.b16 %v1461, %v1461
      %1463 = vrot.lane.b32.xlu0 %v1462, 56
      %v1464 = vpop.permute.xlu0 %1463
      %v1466 = vsel %vm1045, %v1433, 0
      %v1469 = vand.u32 %v1464, %v1052
      %1471 = vmatpush.bf16.msra.mxu0 0
      %1472 = vmatpush.bf16.msra.mxu0 0
      %1473 = vmatpush.bf16.msra.mxu0 0
      %1474 = vmatpush.bf16.msra.mxu0 0
      %1475 = vmatpush.bf16.msra.mxu0 0
      %1476 = vmatpush.bf16.msra.mxu0 0
      %1477 = vmatpush.bf16.msra.mxu0 0
      %1478 = vmatpush.bf16.msra.mxu0 %v1469
      %1479 = vmatmul.bf16.gmra.mxu0 %v1466
      %v1480 = vpop.f32.mrf.mxu0
      %v1481 = vadd.f32 0.0, %v1480
      %v1482 = vpop.f32.mrf.mxu0
      %1483 = vdwg.mxu0
      %v1485 = vunpack.c.l.b16 %v1266
      %v1486 = vpack.c.b16 %v1485, %v1485
      %1487 = vrot.lane.b32.xlu0 %v1486, 56
      %v1488 = vpop.permute.xlu0 %1487
      %v1490 = vsel %vm1045, %v1434, 0
      %v1493 = vand.u32 %v1488, %v1052
      %1495 = vmatpush.bf16.msra.mxu0 0
      %1496 = vmatpush.bf16.msra.mxu0 0
      %1497 = vmatpush.bf16.msra.mxu0 0
      %1498 = vmatpush.bf16.msra.mxu0 0
      %1499 = vmatpush.bf16.msra.mxu0 0
      %1500 = vmatpush.bf16.msra.mxu0 0
      %1501 = vmatpush.bf16.msra.mxu0 0
      %1502 = vmatpush.bf16.msra.mxu0 %v1493
      %1503 = vmatmul.bf16.gmra.mxu0 %v1490
      %v1504 = vpop.f32.mrf.mxu0
      %v1505 = vadd.f32 0.0, %v1504
      %v1506 = vpop.f32.mrf.mxu0
      %1507 = vdwg.mxu0
      %v1509 = vunpack.c.l.b16 %v1267
      %v1510 = vpack.c.b16 %v1509, %v1509
      %1511 = vrot.lane.b32.xlu0 %v1510, 56
      %v1512 = vpop.permute.xlu0 %1511
      %v1514 = vsel %vm1045, %v1435, 0
      %v1517 = vand.u32 %v1512, %v1052
      %1519 = vmatpush.bf16.msra.mxu0 0
      %1520 = vmatpush.bf16.msra.mxu0 0
      %1521 = vmatpush.bf16.msra.mxu0 0
      %1522 = vmatpush.bf16.msra.mxu0 0
      %1523 = vmatpush.bf16.msra.mxu0 0
      %1524 = vmatpush.bf16.msra.mxu0 0
      %1525 = vmatpush.bf16.msra.mxu0 0
      %1526 = vmatpush.bf16.msra.mxu0 %v1517
      %1527 = vmatmul.bf16.gmra.mxu0 %v1514
      %v1528 = vpop.f32.mrf.mxu0
      %v1529 = vadd.f32 0.0, %v1528
      %v1530 = vpop.f32.mrf.mxu0
      %1531 = vdwg.mxu0
      %v1532 = vpack.c.bf16 %v1457, %v1457
      %v1533 = vpack.c.bf16 %v1481, %v1481
      %v1534 = vpack.c.bf16 %v1505, %v1505
      %v1535 = vpack.c.bf16 %v1529, %v1529
      %1540 = vrot.lane.b32.xlu0 %v1532, 8
      %v1541 = vpop.permute.xlu0 %1540
      %1542 = vrot.lane.b32.xlu0 %v1533, 8
      %v1543 = vpop.permute.xlu0 %1542
      %1544 = vrot.lane.b32.xlu0 %v1534, 8
      %v1545 = vpop.permute.xlu0 %1544
      %1546 = vrot.lane.b32.xlu0 %v1535, 8
      %v1547 = vpop.permute.xlu0 %1546
      %vm1552 = vcmask 124992
      %vm1553 = vmand %vm1552, %vm1146
      %v1554 = vld [vmem:[#allocation2] sm:$0x7]
      %v1555 = vsel %vm1553, %v1541, %v1554
      %1556 = vst [vmem:[#allocation2] sm:$0x7] %v1555
      %v1557 = vld [vmem:[#allocation2 + $0x4] sm:$0x7]
      %v1558 = vsel %vm1553, %v1543, %v1557
      %1559 = vst [vmem:[#allocation2 + $0x4] sm:$0x7] %v1558
      %v1560 = vld [vmem:[#allocation2 + $0x8] sm:$0x7]
      %v1561 = vsel %vm1553, %v1545, %v1560
      %1562 = vst [vmem:[#allocation2 + $0x8] sm:$0x7] %v1561
      %v1563 = vld [vmem:[#allocation2 + $0xc] sm:$0x7]
      %v1564 = vsel %vm1553, %v1547, %v1563
      %1565 = vst [vmem:[#allocation2 + $0xc] sm:$0x7] %v1564
      %1566 = vst [vmem:[#allocation1] ss:$9 sm:$0xff] %v754
      %s1567 = scalar_lea.vmem [#allocation1], 1
      %1568 = vst [vmem:[%s1567] ss:$9 sm:$0xff] %v765
      %s1569 = scalar_lea.vmem [#allocation1], 2
      %1570 = vst [vmem:[%s1569] ss:$9 sm:$0xff] %v766
      %s1571 = scalar_lea.vmem [#allocation1], 3
      %1572 = vst [vmem:[%s1571] ss:$9 sm:$0xff] %v767
      %s1573 = scalar_lea.vmem [#allocation1], 4
      %1574 = vst [vmem:[%s1573] ss:$9 sm:$0xff] %v768
      %v1575 = vld [vmem:[#allocation1] sm:$0xff]
      %1576 = vst [vmem:[#allocation1] ss:$9 sm:$0xff] %v769
      %1577 = vst [vmem:[%s1567] ss:$9 sm:$0xff] %v770
      %1578 = vst [vmem:[%s1569] ss:$9 sm:$0xff] %v771
      %1579 = vst [vmem:[%s1571] ss:$9 sm:$0xff] %v756
      %1580 = vst [vmem:[%s1573] ss:$9 sm:$0xff] %v772
      %v1581 = vld [vmem:[#allocation1] sm:$0xff]
      %1582 = vst [vmem:[#allocation1] ss:$9 sm:$0xff] %v773
      %1583 = vst [vmem:[%s1567] ss:$9 sm:$0xff] %v774
      %1584 = vst [vmem:[%s1569] ss:$9 sm:$0xff] %v775
      %1585 = vst [vmem:[%s1571] ss:$9 sm:$0xff] %v776
      %1586 = vst [vmem:[%s1573] ss:$9 sm:$0xff] %v777
      %v1587 = vld [vmem:[#allocation1] sm:$0xff]
      %1588 = vst [vmem:[#allocation1] ss:$9 sm:$0xff] %v778
      %1589 = vst [vmem:[%s1567] ss:$9 sm:$0xff] %v759
      %1590 = vst [vmem:[%s1569] ss:$9 sm:$0xff] %v779
      %1591 = vst [vmem:[%s1571] ss:$9 sm:$0xff] %v780
      %1592 = vst [vmem:[%s1573] ss:$9 sm:$0xff] %v781
      %v1593 = vld [vmem:[#allocation1] sm:$0xff]
      %v1598 = vpack.c.bf16 %v1575, %v1575
      %v1599 = vpack.c.bf16 %v1581, %v1581
      %v1600 = vpack.c.bf16 %v1587, %v1587
      %v1601 = vpack.c.bf16 %v1593, %v1593
      %1602 = vst [vmem:[#allocation1] ss:$9 sm:$0xff] %v754
      %s1603 = scalar_lea.vmem [#allocation1], 1
      %1604 = vst [vmem:[%s1603] ss:$9 sm:$0xff] %v765
      %s1605 = scalar_lea.vmem [#allocation1], 2
      %1606 = vst [vmem:[%s1605] ss:$9 sm:$0xff] %v766
      %s1607 = scalar_lea.vmem [#allocation1], 3
      %1608 = vst [vmem:[%s1607] ss:$9 sm:$0xff] %v767
      %s1609 = scalar_lea.vmem [#allocation1], 4
      %1610 = vst [vmem:[%s1609] ss:$9 sm:$0xff] %v768
      %v1611 = vld [vmem:[#allocation1] sm:$0xff]
      %1612 = vst [vmem:[#allocation1] ss:$9 sm:$0xff] %v769
      %1613 = vst [vmem:[%s1603] ss:$9 sm:$0xff] %v770
      %1614 = vst [vmem:[%s1605] ss:$9 sm:$0xff] %v771
      %1615 = vst [vmem:[%s1607] ss:$9 sm:$0xff] %v756
      %1616 = vst [vmem:[%s1609] ss:$9 sm:$0xff] %v772
      %v1617 = vld [vmem:[#allocation1] sm:$0xff]
      %1618 = vst [vmem:[#allocation1] ss:$9 sm:$0xff] %v773
      %1619 = vst [vmem:[%s1603] ss:$9 sm:$0xff] %v774
      %1620 = vst [vmem:[%s1605] ss:$9 sm:$0xff] %v775
      %1621 = vst [vmem:[%s1607] ss:$9 sm:$0xff] %v776
      %1622 = vst [vmem:[%s1609] ss:$9 sm:$0xff] %v777
      %v1623 = vld [vmem:[#allocation1] sm:$0xff]
      %1624 = vst [vmem:[#allocation1] ss:$9 sm:$0xff] %v778
      %1625 = vst [vmem:[%s1603] ss:$9 sm:$0xff] %v759
      %1626 = vst [vmem:[%s1605] ss:$9 sm:$0xff] %v779
      %1627 = vst [vmem:[%s1607] ss:$9 sm:$0xff] %v780
      %1628 = vst [vmem:[%s1609] ss:$9 sm:$0xff] %v781
      %v1629 = vld [vmem:[#allocation1] sm:$0xff]
      %v1634 = vpack.c.bf16 %v1611, %v1611
      %v1635 = vpack.c.bf16 %v1617, %v1617
      %v1636 = vpack.c.bf16 %v1623, %v1623
      %v1637 = vpack.c.bf16 %v1629, %v1629
      %1638 = vst [vmem:[#allocation1] ss:$9 sm:$0xff] %v754
      %s1639 = scalar_lea.vmem [#allocation1], 1
      %1640 = vst [vmem:[%s1639] ss:$9 sm:$0xff] %v765
      %s1641 = scalar_lea.vmem [#allocation1], 2
      %1642 = vst [vmem:[%s1641] ss:$9 sm:$0xff] %v766
      %s1643 = scalar_lea.vmem [#allocation1], 3
      %1644 = vst [vmem:[%s1643] ss:$9 sm:$0xff] %v767
      %s1645 = scalar_lea.vmem [#allocation1], 4
      %1646 = vst [vmem:[%s1645] ss:$9 sm:$0xff] %v768
      %v1647 = vld [vmem:[#allocation1] sm:$0xff]
      %1648 = vst [vmem:[#allocation1] ss:$9 sm:$0xff] %v769
      %1649 = vst [vmem:[%s1639] ss:$9 sm:$0xff] %v770
      %1650 = vst [vmem:[%s1641] ss:$9 sm:$0xff] %v771
      %1651 = vst [vmem:[%s1643] ss:$9 sm:$0xff] %v756
      %1652 = vst [vmem:[%s1645] ss:$9 sm:$0xff] %v772
      %v1653 = vld [vmem:[#allocation1] sm:$0xff]
      %1654 = vst [vmem:[#allocation1] ss:$9 sm:$0xff] %v773
      %1655 = vst [vmem:[%s1639] ss:$9 sm:$0xff] %v774
      %1656 = vst [vmem:[%s1641] ss:$9 sm:$0xff] %v775
      %1657 = vst [vmem:[%s1643] ss:$9 sm:$0xff] %v776
      %1658 = vst [vmem:[%s1645] ss:$9 sm:$0xff] %v777
      %v1659 = vld [vmem:[#allocation1] sm:$0xff]
      %1660 = vst [vmem:[#allocation1] ss:$9 sm:$0xff] %v778
      %1661 = vst [vmem:[%s1639] ss:$9 sm:$0xff] %v759
      %1662 = vst [vmem:[%s1641] ss:$9 sm:$0xff] %v779
      %1663 = vst [vmem:[%s1643] ss:$9 sm:$0xff] %v780
      %1664 = vst [vmem:[%s1645] ss:$9 sm:$0xff] %v781
      %v1665 = vld [vmem:[#allocation1] sm:$0xff]
      %v1670 = vpack.c.bf16 %v1647, %v1647
      %v1671 = vpack.c.bf16 %v1653, %v1653
      %v1672 = vpack.c.bf16 %v1659, %v1659
      %v1673 = vpack.c.bf16 %v1665, %v1665
      %v1675 = vunpack.c.l.b16 %v1598
      %v1676 = vpack.c.b16 %v1675, %v1675
      %1677 = vrot.lane.b32.xlu0 %v1676, 112
      %v1678 = vpop.permute.xlu0 %1677
      %v1680 = vunpack.c.l.b16 %v1634
      %v1681 = vpack.c.b16 %v1680, %v1680
      %1682 = vrot.lane.b32.xlu0 %v1681, 80
      %v1683 = vpop.permute.xlu0 %1682
      %v1685 = vsel %vm895, %v1678, 0
      %v1688 = vsel %vm895, %v1683, 0
      %1690 = vmatpush.bf16.xpose.msra.mxu0 0
      %1691 = vmatpush.bf16.xpose.msra.mxu0 0
      %1692 = vmatpush.bf16.xpose.msra.mxu0 0
      %1693 = vmatpush.bf16.xpose.msra.mxu0 0
      %1694 = vmatpush.bf16.xpose.msra.mxu0 0
      %1695 = vmatpush.bf16.xpose.msra.mxu0 0
      %1696 = vmatpush.bf16.xpose.msra.mxu0 0
      %1697 = vmatpush.bf16.xpose.msra.mxu0 %v1688
      %1698 = vmatmul.bf16.gmra.mxu0 %v1685
      %v1699 = vpop.f32.mrf.mxu0
      %v1700 = vadd.f32 0.0, %v1699
      %v1701 = vpop.f32.mrf.mxu0
      %1702 = vdwg.mxu0
      %v1704 = vunpack.c.l.b16 %v1599
      %v1705 = vpack.c.b16 %v1704, %v1704
      %1706 = vrot.lane.b32.xlu0 %v1705, 112
      %v1707 = vpop.permute.xlu0 %1706
      %v1709 = vunpack.c.l.b16 %v1635
      %v1710 = vpack.c.b16 %v1709, %v1709
      %1711 = vrot.lane.b32.xlu0 %v1710, 80
      %v1712 = vpop.permute.xlu0 %1711
      %v1714 = vsel %vm895, %v1707, 0
      %v1717 = vsel %vm895, %v1712, 0
      %1719 = vmatpush.bf16.xpose.msra.mxu0 0
      %1720 = vmatpush.bf16.xpose.msra.mxu0 0
      %1721 = vmatpush.bf16.xpose.msra.mxu0 0
      %1722 = vmatpush.bf16.xpose.msra.mxu0 0
      %1723 = vmatpush.bf16.xpose.msra.mxu0 0
      %1724 = vmatpush.bf16.xpose.msra.mxu0 0
      %1725 = vmatpush.bf16.xpose.msra.mxu0 0
      %1726 = vmatpush.bf16.xpose.msra.mxu0 %v1717
      %1727 = vmatmul.bf16.gmra.mxu0 %v1714
      %v1728 = vpop.f32.mrf.mxu0
      %v1729 = vadd.f32 0.0, %v1728
      %v1730 = vpop.f32.mrf.mxu0
      %1731 = vdwg.mxu0
      %v1733 = vunpack.c.l.b16 %v1600
      %v1734 = vpack.c.b16 %v1733, %v1733
      %1735 = vrot.lane.b32.xlu0 %v1734, 112
      %v1736 = vpop.permute.xlu0 %1735
      %v1738 = vunpack.c.l.b16 %v1636
      %v1739 = vpack.c.b16 %v1738, %v1738
      %1740 = vrot.lane.b32.xlu0 %v1739, 80
      %v1741 = vpop.permute.xlu0 %1740
      %v1743 = vsel %vm895, %v1736, 0
      %v1746 = vsel %vm895, %v1741, 0
      %1748 = vmatpush.bf16.xpose.msra.mxu0 0
      %1749 = vmatpush.bf16.xpose.msra.mxu0 0
      %1750 = vmatpush.bf16.xpose.msra.mxu0 0
      %1751 = vmatpush.bf16.xpose.msra.mxu0 0
      %1752 = vmatpush.bf16.xpose.msra.mxu0 0
      %1753 = vmatpush.bf16.xpose.msra.mxu0 0
      %1754 = vmatpush.bf16.xpose.msra.mxu0 0
      %1755 = vmatpush.bf16.xpose.msra.mxu0 %v1746
      %1756 = vmatmul.bf16.gmra.mxu0 %v1743
      %v1757 = vpop.f32.mrf.mxu0
      %v1758 = vadd.f32 0.0, %v1757
      %v1759 = vpop.f32.mrf.mxu0
      %1760 = vdwg.mxu0
      %v1762 = vunpack.c.l.b16 %v1601
      %v1763 = vpack.c.b16 %v1762, %v1762
      %1764 = vrot.lane.b32.xlu0 %v1763, 112
      %v1765 = vpop.permute.xlu0 %1764
      %v1767 = vunpack.c.l.b16 %v1637
      %v1768 = vpack.c.b16 %v1767, %v1767
      %1769 = vrot.lane.b32.xlu0 %v1768, 80
      %v1770 = vpop.permute.xlu0 %1769
      %v1772 = vsel %vm895, %v1765, 0
      %v1775 = vsel %vm895, %v1770, 0
      %1777 = vmatpush.bf16.xpose.msra.mxu0 0
      %1778 = vmatpush.bf16.xpose.msra.mxu0 0
      %1779 = vmatpush.bf16.xpose.msra.mxu0 0
      %1780 = vmatpush.bf16.xpose.msra.mxu0 0
      %1781 = vmatpush.bf16.xpose.msra.mxu0 0
      %1782 = vmatpush.bf16.xpose.msra.mxu0 0
      %1783 = vmatpush.bf16.xpose.msra.mxu0 0
      %1784 = vmatpush.bf16.xpose.msra.mxu0 %v1775
      %1785 = vmatmul.bf16.gmra.mxu0 %v1772
      %v1786 = vpop.f32.mrf.mxu0
      %v1787 = vadd.f32 0.0, %v1786
      %v1788 = vpop.f32.mrf.mxu0
      %1789 = vdwg.mxu0
      %v1790 = vmul.f32 %v1700, 0.35355338
      %v1791 = vmul.f32 %v1729, 0.35355338
      %v1792 = vmul.f32 %v1758, 0.35355338
      %v1793 = vmul.f32 %v1787, 0.35355338
      %v1794 = vsel %vm991, %v1790, -inf
      %1795 = vmax.xlane.f32.xlu0 %v1794
      %v1796 = vpop.xlane.xlu0 %1795
      %v1797 = vsel %vm991, %v1791, -inf
      %1798 = vmax.xlane.f32.xlu0 %v1797
      %v1799 = vpop.xlane.xlu0 %1798
      %v1800 = vsel %vm991, %v1792, -inf
      %1801 = vmax.xlane.f32.xlu0 %v1800
      %v1802 = vpop.xlane.xlu0 %1801
      %v1803 = vsel %vm991, %v1793, -inf
      %1804 = vmax.xlane.f32.xlu0 %v1803
      %v1805 = vpop.xlane.xlu0 %1804
      %v1806 = vsub.f32 %v1790, %v1796
      %v1807 = vsub.f32 %v1791, %v1799
      %v1808 = vsub.f32 %v1792, %v1802
      %v1809 = vsub.f32 %v1793, %v1805
      %v1810 = vmul.f32 %v1806, 1.442695
      %v1811 = vpow.pop %v1810
      %v1812 = vmul.f32 %v1807, 1.442695
      %v1813 = vpow.pop %v1812
      %v1814 = vmul.f32 %v1808, 1.442695
      %v1815 = vpow.pop %v1814
      %v1816 = vmul.f32 %v1809, 1.442695
      %v1817 = vpow.pop %v1816
      %v1818 = vsel %vm991, %v1811, 0.0
      %1819 = vadd.xlane.f32.xlu0 %v1818
      %v1820 = vpop.xlane.xlu0 %1819
      %v1821 = vsel %vm991, %v1813, 0.0
      %1822 = vadd.xlane.f32.xlu0 %v1821
      %v1823 = vpop.xlane.xlu0 %1822
      %v1824 = vsel %vm991, %v1815, 0.0
      %1825 = vadd.xlane.f32.xlu0 %v1824
      %v1826 = vpop.xlane.xlu0 %1825
      %v1827 = vsel %vm991, %v1817, 0.0
      %1828 = vadd.xlane.f32.xlu0 %v1827
      %v1829 = vpop.xlane.xlu0 %1828
      %v1830 = vrcp.pop %v1820
      %v1831 = vrcp.pop %v1823
      %v1832 = vrcp.pop %v1826
      %v1833 = vrcp.pop %v1829
      %v1834 = vmul.f32 %v1811, %v1830
      %v1835 = vmul.f32 %v1813, %v1831
      %v1836 = vmul.f32 %v1815, %v1832
      %v1837 = vmul.f32 %v1817, %v1833
      %v1838 = vpack.c.bf16 %v1834, %v1834
      %v1839 = vpack.c.bf16 %v1835, %v1835
      %v1840 = vpack.c.bf16 %v1836, %v1836
      %v1841 = vpack.c.bf16 %v1837, %v1837
      %v1843 = vunpack.c.l.b16 %v1670
      %v1844 = vpack.c.b16 %v1843, %v1843
      %1845 = vrot.lane.b32.xlu0 %v1844, 48
      %v1846 = vpop.permute.xlu0 %1845
      %v1848 = vsel %vm1045, %v1838, 0
      %v1851 = vand.u32 %v1846, %v1052
      %1853 = vmatpush.bf16.msra.mxu0 0
      %1854 = vmatpush.bf16.msra.mxu0 0
      %1855 = vmatpush.bf16.msra.mxu0 0
      %1856 = vmatpush.bf16.msra.mxu0 0
      %1857 = vmatpush.bf16.msra.mxu0 0
      %1858 = vmatpush.bf16.msra.mxu0 0
      %1859 = vmatpush.bf16.msra.mxu0 0
      %1860 = vmatpush.bf16.msra.mxu0 %v1851
      %1861 = vmatmul.bf16.gmra.mxu0 %v1848
      %v1862 = vpop.f32.mrf.mxu0
      %v1863 = vadd.f32 0.0, %v1862
      %v1864 = vpop.f32.mrf.mxu0
      %1865 = vdwg.mxu0
      %v1867 = vunpack.c.l.b16 %v1671
      %v1868 = vpack.c.b16 %v1867, %v1867
      %1869 = vrot.lane.b32.xlu0 %v1868, 48
      %v1870 = vpop.permute.xlu0 %1869
      %v1872 = vsel %vm1045, %v1839, 0
      %v1875 = vand.u32 %v1870, %v1052
      %1877 = vmatpush.bf16.msra.mxu0 0
      %1878 = vmatpush.bf16.msra.mxu0 0
      %1879 = vmatpush.bf16.msra.mxu0 0
      %1880 = vmatpush.bf16.msra.mxu0 0
      %1881 = vmatpush.bf16.msra.mxu0 0
      %1882 = vmatpush.bf16.msra.mxu0 0
      %1883 = vmatpush.bf16.msra.mxu0 0
      %1884 = vmatpush.bf16.msra.mxu0 %v1875
      %1885 = vmatmul.bf16.gmra.mxu0 %v1872
      %v1886 = vpop.f32.mrf.mxu0
      %v1887 = vadd.f32 0.0, %v1886
      %v1888 = vpop.f32.mrf.mxu0
      %1889 = vdwg.mxu0
      %v1891 = vunpack.c.l.b16 %v1672
      %v1892 = vpack.c.b16 %v1891, %v1891
      %1893 = vrot.lane.b32.xlu0 %v1892, 48
      %v1894 = vpop.permute.xlu0 %1893
      %v1896 = vsel %vm1045, %v1840, 0
      %v1899 = vand.u32 %v1894, %v1052
      %1901 = vmatpush.bf16.msra.mxu0 0
      %1902 = vmatpush.bf16.msra.mxu0 0
      %1903 = vmatpush.bf16.msra.mxu0 0
      %1904 = vmatpush.bf16.msra.mxu0 0
      %1905 = vmatpush.bf16.msra.mxu0 0
      %1906 = vmatpush.bf16.msra.mxu0 0
      %1907 = vmatpush.bf16.msra.mxu0 0
      %1908 = vmatpush.bf16.msra.mxu0 %v1899
      %1909 = vmatmul.bf16.gmra.mxu0 %v1896
      %v1910 = vpop.f32.mrf.mxu0
      %v1911 = vadd.f32 0.0, %v1910
      %v1912 = vpop.f32.mrf.mxu0
      %1913 = vdwg.mxu0
      %v1915 = vunpack.c.l.b16 %v1673
      %v1916 = vpack.c.b16 %v1915, %v1915
      %1917 = vrot.lane.b32.xlu0 %v1916, 48
      %v1918 = vpop.permute.xlu0 %1917
      %v1920 = vsel %vm1045, %v1841, 0
      %v1923 = vand.u32 %v1918, %v1052
      %1925 = vmatpush.bf16.msra.mxu0 0
      %1926 = vmatpush.bf16.msra.mxu0 0
      %1927 = vmatpush.bf16.msra.mxu0 0
      %1928 = vmatpush.bf16.msra.mxu0 0
      %1929 = vmatpush.bf16.msra.mxu0 0
      %1930 = vmatpush.bf16.msra.mxu0 0
      %1931 = vmatpush.bf16.msra.mxu0 0
      %1932 = vmatpush.bf16.msra.mxu0 %v1923
      %1933 = vmatmul.bf16.gmra.mxu0 %v1920
      %v1934 = vpop.f32.mrf.mxu0
      %v1935 = vadd.f32 0.0, %v1934
      %v1936 = vpop.f32.mrf.mxu0
      %1937 = vdwg.mxu0
      %v1938 = vpack.c.bf16 %v1863, %v1863
      %v1939 = vpack.c.bf16 %v1887, %v1887
      %v1940 = vpack.c.bf16 %v1911, %v1911
      %v1941 = vpack.c.bf16 %v1935, %v1935
      %1946 = vrot.lane.b32.xlu0 %v1938, 16
      %v1947 = vpop.permute.xlu0 %1946
      %1948 = vrot.lane.b32.xlu0 %v1939, 16
      %v1949 = vpop.permute.xlu0 %1948
      %1950 = vrot.lane.b32.xlu0 %v1940, 16
      %v1951 = vpop.permute.xlu0 %1950
      %1952 = vrot.lane.b32.xlu0 %v1941, 16
      %v1953 = vpop.permute.xlu0 %1952
      %vm1958 = vcmask 190592
      %vm1959 = vmand %vm1958, %vm1146
      %v1960 = vld [vmem:[#allocation2] sm:$0x7]
      %v1961 = vsel %vm1959, %v1947, %v1960
      %1962 = vst [vmem:[#allocation2] sm:$0x7] %v1961
      %v1963 = vld [vmem:[#allocation2 + $0x4] sm:$0x7]
      %v1964 = vsel %vm1959, %v1949, %v1963
      %1965 = vst [vmem:[#allocation2 + $0x4] sm:$0x7] %v1964
      %v1966 = vld [vmem:[#allocation2 + $0x8] sm:$0x7]
      %v1967 = vsel %vm1959, %v1951, %v1966
      %1968 = vst [vmem:[#allocation2 + $0x8] sm:$0x7] %v1967
      %v1969 = vld [vmem:[#allocation2 + $0xc] sm:$0x7]
      %v1970 = vsel %vm1959, %v1953, %v1969
      %1971 = vst [vmem:[#allocation2 + $0xc] sm:$0x7] %v1970
      %1972 = vst [vmem:[#allocation1] ss:$9 sm:$0xff] %v754
      %s1973 = scalar_lea.vmem [#allocation1], 1
      %1974 = vst [vmem:[%s1973] ss:$9 sm:$0xff] %v765
      %s1975 = scalar_lea.vmem [#allocation1], 2
      %1976 = vst [vmem:[%s1975] ss:$9 sm:$0xff] %v766
      %s1977 = scalar_lea.vmem [#allocation1], 3
      %1978 = vst [vmem:[%s1977] ss:$9 sm:$0xff] %v767
      %s1979 = scalar_lea.vmem [#allocation1], 4
      %1980 = vst [vmem:[%s1979] ss:$9 sm:$0xff] %v768
      %v1981 = vld [vmem:[#allocation1] sm:$0xff]
      %1982 = vst [vmem:[#allocation1] ss:$9 sm:$0xff] %v769
      %1983 = vst [vmem:[%s1973] ss:$9 sm:$0xff] %v770
      %1984 = vst [vmem:[%s1975] ss:$9 sm:$0xff] %v771
      %1985 = vst [vmem:[%s1977] ss:$9 sm:$0xff] %v756
      %1986 = vst [vmem:[%s1979] ss:$9 sm:$0xff] %v772
      %v1987 = vld [vmem:[#allocation1] sm:$0xff]
      %1988 = vst [vmem:[#allocation1] ss:$9 sm:$0xff] %v773
      %1989 = vst [vmem:[%s1973] ss:$9 sm:$0xff] %v774
      %1990 = vst [vmem:[%s1975] ss:$9 sm:$0xff] %v775
      %1991 = vst [vmem:[%s1977] ss:$9 sm:$0xff] %v776
      %1992 = vst [vmem:[%s1979] ss:$9 sm:$0xff] %v777
      %v1993 = vld [vmem:[#allocation1] sm:$0xff]
      %1994 = vst [vmem:[#allocation1] ss:$9 sm:$0xff] %v778
      %1995 = vst [vmem:[%s1973] ss:$9 sm:$0xff] %v759
      %1996 = vst [vmem:[%s1975] ss:$9 sm:$0xff] %v779
      %1997 = vst [vmem:[%s1977] ss:$9 sm:$0xff] %v780
      %1998 = vst [vmem:[%s1979] ss:$9 sm:$0xff] %v781
      %v1999 = vld [vmem:[#allocation1] sm:$0xff]
      %v2004 = vpack.c.bf16 %v1981, %v1981
      %v2005 = vpack.c.bf16 %v1987, %v1987
      %v2006 = vpack.c.bf16 %v1993, %v1993
      %v2007 = vpack.c.bf16 %v1999, %v1999
      %2008 = vst [vmem:[#allocation1] ss:$9 sm:$0xff] %v754
      %s2009 = scalar_lea.vmem [#allocation1], 1
      %2010 = vst [vmem:[%s2009] ss:$9 sm:$0xff] %v765
      %s2011 = scalar_lea.vmem [#allocation1], 2
      %2012 = vst [vmem:[%s2011] ss:$9 sm:$0xff] %v766
      %s2013 = scalar_lea.vmem [#allocation1], 3
      %2014 = vst [vmem:[%s2013] ss:$9 sm:$0xff] %v767
      %s2015 = scalar_lea.vmem [#allocation1], 4
      %2016 = vst [vmem:[%s2015] ss:$9 sm:$0xff] %v768
      %v2017 = vld [vmem:[#allocation1] sm:$0xff]
      %2018 = vst [vmem:[#allocation1] ss:$9 sm:$0xff] %v769
      %2019 = vst [vmem:[%s2009] ss:$9 sm:$0xff] %v770
      %2020 = vst [vmem:[%s2011] ss:$9 sm:$0xff] %v771
      %2021 = vst [vmem:[%s2013] ss:$9 sm:$0xff] %v756
      %2022 = vst [vmem:[%s2015] ss:$9 sm:$0xff] %v772
      %v2023 = vld [vmem:[#allocation1] sm:$0xff]
      %2024 = vst [vmem:[#allocation1] ss:$9 sm:$0xff] %v773
      %2025 = vst [vmem:[%s2009] ss:$9 sm:$0xff] %v774
      %2026 = vst [vmem:[%s2011] ss:$9 sm:$0xff] %v775
      %2027 = vst [vmem:[%s2013] ss:$9 sm:$0xff] %v776
      %2028 = vst [vmem:[%s2015] ss:$9 sm:$0xff] %v777
      %v2029 = vld [vmem:[#allocation1] sm:$0xff]
      %2030 = vst [vmem:[#allocation1] ss:$9 sm:$0xff] %v778
      %2031 = vst [vmem:[%s2009] ss:$9 sm:$0xff] %v759
      %2032 = vst [vmem:[%s2011] ss:$9 sm:$0xff] %v779
      %2033 = vst [vmem:[%s2013] ss:$9 sm:$0xff] %v780
      %2034 = vst [vmem:[%s2015] ss:$9 sm:$0xff] %v781
      %v2035 = vld [vmem:[#allocation1] sm:$0xff]
      %v2040 = vpack.c.bf16 %v2017, %v2017
      %v2041 = vpack.c.bf16 %v2023, %v2023
      %v2042 = vpack.c.bf16 %v2029, %v2029
      %v2043 = vpack.c.bf16 %v2035, %v2035
      %2044 = vst [vmem:[#allocation1] ss:$9 sm:$0xff] %v754
      %s2045 = scalar_lea.vmem [#allocation1], 1
      %2046 = vst [vmem:[%s2045] ss:$9 sm:$0xff] %v765
      %s2047 = scalar_lea.vmem [#allocation1], 2
      %2048 = vst [vmem:[%s2047] ss:$9 sm:$0xff] %v766
      %s2049 = scalar_lea.vmem [#allocation1], 3
      %2050 = vst [vmem:[%s2049] ss:$9 sm:$0xff] %v767
      %s2051 = scalar_lea.vmem [#allocation1], 4
      %2052 = vst [vmem:[%s2051] ss:$9 sm:$0xff] %v768
      %v2053 = vld [vmem:[#allocation1] sm:$0xff]
      %2054 = vst [vmem:[#allocation1] ss:$9 sm:$0xff] %v769
      %2055 = vst [vmem:[%s2045] ss:$9 sm:$0xff] %v770
      %2056 = vst [vmem:[%s2047] ss:$9 sm:$0xff] %v771
      %2057 = vst [vmem:[%s2049] ss:$9 sm:$0xff] %v756
      %2058 = vst [vmem:[%s2051] ss:$9 sm:$0xff] %v772
      %v2059 = vld [vmem:[#allocation1] sm:$0xff]
      %2060 = vst [vmem:[#allocation1] ss:$9 sm:$0xff] %v773
      %2061 = vst [vmem:[%s2045] ss:$9 sm:$0xff] %v774
      %2062 = vst [vmem:[%s2047] ss:$9 sm:$0xff] %v775
      %2063 = vst [vmem:[%s2049] ss:$9 sm:$0xff] %v776
      %2064 = vst [vmem:[%s2051] ss:$9 sm:$0xff] %v777
      %v2065 = vld [vmem:[#allocation1] sm:$0xff]
      %2066 = vst [vmem:[#allocation1] ss:$9 sm:$0xff] %v778
      %2067 = vst [vmem:[%s2045] ss:$9 sm:$0xff] %v759
      %2068 = vst [vmem:[%s2047] ss:$9 sm:$0xff] %v779
      %2069 = vst [vmem:[%s2049] ss:$9 sm:$0xff] %v780
      %2070 = vst [vmem:[%s2051] ss:$9 sm:$0xff] %v781
      %v2071 = vld [vmem:[#allocation1] sm:$0xff]
      %v2076 = vpack.c.bf16 %v2053, %v2053
      %v2077 = vpack.c.bf16 %v2059, %v2059
      %v2078 = vpack.c.bf16 %v2065, %v2065
      %v2079 = vpack.c.bf16 %v2071, %v2071
      %v2081 = vunpack.c.l.b16 %v2004
      %v2082 = vpack.c.b16 %v2081, %v2081
      %2083 = vrot.lane.b32.xlu0 %v2082, 104
      %v2084 = vpop.permute.xlu0 %2083
      %v2086 = vunpack.c.l.b16 %v2040
      %v2087 = vpack.c.b16 %v2086, %v2086
      %2088 = vrot.lane.b32.xlu0 %v2087, 72
      %v2089 = vpop.permute.xlu0 %2088
      %v2091 = vsel %vm895, %v2084, 0
      %v2094 = vsel %vm895, %v2089, 0
      %2096 = vmatpush.bf16.xpose.msra.mxu0 0
      %2097 = vmatpush.bf16.xpose.msra.mxu0 0
      %2098 = vmatpush.bf16.xpose.msra.mxu0 0
      %2099 = vmatpush.bf16.xpose.msra.mxu0 0
      %2100 = vmatpush.bf16.xpose.msra.mxu0 0
      %2101 = vmatpush.bf16.xpose.msra.mxu0 0
      %2102 = vmatpush.bf16.xpose.msra.mxu0 0
      %2103 = vmatpush.bf16.xpose.msra.mxu0 %v2094
      %2104 = vmatmul.bf16.gmra.mxu0 %v2091
      %v2105 = vpop.f32.mrf.mxu0
      %v2106 = vadd.f32 0.0, %v2105
      %v2107 = vpop.f32.mrf.mxu0
      %2108 = vdwg.mxu0
      %v2110 = vunpack.c.l.b16 %v2005
      %v2111 = vpack.c.b16 %v2110, %v2110
      %2112 = vrot.lane.b32.xlu0 %v2111, 104
      %v2113 = vpop.permute.xlu0 %2112
      %v2115 = vunpack.c.l.b16 %v2041
      %v2116 = vpack.c.b16 %v2115, %v2115
      %2117 = vrot.lane.b32.xlu0 %v2116, 72
      %v2118 = vpop.permute.xlu0 %2117
      %v2120 = vsel %vm895, %v2113, 0
      %v2123 = vsel %vm895, %v2118, 0
      %2125 = vmatpush.bf16.xpose.msra.mxu0 0
      %2126 = vmatpush.bf16.xpose.msra.mxu0 0
      %2127 = vmatpush.bf16.xpose.msra.mxu0 0
      %2128 = vmatpush.bf16.xpose.msra.mxu0 0
      %2129 = vmatpush.bf16.xpose.msra.mxu0 0
      %2130 = vmatpush.bf16.xpose.msra.mxu0 0
      %2131 = vmatpush.bf16.xpose.msra.mxu0 0
      %2132 = vmatpush.bf16.xpose.msra.mxu0 %v2123
      %2133 = vmatmul.bf16.gmra.mxu0 %v2120
      %v2134 = vpop.f32.mrf.mxu0
      %v2135 = vadd.f32 0.0, %v2134
      %v2136 = vpop.f32.mrf.mxu0
      %2137 = vdwg.mxu0
      %v2139 = vunpack.c.l.b16 %v2006
      %v2140 = vpack.c.b16 %v2139, %v2139
      %2141 = vrot.lane.b32.xlu0 %v2140, 104
      %v2142 = vpop.permute.xlu0 %2141
      %v2144 = vunpack.c.l.b16 %v2042
      %v2145 = vpack.c.b16 %v2144, %v2144
      %2146 = vrot.lane.b32.xlu0 %v2145, 72
      %v2147 = vpop.permute.xlu0 %2146
      %v2149 = vsel %vm895, %v2142, 0
      %v2152 = vsel %vm895, %v2147, 0
      %2154 = vmatpush.bf16.xpose.msra.mxu0 0
      %2155 = vmatpush.bf16.xpose.msra.mxu0 0
      %2156 = vmatpush.bf16.xpose.msra.mxu0 0
      %2157 = vmatpush.bf16.xpose.msra.mxu0 0
      %2158 = vmatpush.bf16.xpose.msra.mxu0 0
      %2159 = vmatpush.bf16.xpose.msra.mxu0 0
      %2160 = vmatpush.bf16.xpose.msra.mxu0 0
      %2161 = vmatpush.bf16.xpose.msra.mxu0 %v2152
      %2162 = vmatmul.bf16.gmra.mxu0 %v2149
      %v2163 = vpop.f32.mrf.mxu0
      %v2164 = vadd.f32 0.0, %v2163
      %v2165 = vpop.f32.mrf.mxu0
      %2166 = vdwg.mxu0
      %v2168 = vunpack.c.l.b16 %v2007
      %v2169 = vpack.c.b16 %v2168, %v2168
      %2170 = vrot.lane.b32.xlu0 %v2169, 104
      %v2171 = vpop.permute.xlu0 %2170
      %v2173 = vunpack.c.l.b16 %v2043
      %v2174 = vpack.c.b16 %v2173, %v2173
      %2175 = vrot.lane.b32.xlu0 %v2174, 72
      %v2176 = vpop.permute.xlu0 %2175
      %v2178 = vsel %vm895, %v2171, 0
      %v2181 = vsel %vm895, %v2176, 0
      %2183 = vmatpush.bf16.xpose.msra.mxu0 0
      %2184 = vmatpush.bf16.xpose.msra.mxu0 0
      %2185 = vmatpush.bf16.xpose.msra.mxu0 0
      %2186 = vmatpush.bf16.xpose.msra.mxu0 0
      %2187 = vmatpush.bf16.xpose.msra.mxu0 0
      %2188 = vmatpush.bf16.xpose.msra.mxu0 0
      %2189 = vmatpush.bf16.xpose.msra.mxu0 0
      %2190 = vmatpush.bf16.xpose.msra.mxu0 %v2181
      %2191 = vmatmul.bf16.gmra.mxu0 %v2178
      %v2192 = vpop.f32.mrf.mxu0
      %v2193 = vadd.f32 0.0, %v2192
      %v2194 = vpop.f32.mrf.mxu0
      %2195 = vdwg.mxu0
      %v2196 = vmul.f32 %v2106, 0.35355338
      %v2197 = vmul.f32 %v2135, 0.35355338
      %v2198 = vmul.f32 %v2164, 0.35355338
      %v2199 = vmul.f32 %v2193, 0.35355338
      %v2200 = vsel %vm991, %v2196, -inf
      %2201 = vmax.xlane.f32.xlu0 %v2200
      %v2202 = vpop.xlane.xlu0 %2201
      %v2203 = vsel %vm991, %v2197, -inf
      %2204 = vmax.xlane.f32.xlu0 %v2203
      %v2205 = vpop.xlane.xlu0 %2204
      %v2206 = vsel %vm991, %v2198, -inf
      %2207 = vmax.xlane.f32.xlu0 %v2206
      %v2208 = vpop.xlane.xlu0 %2207
      %v2209 = vsel %vm991, %v2199, -inf
      %2210 = vmax.xlane.f32.xlu0 %v2209
      %v2211 = vpop.xlane.xlu0 %2210
      %v2212 = vsub.f32 %v2196, %v2202
      %v2213 = vsub.f32 %v2197, %v2205
      %v2214 = vsub.f32 %v2198, %v2208
      %v2215 = vsub.f32 %v2199, %v2211
      %v2216 = vmul.f32 %v2212, 1.442695
      %v2217 = vpow.pop %v2216
      %v2218 = vmul.f32 %v2213, 1.442695
      %v2219 = vpow.pop %v2218
      %v2220 = vmul.f32 %v2214, 1.442695
      %v2221 = vpow.pop %v2220
      %v2222 = vmul.f32 %v2215, 1.442695
      %v2223 = vpow.pop %v2222
      %v2224 = vsel %vm991, %v2217, 0.0
      %2225 = vadd.xlane.f32.xlu0 %v2224
      %v2226 = vpop.xlane.xlu0 %2225
      %v2227 = vsel %vm991, %v2219, 0.0
      %2228 = vadd.xlane.f32.xlu0 %v2227
      %v2229 = vpop.xlane.xlu0 %2228
      %v2230 = vsel %vm991, %v2221, 0.0
      %2231 = vadd.xlane.f32.xlu0 %v2230
      %v2232 = vpop.xlane.xlu0 %2231
      %v2233 = vsel %vm991, %v2223, 0.0
      %2234 = vadd.xlane.f32.xlu0 %v2233
      %v2235 = vpop.xlane.xlu0 %2234
      %v2236 = vrcp.pop %v2226
      %v2237 = vrcp.pop %v2229
      %v2238 = vrcp.pop %v2232
      %v2239 = vrcp.pop %v2235
      %v2240 = vmul.f32 %v2217, %v2236
      %v2241 = vmul.f32 %v2219, %v2237
      %v2242 = vmul.f32 %v2221, %v2238
      %v2243 = vmul.f32 %v2223, %v2239
      %v2244 = vpack.c.bf16 %v2240, %v2240
      %v2245 = vpack.c.bf16 %v2241, %v2241
      %v2246 = vpack.c.bf16 %v2242, %v2242
      %v2247 = vpack.c.bf16 %v2243, %v2243
      %v2249 = vunpack.c.l.b16 %v2076
      %v2250 = vpack.c.b16 %v2249, %v2249
      %2251 = vrot.lane.b32.xlu0 %v2250, 40
      %v2252 = vpop.permute.xlu0 %2251
      %v2254 = vsel %vm1045, %v2244, 0
      %v2257 = vand.u32 %v2252, %v1052
      %2259 = vmatpush.bf16.msra.mxu0 0
      %2260 = vmatpush.bf16.msra.mxu0 0
      %2261 = vmatpush.bf16.msra.mxu0 0
      %2262 = vmatpush.bf16.msra.mxu0 0
      %2263 = vmatpush.bf16.msra.mxu0 0
      %2264 = vmatpush.bf16.msra.mxu0 0
      %2265 = vmatpush.bf16.msra.mxu0 0
      %2266 = vmatpush.bf16.msra.mxu0 %v2257
      %2267 = vmatmul.bf16.gmra.mxu0 %v2254
      %v2268 = vpop.f32.mrf.mxu0
      %v2269 = vadd.f32 0.0, %v2268
      %v2270 = vpop.f32.mrf.mxu0
      %2271 = vdwg.mxu0
      %v2273 = vunpack.c.l.b16 %v2077
      %v2274 = vpack.c.b16 %v2273, %v2273
      %2275 = vrot.lane.b32.xlu0 %v2274, 40
      %v2276 = vpop.permute.xlu0 %2275
      %v2278 = vsel %vm1045, %v2245, 0
      %v2281 = vand.u32 %v2276, %v1052
      %2283 = vmatpush.bf16.msra.mxu0 0
      %2284 = vmatpush.bf16.msra.mxu0 0
      %2285 = vmatpush.bf16.msra.mxu0 0
      %2286 = vmatpush.bf16.msra.mxu0 0
      %2287 = vmatpush.bf16.msra.mxu0 0
      %2288 = vmatpush.bf16.msra.mxu0 0
      %2289 = vmatpush.bf16.msra.mxu0 0
      %2290 = vmatpush.bf16.msra.mxu0 %v2281
      %2291 = vmatmul.bf16.gmra.mxu0 %v2278
      %v2292 = vpop.f32.mrf.mxu0
      %v2293 = vadd.f32 0.0, %v2292
      %v2294 = vpop.f32.mrf.mxu0
      %2295 = vdwg.mxu0
      %v2297 = vunpack.c.l.b16 %v2078
      %v2298 = vpack.c.b16 %v2297, %v2297
      %2299 = vrot.lane.b32.xlu0 %v2298, 40
      %v2300 = vpop.permute.xlu0 %2299
      %v2302 = vsel %vm1045, %v2246, 0
      %v2305 = vand.u32 %v2300, %v1052
      %2307 = vmatpush.bf16.msra.mxu0 0
      %2308 = vmatpush.bf16.msra.mxu0 0
      %2309 = vmatpush.bf16.msra.mxu0 0
      %2310 = vmatpush.bf16.msra.mxu0 0
      %2311 = vmatpush.bf16.msra.mxu0 0
      %2312 = vmatpush.bf16.msra.mxu0 0
      %2313 = vmatpush.bf16.msra.mxu0 0
      %2314 = vmatpush.bf16.msra.mxu0 %v2305
      %2315 = vmatmul.bf16.gmra.mxu0 %v2302
      %v2316 = vpop.f32.mrf.mxu0
      %v2317 = vadd.f32 0.0, %v2316
      %v2318 = vpop.f32.mrf.mxu0
      %2319 = vdwg.mxu0
      %v2321 = vunpack.c.l.b16 %v2079
      %v2322 = vpack.c.b16 %v2321, %v2321
      %2323 = vrot.lane.b32.xlu0 %v2322, 40
      %v2324 = vpop.permute.xlu0 %2323
      %v2326 = vsel %vm1045, %v2247, 0
      %v2329 = vand.u32 %v2324, %v1052
      %2331 = vmatpush.bf16.msra.mxu0 0
      %2332 = vmatpush.bf16.msra.mxu0 0
      %2333 = vmatpush.bf16.msra.mxu0 0
      %2334 = vmatpush.bf16.msra.mxu0 0
      %2335 = vmatpush.bf16.msra.mxu0 0
      %2336 = vmatpush.bf16.msra.mxu0 0
      %2337 = vmatpush.bf16.msra.mxu0 0
      %2338 = vmatpush.bf16.msra.mxu0 %v2329
      %2339 = vmatmul.bf16.gmra.mxu0 %v2326
      %v2340 = vpop.f32.mrf.mxu0
      %v2341 = vadd.f32 0.0, %v2340
      %v2342 = vpop.f32.mrf.mxu0
      %2343 = vdwg.mxu0
      %v2344 = vpack.c.bf16 %v2269, %v2269
      %v2345 = vpack.c.bf16 %v2293, %v2293
      %v2346 = vpack.c.bf16 %v2317, %v2317
      %v2347 = vpack.c.bf16 %v2341, %v2341
      %2352 = vrot.lane.b32.xlu0 %v2344, 24
      %v2353 = vpop.permute.xlu0 %2352
      %2354 = vrot.lane.b32.xlu0 %v2345, 24
      %v2355 = vpop.permute.xlu0 %2354
      %2356 = vrot.lane.b32.xlu0 %v2346, 24
      %v2357 = vpop.permute.xlu0 %2356
      %2358 = vrot.lane.b32.xlu0 %v2347, 24
      %v2359 = vpop.permute.xlu0 %2358
      %vm2364 = vcmask 256192
      %vm2365 = vmand %vm2364, %vm1146
      %v2366 = vld [vmem:[#allocation2] sm:$0x7]
      %v2367 = vsel %vm2365, %v2353, %v2366
      %2368 = vst [vmem:[#allocation2] sm:$0x7] %v2367
      %v2369 = vld [vmem:[#allocation2 + $0x4] sm:$0x7]
      %v2370 = vsel %vm2365, %v2355, %v2369
      %2371 = vst [vmem:[#allocation2 + $0x4] sm:$0x7] %v2370
      %v2372 = vld [vmem:[#allocation2 + $0x8] sm:$0x7]
      %v2373 = vsel %vm2365, %v2357, %v2372
      %2374 = vst [vmem:[#allocation2 + $0x8] sm:$0x7] %v2373
      %v2375 = vld [vmem:[#allocation2 + $0xc] sm:$0x7]
      %v2376 = vsel %vm2365, %v2359, %v2375
      %2377 = vst [vmem:[#allocation2 + $0xc] sm:$0x7] %v2376
      %v2378 = vld [vmem:[#allocation2] sm:$0x7]
      %v2379 = vld [vmem:[#allocation2 + $0x4] sm:$0x7]
      %v2380 = vld [vmem:[#allocation2 + $0x8] sm:$0x7]
      %v2381 = vld [vmem:[#allocation2 + $0xc] sm:$0x7]
      %v2386 = vrot.slane %v2378, 3
      %v2387 = vrot.slane %v2379, 3
      %v2388 = vrot.slane %v2380, 3
      %v2389 = vrot.slane %v2381, 3
      %vm2390 = vcmask 1040384
      %v2393 = vsel %vm2390, %v2378, %v2386
      %vm2395 = vcmask 1041409
      %v2396 = vsel %vm2395, %v2378, %v2386
      %v2398 = vrot.slane %v2396, 1
      %vm2399 = vcmask 1042434
      %v2400 = vsel %vm2399, %v2378, %v2386
      %v2402 = vrot.slane %v2400, 2
      %v2405 = vsel %vm2390, %v2379, %v2387
      %v2407 = vsel %vm2395, %v2379, %v2387
      %v2409 = vrot.slane %v2407, 1
      %v2410 = vsel %vm2399, %v2379, %v2387
      %v2412 = vrot.slane %v2410, 2
      %v2415 = vsel %vm2390, %v2380, %v2388
      %v2417 = vsel %vm2395, %v2380, %v2388
      %v2419 = vrot.slane %v2417, 1
      %v2420 = vsel %vm2399, %v2380, %v2388
      %v2422 = vrot.slane %v2420, 2
      %v2425 = vsel %vm2390, %v2381, %v2389
      %v2427 = vsel %vm2395, %v2381, %v2389
      %v2429 = vrot.slane %v2427, 1
      %v2430 = vsel %vm2399, %v2381, %v2389
      %v2432 = vrot.slane %v2430, 2
      %v2433 = vunpack.i.l.s16 %v2393
      %v2434 = vunpack.i.h.s16 %v2393
      %v2435 = vunpack.i.l.s16 %v2398
      %v2436 = vunpack.i.h.s16 %v2398
      %v2437 = vunpack.i.l.s16 %v2402
      %v2438 = vunpack.i.l.s16 %v2405
      %v2439 = vunpack.i.h.s16 %v2405
      %v2440 = vunpack.i.l.s16 %v2409
      %v2441 = vunpack.i.h.s16 %v2409
      %v2442 = vunpack.i.l.s16 %v2412
      %v2443 = vunpack.i.l.s16 %v2415
      %v2444 = vunpack.i.h.s16 %v2415
      %v2445 = vunpack.i.l.s16 %v2419
      %v2446 = vunpack.i.h.s16 %v2419
      %v2447 = vunpack.i.l.s16 %v2422
      %v2448 = vunpack.i.l.s16 %v2425
      %v2449 = vunpack.i.h.s16 %v2425
      %v2450 = vunpack.i.l.s16 %v2429
      %v2451 = vunpack.i.h.s16 %v2429
      %v2452 = vunpack.i.l.s16 %v2432
      %v2453 = vld [vmem:[%s4] sm:$0xf]
      %v2454 = vld [vmem:[%s4 + $0x4] sm:$0xf]
      %v2455 = vld [vmem:[%s4 + $0x8] sm:$0xf]
      %v2456 = vld [vmem:[%s4 + $0xc] sm:$0xf]
      %v2457 = vld [vmem:[%s5] sm:$0x1]
      %v2459 = vperm.slane %v2457, 0
      %v2461 = vpack.i.b16 %v2434, %v2433
      %v2462 = vpack.i.b16 %v2436, %v2435
      %v2463 = vpack.i.b16 %v2438, %v2437
      %v2464 = vpack.i.b16 %v2440, %v2439
      %v2465 = vpack.i.b16 %v2442, %v2441
      %v2466 = vpack.i.b16 %v2444, %v2443
      %v2467 = vpack.i.b16 %v2446, %v2445
      %v2468 = vpack.i.b16 %v2448, %v2447
      %v2469 = vpack.i.b16 %v2450, %v2449
      %v2470 = vpack.i.b16 %v2452, %v2451
      %2472 = vst [vmem:[#allocation1] ss:$9 sm:$0xff] %v2461
      %s2474 = scalar_lea.vmem [#allocation1], 1
      %2475 = vst [vmem:[%s2474] ss:$9 sm:$0xff] %v2462
      %s2477 = scalar_lea.vmem [#allocation1], 2
      %2478 = vst [vmem:[%s2477] ss:$9 sm:$0xff] %v2463
      %s2480 = scalar_lea.vmem [#allocation1], 3
      %2481 = vst [vmem:[%s2480] ss:$9 sm:$0xff] %v2464
      %s2483 = scalar_lea.vmem [#allocation1], 4
      %2484 = vst [vmem:[%s2483] ss:$9 sm:$0xff] %v2465
      %s2486 = scalar_lea.vmem [#allocation1], 5
      %2487 = vst [vmem:[%s2486] ss:$9 sm:$0xff] %v2466
      %s2489 = scalar_lea.vmem [#allocation1], 6
      %2490 = vst [vmem:[%s2489] ss:$9 sm:$0xff] %v2467
      %s2492 = scalar_lea.vmem [#allocation1], 7
      %2493 = vst [vmem:[%s2492] ss:$9 sm:$0xff] %v2468
      %v2494 = vld [vmem:[#allocation1] sm:$0xff]
      %2496 = vst [vmem:[#allocation1] ss:$9 sm:$0xff] %v2469
      %2498 = vst [vmem:[%s2474] ss:$9 sm:$0xff] %v2470
      %v2499 = vld [vmem:[#allocation1] sm:$0xff]
      %v2504 = vunpack.c.l.b16 %v2453
      %v2505 = vunpack.c.l.b16 %v2454
      %v2506 = vunpack.c.l.b16 %v2455
      %v2507 = vunpack.c.l.b16 %v2456
      %v2508 = vpack.c.b16 %v2505, %v2504
      %v2509 = vpack.c.b16 %v2507, %v2506
      %v2512 = vsel %vm326, %v2494, 0
      %v2514 = vsel %vm326, %v2499, 0
      %2516 = vmatpush.bf16.msra.mxu0 0
      %2517 = vmatpush.bf16.msra.mxu0 0
      %2518 = vmatpush.bf16.msra.mxu0 0
      %2519 = vmatpush.bf16.msra.mxu0 0
      %2520 = vmatpush.bf16.msra.mxu0 0
      %2521 = vmatpush.bf16.msra.mxu0 0
      %2522 = vmatpush.bf16.msra.mxu0 %v2509
      %2523 = vmatpush.bf16.msra.mxu0 %v2508
      %2524 = vmatmul.bf16.gmra.mxu0 %v2512
      %v2525 = vpop.f32.mrf.mxu0
      %v2526 = vadd.f32 %v2459, %v2525
      %v2527 = vpop.f32.mrf.mxu0
      %v2528 = vadd.f32 %v2459, %v2527
      %2529 = vmatmul.bf16.gmra.mxu0 %v2514
      %v2530 = vpop.f32.mrf.mxu0
      %v2531 = vadd.f32 %v2459, %v2530
      %v2532 = vpop.f32.mrf.mxu0
      %2533 = vdwg.mxu0
      %2534 = vst [vmem:[#allocation1] ss:$9 sm:$0xff] %v253
      %s2535 = scalar_lea.vmem [#allocation1], 1
      %2536 = vst [vmem:[%s2535] ss:$9 sm:$0xff] %v261
      %s2537 = scalar_lea.vmem [#allocation1], 2
      %2538 = vst [vmem:[%s2537] ss:$9 sm:$0xff] %v262
      %s2539 = scalar_lea.vmem [#allocation1], 3
      %2540 = vst [vmem:[%s2539] ss:$9 sm:$0xff] %v263
      %s2541 = scalar_lea.vmem [#allocation1], 4
      %2542 = vst [vmem:[%s2541] ss:$9 sm:$0xff] %v264
      %s2543 = scalar_lea.vmem [#allocation1], 5
      %2544 = vst [vmem:[%s2543] ss:$9 sm:$0xff] %v254
      %s2545 = scalar_lea.vmem [#allocation1], 6
      %2546 = vst [vmem:[%s2545] ss:$9 sm:$0xff] %v265
      %s2547 = scalar_lea.vmem [#allocation1], 7
      %2548 = vst [vmem:[%s2547] ss:$9 sm:$0xff] %v266
      %v2549 = vld [vmem:[#allocation1] sm:$0xff]
      %2550 = vst [vmem:[#allocation1] ss:$9 sm:$0xff] %v267
      %2551 = vst [vmem:[%s2535] ss:$9 sm:$0xff] %v268
      %2552 = vst [vmem:[%s2537] ss:$9 sm:$0xff] %v255
      %2553 = vst [vmem:[%s2539] ss:$9 sm:$0xff] %v269
      %2554 = vst [vmem:[%s2541] ss:$9 sm:$0xff] %v270
      %2555 = vst [vmem:[%s2543] ss:$9 sm:$0xff] %v271
      %2556 = vst [vmem:[%s2545] ss:$9 sm:$0xff] %v272
      %2557 = vst [vmem:[%s2547] ss:$9 sm:$0xff] %v256
      %v2558 = vld [vmem:[#allocation1] sm:$0xff]
      %2559 = vst [vmem:[#allocation1] ss:$9 sm:$0xff] %v273
      %2560 = vst [vmem:[%s2535] ss:$9 sm:$0xff] %v274
      %2561 = vst [vmem:[%s2537] ss:$9 sm:$0xff] %v275
      %2562 = vst [vmem:[%s2539] ss:$9 sm:$0xff] %v276
      %v2563 = vld [vmem:[#allocation1] sm:$0xff]
      %v2567 = vadd.f32 %v2526, %v2549
      %v2568 = vadd.f32 %v2528, %v2558
      %v2569 = vadd.f32 %v2531, %v2563
      %v2573 = vrot.slane %v2567, 1
      %v2574 = vrot.slane %v2567, 2
      %v2575 = vrot.slane %v2567, 3
      %v2576 = vrot.slane %v2567, 4
      %v2577 = vrot.slane %v2567, 5
      %v2578 = vrot.slane %v2567, 6
      %v2579 = vrot.slane %v2567, 7
      %v2580 = vrot.slane %v2568, 1
      %v2581 = vrot.slane %v2568, 2
      %v2582 = vrot.slane %v2568, 3
      %v2583 = vrot.slane %v2568, 4
      %v2584 = vrot.slane %v2568, 5
      %v2585 = vrot.slane %v2568, 6
      %v2586 = vrot.slane %v2568, 7
      %v2587 = vrot.slane %v2569, 1
      %v2588 = vrot.slane %v2569, 2
      %v2589 = vrot.slane %v2569, 3
      %2590 = vst [vmem:[#allocation1] ss:$9 sm:$0xff] %v2567
      %s2591 = scalar_lea.vmem [#allocation1], 1
      %2592 = vst [vmem:[%s2591] ss:$9 sm:$0xff] %v2573
      %s2593 = scalar_lea.vmem [#allocation1], 2
      %2594 = vst [vmem:[%s2593] ss:$9 sm:$0xff] %v2574
      %s2595 = scalar_lea.vmem [#allocation1], 3
      %2596 = vst [vmem:[%s2595] ss:$9 sm:$0xff] %v2575
      %s2597 = scalar_lea.vmem [#allocation1], 4
      %2598 = vst [vmem:[%s2597] ss:$9 sm:$0xff] %v2576
      %v2599 = vld [vmem:[#allocation1] sm:$0xff]
      %2600 = vst [vmem:[#allocation1] ss:$9 sm:$0xff] %v2577
      %2601 = vst [vmem:[%s2591] ss:$9 sm:$0xff] %v2578
      %2602 = vst [vmem:[%s2593] ss:$9 sm:$0xff] %v2579
      %2603 = vst [vmem:[%s2595] ss:$9 sm:$0xff] %v2568
      %2604 = vst [vmem:[%s2597] ss:$9 sm:$0xff] %v2580
      %v2605 = vld [vmem:[#allocation1] sm:$0xff]
      %2606 = vst [vmem:[#allocation1] ss:$9 sm:$0xff] %v2581
      %2607 = vst [vmem:[%s2591] ss:$9 sm:$0xff] %v2582
      %2608 = vst [vmem:[%s2593] ss:$9 sm:$0xff] %v2583
      %2609 = vst [vmem:[%s2595] ss:$9 sm:$0xff] %v2584
      %2610 = vst [vmem:[%s2597] ss:$9 sm:$0xff] %v2585
      %v2611 = vld [vmem:[#allocation1] sm:$0xff]
      %2612 = vst [vmem:[#allocation1] ss:$9 sm:$0xff] %v2586
      %2613 = vst [vmem:[%s2591] ss:$9 sm:$0xff] %v2569
      %2614 = vst [vmem:[%s2593] ss:$9 sm:$0xff] %v2587
      %2615 = vst [vmem:[%s2595] ss:$9 sm:$0xff] %v2588
      %2616 = vst [vmem:[%s2597] ss:$9 sm:$0xff] %v2589
      %v2617 = vld [vmem:[#allocation1] sm:$0xff]
      %vm2622 = vcmask 258048
      %2623 = vst.msk [vmem:[%s251] sm:$0x1f] %vm2622, %v2599
      %2624 = vst.msk [vmem:[%s251 + $0x8] sm:$0x1f] %vm2622, %v2605
      %2625 = vst.msk [vmem:[%s251 + $0x10] sm:$0x1f] %vm2622, %v2611
      %2626 = vst.msk [vmem:[%s251 + $0x18] sm:$0x1f] %vm2622, %v2617
      %p2627 = scmp.lt.s32.totalorder %s17, 1
      %s2628 = scalar_select %p2627, %s17, 1
      %s2629 = smul.addr %s2628, 4
      %s2630 = smul.addr %s2629, 8
      %s2631 = scalar_lea.vmem %s6, %s2630
      // Predicated region
      $region45: #{video_vit_forward.6} parent=43 // pred_check
        %p2632 = pneg %p166
      $region46: #{video_vit_forward.6} parent=43 // pred_check_branch
        %2634 = sbr.rel (%p2632) target = $region48
      $region47: #{video_vit_forward.6} parent=43 // pred_region
        _
      $region48: #{video_vit_forward.6} parent=43 // pred_fallthru
        _
    $region44: #{video_vit_forward.6} parent=5 // pred_fallthru
      _
    %p2635 = scmp.le.s32.totalorder 2, %s12
    // Predicated region
    $region49: #{video_vit_forward.6} parent=5 // pred_check
      %p2636 = pneg %p2635
    $region50: #{video_vit_forward.6} parent=5 // pred_check_branch
      %2638 = sbr.rel (%p2636) target = $region52
    $region51: #{video_vit_forward.6} parent=5 // pred_region
      %s2639 = ssub.s32 %s12, 2
      // Predicated region
      $region53: #{video_vit_forward.6} parent=51 // pred_check
        %p2640 = pneg %p172
      $region54: #{video_vit_forward.6} parent=51 // pred_check_branch
        %2642 = sbr.rel (%p2640) target = $region56
      $region55: #{video_vit_forward.6} parent=51 // pred_region
        %p2643 = scmp.lt.s32.totalorder %s18, 1
        %s2644 = scalar_select %p2643, %s18, 1
        %s2645 = smul.addr %s2644, 4
        %s2646 = smul.addr %s2645, 8
        %s2647 = scalar_lea.vmem %s6, %s2646
      $region56: #{video_vit_forward.6} parent=51 // pred_fallthru
        _
    $region52: #{video_vit_forward.6} parent=5 // pred_fallthru
      _
  $region6: #{video_vit_forward.6} parent=0 // loop_footer
    %s16 = sadd.s32 1, %s12
  $region7: #{video_vit_forward.6} parent=0 // loop_footer_branch
    %11 = sbr.rel target = $region3
  $region8: #{video_vit_forward.6} parent=0 // loop_exit
    _

</llo_original>
